<compile_context>
chip_gen: v7x
topology: tpu7x:2x2x1
jax: 0.10.0
libtpu: 0.0.40
codegen_flags: <defaults>
</compile_context>

<pallas_src>
import functools

import jax
import jax.numpy as jnp
from jax.experimental import pallas as pl
from jax.experimental.pallas import tpu as pltpu


# ----------------------------- Pallas kernel --------------------------------

def _multiscale_kernel(pix_ref, add_ref, mask_ref, pool_ref, pew_ref,
                       e_n1g, e_n1b, e_qkvw, e_qkvb, e_pw, e_pb,
                       e_n2g, e_n2b, e_f1w, e_f1b, e_f2w, e_f2b,
                       encg_ref, encb_ref, fpos_ref,
                       f_n1g, f_n1b, f_qkvw, f_qkvb, f_pw, f_pb,
                       f_n2g, f_n2b, f_f1w, f_f1b, f_f2w, f_f2b,
                       fusg_ref, fusb_ref, hw_ref, hb_ref,
                       o_ref, *, n_p, enc_layers, enc_heads,
                       fus_layers, fus_heads, ln_eps):
    f32, bf16 = jnp.float32, jnp.bfloat16

    def mm(a, w):
        # bf16 x bf16 -> f32 accumulate on the MXU.
        return jnp.dot(a.astype(bf16), w.astype(bf16),
                       preferred_element_type=f32)

    def ln(v, g, b):
        mu = jnp.mean(v, axis=-1, keepdims=True)
        c = v - mu
        var = jnp.mean(c * c, axis=-1, keepdims=True)
        return c * jax.lax.rsqrt(var + ln_eps) * g + b

    def run_stack(x, refs, num_layers, num_heads, mask):
        (n1g, n1b, qkvw, qkvb, projw, projb,
         n2g, n2b, f1w, f1b, f2w, f2b) = refs
        m, d = x.shape
        dh = d // num_heads
        scale = dh ** -0.5
        for l in range(num_layers):            # unrolled; w[l] is a free leading index
            h = ln(x, n1g[l], n1b[l])
            qkv = mm(h, qkvw[l]) + qkvb[l]     # (m, 3d)
            heads = []
            for hd in range(num_heads):
                q = qkv[:, hd * dh:(hd + 1) * dh]
                k = qkv[:, d + hd * dh:d + (hd + 1) * dh]
                v = qkv[:, 2 * d + hd * dh:2 * d + (hd + 1) * dh]
                s = jax.lax.dot_general(
                    q.astype(bf16), k.astype(bf16),
                    (((1,), (1,)), ((), ())),
                    preferred_element_type=f32) * scale
                if mask is not None:
                    s = s - (1.0 - mask) * 1e9
                s = s - jnp.max(s, axis=-1, keepdims=True)
                p = jnp.exp(s)
                if mask is not None:
                    p = p * mask               # exact block-diagonal softmax
                p = p / jnp.sum(p, axis=-1, keepdims=True)
                heads.append(jnp.dot(p.astype(bf16), v.astype(bf16),
                                     preferred_element_type=f32))
            attn = jnp.concatenate(heads, axis=-1)      # (m, d) lane slab
            x = x + mm(attn, projw[l]) + projb[l]       # single K=d projection
            h = ln(x, n2g[l], n2b[l])
            h = mm(h, f1w[l]) + f1b[l]
            # TODO(synk): torch nn.GELU default is exact erf-GELU; tanh approx used.
            h = jax.nn.gelu(h, approximate=True)
            x = x + mm(h, f2w[l]) + f2b[l]
        return x

    # --- patch embed (Conv2d k=stride=p == matmul); CLS rows come from add_ref ---
    x = mm(pix_ref[...], pew_ref[...]) + add_ref[...]            # (M, D)

    # --- image encoder: all layers; block-diag mask isolates the n_p sequences ---
    mask = mask_ref[...]
    x = run_stack(x, (e_n1g, e_n1b, e_qkvw, e_qkvb, e_pw, e_pb,
                      e_n2g, e_n2b, e_f1w, e_f1b, e_f2w, e_f2b),
                  enc_layers, enc_heads, mask)
    y = ln(x, encg_ref[...], encb_ref[...])
    # per-sequence token mean (incl. CLS) via one pooling matmul -> (n_p, D)
    feat = jnp.dot(pool_ref[...], y, preferred_element_type=f32)

    # --- fusion block: pos embed + layers + norm + mean + head ---
    xf = feat + fpos_ref[...]
    xf = run_stack(xf, (f_n1g, f_n1b, f_qkvw, f_qkvb, f_pw, f_pb,
                        f_n2g, f_n2b, f_f1w, f_f1b, f_f2w, f_f2b),
                   fus_layers, fus_heads, None)
    yf = ln(xf, fusg_ref[...], fusb_ref[...])
    pooled = jnp.sum(yf, axis=0, keepdims=True) * (1.0 / n_p)    # (1, D)
    logits = mm(pooled, hw_ref[...]) + hb_ref[...]               # (1, classes)
    o_ref[...] = logits.astype(o_ref.dtype)


def _multiscale_call(params, pix, add_slab, blk_mask, pool_mat, cfg, n_p):
    B, M, K = pix.shape
    Ccls = cfg["num_classes"]
    enc, fus = params["enc"], params["fus"]

    stack_names = ("n1g", "n1b", "qkvw", "qkvb", "projw", "projb",
                   "n2g", "n2b", "fc1w", "fc1b", "fc2w", "fc2b")
    inputs = ([pix, add_slab, blk_mask, pool_mat, params["pe_w"]]
              + [enc[n] for n in stack_names]
              + [params["enc_norm_g"], params["enc_norm_b"],
                 params["fusion_pos_embed"]]
              + [fus[n] for n in stack_names]
              + [params["fusion_norm_g"], params["fusion_norm_b"],
                 params["head_w"], params["head_b"]])

    def _cmap(nd):
        return lambda b: (0,) * nd

    in_specs = [pl.BlockSpec((None, M, K), lambda b: (b, 0, 0))]
    in_specs += [pl.BlockSpec(a.shape, _cmap(a.ndim)) for a in inputs[1:]]

    kern = functools.partial(
        _multiscale_kernel,
        n_p=n_p,
        enc_layers=cfg["depth"], enc_heads=cfg["num_heads"],
        fus_layers=cfg["fusion_layer_num"], fus_heads=cfg["fusion_num_heads"],
        ln_eps=1e-6)

    out = pl.pallas_call(
        kern,
        out_shape=jax.ShapeDtypeStruct((B, 1, Ccls), jnp.float32),
        grid=(B,),
        in_specs=in_specs,
        out_specs=pl.BlockSpec((None, 1, Ccls), lambda b: (b, 0, 0)),
        compiler_params=pltpu.CompilerParams(
            dimension_semantics=("parallel",)),
    )(*inputs)
    return out.reshape(B, Ccls)


# ----------------------------- model glue -----------------------------------

def split_to_patches(x, n_h, n_w, p):
    # 'B C (n_h p_h) (n_w p_w) -> B (n_h n_w) C p_h p_w'
    B, C, H, W = x.shape
    x = x.reshape(B, C, n_h, p, n_w, p)
    x = x.transpose(0, 2, 4, 1, 3, 5)
    return x.reshape(B, n_h * n_w, C, p, p)


def multiscale_forward(params, x, cfg):
    B, C, H, W = x.shape
    fm = cfg["fm_input_size"]
    p = cfg["patch_size"]

    # --- InterpolateSplitBlock (pure data movement; stays wrapper-side in XLA) ---
    all_patches = []
    for (n_h, n_w) in cfg["num_patches"]:
        th, tw = n_h * fm, n_w * fm
        if (H, W) != (th, tw):
            # TODO(synk): torch bicubic uses Keys a=-0.75; jax bicubic uses a=-0.5.
            sx = jax.image.resize(x, (B, C, th, tw), method="bicubic")
        else:
            sx = x
        all_patches.append(split_to_patches(sx, n_h, n_w, fm))
    xp = jnp.concatenate(all_patches, axis=1)            # (B, n_p, C, fm, fm)
    n_p = xp.shape[1]

    # --- patch-pixel extraction (== Conv2d k=stride=p) -> (B, n_p, S_p, C*p*p) ---
    gh = fm // p
    S_p = gh * gh
    K = C * p * p
    pix = (xp.reshape(B, n_p, C, gh, p, gh, p)
             .transpose(0, 1, 3, 5, 2, 4, 6)
             .reshape(B, n_p, S_p, K))
    # Prepend one zero pixel row per sequence: it becomes the CLS slot, so the
    # kernel needs no in-kernel concat (CLS content is injected via add_slab).
    pix = jnp.concatenate([jnp.zeros((B, n_p, 1, K), pix.dtype), pix], axis=2)
    S = S_p + 1
    M = n_p * S
    pix = pix.reshape(B, M, K)

    # Additive slab: CLS rows get cls+pos[0]; patch rows get pos[s]+patch-embed bias.
    base = jnp.concatenate(
        [params["cls_token"] + params["pos_embed"][0:1],
         params["pos_embed"][1:] + params["pe_b"]], axis=0)        # (S, D)
    add_slab = jnp.tile(base, (n_p, 1))                             # (M, D)

    # Block-diagonal attention mask + per-sequence mean-pooling matrix (constants).
    eid = jnp.arange(M) // S
    blk_mask = (eid[:, None] == eid[None, :]).astype(jnp.float32)   # (M, M)
    pool_mat = ((jnp.arange(n_p)[:, None] == eid[None, :])
                .astype(jnp.float32) / S)                           # (n_p, M)

    return _multiscale_call(params, pix, add_slab, blk_mask, pool_mat, cfg, n_p)


# ----------------------------- deterministic parameter init -----------------

def trunc_normal(key, shape, std=0.02, dtype=jnp.float32):
    return (std * jax.random.truncated_normal(key, -2.0, 2.0, shape)).astype(dtype)


def init_block_params(key, dim, hidden):
    k = jax.random.split(key, 4)
    f32, bf16 = jnp.float32, jnp.bfloat16
    return dict(
        n1g=jnp.ones((1, dim), f32), n1b=jnp.zeros((1, dim), f32),
        qkvw=trunc_normal(k[0], (dim, 3 * dim), dtype=bf16),
        qkvb=jnp.zeros((1, 3 * dim), f32),
        projw=trunc_normal(k[1], (dim, dim), dtype=bf16),
        projb=jnp.zeros((1, dim), f32),
        n2g=jnp.ones((1, dim), f32), n2b=jnp.zeros((1, dim), f32),
        fc1w=trunc_normal(k[2], (dim, hidden), dtype=bf16),
        fc1b=jnp.zeros((1, hidden), f32),
        fc2w=trunc_normal(k[3], (hidden, dim), dtype=bf16),
        fc2b=jnp.zeros((1, dim), f32),
    )


def stack_blocks(key, dim, hidden, n_layers):
    keys = jax.random.split(key, n_layers)
    blocks = [init_block_params(k, dim, hidden) for k in keys]
    return {name: jnp.stack([blk[name] for blk in blocks], axis=0)
            for name in blocks[0]}


def init_params(key, cfg):
    D, p, C = cfg["embed_dim"], cfg["patch_size"], cfg["in_chans"]
    total_patches = sum(nh * nw for nh, nw in cfg["num_patches"])
    S = (cfg["fm_input_size"] // p) ** 2 + 1
    keys = jax.random.split(key, 7)
    f32, bf16 = jnp.float32, jnp.bfloat16
    return dict(
        pe_w=trunc_normal(keys[0], (C * p * p, D), dtype=bf16),
        pe_b=jnp.zeros((1, D), f32),
        cls_token=trunc_normal(keys[1], (1, D)),
        pos_embed=trunc_normal(keys[2], (S, D)),
        enc=stack_blocks(keys[3], D, int(D * cfg["mlp_ratio"]), cfg["depth"]),
        enc_norm_g=jnp.ones((1, D), f32), enc_norm_b=jnp.zeros((1, D), f32),
        fusion_pos_embed=trunc_normal(keys[4], (total_patches, D)),
        fus=stack_blocks(keys[5], D, int(D * cfg["fusion_mlp_ratio"]),
                         cfg["fusion_layer_num"]),
        fusion_norm_g=jnp.ones((1, D), f32), fusion_norm_b=jnp.zeros((1, D), f32),
        head_w=trunc_normal(keys[6], (D, cfg["num_classes"]), dtype=bf16),
        head_b=jnp.zeros((1, cfg["num_classes"]), f32),
    )


# ----------------------------- main ------------------------------------------

if __name__ == "__main__":
    cfg = dict(
        input_size=(64, 64),
        num_patches=((2, 2), (1, 1)),      # total_patches (n_p) = 5
        fm_input_size=32,
        patch_size=16,
        embed_dim=64,
        depth=2,
        num_heads=4,
        mlp_ratio=2,
        fusion_layer_num=2,
        fusion_num_heads=4,
        fusion_mlp_ratio=1,
        num_classes=5,
        in_chans=3,
    )

    root = jax.random.PRNGKey(0)
    pkey, xkey = jax.random.split(root)
    params = init_params(pkey, cfg)
    x = jax.random.normal(xkey, (2, cfg["in_chans"], *cfg["input_size"]),
                          jnp.float32)

    fwd = jax.jit(functools.partial(multiscale_forward, cfg=cfg))
    out = fwd(params, x)
    jax.block_until_ready(out)
    assert out.shape == (2, cfg["num_classes"]), out.shape
    print("KERNEL_OK")
</pallas_src>

<mosaic_0001>
module attributes {stable_mosaic.version = 11 : i64} {
  func.func @_multiscale_kernel(%arg0: i32, %arg1: memref<1x25x768xf32, #tpu.memory_space<vmem>>, %arg2: memref<25x64xf32, #tpu.memory_space<vmem>>, %arg3: memref<25x25xf32, #tpu.memory_space<vmem>>, %arg4: memref<5x25xf32, #tpu.memory_space<vmem>>, %arg5: memref<768x64xbf16, #tpu.memory_space<vmem>>, %arg6: memref<2x1x64xf32, #tpu.memory_space<vmem>>, %arg7: memref<2x1x64xf32, #tpu.memory_space<vmem>>, %arg8: memref<2x64x192xbf16, #tpu.memory_space<vmem>>, %arg9: memref<2x1x192xf32, #tpu.memory_space<vmem>>, %arg10: memref<2x64x64xbf16, #tpu.memory_space<vmem>>, %arg11: memref<2x1x64xf32, #tpu.memory_space<vmem>>, %arg12: memref<2x1x64xf32, #tpu.memory_space<vmem>>, %arg13: memref<2x1x64xf32, #tpu.memory_space<vmem>>, %arg14: memref<2x64x128xbf16, #tpu.memory_space<vmem>>, %arg15: memref<2x1x128xf32, #tpu.memory_space<vmem>>, %arg16: memref<2x128x64xbf16, #tpu.memory_space<vmem>>, %arg17: memref<2x1x64xf32, #tpu.memory_space<vmem>>, %arg18: memref<1x64xf32, #tpu.memory_space<vmem>>, %arg19: memref<1x64xf32, #tpu.memory_space<vmem>>, %arg20: memref<5x64xf32, #tpu.memory_space<vmem>>, %arg21: memref<2x1x64xf32, #tpu.memory_space<vmem>>, %arg22: memref<2x1x64xf32, #tpu.memory_space<vmem>>, %arg23: memref<2x64x192xbf16, #tpu.memory_space<vmem>>, %arg24: memref<2x1x192xf32, #tpu.memory_space<vmem>>, %arg25: memref<2x64x64xbf16, #tpu.memory_space<vmem>>, %arg26: memref<2x1x64xf32, #tpu.memory_space<vmem>>, %arg27: memref<2x1x64xf32, #tpu.memory_space<vmem>>, %arg28: memref<2x1x64xf32, #tpu.memory_space<vmem>>, %arg29: memref<2x64x64xbf16, #tpu.memory_space<vmem>>, %arg30: memref<2x1x64xf32, #tpu.memory_space<vmem>>, %arg31: memref<2x64x64xbf16, #tpu.memory_space<vmem>>, %arg32: memref<2x1x64xf32, #tpu.memory_space<vmem>>, %arg33: memref<1x64xf32, #tpu.memory_space<vmem>>, %arg34: memref<1x64xf32, #tpu.memory_space<vmem>>, %arg35: memref<64x5xbf16, #tpu.memory_space<vmem>>, %arg36: memref<1x5xf32, #tpu.memory_space<vmem>>, %arg37: memref<1x1x5xf32, #tpu.memory_space<vmem>>) attributes {dimension_semantics = [#tpu.dimension_semantics<parallel>], iteration_bounds = array<i64: 2>, scalar_prefetch = 0 : i64, scratch_operands = 0 : i64, tpu.core_type = #tpu.core_type<tc>, window_params = [{transform_indices = @transform_0, window_bounds = array<i64: 1, 25, 768>}, {pipeline_mode = #tpu.pipeline_mode<synchronous>, transform_indices = @transform_1, window_bounds = array<i64: 25, 64>}, {pipeline_mode = #tpu.pipeline_mode<synchronous>, transform_indices = @transform_2, window_bounds = array<i64: 25, 25>}, {pipeline_mode = #tpu.pipeline_mode<synchronous>, transform_indices = @transform_3, window_bounds = array<i64: 5, 25>}, {pipeline_mode = #tpu.pipeline_mode<synchronous>, transform_indices = @transform_4, window_bounds = array<i64: 768, 64>}, {pipeline_mode = #tpu.pipeline_mode<synchronous>, transform_indices = @transform_5, window_bounds = array<i64: 2, 1, 64>}, {pipeline_mode = #tpu.pipeline_mode<synchronous>, transform_indices = @transform_6, window_bounds = array<i64: 2, 1, 64>}, {pipeline_mode = #tpu.pipeline_mode<synchronous>, transform_indices = @transform_7, window_bounds = array<i64: 2, 64, 192>}, {pipeline_mode = #tpu.pipeline_mode<synchronous>, transform_indices = @transform_8, window_bounds = array<i64: 2, 1, 192>}, {pipeline_mode = #tpu.pipeline_mode<synchronous>, transform_indices = @transform_9, window_bounds = array<i64: 2, 64, 64>}, {pipeline_mode = #tpu.pipeline_mode<synchronous>, transform_indices = @transform_10, window_bounds = array<i64: 2, 1, 64>}, {pipeline_mode = #tpu.pipeline_mode<synchronous>, transform_indices = @transform_11, window_bounds = array<i64: 2, 1, 64>}, {pipeline_mode = #tpu.pipeline_mode<synchronous>, transform_indices = @transform_12, window_bounds = array<i64: 2, 1, 64>}, {pipeline_mode = #tpu.pipeline_mode<synchronous>, transform_indices = @transform_13, window_bounds = array<i64: 2, 64, 128>}, {pipeline_mode = #tpu.pipeline_mode<synchronous>, transform_indices = @transform_14, window_bounds = array<i64: 2, 1, 128>}, {pipeline_mode = #tpu.pipeline_mode<synchronous>, transform_indices = @transform_15, window_bounds = array<i64: 2, 128, 64>}, {pipeline_mode = #tpu.pipeline_mode<synchronous>, transform_indices = @transform_16, window_bounds = array<i64: 2, 1, 64>}, {pipeline_mode = #tpu.pipeline_mode<synchronous>, transform_indices = @transform_17, window_bounds = array<i64: 1, 64>}, {pipeline_mode = #tpu.pipeline_mode<synchronous>, transform_indices = @transform_18, window_bounds = array<i64: 1, 64>}, {pipeline_mode = #tpu.pipeline_mode<synchronous>, transform_indices = @transform_19, window_bounds = array<i64: 5, 64>}, {pipeline_mode = #tpu.pipeline_mode<synchronous>, transform_indices = @transform_20, window_bounds = array<i64: 2, 1, 64>}, {pipeline_mode = #tpu.pipeline_mode<synchronous>, transform_indices = @transform_21, window_bounds = array<i64: 2, 1, 64>}, {pipeline_mode = #tpu.pipeline_mode<synchronous>, transform_indices = @transform_22, window_bounds = array<i64: 2, 64, 192>}, {pipeline_mode = #tpu.pipeline_mode<synchronous>, transform_indices = @transform_23, window_bounds = array<i64: 2, 1, 192>}, {pipeline_mode = #tpu.pipeline_mode<synchronous>, transform_indices = @transform_24, window_bounds = array<i64: 2, 64, 64>}, {pipeline_mode = #tpu.pipeline_mode<synchronous>, transform_indices = @transform_25, window_bounds = array<i64: 2, 1, 64>}, {pipeline_mode = #tpu.pipeline_mode<synchronous>, transform_indices = @transform_26, window_bounds = array<i64: 2, 1, 64>}, {pipeline_mode = #tpu.pipeline_mode<synchronous>, transform_indices = @transform_27, window_bounds = array<i64: 2, 1, 64>}, {pipeline_mode = #tpu.pipeline_mode<synchronous>, transform_indices = @transform_28, window_bounds = array<i64: 2, 64, 64>}, {pipeline_mode = #tpu.pipeline_mode<synchronous>, transform_indices = @transform_29, window_bounds = array<i64: 2, 1, 64>}, {pipeline_mode = #tpu.pipeline_mode<synchronous>, transform_indices = @transform_30, window_bounds = array<i64: 2, 64, 64>}, {pipeline_mode = #tpu.pipeline_mode<synchronous>, transform_indices = @transform_31, window_bounds = array<i64: 2, 1, 64>}, {pipeline_mode = #tpu.pipeline_mode<synchronous>, transform_indices = @transform_32, window_bounds = array<i64: 1, 64>}, {pipeline_mode = #tpu.pipeline_mode<synchronous>, transform_indices = @transform_33, window_bounds = array<i64: 1, 64>}, {pipeline_mode = #tpu.pipeline_mode<synchronous>, transform_indices = @transform_34, window_bounds = array<i64: 64, 5>}, {pipeline_mode = #tpu.pipeline_mode<synchronous>, transform_indices = @transform_35, window_bounds = array<i64: 1, 5>}, {transform_indices = @transform_36, window_bounds = array<i64: 1, 1, 5>}]} {
    %c0 = arith.constant 0 : index
    %c0_0 = arith.constant 0 : index
    %c0_1 = arith.constant 0 : index
    %0 = vector.load %arg1[%c0, %c0_0, %c0_1] : memref<1x25x768xf32, #tpu.memory_space<vmem>>, vector<1x25x768xf32>
    %1 = vector.shape_cast %0 : vector<1x25x768xf32> to vector<25x768xf32>
    %c0_2 = arith.constant 0 : index
    %c0_3 = arith.constant 0 : index
    %2 = vector.load %arg5[%c0_2, %c0_3] : memref<768x64xbf16, #tpu.memory_space<vmem>>, vector<768x64xbf16>
    %3 = arith.truncf %1 : vector<25x768xf32> to vector<25x768xbf16>
    %cst = arith.constant dense<0.000000e+00> : vector<25x64xf32>
    %4 = tpu.matmul %3, %2, %cst {dimension_numbers = #tpu.dot_dimension_numbers<[1], [0], [0], [1], [0, 0, 1, 1], [], []>} : vector<25x768xbf16>, vector<768x64xbf16>, vector<25x64xf32> -> vector<25x64xf32>
    %c0_4 = arith.constant 0 : index
    %c0_5 = arith.constant 0 : index
    %5 = vector.load %arg2[%c0_4, %c0_5] : memref<25x64xf32, #tpu.memory_space<vmem>>, vector<25x64xf32>
    %6 = arith.addf %4, %5 : vector<25x64xf32>
    %c0_6 = arith.constant 0 : index
    %c0_7 = arith.constant 0 : index
    %7 = vector.load %arg3[%c0_6, %c0_7] : memref<25x25xf32, #tpu.memory_space<vmem>>, vector<25x25xf32>
    %c0_8 = arith.constant 0 : index
    %c0_9 = arith.constant 0 : index
    %c0_10 = arith.constant 0 : index
    %8 = vector.load %arg6[%c0_8, %c0_9, %c0_10] : memref<2x1x64xf32, #tpu.memory_space<vmem>>, vector<1x1x64xf32>
    %9 = vector.shape_cast %8 : vector<1x1x64xf32> to vector<1x64xf32>
    %c0_11 = arith.constant 0 : index
    %c0_12 = arith.constant 0 : index
    %c0_13 = arith.constant 0 : index
    %10 = vector.load %arg7[%c0_11, %c0_12, %c0_13] : memref<2x1x64xf32, #tpu.memory_space<vmem>>, vector<1x1x64xf32>
    %11 = vector.shape_cast %10 : vector<1x1x64xf32> to vector<1x64xf32>
    %cst_14 = arith.constant dense<0.000000e+00> : vector<25xf32>
    %12 = vector.multi_reduction <add>, %6, %cst_14 [1] : vector<25x64xf32> to vector<25xf32>
    %13 = vector.shape_cast %12 : vector<25xf32> to vector<25x1xf32>
    %cst_15 = arith.constant 6.400000e+01 : f32
    %14 = vector.broadcast %cst_15 : f32 to vector<25x1xf32>
    %15 = arith.divf %13, %14 : vector<25x1xf32>
    %16 = vector.broadcast %15 : vector<25x1xf32> to vector<25x64xf32>
    %17 = arith.subf %6, %16 : vector<25x64xf32>
    %18 = arith.mulf %17, %17 : vector<25x64xf32>
    %cst_16 = arith.constant dense<0.000000e+00> : vector<25xf32>
    %19 = vector.multi_reduction <add>, %18, %cst_16 [1] : vector<25x64xf32> to vector<25xf32>
    %20 = vector.shape_cast %19 : vector<25xf32> to vector<25x1xf32>
    %cst_17 = arith.constant 6.400000e+01 : f32
    %21 = vector.broadcast %cst_17 : f32 to vector<25x1xf32>
    %22 = arith.divf %20, %21 : vector<25x1xf32>
    %cst_18 = arith.constant 9.99999997E-7 : f32
    %23 = vector.broadcast %cst_18 : f32 to vector<25x1xf32>
    %24 = arith.addf %22, %23 : vector<25x1xf32>
    %25 = math.rsqrt %24 : vector<25x1xf32>
    %26 = vector.broadcast %25 : vector<25x1xf32> to vector<25x64xf32>
    %27 = arith.mulf %17, %26 : vector<25x64xf32>
    %28 = vector.broadcast %9 : vector<1x64xf32> to vector<25x64xf32>
    %29 = arith.mulf %27, %28 : vector<25x64xf32>
    %30 = vector.broadcast %11 : vector<1x64xf32> to vector<25x64xf32>
    %31 = arith.addf %29, %30 : vector<25x64xf32>
    %c0_19 = arith.constant 0 : index
    %c0_20 = arith.constant 0 : index
    %c0_21 = arith.constant 0 : index
    %32 = vector.load %arg8[%c0_19, %c0_20, %c0_21] : memref<2x64x192xbf16, #tpu.memory_space<vmem>>, vector<1x64x192xbf16>
    %33 = vector.shape_cast %32 : vector<1x64x192xbf16> to vector<64x192xbf16>
    %34 = arith.truncf %31 : vector<25x64xf32> to vector<25x64xbf16>
    %cst_22 = arith.constant dense<0.000000e+00> : vector<25x192xf32>
    %35 = tpu.matmul %34, %33, %cst_22 {dimension_numbers = #tpu.dot_dimension_numbers<[1], [0], [0], [1], [0, 0, 1, 1], [], []>} : vector<25x64xbf16>, vector<64x192xbf16>, vector<25x192xf32> -> vector<25x192xf32>
    %c0_23 = arith.constant 0 : index
    %c0_24 = arith.constant 0 : index
    %c0_25 = arith.constant 0 : index
    %36 = vector.load %arg9[%c0_23, %c0_24, %c0_25] : memref<2x1x192xf32, #tpu.memory_space<vmem>>, vector<1x1x192xf32>
    %37 = vector.shape_cast %36 : vector<1x1x192xf32> to vector<1x192xf32>
    %38 = vector.broadcast %37 : vector<1x192xf32> to vector<25x192xf32>
    %39 = arith.addf %35, %38 : vector<25x192xf32>
    %40 = vector.extract_strided_slice %39 {offsets = [0, 0], sizes = [25, 16], strides = [1, 1]} : vector<25x192xf32> to vector<25x16xf32>
    %41 = vector.extract_strided_slice %39 {offsets = [0, 64], sizes = [25, 16], strides = [1, 1]} : vector<25x192xf32> to vector<25x16xf32>
    %42 = vector.extract_strided_slice %39 {offsets = [0, 128], sizes = [25, 16], strides = [1, 1]} : vector<25x192xf32> to vector<25x16xf32>
    %43 = arith.truncf %40 : vector<25x16xf32> to vector<25x16xbf16>
    %44 = arith.truncf %41 : vector<25x16xf32> to vector<25x16xbf16>
    %cst_26 = arith.constant dense<0.000000e+00> : vector<25x25xf32>
    %45 = tpu.matmul %43, %44, %cst_26 {dimension_numbers = #tpu.dot_dimension_numbers<[1], [1], [0], [0], [0, 0, 1, 0], [], []>} : vector<25x16xbf16>, vector<25x16xbf16>, vector<25x25xf32> -> vector<25x25xf32>
    %cst_27 = arith.constant 2.500000e-01 : f32
    %46 = vector.broadcast %cst_27 : f32 to vector<25x25xf32>
    %47 = arith.mulf %45, %46 : vector<25x25xf32>
    %cst_28 = arith.constant 1.000000e+00 : f32
    %48 = vector.broadcast %cst_28 : f32 to vector<25x25xf32>
    %49 = arith.subf %48, %7 : vector<25x25xf32>
    %cst_29 = arith.constant 1.000000e+09 : f32
    %50 = vector.broadcast %cst_29 : f32 to vector<25x25xf32>
    %51 = arith.mulf %49, %50 : vector<25x25xf32>
    %52 = arith.subf %47, %51 : vector<25x25xf32>
    %cst_30 = arith.constant dense<0xFF800000> : vector<25xf32>
    %53 = vector.multi_reduction <maximumf>, %52, %cst_30 [1] : vector<25x25xf32> to vector<25xf32>
    %54 = vector.shape_cast %53 : vector<25xf32> to vector<25x1xf32>
    %55 = vector.broadcast %54 : vector<25x1xf32> to vector<25x25xf32>
    %56 = arith.subf %52, %55 : vector<25x25xf32>
    %57 = math.exp %56 : vector<25x25xf32>
    %58 = arith.mulf %57, %7 : vector<25x25xf32>
    %cst_31 = arith.constant dense<0.000000e+00> : vector<25xf32>
    %59 = vector.multi_reduction <add>, %58, %cst_31 [1] : vector<25x25xf32> to vector<25xf32>
    %60 = vector.shape_cast %59 : vector<25xf32> to vector<25x1xf32>
    %61 = vector.broadcast %60 : vector<25x1xf32> to vector<25x25xf32>
    %62 = arith.divf %58, %61 : vector<25x25xf32>
    %63 = arith.truncf %62 : vector<25x25xf32> to vector<25x25xbf16>
    %64 = arith.truncf %42 : vector<25x16xf32> to vector<25x16xbf16>
    %cst_32 = arith.constant dense<0.000000e+00> : vector<25x16xf32>
    %65 = tpu.matmul %63, %64, %cst_32 {dimension_numbers = #tpu.dot_dimension_numbers<[1], [0], [0], [1], [0, 0, 1, 1], [], []>} : vector<25x25xbf16>, vector<25x16xbf16>, vector<25x16xf32> -> vector<25x16xf32>
    %66 = vector.extract_strided_slice %39 {offsets = [0, 16], sizes = [25, 16], strides = [1, 1]} : vector<25x192xf32> to vector<25x16xf32>
    %67 = vector.extract_strided_slice %39 {offsets = [0, 80], sizes = [25, 16], strides = [1, 1]} : vector<25x192xf32> to vector<25x16xf32>
    %68 = vector.extract_strided_slice %39 {offsets = [0, 144], sizes = [25, 16], strides = [1, 1]} : vector<25x192xf32> to vector<25x16xf32>
    %69 = arith.truncf %66 : vector<25x16xf32> to vector<25x16xbf16>
    %70 = arith.truncf %67 : vector<25x16xf32> to vector<25x16xbf16>
    %cst_33 = arith.constant dense<0.000000e+00> : vector<25x25xf32>
    %71 = tpu.matmul %69, %70, %cst_33 {dimension_numbers = #tpu.dot_dimension_numbers<[1], [1], [0], [0], [0, 0, 1, 0], [], []>} : vector<25x16xbf16>, vector<25x16xbf16>, vector<25x25xf32> -> vector<25x25xf32>
    %cst_34 = arith.constant 2.500000e-01 : f32
    %72 = vector.broadcast %cst_34 : f32 to vector<25x25xf32>
    %73 = arith.mulf %71, %72 : vector<25x25xf32>
    %cst_35 = arith.constant 1.000000e+00 : f32
    %74 = vector.broadcast %cst_35 : f32 to vector<25x25xf32>
    %75 = arith.subf %74, %7 : vector<25x25xf32>
    %cst_36 = arith.constant 1.000000e+09 : f32
    %76 = vector.broadcast %cst_36 : f32 to vector<25x25xf32>
    %77 = arith.mulf %75, %76 : vector<25x25xf32>
    %78 = arith.subf %73, %77 : vector<25x25xf32>
    %cst_37 = arith.constant dense<0xFF800000> : vector<25xf32>
    %79 = vector.multi_reduction <maximumf>, %78, %cst_37 [1] : vector<25x25xf32> to vector<25xf32>
    %80 = vector.shape_cast %79 : vector<25xf32> to vector<25x1xf32>
    %81 = vector.broadcast %80 : vector<25x1xf32> to vector<25x25xf32>
    %82 = arith.subf %78, %81 : vector<25x25xf32>
    %83 = math.exp %82 : vector<25x25xf32>
    %84 = arith.mulf %83, %7 : vector<25x25xf32>
    %cst_38 = arith.constant dense<0.000000e+00> : vector<25xf32>
    %85 = vector.multi_reduction <add>, %84, %cst_38 [1] : vector<25x25xf32> to vector<25xf32>
    %86 = vector.shape_cast %85 : vector<25xf32> to vector<25x1xf32>
    %87 = vector.broadcast %86 : vector<25x1xf32> to vector<25x25xf32>
    %88 = arith.divf %84, %87 : vector<25x25xf32>
    %89 = arith.truncf %88 : vector<25x25xf32> to vector<25x25xbf16>
    %90 = arith.truncf %68 : vector<25x16xf32> to vector<25x16xbf16>
    %cst_39 = arith.constant dense<0.000000e+00> : vector<25x16xf32>
    %91 = tpu.matmul %89, %90, %cst_39 {dimension_numbers = #tpu.dot_dimension_numbers<[1], [0], [0], [1], [0, 0, 1, 1], [], []>} : vector<25x25xbf16>, vector<25x16xbf16>, vector<25x16xf32> -> vector<25x16xf32>
    %92 = vector.extract_strided_slice %39 {offsets = [0, 32], sizes = [25, 16], strides = [1, 1]} : vector<25x192xf32> to vector<25x16xf32>
    %93 = vector.extract_strided_slice %39 {offsets = [0, 96], sizes = [25, 16], strides = [1, 1]} : vector<25x192xf32> to vector<25x16xf32>
    %94 = vector.extract_strided_slice %39 {offsets = [0, 160], sizes = [25, 16], strides = [1, 1]} : vector<25x192xf32> to vector<25x16xf32>
    %95 = arith.truncf %92 : vector<25x16xf32> to vector<25x16xbf16>
    %96 = arith.truncf %93 : vector<25x16xf32> to vector<25x16xbf16>
    %cst_40 = arith.constant dense<0.000000e+00> : vector<25x25xf32>
    %97 = tpu.matmul %95, %96, %cst_40 {dimension_numbers = #tpu.dot_dimension_numbers<[1], [1], [0], [0], [0, 0, 1, 0], [], []>} : vector<25x16xbf16>, vector<25x16xbf16>, vector<25x25xf32> -> vector<25x25xf32>
    %cst_41 = arith.constant 2.500000e-01 : f32
    %98 = vector.broadcast %cst_41 : f32 to vector<25x25xf32>
    %99 = arith.mulf %97, %98 : vector<25x25xf32>
    %cst_42 = arith.constant 1.000000e+00 : f32
    %100 = vector.broadcast %cst_42 : f32 to vector<25x25xf32>
    %101 = arith.subf %100, %7 : vector<25x25xf32>
    %cst_43 = arith.constant 1.000000e+09 : f32
    %102 = vector.broadcast %cst_43 : f32 to vector<25x25xf32>
    %103 = arith.mulf %101, %102 : vector<25x25xf32>
    %104 = arith.subf %99, %103 : vector<25x25xf32>
    %cst_44 = arith.constant dense<0xFF800000> : vector<25xf32>
    %105 = vector.multi_reduction <maximumf>, %104, %cst_44 [1] : vector<25x25xf32> to vector<25xf32>
    %106 = vector.shape_cast %105 : vector<25xf32> to vector<25x1xf32>
    %107 = vector.broadcast %106 : vector<25x1xf32> to vector<25x25xf32>
    %108 = arith.subf %104, %107 : vector<25x25xf32>
    %109 = math.exp %108 : vector<25x25xf32>
    %110 = arith.mulf %109, %7 : vector<25x25xf32>
    %cst_45 = arith.constant dense<0.000000e+00> : vector<25xf32>
    %111 = vector.multi_reduction <add>, %110, %cst_45 [1] : vector<25x25xf32> to vector<25xf32>
    %112 = vector.shape_cast %111 : vector<25xf32> to vector<25x1xf32>
    %113 = vector.broadcast %112 : vector<25x1xf32> to vector<25x25xf32>
    %114 = arith.divf %110, %113 : vector<25x25xf32>
    %115 = arith.truncf %114 : vector<25x25xf32> to vector<25x25xbf16>
    %116 = arith.truncf %94 : vector<25x16xf32> to vector<25x16xbf16>
    %cst_46 = arith.constant dense<0.000000e+00> : vector<25x16xf32>
    %117 = tpu.matmul %115, %116, %cst_46 {dimension_numbers = #tpu.dot_dimension_numbers<[1], [0], [0], [1], [0, 0, 1, 1], [], []>} : vector<25x25xbf16>, vector<25x16xbf16>, vector<25x16xf32> -> vector<25x16xf32>
    %118 = vector.extract_strided_slice %39 {offsets = [0, 48], sizes = [25, 16], strides = [1, 1]} : vector<25x192xf32> to vector<25x16xf32>
    %119 = vector.extract_strided_slice %39 {offsets = [0, 112], sizes = [25, 16], strides = [1, 1]} : vector<25x192xf32> to vector<25x16xf32>
    %120 = vector.extract_strided_slice %39 {offsets = [0, 176], sizes = [25, 16], strides = [1, 1]} : vector<25x192xf32> to vector<25x16xf32>
    %121 = arith.truncf %118 : vector<25x16xf32> to vector<25x16xbf16>
    %122 = arith.truncf %119 : vector<25x16xf32> to vector<25x16xbf16>
    %cst_47 = arith.constant dense<0.000000e+00> : vector<25x25xf32>
    %123 = tpu.matmul %121, %122, %cst_47 {dimension_numbers = #tpu.dot_dimension_numbers<[1], [1], [0], [0], [0, 0, 1, 0], [], []>} : vector<25x16xbf16>, vector<25x16xbf16>, vector<25x25xf32> -> vector<25x25xf32>
    %cst_48 = arith.constant 2.500000e-01 : f32
    %124 = vector.broadcast %cst_48 : f32 to vector<25x25xf32>
    %125 = arith.mulf %123, %124 : vector<25x25xf32>
    %cst_49 = arith.constant 1.000000e+00 : f32
    %126 = vector.broadcast %cst_49 : f32 to vector<25x25xf32>
    %127 = arith.subf %126, %7 : vector<25x25xf32>
    %cst_50 = arith.constant 1.000000e+09 : f32
    %128 = vector.broadcast %cst_50 : f32 to vector<25x25xf32>
    %129 = arith.mulf %127, %128 : vector<25x25xf32>
    %130 = arith.subf %125, %129 : vector<25x25xf32>
    %cst_51 = arith.constant dense<0xFF800000> : vector<25xf32>
    %131 = vector.multi_reduction <maximumf>, %130, %cst_51 [1] : vector<25x25xf32> to vector<25xf32>
    %132 = vector.shape_cast %131 : vector<25xf32> to vector<25x1xf32>
    %133 = vector.broadcast %132 : vector<25x1xf32> to vector<25x25xf32>
    %134 = arith.subf %130, %133 : vector<25x25xf32>
    %135 = math.exp %134 : vector<25x25xf32>
    %136 = arith.mulf %135, %7 : vector<25x25xf32>
    %cst_52 = arith.constant dense<0.000000e+00> : vector<25xf32>
    %137 = vector.multi_reduction <add>, %136, %cst_52 [1] : vector<25x25xf32> to vector<25xf32>
    %138 = vector.shape_cast %137 : vector<25xf32> to vector<25x1xf32>
    %139 = vector.broadcast %138 : vector<25x1xf32> to vector<25x25xf32>
    %140 = arith.divf %136, %139 : vector<25x25xf32>
    %141 = arith.truncf %140 : vector<25x25xf32> to vector<25x25xbf16>
    %142 = arith.truncf %120 : vector<25x16xf32> to vector<25x16xbf16>
    %cst_53 = arith.constant dense<0.000000e+00> : vector<25x16xf32>
    %143 = tpu.matmul %141, %142, %cst_53 {dimension_numbers = #tpu.dot_dimension_numbers<[1], [0], [0], [1], [0, 0, 1, 1], [], []>} : vector<25x25xbf16>, vector<25x16xbf16>, vector<25x16xf32> -> vector<25x16xf32>
    %144 = tpu.concatenate %65, %91, %117, %143 in 1 : vector<25x16xf32>, vector<25x16xf32>, vector<25x16xf32>, vector<25x16xf32> -> vector<25x64xf32>
    %c0_54 = arith.constant 0 : index
    %c0_55 = arith.constant 0 : index
    %c0_56 = arith.constant 0 : index
    %145 = vector.load %arg10[%c0_54, %c0_55, %c0_56] : memref<2x64x64xbf16, #tpu.memory_space<vmem>>, vector<1x64x64xbf16>
    %146 = vector.shape_cast %145 : vector<1x64x64xbf16> to vector<64x64xbf16>
    %147 = arith.truncf %144 : vector<25x64xf32> to vector<25x64xbf16>
    %cst_57 = arith.constant dense<0.000000e+00> : vector<25x64xf32>
    %148 = tpu.matmul %147, %146, %cst_57 {dimension_numbers = #tpu.dot_dimension_numbers<[1], [0], [0], [1], [0, 0, 1, 1], [], []>} : vector<25x64xbf16>, vector<64x64xbf16>, vector<25x64xf32> -> vector<25x64xf32>
    %149 = arith.addf %6, %148 : vector<25x64xf32>
    %c0_58 = arith.constant 0 : index
    %c0_59 = arith.constant 0 : index
    %c0_60 = arith.constant 0 : index
    %150 = vector.load %arg11[%c0_58, %c0_59, %c0_60] : memref<2x1x64xf32, #tpu.memory_space<vmem>>, vector<1x1x64xf32>
    %151 = vector.shape_cast %150 : vector<1x1x64xf32> to vector<1x64xf32>
    %152 = vector.broadcast %151 : vector<1x64xf32> to vector<25x64xf32>
    %153 = arith.addf %149, %152 : vector<25x64xf32>
    %c0_61 = arith.constant 0 : index
    %c0_62 = arith.constant 0 : index
    %c0_63 = arith.constant 0 : index
    %154 = vector.load %arg12[%c0_61, %c0_62, %c0_63] : memref<2x1x64xf32, #tpu.memory_space<vmem>>, vector<1x1x64xf32>
    %155 = vector.shape_cast %154 : vector<1x1x64xf32> to vector<1x64xf32>
    %c0_64 = arith.constant 0 : index
    %c0_65 = arith.constant 0 : index
    %c0_66 = arith.constant 0 : index
    %156 = vector.load %arg13[%c0_64, %c0_65, %c0_66] : memref<2x1x64xf32, #tpu.memory_space<vmem>>, vector<1x1x64xf32>
    %157 = vector.shape_cast %156 : vector<1x1x64xf32> to vector<1x64xf32>
    %cst_67 = arith.constant dense<0.000000e+00> : vector<25xf32>
    %158 = vector.multi_reduction <add>, %153, %cst_67 [1] : vector<25x64xf32> to vector<25xf32>
    %159 = vector.shape_cast %158 : vector<25xf32> to vector<25x1xf32>
    %cst_68 = arith.constant 6.400000e+01 : f32
    %160 = vector.broadcast %cst_68 : f32 to vector<25x1xf32>
    %161 = arith.divf %159, %160 : vector<25x1xf32>
    %162 = vector.broadcast %161 : vector<25x1xf32> to vector<25x64xf32>
    %163 = arith.subf %153, %162 : vector<25x64xf32>
    %164 = arith.mulf %163, %163 : vector<25x64xf32>
    %cst_69 = arith.constant dense<0.000000e+00> : vector<25xf32>
    %165 = vector.multi_reduction <add>, %164, %cst_69 [1] : vector<25x64xf32> to vector<25xf32>
    %166 = vector.shape_cast %165 : vector<25xf32> to vector<25x1xf32>
    %cst_70 = arith.constant 6.400000e+01 : f32
    %167 = vector.broadcast %cst_70 : f32 to vector<25x1xf32>
    %168 = arith.divf %166, %167 : vector<25x1xf32>
    %cst_71 = arith.constant 9.99999997E-7 : f32
    %169 = vector.broadcast %cst_71 : f32 to vector<25x1xf32>
    %170 = arith.addf %168, %169 : vector<25x1xf32>
    %171 = math.rsqrt %170 : vector<25x1xf32>
    %172 = vector.broadcast %171 : vector<25x1xf32> to vector<25x64xf32>
    %173 = arith.mulf %163, %172 : vector<25x64xf32>
    %174 = vector.broadcast %155 : vector<1x64xf32> to vector<25x64xf32>
    %175 = arith.mulf %173, %174 : vector<25x64xf32>
    %176 = vector.broadcast %157 : vector<1x64xf32> to vector<25x64xf32>
    %177 = arith.addf %175, %176 : vector<25x64xf32>
    %c0_72 = arith.constant 0 : index
    %c0_73 = arith.constant 0 : index
    %c0_74 = arith.constant 0 : index
    %178 = vector.load %arg14[%c0_72, %c0_73, %c0_74] : memref<2x64x128xbf16, #tpu.memory_space<vmem>>, vector<1x64x128xbf16>
    %179 = vector.shape_cast %178 : vector<1x64x128xbf16> to vector<64x128xbf16>
    %180 = arith.truncf %177 : vector<25x64xf32> to vector<25x64xbf16>
    %cst_75 = arith.constant dense<0.000000e+00> : vector<25x128xf32>
    %181 = tpu.matmul %180, %179, %cst_75 {dimension_numbers = #tpu.dot_dimension_numbers<[1], [0], [0], [1], [0, 0, 1, 1], [], []>} : vector<25x64xbf16>, vector<64x128xbf16>, vector<25x128xf32> -> vector<25x128xf32>
    %c0_76 = arith.constant 0 : index
    %c0_77 = arith.constant 0 : index
    %c0_78 = arith.constant 0 : index
    %182 = vector.load %arg15[%c0_76, %c0_77, %c0_78] : memref<2x1x128xf32, #tpu.memory_space<vmem>>, vector<1x1x128xf32>
    %183 = vector.shape_cast %182 : vector<1x1x128xf32> to vector<1x128xf32>
    %184 = vector.broadcast %183 : vector<1x128xf32> to vector<25x128xf32>
    %185 = arith.addf %181, %184 : vector<25x128xf32>
    %186 = arith.mulf %185, %185 : vector<25x128xf32>
    %187 = arith.mulf %185, %186 : vector<25x128xf32>
    %cst_79 = arith.constant 4.471500e-02 : f32
    %188 = vector.broadcast %cst_79 : f32 to vector<25x128xf32>
    %189 = arith.mulf %188, %187 : vector<25x128xf32>
    %190 = arith.addf %185, %189 : vector<25x128xf32>
    %cst_80 = arith.constant 0.797884583 : f32
    %191 = vector.broadcast %cst_80 : f32 to vector<25x128xf32>
    %192 = arith.mulf %191, %190 : vector<25x128xf32>
    %193 = math.tanh %192 : vector<25x128xf32>
    %cst_81 = arith.constant 1.000000e+00 : f32
    %194 = vector.broadcast %cst_81 : f32 to vector<25x128xf32>
    %195 = arith.addf %194, %193 : vector<25x128xf32>
    %cst_82 = arith.constant 5.000000e-01 : f32
    %196 = vector.broadcast %cst_82 : f32 to vector<25x128xf32>
    %197 = arith.mulf %196, %195 : vector<25x128xf32>
    %198 = arith.mulf %185, %197 : vector<25x128xf32>
    %c0_83 = arith.constant 0 : index
    %c0_84 = arith.constant 0 : index
    %c0_85 = arith.constant 0 : index
    %199 = vector.load %arg16[%c0_83, %c0_84, %c0_85] : memref<2x128x64xbf16, #tpu.memory_space<vmem>>, vector<1x128x64xbf16>
    %200 = vector.shape_cast %199 : vector<1x128x64xbf16> to vector<128x64xbf16>
    %201 = arith.truncf %198 : vector<25x128xf32> to vector<25x128xbf16>
    %cst_86 = arith.constant dense<0.000000e+00> : vector<25x64xf32>
    %202 = tpu.matmul %201, %200, %cst_86 {dimension_numbers = #tpu.dot_dimension_numbers<[1], [0], [0], [1], [0, 0, 1, 1], [], []>} : vector<25x128xbf16>, vector<128x64xbf16>, vector<25x64xf32> -> vector<25x64xf32>
    %203 = arith.addf %153, %202 : vector<25x64xf32>
    %c0_87 = arith.constant 0 : index
    %c0_88 = arith.constant 0 : index
    %c0_89 = arith.constant 0 : index
    %204 = vector.load %arg17[%c0_87, %c0_88, %c0_89] : memref<2x1x64xf32, #tpu.memory_space<vmem>>, vector<1x1x64xf32>
    %205 = vector.shape_cast %204 : vector<1x1x64xf32> to vector<1x64xf32>
    %206 = vector.broadcast %205 : vector<1x64xf32> to vector<25x64xf32>
    %207 = arith.addf %203, %206 : vector<25x64xf32>
    %c1 = arith.constant 1 : index
    %c0_90 = arith.constant 0 : index
    %c0_91 = arith.constant 0 : index
    %208 = vector.load %arg6[%c1, %c0_90, %c0_91] : memref<2x1x64xf32, #tpu.memory_space<vmem>>, vector<1x1x64xf32>
    %209 = vector.shape_cast %208 : vector<1x1x64xf32> to vector<1x64xf32>
    %c1_92 = arith.constant 1 : index
    %c0_93 = arith.constant 0 : index
    %c0_94 = arith.constant 0 : index
    %210 = vector.load %arg7[%c1_92, %c0_93, %c0_94] : memref<2x1x64xf32, #tpu.memory_space<vmem>>, vector<1x1x64xf32>
    %211 = vector.shape_cast %210 : vector<1x1x64xf32> to vector<1x64xf32>
    %cst_95 = arith.constant dense<0.000000e+00> : vector<25xf32>
    %212 = vector.multi_reduction <add>, %207, %cst_95 [1] : vector<25x64xf32> to vector<25xf32>
    %213 = vector.shape_cast %212 : vector<25xf32> to vector<25x1xf32>
    %cst_96 = arith.constant 6.400000e+01 : f32
    %214 = vector.broadcast %cst_96 : f32 to vector<25x1xf32>
    %215 = arith.divf %213, %214 : vector<25x1xf32>
    %216 = vector.broadcast %215 : vector<25x1xf32> to vector<25x64xf32>
    %217 = arith.subf %207, %216 : vector<25x64xf32>
    %218 = arith.mulf %217, %217 : vector<25x64xf32>
    %cst_97 = arith.constant dense<0.000000e+00> : vector<25xf32>
    %219 = vector.multi_reduction <add>, %218, %cst_97 [1] : vector<25x64xf32> to vector<25xf32>
    %220 = vector.shape_cast %219 : vector<25xf32> to vector<25x1xf32>
    %cst_98 = arith.constant 6.400000e+01 : f32
    %221 = vector.broadcast %cst_98 : f32 to vector<25x1xf32>
    %222 = arith.divf %220, %221 : vector<25x1xf32>
    %cst_99 = arith.constant 9.99999997E-7 : f32
    %223 = vector.broadcast %cst_99 : f32 to vector<25x1xf32>
    %224 = arith.addf %222, %223 : vector<25x1xf32>
    %225 = math.rsqrt %224 : vector<25x1xf32>
    %226 = vector.broadcast %225 : vector<25x1xf32> to vector<25x64xf32>
    %227 = arith.mulf %217, %226 : vector<25x64xf32>
    %228 = vector.broadcast %209 : vector<1x64xf32> to vector<25x64xf32>
    %229 = arith.mulf %227, %228 : vector<25x64xf32>
    %230 = vector.broadcast %211 : vector<1x64xf32> to vector<25x64xf32>
    %231 = arith.addf %229, %230 : vector<25x64xf32>
    %c1_100 = arith.constant 1 : index
    %c0_101 = arith.constant 0 : index
    %c0_102 = arith.constant 0 : index
    %232 = vector.load %arg8[%c1_100, %c0_101, %c0_102] : memref<2x64x192xbf16, #tpu.memory_space<vmem>>, vector<1x64x192xbf16>
    %233 = vector.shape_cast %232 : vector<1x64x192xbf16> to vector<64x192xbf16>
    %234 = arith.truncf %231 : vector<25x64xf32> to vector<25x64xbf16>
    %cst_103 = arith.constant dense<0.000000e+00> : vector<25x192xf32>
    %235 = tpu.matmul %234, %233, %cst_103 {dimension_numbers = #tpu.dot_dimension_numbers<[1], [0], [0], [1], [0, 0, 1, 1], [], []>} : vector<25x64xbf16>, vector<64x192xbf16>, vector<25x192xf32> -> vector<25x192xf32>
    %c1_104 = arith.constant 1 : index
    %c0_105 = arith.constant 0 : index
    %c0_106 = arith.constant 0 : index
    %236 = vector.load %arg9[%c1_104, %c0_105, %c0_106] : memref<2x1x192xf32, #tpu.memory_space<vmem>>, vector<1x1x192xf32>
    %237 = vector.shape_cast %236 : vector<1x1x192xf32> to vector<1x192xf32>
    %238 = vector.broadcast %237 : vector<1x192xf32> to vector<25x192xf32>
    %239 = arith.addf %235, %238 : vector<25x192xf32>
    %240 = vector.extract_strided_slice %239 {offsets = [0, 0], sizes = [25, 16], strides = [1, 1]} : vector<25x192xf32> to vector<25x16xf32>
    %241 = vector.extract_strided_slice %239 {offsets = [0, 64], sizes = [25, 16], strides = [1, 1]} : vector<25x192xf32> to vector<25x16xf32>
    %242 = vector.extract_strided_slice %239 {offsets = [0, 128], sizes = [25, 16], strides = [1, 1]} : vector<25x192xf32> to vector<25x16xf32>
    %243 = arith.truncf %240 : vector<25x16xf32> to vector<25x16xbf16>
    %244 = arith.truncf %241 : vector<25x16xf32> to vector<25x16xbf16>
    %cst_107 = arith.constant dense<0.000000e+00> : vector<25x25xf32>
    %245 = tpu.matmul %243, %244, %cst_107 {dimension_numbers = #tpu.dot_dimension_numbers<[1], [1], [0], [0], [0, 0, 1, 0], [], []>} : vector<25x16xbf16>, vector<25x16xbf16>, vector<25x25xf32> -> vector<25x25xf32>
    %cst_108 = arith.constant 2.500000e-01 : f32
    %246 = vector.broadcast %cst_108 : f32 to vector<25x25xf32>
    %247 = arith.mulf %245, %246 : vector<25x25xf32>
    %cst_109 = arith.constant 1.000000e+00 : f32
    %248 = vector.broadcast %cst_109 : f32 to vector<25x25xf32>
    %249 = arith.subf %248, %7 : vector<25x25xf32>
    %cst_110 = arith.constant 1.000000e+09 : f32
    %250 = vector.broadcast %cst_110 : f32 to vector<25x25xf32>
    %251 = arith.mulf %249, %250 : vector<25x25xf32>
    %252 = arith.subf %247, %251 : vector<25x25xf32>
    %cst_111 = arith.constant dense<0xFF800000> : vector<25xf32>
    %253 = vector.multi_reduction <maximumf>, %252, %cst_111 [1] : vector<25x25xf32> to vector<25xf32>
    %254 = vector.shape_cast %253 : vector<25xf32> to vector<25x1xf32>
    %255 = vector.broadcast %254 : vector<25x1xf32> to vector<25x25xf32>
    %256 = arith.subf %252, %255 : vector<25x25xf32>
    %257 = math.exp %256 : vector<25x25xf32>
    %258 = arith.mulf %257, %7 : vector<25x25xf32>
    %cst_112 = arith.constant dense<0.000000e+00> : vector<25xf32>
    %259 = vector.multi_reduction <add>, %258, %cst_112 [1] : vector<25x25xf32> to vector<25xf32>
    %260 = vector.shape_cast %259 : vector<25xf32> to vector<25x1xf32>
    %261 = vector.broadcast %260 : vector<25x1xf32> to vector<25x25xf32>
    %262 = arith.divf %258, %261 : vector<25x25xf32>
    %263 = arith.truncf %262 : vector<25x25xf32> to vector<25x25xbf16>
    %264 = arith.truncf %242 : vector<25x16xf32> to vector<25x16xbf16>
    %cst_113 = arith.constant dense<0.000000e+00> : vector<25x16xf32>
    %265 = tpu.matmul %263, %264, %cst_113 {dimension_numbers = #tpu.dot_dimension_numbers<[1], [0], [0], [1], [0, 0, 1, 1], [], []>} : vector<25x25xbf16>, vector<25x16xbf16>, vector<25x16xf32> -> vector<25x16xf32>
    %266 = vector.extract_strided_slice %239 {offsets = [0, 16], sizes = [25, 16], strides = [1, 1]} : vector<25x192xf32> to vector<25x16xf32>
    %267 = vector.extract_strided_slice %239 {offsets = [0, 80], sizes = [25, 16], strides = [1, 1]} : vector<25x192xf32> to vector<25x16xf32>
    %268 = vector.extract_strided_slice %239 {offsets = [0, 144], sizes = [25, 16], strides = [1, 1]} : vector<25x192xf32> to vector<25x16xf32>
    %269 = arith.truncf %266 : vector<25x16xf32> to vector<25x16xbf16>
    %270 = arith.truncf %267 : vector<25x16xf32> to vector<25x16xbf16>
    %cst_114 = arith.constant dense<0.000000e+00> : vector<25x25xf32>
    %271 = tpu.matmul %269, %270, %cst_114 {dimension_numbers = #tpu.dot_dimension_numbers<[1], [1], [0], [0], [0, 0, 1, 0], [], []>} : vector<25x16xbf16>, vector<25x16xbf16>, vector<25x25xf32> -> vector<25x25xf32>
    %cst_115 = arith.constant 2.500000e-01 : f32
    %272 = vector.broadcast %cst_115 : f32 to vector<25x25xf32>
    %273 = arith.mulf %271, %272 : vector<25x25xf32>
    %cst_116 = arith.constant 1.000000e+00 : f32
    %274 = vector.broadcast %cst_116 : f32 to vector<25x25xf32>
    %275 = arith.subf %274, %7 : vector<25x25xf32>
    %cst_117 = arith.constant 1.000000e+09 : f32
    %276 = vector.broadcast %cst_117 : f32 to vector<25x25xf32>
    %277 = arith.mulf %275, %276 : vector<25x25xf32>
    %278 = arith.subf %273, %277 : vector<25x25xf32>
    %cst_118 = arith.constant dense<0xFF800000> : vector<25xf32>
    %279 = vector.multi_reduction <maximumf>, %278, %cst_118 [1] : vector<25x25xf32> to vector<25xf32>
    %280 = vector.shape_cast %279 : vector<25xf32> to vector<25x1xf32>
    %281 = vector.broadcast %280 : vector<25x1xf32> to vector<25x25xf32>
    %282 = arith.subf %278, %281 : vector<25x25xf32>
    %283 = math.exp %282 : vector<25x25xf32>
    %284 = arith.mulf %283, %7 : vector<25x25xf32>
    %cst_119 = arith.constant dense<0.000000e+00> : vector<25xf32>
    %285 = vector.multi_reduction <add>, %284, %cst_119 [1] : vector<25x25xf32> to vector<25xf32>
    %286 = vector.shape_cast %285 : vector<25xf32> to vector<25x1xf32>
    %287 = vector.broadcast %286 : vector<25x1xf32> to vector<25x25xf32>
    %288 = arith.divf %284, %287 : vector<25x25xf32>
    %289 = arith.truncf %288 : vector<25x25xf32> to vector<25x25xbf16>
    %290 = arith.truncf %268 : vector<25x16xf32> to vector<25x16xbf16>
    %cst_120 = arith.constant dense<0.000000e+00> : vector<25x16xf32>
    %291 = tpu.matmul %289, %290, %cst_120 {dimension_numbers = #tpu.dot_dimension_numbers<[1], [0], [0], [1], [0, 0, 1, 1], [], []>} : vector<25x25xbf16>, vector<25x16xbf16>, vector<25x16xf32> -> vector<25x16xf32>
    %292 = vector.extract_strided_slice %239 {offsets = [0, 32], sizes = [25, 16], strides = [1, 1]} : vector<25x192xf32> to vector<25x16xf32>
    %293 = vector.extract_strided_slice %239 {offsets = [0, 96], sizes = [25, 16], strides = [1, 1]} : vector<25x192xf32> to vector<25x16xf32>
    %294 = vector.extract_strided_slice %239 {offsets = [0, 160], sizes = [25, 16], strides = [1, 1]} : vector<25x192xf32> to vector<25x16xf32>
    %295 = arith.truncf %292 : vector<25x16xf32> to vector<25x16xbf16>
    %296 = arith.truncf %293 : vector<25x16xf32> to vector<25x16xbf16>
    %cst_121 = arith.constant dense<0.000000e+00> : vector<25x25xf32>
    %297 = tpu.matmul %295, %296, %cst_121 {dimension_numbers = #tpu.dot_dimension_numbers<[1], [1], [0], [0], [0, 0, 1, 0], [], []>} : vector<25x16xbf16>, vector<25x16xbf16>, vector<25x25xf32> -> vector<25x25xf32>
    %cst_122 = arith.constant 2.500000e-01 : f32
    %298 = vector.broadcast %cst_122 : f32 to vector<25x25xf32>
    %299 = arith.mulf %297, %298 : vector<25x25xf32>
    %cst_123 = arith.constant 1.000000e+00 : f32
    %300 = vector.broadcast %cst_123 : f32 to vector<25x25xf32>
    %301 = arith.subf %300, %7 : vector<25x25xf32>
    %cst_124 = arith.constant 1.000000e+09 : f32
    %302 = vector.broadcast %cst_124 : f32 to vector<25x25xf32>
    %303 = arith.mulf %301, %302 : vector<25x25xf32>
    %304 = arith.subf %299, %303 : vector<25x25xf32>
    %cst_125 = arith.constant dense<0xFF800000> : vector<25xf32>
    %305 = vector.multi_reduction <maximumf>, %304, %cst_125 [1] : vector<25x25xf32> to vector<25xf32>
    %306 = vector.shape_cast %305 : vector<25xf32> to vector<25x1xf32>
    %307 = vector.broadcast %306 : vector<25x1xf32> to vector<25x25xf32>
    %308 = arith.subf %304, %307 : vector<25x25xf32>
    %309 = math.exp %308 : vector<25x25xf32>
    %310 = arith.mulf %309, %7 : vector<25x25xf32>
    %cst_126 = arith.constant dense<0.000000e+00> : vector<25xf32>
    %311 = vector.multi_reduction <add>, %310, %cst_126 [1] : vector<25x25xf32> to vector<25xf32>
    %312 = vector.shape_cast %311 : vector<25xf32> to vector<25x1xf32>
    %313 = vector.broadcast %312 : vector<25x1xf32> to vector<25x25xf32>
    %314 = arith.divf %310, %313 : vector<25x25xf32>
    %315 = arith.truncf %314 : vector<25x25xf32> to vector<25x25xbf16>
    %316 = arith.truncf %294 : vector<25x16xf32> to vector<25x16xbf16>
    %cst_127 = arith.constant dense<0.000000e+00> : vector<25x16xf32>
    %317 = tpu.matmul %315, %316, %cst_127 {dimension_numbers = #tpu.dot_dimension_numbers<[1], [0], [0], [1], [0, 0, 1, 1], [], []>} : vector<25x25xbf16>, vector<25x16xbf16>, vector<25x16xf32> -> vector<25x16xf32>
    %318 = vector.extract_strided_slice %239 {offsets = [0, 48], sizes = [25, 16], strides = [1, 1]} : vector<25x192xf32> to vector<25x16xf32>
    %319 = vector.extract_strided_slice %239 {offsets = [0, 112], sizes = [25, 16], strides = [1, 1]} : vector<25x192xf32> to vector<25x16xf32>
    %320 = vector.extract_strided_slice %239 {offsets = [0, 176], sizes = [25, 16], strides = [1, 1]} : vector<25x192xf32> to vector<25x16xf32>
    %321 = arith.truncf %318 : vector<25x16xf32> to vector<25x16xbf16>
    %322 = arith.truncf %319 : vector<25x16xf32> to vector<25x16xbf16>
    %cst_128 = arith.constant dense<0.000000e+00> : vector<25x25xf32>
    %323 = tpu.matmul %321, %322, %cst_128 {dimension_numbers = #tpu.dot_dimension_numbers<[1], [1], [0], [0], [0, 0, 1, 0], [], []>} : vector<25x16xbf16>, vector<25x16xbf16>, vector<25x25xf32> -> vector<25x25xf32>
    %cst_129 = arith.constant 2.500000e-01 : f32
    %324 = vector.broadcast %cst_129 : f32 to vector<25x25xf32>
    %325 = arith.mulf %323, %324 : vector<25x25xf32>
    %cst_130 = arith.constant 1.000000e+00 : f32
    %326 = vector.broadcast %cst_130 : f32 to vector<25x25xf32>
    %327 = arith.subf %326, %7 : vector<25x25xf32>
    %cst_131 = arith.constant 1.000000e+09 : f32
    %328 = vector.broadcast %cst_131 : f32 to vector<25x25xf32>
    %329 = arith.mulf %327, %328 : vector<25x25xf32>
    %330 = arith.subf %325, %329 : vector<25x25xf32>
    %cst_132 = arith.constant dense<0xFF800000> : vector<25xf32>
    %331 = vector.multi_reduction <maximumf>, %330, %cst_132 [1] : vector<25x25xf32> to vector<25xf32>
    %332 = vector.shape_cast %331 : vector<25xf32> to vector<25x1xf32>
    %333 = vector.broadcast %332 : vector<25x1xf32> to vector<25x25xf32>
    %334 = arith.subf %330, %333 : vector<25x25xf32>
    %335 = math.exp %334 : vector<25x25xf32>
    %336 = arith.mulf %335, %7 : vector<25x25xf32>
    %cst_133 = arith.constant dense<0.000000e+00> : vector<25xf32>
    %337 = vector.multi_reduction <add>, %336, %cst_133 [1] : vector<25x25xf32> to vector<25xf32>
    %338 = vector.shape_cast %337 : vector<25xf32> to vector<25x1xf32>
    %339 = vector.broadcast %338 : vector<25x1xf32> to vector<25x25xf32>
    %340 = arith.divf %336, %339 : vector<25x25xf32>
    %341 = arith.truncf %340 : vector<25x25xf32> to vector<25x25xbf16>
    %342 = arith.truncf %320 : vector<25x16xf32> to vector<25x16xbf16>
    %cst_134 = arith.constant dense<0.000000e+00> : vector<25x16xf32>
    %343 = tpu.matmul %341, %342, %cst_134 {dimension_numbers = #tpu.dot_dimension_numbers<[1], [0], [0], [1], [0, 0, 1, 1], [], []>} : vector<25x25xbf16>, vector<25x16xbf16>, vector<25x16xf32> -> vector<25x16xf32>
    %344 = tpu.concatenate %265, %291, %317, %343 in 1 : vector<25x16xf32>, vector<25x16xf32>, vector<25x16xf32>, vector<25x16xf32> -> vector<25x64xf32>
    %c1_135 = arith.constant 1 : index
    %c0_136 = arith.constant 0 : index
    %c0_137 = arith.constant 0 : index
    %345 = vector.load %arg10[%c1_135, %c0_136, %c0_137] : memref<2x64x64xbf16, #tpu.memory_space<vmem>>, vector<1x64x64xbf16>
    %346 = vector.shape_cast %345 : vector<1x64x64xbf16> to vector<64x64xbf16>
    %347 = arith.truncf %344 : vector<25x64xf32> to vector<25x64xbf16>
    %cst_138 = arith.constant dense<0.000000e+00> : vector<25x64xf32>
    %348 = tpu.matmul %347, %346, %cst_138 {dimension_numbers = #tpu.dot_dimension_numbers<[1], [0], [0], [1], [0, 0, 1, 1], [], []>} : vector<25x64xbf16>, vector<64x64xbf16>, vector<25x64xf32> -> vector<25x64xf32>
    %349 = arith.addf %207, %348 : vector<25x64xf32>
    %c1_139 = arith.constant 1 : index
    %c0_140 = arith.constant 0 : index
    %c0_141 = arith.constant 0 : index
    %350 = vector.load %arg11[%c1_139, %c0_140, %c0_141] : memref<2x1x64xf32, #tpu.memory_space<vmem>>, vector<1x1x64xf32>
    %351 = vector.shape_cast %350 : vector<1x1x64xf32> to vector<1x64xf32>
    %352 = vector.broadcast %351 : vector<1x64xf32> to vector<25x64xf32>
    %353 = arith.addf %349, %352 : vector<25x64xf32>
    %c1_142 = arith.constant 1 : index
    %c0_143 = arith.constant 0 : index
    %c0_144 = arith.constant 0 : index
    %354 = vector.load %arg12[%c1_142, %c0_143, %c0_144] : memref<2x1x64xf32, #tpu.memory_space<vmem>>, vector<1x1x64xf32>
    %355 = vector.shape_cast %354 : vector<1x1x64xf32> to vector<1x64xf32>
    %c1_145 = arith.constant 1 : index
    %c0_146 = arith.constant 0 : index
    %c0_147 = arith.constant 0 : index
    %356 = vector.load %arg13[%c1_145, %c0_146, %c0_147] : memref<2x1x64xf32, #tpu.memory_space<vmem>>, vector<1x1x64xf32>
    %357 = vector.shape_cast %356 : vector<1x1x64xf32> to vector<1x64xf32>
    %cst_148 = arith.constant dense<0.000000e+00> : vector<25xf32>
    %358 = vector.multi_reduction <add>, %353, %cst_148 [1] : vector<25x64xf32> to vector<25xf32>
    %359 = vector.shape_cast %358 : vector<25xf32> to vector<25x1xf32>
    %cst_149 = arith.constant 6.400000e+01 : f32
    %360 = vector.broadcast %cst_149 : f32 to vector<25x1xf32>
    %361 = arith.divf %359, %360 : vector<25x1xf32>
    %362 = vector.broadcast %361 : vector<25x1xf32> to vector<25x64xf32>
    %363 = arith.subf %353, %362 : vector<25x64xf32>
    %364 = arith.mulf %363, %363 : vector<25x64xf32>
    %cst_150 = arith.constant dense<0.000000e+00> : vector<25xf32>
    %365 = vector.multi_reduction <add>, %364, %cst_150 [1] : vector<25x64xf32> to vector<25xf32>
    %366 = vector.shape_cast %365 : vector<25xf32> to vector<25x1xf32>
    %cst_151 = arith.constant 6.400000e+01 : f32
    %367 = vector.broadcast %cst_151 : f32 to vector<25x1xf32>
    %368 = arith.divf %366, %367 : vector<25x1xf32>
    %cst_152 = arith.constant 9.99999997E-7 : f32
    %369 = vector.broadcast %cst_152 : f32 to vector<25x1xf32>
    %370 = arith.addf %368, %369 : vector<25x1xf32>
    %371 = math.rsqrt %370 : vector<25x1xf32>
    %372 = vector.broadcast %371 : vector<25x1xf32> to vector<25x64xf32>
    %373 = arith.mulf %363, %372 : vector<25x64xf32>
    %374 = vector.broadcast %355 : vector<1x64xf32> to vector<25x64xf32>
    %375 = arith.mulf %373, %374 : vector<25x64xf32>
    %376 = vector.broadcast %357 : vector<1x64xf32> to vector<25x64xf32>
    %377 = arith.addf %375, %376 : vector<25x64xf32>
    %c1_153 = arith.constant 1 : index
    %c0_154 = arith.constant 0 : index
    %c0_155 = arith.constant 0 : index
    %378 = vector.load %arg14[%c1_153, %c0_154, %c0_155] : memref<2x64x128xbf16, #tpu.memory_space<vmem>>, vector<1x64x128xbf16>
    %379 = vector.shape_cast %378 : vector<1x64x128xbf16> to vector<64x128xbf16>
    %380 = arith.truncf %377 : vector<25x64xf32> to vector<25x64xbf16>
    %cst_156 = arith.constant dense<0.000000e+00> : vector<25x128xf32>
    %381 = tpu.matmul %380, %379, %cst_156 {dimension_numbers = #tpu.dot_dimension_numbers<[1], [0], [0], [1], [0, 0, 1, 1], [], []>} : vector<25x64xbf16>, vector<64x128xbf16>, vector<25x128xf32> -> vector<25x128xf32>
    %c1_157 = arith.constant 1 : index
    %c0_158 = arith.constant 0 : index
    %c0_159 = arith.constant 0 : index
    %382 = vector.load %arg15[%c1_157, %c0_158, %c0_159] : memref<2x1x128xf32, #tpu.memory_space<vmem>>, vector<1x1x128xf32>
    %383 = vector.shape_cast %382 : vector<1x1x128xf32> to vector<1x128xf32>
    %384 = vector.broadcast %383 : vector<1x128xf32> to vector<25x128xf32>
    %385 = arith.addf %381, %384 : vector<25x128xf32>
    %386 = arith.mulf %385, %385 : vector<25x128xf32>
    %387 = arith.mulf %385, %386 : vector<25x128xf32>
    %cst_160 = arith.constant 4.471500e-02 : f32
    %388 = vector.broadcast %cst_160 : f32 to vector<25x128xf32>
    %389 = arith.mulf %388, %387 : vector<25x128xf32>
    %390 = arith.addf %385, %389 : vector<25x128xf32>
    %cst_161 = arith.constant 0.797884583 : f32
    %391 = vector.broadcast %cst_161 : f32 to vector<25x128xf32>
    %392 = arith.mulf %391, %390 : vector<25x128xf32>
    %393 = math.tanh %392 : vector<25x128xf32>
    %cst_162 = arith.constant 1.000000e+00 : f32
    %394 = vector.broadcast %cst_162 : f32 to vector<25x128xf32>
    %395 = arith.addf %394, %393 : vector<25x128xf32>
    %cst_163 = arith.constant 5.000000e-01 : f32
    %396 = vector.broadcast %cst_163 : f32 to vector<25x128xf32>
    %397 = arith.mulf %396, %395 : vector<25x128xf32>
    %398 = arith.mulf %385, %397 : vector<25x128xf32>
    %c1_164 = arith.constant 1 : index
    %c0_165 = arith.constant 0 : index
    %c0_166 = arith.constant 0 : index
    %399 = vector.load %arg16[%c1_164, %c0_165, %c0_166] : memref<2x128x64xbf16, #tpu.memory_space<vmem>>, vector<1x128x64xbf16>
    %400 = vector.shape_cast %399 : vector<1x128x64xbf16> to vector<128x64xbf16>
    %401 = arith.truncf %398 : vector<25x128xf32> to vector<25x128xbf16>
    %cst_167 = arith.constant dense<0.000000e+00> : vector<25x64xf32>
    %402 = tpu.matmul %401, %400, %cst_167 {dimension_numbers = #tpu.dot_dimension_numbers<[1], [0], [0], [1], [0, 0, 1, 1], [], []>} : vector<25x128xbf16>, vector<128x64xbf16>, vector<25x64xf32> -> vector<25x64xf32>
    %403 = arith.addf %353, %402 : vector<25x64xf32>
    %c1_168 = arith.constant 1 : index
    %c0_169 = arith.constant 0 : index
    %c0_170 = arith.constant 0 : index
    %404 = vector.load %arg17[%c1_168, %c0_169, %c0_170] : memref<2x1x64xf32, #tpu.memory_space<vmem>>, vector<1x1x64xf32>
    %405 = vector.shape_cast %404 : vector<1x1x64xf32> to vector<1x64xf32>
    %406 = vector.broadcast %405 : vector<1x64xf32> to vector<25x64xf32>
    %407 = arith.addf %403, %406 : vector<25x64xf32>
    %c0_171 = arith.constant 0 : index
    %c0_172 = arith.constant 0 : index
    %408 = vector.load %arg18[%c0_171, %c0_172] : memref<1x64xf32, #tpu.memory_space<vmem>>, vector<1x64xf32>
    %c0_173 = arith.constant 0 : index
    %c0_174 = arith.constant 0 : index
    %409 = vector.load %arg19[%c0_173, %c0_174] : memref<1x64xf32, #tpu.memory_space<vmem>>, vector<1x64xf32>
    %cst_175 = arith.constant dense<0.000000e+00> : vector<25xf32>
    %410 = vector.multi_reduction <add>, %407, %cst_175 [1] : vector<25x64xf32> to vector<25xf32>
    %411 = vector.shape_cast %410 : vector<25xf32> to vector<25x1xf32>
    %cst_176 = arith.constant 6.400000e+01 : f32
    %412 = vector.broadcast %cst_176 : f32 to vector<25x1xf32>
    %413 = arith.divf %411, %412 : vector<25x1xf32>
    %414 = vector.broadcast %413 : vector<25x1xf32> to vector<25x64xf32>
    %415 = arith.subf %407, %414 : vector<25x64xf32>
    %416 = arith.mulf %415, %415 : vector<25x64xf32>
    %cst_177 = arith.constant dense<0.000000e+00> : vector<25xf32>
    %417 = vector.multi_reduction <add>, %416, %cst_177 [1] : vector<25x64xf32> to vector<25xf32>
    %418 = vector.shape_cast %417 : vector<25xf32> to vector<25x1xf32>
    %cst_178 = arith.constant 6.400000e+01 : f32
    %419 = vector.broadcast %cst_178 : f32 to vector<25x1xf32>
    %420 = arith.divf %418, %419 : vector<25x1xf32>
    %cst_179 = arith.constant 9.99999997E-7 : f32
    %421 = vector.broadcast %cst_179 : f32 to vector<25x1xf32>
    %422 = arith.addf %420, %421 : vector<25x1xf32>
    %423 = math.rsqrt %422 : vector<25x1xf32>
    %424 = vector.broadcast %423 : vector<25x1xf32> to vector<25x64xf32>
    %425 = arith.mulf %415, %424 : vector<25x64xf32>
    %426 = vector.broadcast %408 : vector<1x64xf32> to vector<25x64xf32>
    %427 = arith.mulf %425, %426 : vector<25x64xf32>
    %428 = vector.broadcast %409 : vector<1x64xf32> to vector<25x64xf32>
    %429 = arith.addf %427, %428 : vector<25x64xf32>
    %c0_180 = arith.constant 0 : index
    %c0_181 = arith.constant 0 : index
    %430 = vector.load %arg4[%c0_180, %c0_181] : memref<5x25xf32, #tpu.memory_space<vmem>>, vector<5x25xf32>
    %cst_182 = arith.constant dense<0.000000e+00> : vector<5x64xf32>
    %431 = tpu.matmul %430, %429, %cst_182 {dimension_numbers = #tpu.dot_dimension_numbers<[1], [0], [0], [1], [0, 0, 1, 1], [], []>} : vector<5x25xf32>, vector<25x64xf32>, vector<5x64xf32> -> vector<5x64xf32>
    %c0_183 = arith.constant 0 : index
    %c0_184 = arith.constant 0 : index
    %432 = vector.load %arg20[%c0_183, %c0_184] : memref<5x64xf32, #tpu.memory_space<vmem>>, vector<5x64xf32>
    %433 = arith.addf %431, %432 : vector<5x64xf32>
    %c0_185 = arith.constant 0 : index
    %c0_186 = arith.constant 0 : index
    %c0_187 = arith.constant 0 : index
    %434 = vector.load %arg21[%c0_185, %c0_186, %c0_187] : memref<2x1x64xf32, #tpu.memory_space<vmem>>, vector<1x1x64xf32>
    %435 = vector.shape_cast %434 : vector<1x1x64xf32> to vector<1x64xf32>
    %c0_188 = arith.constant 0 : index
    %c0_189 = arith.constant 0 : index
    %c0_190 = arith.constant 0 : index
    %436 = vector.load %arg22[%c0_188, %c0_189, %c0_190] : memref<2x1x64xf32, #tpu.memory_space<vmem>>, vector<1x1x64xf32>
    %437 = vector.shape_cast %436 : vector<1x1x64xf32> to vector<1x64xf32>
    %cst_191 = arith.constant dense<0.000000e+00> : vector<5xf32>
    %438 = vector.multi_reduction <add>, %433, %cst_191 [1] : vector<5x64xf32> to vector<5xf32>
    %439 = vector.shape_cast %438 : vector<5xf32> to vector<5x1xf32>
    %cst_192 = arith.constant 6.400000e+01 : f32
    %440 = vector.broadcast %cst_192 : f32 to vector<5x1xf32>
    %441 = arith.divf %439, %440 : vector<5x1xf32>
    %442 = vector.broadcast %441 : vector<5x1xf32> to vector<5x64xf32>
    %443 = arith.subf %433, %442 : vector<5x64xf32>
    %444 = arith.mulf %443, %443 : vector<5x64xf32>
    %cst_193 = arith.constant dense<0.000000e+00> : vector<5xf32>
    %445 = vector.multi_reduction <add>, %444, %cst_193 [1] : vector<5x64xf32> to vector<5xf32>
    %446 = vector.shape_cast %445 : vector<5xf32> to vector<5x1xf32>
    %cst_194 = arith.constant 6.400000e+01 : f32
    %447 = vector.broadcast %cst_194 : f32 to vector<5x1xf32>
    %448 = arith.divf %446, %447 : vector<5x1xf32>
    %cst_195 = arith.constant 9.99999997E-7 : f32
    %449 = vector.broadcast %cst_195 : f32 to vector<5x1xf32>
    %450 = arith.addf %448, %449 : vector<5x1xf32>
    %451 = math.rsqrt %450 : vector<5x1xf32>
    %452 = vector.broadcast %451 : vector<5x1xf32> to vector<5x64xf32>
    %453 = arith.mulf %443, %452 : vector<5x64xf32>
    %454 = vector.broadcast %435 : vector<1x64xf32> to vector<5x64xf32>
    %455 = arith.mulf %453, %454 : vector<5x64xf32>
    %456 = vector.broadcast %437 : vector<1x64xf32> to vector<5x64xf32>
    %457 = arith.addf %455, %456 : vector<5x64xf32>
    %c0_196 = arith.constant 0 : index
    %c0_197 = arith.constant 0 : index
    %c0_198 = arith.constant 0 : index
    %458 = vector.load %arg23[%c0_196, %c0_197, %c0_198] : memref<2x64x192xbf16, #tpu.memory_space<vmem>>, vector<1x64x192xbf16>
    %459 = vector.shape_cast %458 : vector<1x64x192xbf16> to vector<64x192xbf16>
    %460 = arith.truncf %457 : vector<5x64xf32> to vector<5x64xbf16>
    %cst_199 = arith.constant dense<0.000000e+00> : vector<5x192xf32>
    %461 = tpu.matmul %460, %459, %cst_199 {dimension_numbers = #tpu.dot_dimension_numbers<[1], [0], [0], [1], [0, 0, 1, 1], [], []>} : vector<5x64xbf16>, vector<64x192xbf16>, vector<5x192xf32> -> vector<5x192xf32>
    %c0_200 = arith.constant 0 : index
    %c0_201 = arith.constant 0 : index
    %c0_202 = arith.constant 0 : index
    %462 = vector.load %arg24[%c0_200, %c0_201, %c0_202] : memref<2x1x192xf32, #tpu.memory_space<vmem>>, vector<1x1x192xf32>
    %463 = vector.shape_cast %462 : vector<1x1x192xf32> to vector<1x192xf32>
    %464 = vector.broadcast %463 : vector<1x192xf32> to vector<5x192xf32>
    %465 = arith.addf %461, %464 : vector<5x192xf32>
    %466 = vector.extract_strided_slice %465 {offsets = [0, 0], sizes = [5, 16], strides = [1, 1]} : vector<5x192xf32> to vector<5x16xf32>
    %467 = vector.extract_strided_slice %465 {offsets = [0, 64], sizes = [5, 16], strides = [1, 1]} : vector<5x192xf32> to vector<5x16xf32>
    %468 = vector.extract_strided_slice %465 {offsets = [0, 128], sizes = [5, 16], strides = [1, 1]} : vector<5x192xf32> to vector<5x16xf32>
    %469 = arith.truncf %466 : vector<5x16xf32> to vector<5x16xbf16>
    %470 = arith.truncf %467 : vector<5x16xf32> to vector<5x16xbf16>
    %cst_203 = arith.constant dense<0.000000e+00> : vector<5x5xf32>
    %471 = tpu.matmul %469, %470, %cst_203 {dimension_numbers = #tpu.dot_dimension_numbers<[1], [1], [0], [0], [0, 0, 1, 0], [], []>} : vector<5x16xbf16>, vector<5x16xbf16>, vector<5x5xf32> -> vector<5x5xf32>
    %cst_204 = arith.constant 2.500000e-01 : f32
    %472 = vector.broadcast %cst_204 : f32 to vector<5x5xf32>
    %473 = arith.mulf %471, %472 : vector<5x5xf32>
    %cst_205 = arith.constant dense<0xFF800000> : vector<5xf32>
    %474 = vector.multi_reduction <maximumf>, %473, %cst_205 [1] : vector<5x5xf32> to vector<5xf32>
    %475 = vector.shape_cast %474 : vector<5xf32> to vector<5x1xf32>
    %476 = vector.broadcast %475 : vector<5x1xf32> to vector<5x5xf32>
    %477 = arith.subf %473, %476 : vector<5x5xf32>
    %478 = math.exp %477 : vector<5x5xf32>
    %cst_206 = arith.constant dense<0.000000e+00> : vector<5xf32>
    %479 = vector.multi_reduction <add>, %478, %cst_206 [1] : vector<5x5xf32> to vector<5xf32>
    %480 = vector.shape_cast %479 : vector<5xf32> to vector<5x1xf32>
    %481 = vector.broadcast %480 : vector<5x1xf32> to vector<5x5xf32>
    %482 = arith.divf %478, %481 : vector<5x5xf32>
    %483 = arith.truncf %482 : vector<5x5xf32> to vector<5x5xbf16>
    %484 = arith.truncf %468 : vector<5x16xf32> to vector<5x16xbf16>
    %cst_207 = arith.constant dense<0.000000e+00> : vector<5x16xf32>
    %485 = tpu.matmul %483, %484, %cst_207 {dimension_numbers = #tpu.dot_dimension_numbers<[1], [0], [0], [1], [0, 0, 1, 1], [], []>} : vector<5x5xbf16>, vector<5x16xbf16>, vector<5x16xf32> -> vector<5x16xf32>
    %486 = vector.extract_strided_slice %465 {offsets = [0, 16], sizes = [5, 16], strides = [1, 1]} : vector<5x192xf32> to vector<5x16xf32>
    %487 = vector.extract_strided_slice %465 {offsets = [0, 80], sizes = [5, 16], strides = [1, 1]} : vector<5x192xf32> to vector<5x16xf32>
    %488 = vector.extract_strided_slice %465 {offsets = [0, 144], sizes = [5, 16], strides = [1, 1]} : vector<5x192xf32> to vector<5x16xf32>
    %489 = arith.truncf %486 : vector<5x16xf32> to vector<5x16xbf16>
    %490 = arith.truncf %487 : vector<5x16xf32> to vector<5x16xbf16>
    %cst_208 = arith.constant dense<0.000000e+00> : vector<5x5xf32>
    %491 = tpu.matmul %489, %490, %cst_208 {dimension_numbers = #tpu.dot_dimension_numbers<[1], [1], [0], [0], [0, 0, 1, 0], [], []>} : vector<5x16xbf16>, vector<5x16xbf16>, vector<5x5xf32> -> vector<5x5xf32>
    %cst_209 = arith.constant 2.500000e-01 : f32
    %492 = vector.broadcast %cst_209 : f32 to vector<5x5xf32>
    %493 = arith.mulf %491, %492 : vector<5x5xf32>
    %cst_210 = arith.constant dense<0xFF800000> : vector<5xf32>
    %494 = vector.multi_reduction <maximumf>, %493, %cst_210 [1] : vector<5x5xf32> to vector<5xf32>
    %495 = vector.shape_cast %494 : vector<5xf32> to vector<5x1xf32>
    %496 = vector.broadcast %495 : vector<5x1xf32> to vector<5x5xf32>
    %497 = arith.subf %493, %496 : vector<5x5xf32>
    %498 = math.exp %497 : vector<5x5xf32>
    %cst_211 = arith.constant dense<0.000000e+00> : vector<5xf32>
    %499 = vector.multi_reduction <add>, %498, %cst_211 [1] : vector<5x5xf32> to vector<5xf32>
    %500 = vector.shape_cast %499 : vector<5xf32> to vector<5x1xf32>
    %501 = vector.broadcast %500 : vector<5x1xf32> to vector<5x5xf32>
    %502 = arith.divf %498, %501 : vector<5x5xf32>
    %503 = arith.truncf %502 : vector<5x5xf32> to vector<5x5xbf16>
    %504 = arith.truncf %488 : vector<5x16xf32> to vector<5x16xbf16>
    %cst_212 = arith.constant dense<0.000000e+00> : vector<5x16xf32>
    %505 = tpu.matmul %503, %504, %cst_212 {dimension_numbers = #tpu.dot_dimension_numbers<[1], [0], [0], [1], [0, 0, 1, 1], [], []>} : vector<5x5xbf16>, vector<5x16xbf16>, vector<5x16xf32> -> vector<5x16xf32>
    %506 = vector.extract_strided_slice %465 {offsets = [0, 32], sizes = [5, 16], strides = [1, 1]} : vector<5x192xf32> to vector<5x16xf32>
    %507 = vector.extract_strided_slice %465 {offsets = [0, 96], sizes = [5, 16], strides = [1, 1]} : vector<5x192xf32> to vector<5x16xf32>
    %508 = vector.extract_strided_slice %465 {offsets = [0, 160], sizes = [5, 16], strides = [1, 1]} : vector<5x192xf32> to vector<5x16xf32>
    %509 = arith.truncf %506 : vector<5x16xf32> to vector<5x16xbf16>
    %510 = arith.truncf %507 : vector<5x16xf32> to vector<5x16xbf16>
    %cst_213 = arith.constant dense<0.000000e+00> : vector<5x5xf32>
    %511 = tpu.matmul %509, %510, %cst_213 {dimension_numbers = #tpu.dot_dimension_numbers<[1], [1], [0], [0], [0, 0, 1, 0], [], []>} : vector<5x16xbf16>, vector<5x16xbf16>, vector<5x5xf32> -> vector<5x5xf32>
    %cst_214 = arith.constant 2.500000e-01 : f32
    %512 = vector.broadcast %cst_214 : f32 to vector<5x5xf32>
    %513 = arith.mulf %511, %512 : vector<5x5xf32>
    %cst_215 = arith.constant dense<0xFF800000> : vector<5xf32>
    %514 = vector.multi_reduction <maximumf>, %513, %cst_215 [1] : vector<5x5xf32> to vector<5xf32>
    %515 = vector.shape_cast %514 : vector<5xf32> to vector<5x1xf32>
    %516 = vector.broadcast %515 : vector<5x1xf32> to vector<5x5xf32>
    %517 = arith.subf %513, %516 : vector<5x5xf32>
    %518 = math.exp %517 : vector<5x5xf32>
    %cst_216 = arith.constant dense<0.000000e+00> : vector<5xf32>
    %519 = vector.multi_reduction <add>, %518, %cst_216 [1] : vector<5x5xf32> to vector<5xf32>
    %520 = vector.shape_cast %519 : vector<5xf32> to vector<5x1xf32>
    %521 = vector.broadcast %520 : vector<5x1xf32> to vector<5x5xf32>
    %522 = arith.divf %518, %521 : vector<5x5xf32>
    %523 = arith.truncf %522 : vector<5x5xf32> to vector<5x5xbf16>
    %524 = arith.truncf %508 : vector<5x16xf32> to vector<5x16xbf16>
    %cst_217 = arith.constant dense<0.000000e+00> : vector<5x16xf32>
    %525 = tpu.matmul %523, %524, %cst_217 {dimension_numbers = #tpu.dot_dimension_numbers<[1], [0], [0], [1], [0, 0, 1, 1], [], []>} : vector<5x5xbf16>, vector<5x16xbf16>, vector<5x16xf32> -> vector<5x16xf32>
    %526 = vector.extract_strided_slice %465 {offsets = [0, 48], sizes = [5, 16], strides = [1, 1]} : vector<5x192xf32> to vector<5x16xf32>
    %527 = vector.extract_strided_slice %465 {offsets = [0, 112], sizes = [5, 16], strides = [1, 1]} : vector<5x192xf32> to vector<5x16xf32>
    %528 = vector.extract_strided_slice %465 {offsets = [0, 176], sizes = [5, 16], strides = [1, 1]} : vector<5x192xf32> to vector<5x16xf32>
    %529 = arith.truncf %526 : vector<5x16xf32> to vector<5x16xbf16>
    %530 = arith.truncf %527 : vector<5x16xf32> to vector<5x16xbf16>
    %cst_218 = arith.constant dense<0.000000e+00> : vector<5x5xf32>
    %531 = tpu.matmul %529, %530, %cst_218 {dimension_numbers = #tpu.dot_dimension_numbers<[1], [1], [0], [0], [0, 0, 1, 0], [], []>} : vector<5x16xbf16>, vector<5x16xbf16>, vector<5x5xf32> -> vector<5x5xf32>
    %cst_219 = arith.constant 2.500000e-01 : f32
    %532 = vector.broadcast %cst_219 : f32 to vector<5x5xf32>
    %533 = arith.mulf %531, %532 : vector<5x5xf32>
    %cst_220 = arith.constant dense<0xFF800000> : vector<5xf32>
    %534 = vector.multi_reduction <maximumf>, %533, %cst_220 [1] : vector<5x5xf32> to vector<5xf32>
    %535 = vector.shape_cast %534 : vector<5xf32> to vector<5x1xf32>
    %536 = vector.broadcast %535 : vector<5x1xf32> to vector<5x5xf32>
    %537 = arith.subf %533, %536 : vector<5x5xf32>
    %538 = math.exp %537 : vector<5x5xf32>
    %cst_221 = arith.constant dense<0.000000e+00> : vector<5xf32>
    %539 = vector.multi_reduction <add>, %538, %cst_221 [1] : vector<5x5xf32> to vector<5xf32>
    %540 = vector.shape_cast %539 : vector<5xf32> to vector<5x1xf32>
    %541 = vector.broadcast %540 : vector<5x1xf32> to vector<5x5xf32>
    %542 = arith.divf %538, %541 : vector<5x5xf32>
    %543 = arith.truncf %542 : vector<5x5xf32> to vector<5x5xbf16>
    %544 = arith.truncf %528 : vector<5x16xf32> to vector<5x16xbf16>
    %cst_222 = arith.constant dense<0.000000e+00> : vector<5x16xf32>
    %545 = tpu.matmul %543, %544, %cst_222 {dimension_numbers = #tpu.dot_dimension_numbers<[1], [0], [0], [1], [0, 0, 1, 1], [], []>} : vector<5x5xbf16>, vector<5x16xbf16>, vector<5x16xf32> -> vector<5x16xf32>
    %546 = tpu.concatenate %485, %505, %525, %545 in 1 : vector<5x16xf32>, vector<5x16xf32>, vector<5x16xf32>, vector<5x16xf32> -> vector<5x64xf32>
    %c0_223 = arith.constant 0 : index
    %c0_224 = arith.constant 0 : index
    %c0_225 = arith.constant 0 : index
    %547 = vector.load %arg25[%c0_223, %c0_224, %c0_225] : memref<2x64x64xbf16, #tpu.memory_space<vmem>>, vector<1x64x64xbf16>
    %548 = vector.shape_cast %547 : vector<1x64x64xbf16> to vector<64x64xbf16>
    %549 = arith.truncf %546 : vector<5x64xf32> to vector<5x64xbf16>
    %cst_226 = arith.constant dense<0.000000e+00> : vector<5x64xf32>
    %550 = tpu.matmul %549, %548, %cst_226 {dimension_numbers = #tpu.dot_dimension_numbers<[1], [0], [0], [1], [0, 0, 1, 1], [], []>} : vector<5x64xbf16>, vector<64x64xbf16>, vector<5x64xf32> -> vector<5x64xf32>
    %551 = arith.addf %433, %550 : vector<5x64xf32>
    %c0_227 = arith.constant 0 : index
    %c0_228 = arith.constant 0 : index
    %c0_229 = arith.constant 0 : index
    %552 = vector.load %arg26[%c0_227, %c0_228, %c0_229] : memref<2x1x64xf32, #tpu.memory_space<vmem>>, vector<1x1x64xf32>
    %553 = vector.shape_cast %552 : vector<1x1x64xf32> to vector<1x64xf32>
    %554 = vector.broadcast %553 : vector<1x64xf32> to vector<5x64xf32>
    %555 = arith.addf %551, %554 : vector<5x64xf32>
    %c0_230 = arith.constant 0 : index
    %c0_231 = arith.constant 0 : index
    %c0_232 = arith.constant 0 : index
    %556 = vector.load %arg27[%c0_230, %c0_231, %c0_232] : memref<2x1x64xf32, #tpu.memory_space<vmem>>, vector<1x1x64xf32>
    %557 = vector.shape_cast %556 : vector<1x1x64xf32> to vector<1x64xf32>
    %c0_233 = arith.constant 0 : index
    %c0_234 = arith.constant 0 : index
    %c0_235 = arith.constant 0 : index
    %558 = vector.load %arg28[%c0_233, %c0_234, %c0_235] : memref<2x1x64xf32, #tpu.memory_space<vmem>>, vector<1x1x64xf32>
    %559 = vector.shape_cast %558 : vector<1x1x64xf32> to vector<1x64xf32>
    %cst_236 = arith.constant dense<0.000000e+00> : vector<5xf32>
    %560 = vector.multi_reduction <add>, %555, %cst_236 [1] : vector<5x64xf32> to vector<5xf32>
    %561 = vector.shape_cast %560 : vector<5xf32> to vector<5x1xf32>
    %cst_237 = arith.constant 6.400000e+01 : f32
    %562 = vector.broadcast %cst_237 : f32 to vector<5x1xf32>
    %563 = arith.divf %561, %562 : vector<5x1xf32>
    %564 = vector.broadcast %563 : vector<5x1xf32> to vector<5x64xf32>
    %565 = arith.subf %555, %564 : vector<5x64xf32>
    %566 = arith.mulf %565, %565 : vector<5x64xf32>
    %cst_238 = arith.constant dense<0.000000e+00> : vector<5xf32>
    %567 = vector.multi_reduction <add>, %566, %cst_238 [1] : vector<5x64xf32> to vector<5xf32>
    %568 = vector.shape_cast %567 : vector<5xf32> to vector<5x1xf32>
    %cst_239 = arith.constant 6.400000e+01 : f32
    %569 = vector.broadcast %cst_239 : f32 to vector<5x1xf32>
    %570 = arith.divf %568, %569 : vector<5x1xf32>
    %cst_240 = arith.constant 9.99999997E-7 : f32
    %571 = vector.broadcast %cst_240 : f32 to vector<5x1xf32>
    %572 = arith.addf %570, %571 : vector<5x1xf32>
    %573 = math.rsqrt %572 : vector<5x1xf32>
    %574 = vector.broadcast %573 : vector<5x1xf32> to vector<5x64xf32>
    %575 = arith.mulf %565, %574 : vector<5x64xf32>
    %576 = vector.broadcast %557 : vector<1x64xf32> to vector<5x64xf32>
    %577 = arith.mulf %575, %576 : vector<5x64xf32>
    %578 = vector.broadcast %559 : vector<1x64xf32> to vector<5x64xf32>
    %579 = arith.addf %577, %578 : vector<5x64xf32>
    %c0_241 = arith.constant 0 : index
    %c0_242 = arith.constant 0 : index
    %c0_243 = arith.constant 0 : index
    %580 = vector.load %arg29[%c0_241, %c0_242, %c0_243] : memref<2x64x64xbf16, #tpu.memory_space<vmem>>, vector<1x64x64xbf16>
    %581 = vector.shape_cast %580 : vector<1x64x64xbf16> to vector<64x64xbf16>
    %582 = arith.truncf %579 : vector<5x64xf32> to vector<5x64xbf16>
    %cst_244 = arith.constant dense<0.000000e+00> : vector<5x64xf32>
    %583 = tpu.matmul %582, %581, %cst_244 {dimension_numbers = #tpu.dot_dimension_numbers<[1], [0], [0], [1], [0, 0, 1, 1], [], []>} : vector<5x64xbf16>, vector<64x64xbf16>, vector<5x64xf32> -> vector<5x64xf32>
    %c0_245 = arith.constant 0 : index
    %c0_246 = arith.constant 0 : index
    %c0_247 = arith.constant 0 : index
    %584 = vector.load %arg30[%c0_245, %c0_246, %c0_247] : memref<2x1x64xf32, #tpu.memory_space<vmem>>, vector<1x1x64xf32>
    %585 = vector.shape_cast %584 : vector<1x1x64xf32> to vector<1x64xf32>
    %586 = vector.broadcast %585 : vector<1x64xf32> to vector<5x64xf32>
    %587 = arith.addf %583, %586 : vector<5x64xf32>
    %588 = arith.mulf %587, %587 : vector<5x64xf32>
    %589 = arith.mulf %587, %588 : vector<5x64xf32>
    %cst_248 = arith.constant 4.471500e-02 : f32
    %590 = vector.broadcast %cst_248 : f32 to vector<5x64xf32>
    %591 = arith.mulf %590, %589 : vector<5x64xf32>
    %592 = arith.addf %587, %591 : vector<5x64xf32>
    %cst_249 = arith.constant 0.797884583 : f32
    %593 = vector.broadcast %cst_249 : f32 to vector<5x64xf32>
    %594 = arith.mulf %593, %592 : vector<5x64xf32>
    %595 = math.tanh %594 : vector<5x64xf32>
    %cst_250 = arith.constant 1.000000e+00 : f32
    %596 = vector.broadcast %cst_250 : f32 to vector<5x64xf32>
    %597 = arith.addf %596, %595 : vector<5x64xf32>
    %cst_251 = arith.constant 5.000000e-01 : f32
    %598 = vector.broadcast %cst_251 : f32 to vector<5x64xf32>
    %599 = arith.mulf %598, %597 : vector<5x64xf32>
    %600 = arith.mulf %587, %599 : vector<5x64xf32>
    %c0_252 = arith.constant 0 : index
    %c0_253 = arith.constant 0 : index
    %c0_254 = arith.constant 0 : index
    %601 = vector.load %arg31[%c0_252, %c0_253, %c0_254] : memref<2x64x64xbf16, #tpu.memory_space<vmem>>, vector<1x64x64xbf16>
    %602 = vector.shape_cast %601 : vector<1x64x64xbf16> to vector<64x64xbf16>
    %603 = arith.truncf %600 : vector<5x64xf32> to vector<5x64xbf16>
    %cst_255 = arith.constant dense<0.000000e+00> : vector<5x64xf32>
    %604 = tpu.matmul %603, %602, %cst_255 {dimension_numbers = #tpu.dot_dimension_numbers<[1], [0], [0], [1], [0, 0, 1, 1], [], []>} : vector<5x64xbf16>, vector<64x64xbf16>, vector<5x64xf32> -> vector<5x64xf32>
    %605 = arith.addf %555, %604 : vector<5x64xf32>
    %c0_256 = arith.constant 0 : index
    %c0_257 = arith.constant 0 : index
    %c0_258 = arith.constant 0 : index
    %606 = vector.load %arg32[%c0_256, %c0_257, %c0_258] : memref<2x1x64xf32, #tpu.memory_space<vmem>>, vector<1x1x64xf32>
    %607 = vector.shape_cast %606 : vector<1x1x64xf32> to vector<1x64xf32>
    %608 = vector.broadcast %607 : vector<1x64xf32> to vector<5x64xf32>
    %609 = arith.addf %605, %608 : vector<5x64xf32>
    %c1_259 = arith.constant 1 : index
    %c0_260 = arith.constant 0 : index
    %c0_261 = arith.constant 0 : index
    %610 = vector.load %arg21[%c1_259, %c0_260, %c0_261] : memref<2x1x64xf32, #tpu.memory_space<vmem>>, vector<1x1x64xf32>
    %611 = vector.shape_cast %610 : vector<1x1x64xf32> to vector<1x64xf32>
    %c1_262 = arith.constant 1 : index
    %c0_263 = arith.constant 0 : index
    %c0_264 = arith.constant 0 : index
    %612 = vector.load %arg22[%c1_262, %c0_263, %c0_264] : memref<2x1x64xf32, #tpu.memory_space<vmem>>, vector<1x1x64xf32>
    %613 = vector.shape_cast %612 : vector<1x1x64xf32> to vector<1x64xf32>
    %cst_265 = arith.constant dense<0.000000e+00> : vector<5xf32>
    %614 = vector.multi_reduction <add>, %609, %cst_265 [1] : vector<5x64xf32> to vector<5xf32>
    %615 = vector.shape_cast %614 : vector<5xf32> to vector<5x1xf32>
    %cst_266 = arith.constant 6.400000e+01 : f32
    %616 = vector.broadcast %cst_266 : f32 to vector<5x1xf32>
    %617 = arith.divf %615, %616 : vector<5x1xf32>
    %618 = vector.broadcast %617 : vector<5x1xf32> to vector<5x64xf32>
    %619 = arith.subf %609, %618 : vector<5x64xf32>
    %620 = arith.mulf %619, %619 : vector<5x64xf32>
    %cst_267 = arith.constant dense<0.000000e+00> : vector<5xf32>
    %621 = vector.multi_reduction <add>, %620, %cst_267 [1] : vector<5x64xf32> to vector<5xf32>
    %622 = vector.shape_cast %621 : vector<5xf32> to vector<5x1xf32>
    %cst_268 = arith.constant 6.400000e+01 : f32
    %623 = vector.broadcast %cst_268 : f32 to vector<5x1xf32>
    %624 = arith.divf %622, %623 : vector<5x1xf32>
    %cst_269 = arith.constant 9.99999997E-7 : f32
    %625 = vector.broadcast %cst_269 : f32 to vector<5x1xf32>
    %626 = arith.addf %624, %625 : vector<5x1xf32>
    %627 = math.rsqrt %626 : vector<5x1xf32>
    %628 = vector.broadcast %627 : vector<5x1xf32> to vector<5x64xf32>
    %629 = arith.mulf %619, %628 : vector<5x64xf32>
    %630 = vector.broadcast %611 : vector<1x64xf32> to vector<5x64xf32>
    %631 = arith.mulf %629, %630 : vector<5x64xf32>
    %632 = vector.broadcast %613 : vector<1x64xf32> to vector<5x64xf32>
    %633 = arith.addf %631, %632 : vector<5x64xf32>
    %c1_270 = arith.constant 1 : index
    %c0_271 = arith.constant 0 : index
    %c0_272 = arith.constant 0 : index
    %634 = vector.load %arg23[%c1_270, %c0_271, %c0_272] : memref<2x64x192xbf16, #tpu.memory_space<vmem>>, vector<1x64x192xbf16>
    %635 = vector.shape_cast %634 : vector<1x64x192xbf16> to vector<64x192xbf16>
    %636 = arith.truncf %633 : vector<5x64xf32> to vector<5x64xbf16>
    %cst_273 = arith.constant dense<0.000000e+00> : vector<5x192xf32>
    %637 = tpu.matmul %636, %635, %cst_273 {dimension_numbers = #tpu.dot_dimension_numbers<[1], [0], [0], [1], [0, 0, 1, 1], [], []>} : vector<5x64xbf16>, vector<64x192xbf16>, vector<5x192xf32> -> vector<5x192xf32>
    %c1_274 = arith.constant 1 : index
    %c0_275 = arith.constant 0 : index
    %c0_276 = arith.constant 0 : index
    %638 = vector.load %arg24[%c1_274, %c0_275, %c0_276] : memref<2x1x192xf32, #tpu.memory_space<vmem>>, vector<1x1x192xf32>
    %639 = vector.shape_cast %638 : vector<1x1x192xf32> to vector<1x192xf32>
    %640 = vector.broadcast %639 : vector<1x192xf32> to vector<5x192xf32>
    %641 = arith.addf %637, %640 : vector<5x192xf32>
    %642 = vector.extract_strided_slice %641 {offsets = [0, 0], sizes = [5, 16], strides = [1, 1]} : vector<5x192xf32> to vector<5x16xf32>
    %643 = vector.extract_strided_slice %641 {offsets = [0, 64], sizes = [5, 16], strides = [1, 1]} : vector<5x192xf32> to vector<5x16xf32>
    %644 = vector.extract_strided_slice %641 {offsets = [0, 128], sizes = [5, 16], strides = [1, 1]} : vector<5x192xf32> to vector<5x16xf32>
    %645 = arith.truncf %642 : vector<5x16xf32> to vector<5x16xbf16>
    %646 = arith.truncf %643 : vector<5x16xf32> to vector<5x16xbf16>
    %cst_277 = arith.constant dense<0.000000e+00> : vector<5x5xf32>
    %647 = tpu.matmul %645, %646, %cst_277 {dimension_numbers = #tpu.dot_dimension_numbers<[1], [1], [0], [0], [0, 0, 1, 0], [], []>} : vector<5x16xbf16>, vector<5x16xbf16>, vector<5x5xf32> -> vector<5x5xf32>
    %cst_278 = arith.constant 2.500000e-01 : f32
    %648 = vector.broadcast %cst_278 : f32 to vector<5x5xf32>
    %649 = arith.mulf %647, %648 : vector<5x5xf32>
    %cst_279 = arith.constant dense<0xFF800000> : vector<5xf32>
    %650 = vector.multi_reduction <maximumf>, %649, %cst_279 [1] : vector<5x5xf32> to vector<5xf32>
    %651 = vector.shape_cast %650 : vector<5xf32> to vector<5x1xf32>
    %652 = vector.broadcast %651 : vector<5x1xf32> to vector<5x5xf32>
    %653 = arith.subf %649, %652 : vector<5x5xf32>
    %654 = math.exp %653 : vector<5x5xf32>
    %cst_280 = arith.constant dense<0.000000e+00> : vector<5xf32>
    %655 = vector.multi_reduction <add>, %654, %cst_280 [1] : vector<5x5xf32> to vector<5xf32>
    %656 = vector.shape_cast %655 : vector<5xf32> to vector<5x1xf32>
    %657 = vector.broadcast %656 : vector<5x1xf32> to vector<5x5xf32>
    %658 = arith.divf %654, %657 : vector<5x5xf32>
    %659 = arith.truncf %658 : vector<5x5xf32> to vector<5x5xbf16>
    %660 = arith.truncf %644 : vector<5x16xf32> to vector<5x16xbf16>
    %cst_281 = arith.constant dense<0.000000e+00> : vector<5x16xf32>
    %661 = tpu.matmul %659, %660, %cst_281 {dimension_numbers = #tpu.dot_dimension_numbers<[1], [0], [0], [1], [0, 0, 1, 1], [], []>} : vector<5x5xbf16>, vector<5x16xbf16>, vector<5x16xf32> -> vector<5x16xf32>
    %662 = vector.extract_strided_slice %641 {offsets = [0, 16], sizes = [5, 16], strides = [1, 1]} : vector<5x192xf32> to vector<5x16xf32>
    %663 = vector.extract_strided_slice %641 {offsets = [0, 80], sizes = [5, 16], strides = [1, 1]} : vector<5x192xf32> to vector<5x16xf32>
    %664 = vector.extract_strided_slice %641 {offsets = [0, 144], sizes = [5, 16], strides = [1, 1]} : vector<5x192xf32> to vector<5x16xf32>
    %665 = arith.truncf %662 : vector<5x16xf32> to vector<5x16xbf16>
    %666 = arith.truncf %663 : vector<5x16xf32> to vector<5x16xbf16>
    %cst_282 = arith.constant dense<0.000000e+00> : vector<5x5xf32>
    %667 = tpu.matmul %665, %666, %cst_282 {dimension_numbers = #tpu.dot_dimension_numbers<[1], [1], [0], [0], [0, 0, 1, 0], [], []>} : vector<5x16xbf16>, vector<5x16xbf16>, vector<5x5xf32> -> vector<5x5xf32>
    %cst_283 = arith.constant 2.500000e-01 : f32
    %668 = vector.broadcast %cst_283 : f32 to vector<5x5xf32>
    %669 = arith.mulf %667, %668 : vector<5x5xf32>
    %cst_284 = arith.constant dense<0xFF800000> : vector<5xf32>
    %670 = vector.multi_reduction <maximumf>, %669, %cst_284 [1] : vector<5x5xf32> to vector<5xf32>
    %671 = vector.shape_cast %670 : vector<5xf32> to vector<5x1xf32>
    %672 = vector.broadcast %671 : vector<5x1xf32> to vector<5x5xf32>
    %673 = arith.subf %669, %672 : vector<5x5xf32>
    %674 = math.exp %673 : vector<5x5xf32>
    %cst_285 = arith.constant dense<0.000000e+00> : vector<5xf32>
    %675 = vector.multi_reduction <add>, %674, %cst_285 [1] : vector<5x5xf32> to vector<5xf32>
    %676 = vector.shape_cast %675 : vector<5xf32> to vector<5x1xf32>
    %677 = vector.broadcast %676 : vector<5x1xf32> to vector<5x5xf32>
    %678 = arith.divf %674, %677 : vector<5x5xf32>
    %679 = arith.truncf %678 : vector<5x5xf32> to vector<5x5xbf16>
    %680 = arith.truncf %664 : vector<5x16xf32> to vector<5x16xbf16>
    %cst_286 = arith.constant dense<0.000000e+00> : vector<5x16xf32>
    %681 = tpu.matmul %679, %680, %cst_286 {dimension_numbers = #tpu.dot_dimension_numbers<[1], [0], [0], [1], [0, 0, 1, 1], [], []>} : vector<5x5xbf16>, vector<5x16xbf16>, vector<5x16xf32> -> vector<5x16xf32>
    %682 = vector.extract_strided_slice %641 {offsets = [0, 32], sizes = [5, 16], strides = [1, 1]} : vector<5x192xf32> to vector<5x16xf32>
    %683 = vector.extract_strided_slice %641 {offsets = [0, 96], sizes = [5, 16], strides = [1, 1]} : vector<5x192xf32> to vector<5x16xf32>
    %684 = vector.extract_strided_slice %641 {offsets = [0, 160], sizes = [5, 16], strides = [1, 1]} : vector<5x192xf32> to vector<5x16xf32>
    %685 = arith.truncf %682 : vector<5x16xf32> to vector<5x16xbf16>
    %686 = arith.truncf %683 : vector<5x16xf32> to vector<5x16xbf16>
    %cst_287 = arith.constant dense<0.000000e+00> : vector<5x5xf32>
    %687 = tpu.matmul %685, %686, %cst_287 {dimension_numbers = #tpu.dot_dimension_numbers<[1], [1], [0], [0], [0, 0, 1, 0], [], []>} : vector<5x16xbf16>, vector<5x16xbf16>, vector<5x5xf32> -> vector<5x5xf32>
    %cst_288 = arith.constant 2.500000e-01 : f32
    %688 = vector.broadcast %cst_288 : f32 to vector<5x5xf32>
    %689 = arith.mulf %687, %688 : vector<5x5xf32>
    %cst_289 = arith.constant dense<0xFF800000> : vector<5xf32>
    %690 = vector.multi_reduction <maximumf>, %689, %cst_289 [1] : vector<5x5xf32> to vector<5xf32>
    %691 = vector.shape_cast %690 : vector<5xf32> to vector<5x1xf32>
    %692 = vector.broadcast %691 : vector<5x1xf32> to vector<5x5xf32>
    %693 = arith.subf %689, %692 : vector<5x5xf32>
    %694 = math.exp %693 : vector<5x5xf32>
    %cst_290 = arith.constant dense<0.000000e+00> : vector<5xf32>
    %695 = vector.multi_reduction <add>, %694, %cst_290 [1] : vector<5x5xf32> to vector<5xf32>
    %696 = vector.shape_cast %695 : vector<5xf32> to vector<5x1xf32>
    %697 = vector.broadcast %696 : vector<5x1xf32> to vector<5x5xf32>
    %698 = arith.divf %694, %697 : vector<5x5xf32>
    %699 = arith.truncf %698 : vector<5x5xf32> to vector<5x5xbf16>
    %700 = arith.truncf %684 : vector<5x16xf32> to vector<5x16xbf16>
    %cst_291 = arith.constant dense<0.000000e+00> : vector<5x16xf32>
    %701 = tpu.matmul %699, %700, %cst_291 {dimension_numbers = #tpu.dot_dimension_numbers<[1], [0], [0], [1], [0, 0, 1, 1], [], []>} : vector<5x5xbf16>, vector<5x16xbf16>, vector<5x16xf32> -> vector<5x16xf32>
    %702 = vector.extract_strided_slice %641 {offsets = [0, 48], sizes = [5, 16], strides = [1, 1]} : vector<5x192xf32> to vector<5x16xf32>
    %703 = vector.extract_strided_slice %641 {offsets = [0, 112], sizes = [5, 16], strides = [1, 1]} : vector<5x192xf32> to vector<5x16xf32>
    %704 = vector.extract_strided_slice %641 {offsets = [0, 176], sizes = [5, 16], strides = [1, 1]} : vector<5x192xf32> to vector<5x16xf32>
    %705 = arith.truncf %702 : vector<5x16xf32> to vector<5x16xbf16>
    %706 = arith.truncf %703 : vector<5x16xf32> to vector<5x16xbf16>
    %cst_292 = arith.constant dense<0.000000e+00> : vector<5x5xf32>
    %707 = tpu.matmul %705, %706, %cst_292 {dimension_numbers = #tpu.dot_dimension_numbers<[1], [1], [0], [0], [0, 0, 1, 0], [], []>} : vector<5x16xbf16>, vector<5x16xbf16>, vector<5x5xf32> -> vector<5x5xf32>
    %cst_293 = arith.constant 2.500000e-01 : f32
    %708 = vector.broadcast %cst_293 : f32 to vector<5x5xf32>
    %709 = arith.mulf %707, %708 : vector<5x5xf32>
    %cst_294 = arith.constant dense<0xFF800000> : vector<5xf32>
    %710 = vector.multi_reduction <maximumf>, %709, %cst_294 [1] : vector<5x5xf32> to vector<5xf32>
    %711 = vector.shape_cast %710 : vector<5xf32> to vector<5x1xf32>
    %712 = vector.broadcast %711 : vector<5x1xf32> to vector<5x5xf32>
    %713 = arith.subf %709, %712 : vector<5x5xf32>
    %714 = math.exp %713 : vector<5x5xf32>
    %cst_295 = arith.constant dense<0.000000e+00> : vector<5xf32>
    %715 = vector.multi_reduction <add>, %714, %cst_295 [1] : vector<5x5xf32> to vector<5xf32>
    %716 = vector.shape_cast %715 : vector<5xf32> to vector<5x1xf32>
    %717 = vector.broadcast %716 : vector<5x1xf32> to vector<5x5xf32>
    %718 = arith.divf %714, %717 : vector<5x5xf32>
    %719 = arith.truncf %718 : vector<5x5xf32> to vector<5x5xbf16>
    %720 = arith.truncf %704 : vector<5x16xf32> to vector<5x16xbf16>
    %cst_296 = arith.constant dense<0.000000e+00> : vector<5x16xf32>
    %721 = tpu.matmul %719, %720, %cst_296 {dimension_numbers = #tpu.dot_dimension_numbers<[1], [0], [0], [1], [0, 0, 1, 1], [], []>} : vector<5x5xbf16>, vector<5x16xbf16>, vector<5x16xf32> -> vector<5x16xf32>
    %722 = tpu.concatenate %661, %681, %701, %721 in 1 : vector<5x16xf32>, vector<5x16xf32>, vector<5x16xf32>, vector<5x16xf32> -> vector<5x64xf32>
    %c1_297 = arith.constant 1 : index
    %c0_298 = arith.constant 0 : index
    %c0_299 = arith.constant 0 : index
    %723 = vector.load %arg25[%c1_297, %c0_298, %c0_299] : memref<2x64x64xbf16, #tpu.memory_space<vmem>>, vector<1x64x64xbf16>
    %724 = vector.shape_cast %723 : vector<1x64x64xbf16> to vector<64x64xbf16>
    %725 = arith.truncf %722 : vector<5x64xf32> to vector<5x64xbf16>
    %cst_300 = arith.constant dense<0.000000e+00> : vector<5x64xf32>
    %726 = tpu.matmul %725, %724, %cst_300 {dimension_numbers = #tpu.dot_dimension_numbers<[1], [0], [0], [1], [0, 0, 1, 1], [], []>} : vector<5x64xbf16>, vector<64x64xbf16>, vector<5x64xf32> -> vector<5x64xf32>
    %727 = arith.addf %609, %726 : vector<5x64xf32>
    %c1_301 = arith.constant 1 : index
    %c0_302 = arith.constant 0 : index
    %c0_303 = arith.constant 0 : index
    %728 = vector.load %arg26[%c1_301, %c0_302, %c0_303] : memref<2x1x64xf32, #tpu.memory_space<vmem>>, vector<1x1x64xf32>
    %729 = vector.shape_cast %728 : vector<1x1x64xf32> to vector<1x64xf32>
    %730 = vector.broadcast %729 : vector<1x64xf32> to vector<5x64xf32>
    %731 = arith.addf %727, %730 : vector<5x64xf32>
    %c1_304 = arith.constant 1 : index
    %c0_305 = arith.constant 0 : index
    %c0_306 = arith.constant 0 : index
    %732 = vector.load %arg27[%c1_304, %c0_305, %c0_306] : memref<2x1x64xf32, #tpu.memory_space<vmem>>, vector<1x1x64xf32>
    %733 = vector.shape_cast %732 : vector<1x1x64xf32> to vector<1x64xf32>
    %c1_307 = arith.constant 1 : index
    %c0_308 = arith.constant 0 : index
    %c0_309 = arith.constant 0 : index
    %734 = vector.load %arg28[%c1_307, %c0_308, %c0_309] : memref<2x1x64xf32, #tpu.memory_space<vmem>>, vector<1x1x64xf32>
    %735 = vector.shape_cast %734 : vector<1x1x64xf32> to vector<1x64xf32>
    %cst_310 = arith.constant dense<0.000000e+00> : vector<5xf32>
    %736 = vector.multi_reduction <add>, %731, %cst_310 [1] : vector<5x64xf32> to vector<5xf32>
    %737 = vector.shape_cast %736 : vector<5xf32> to vector<5x1xf32>
    %cst_311 = arith.constant 6.400000e+01 : f32
    %738 = vector.broadcast %cst_311 : f32 to vector<5x1xf32>
    %739 = arith.divf %737, %738 : vector<5x1xf32>
    %740 = vector.broadcast %739 : vector<5x1xf32> to vector<5x64xf32>
    %741 = arith.subf %731, %740 : vector<5x64xf32>
    %742 = arith.mulf %741, %741 : vector<5x64xf32>
    %cst_312 = arith.constant dense<0.000000e+00> : vector<5xf32>
    %743 = vector.multi_reduction <add>, %742, %cst_312 [1] : vector<5x64xf32> to vector<5xf32>
    %744 = vector.shape_cast %743 : vector<5xf32> to vector<5x1xf32>
    %cst_313 = arith.constant 6.400000e+01 : f32
    %745 = vector.broadcast %cst_313 : f32 to vector<5x1xf32>
    %746 = arith.divf %744, %745 : vector<5x1xf32>
    %cst_314 = arith.constant 9.99999997E-7 : f32
    %747 = vector.broadcast %cst_314 : f32 to vector<5x1xf32>
    %748 = arith.addf %746, %747 : vector<5x1xf32>
    %749 = math.rsqrt %748 : vector<5x1xf32>
    %750 = vector.broadcast %749 : vector<5x1xf32> to vector<5x64xf32>
    %751 = arith.mulf %741, %750 : vector<5x64xf32>
    %752 = vector.broadcast %733 : vector<1x64xf32> to vector<5x64xf32>
    %753 = arith.mulf %751, %752 : vector<5x64xf32>
    %754 = vector.broadcast %735 : vector<1x64xf32> to vector<5x64xf32>
    %755 = arith.addf %753, %754 : vector<5x64xf32>
    %c1_315 = arith.constant 1 : index
    %c0_316 = arith.constant 0 : index
    %c0_317 = arith.constant 0 : index
    %756 = vector.load %arg29[%c1_315, %c0_316, %c0_317] : memref<2x64x64xbf16, #tpu.memory_space<vmem>>, vector<1x64x64xbf16>
    %757 = vector.shape_cast %756 : vector<1x64x64xbf16> to vector<64x64xbf16>
    %758 = arith.truncf %755 : vector<5x64xf32> to vector<5x64xbf16>
    %cst_318 = arith.constant dense<0.000000e+00> : vector<5x64xf32>
    %759 = tpu.matmul %758, %757, %cst_318 {dimension_numbers = #tpu.dot_dimension_numbers<[1], [0], [0], [1], [0, 0, 1, 1], [], []>} : vector<5x64xbf16>, vector<64x64xbf16>, vector<5x64xf32> -> vector<5x64xf32>
    %c1_319 = arith.constant 1 : index
    %c0_320 = arith.constant 0 : index
    %c0_321 = arith.constant 0 : index
    %760 = vector.load %arg30[%c1_319, %c0_320, %c0_321] : memref<2x1x64xf32, #tpu.memory_space<vmem>>, vector<1x1x64xf32>
    %761 = vector.shape_cast %760 : vector<1x1x64xf32> to vector<1x64xf32>
    %762 = vector.broadcast %761 : vector<1x64xf32> to vector<5x64xf32>
    %763 = arith.addf %759, %762 : vector<5x64xf32>
    %764 = arith.mulf %763, %763 : vector<5x64xf32>
    %765 = arith.mulf %763, %764 : vector<5x64xf32>
    %cst_322 = arith.constant 4.471500e-02 : f32
    %766 = vector.broadcast %cst_322 : f32 to vector<5x64xf32>
    %767 = arith.mulf %766, %765 : vector<5x64xf32>
    %768 = arith.addf %763, %767 : vector<5x64xf32>
    %cst_323 = arith.constant 0.797884583 : f32
    %769 = vector.broadcast %cst_323 : f32 to vector<5x64xf32>
    %770 = arith.mulf %769, %768 : vector<5x64xf32>
    %771 = math.tanh %770 : vector<5x64xf32>
    %cst_324 = arith.constant 1.000000e+00 : f32
    %772 = vector.broadcast %cst_324 : f32 to vector<5x64xf32>
    %773 = arith.addf %772, %771 : vector<5x64xf32>
    %cst_325 = arith.constant 5.000000e-01 : f32
    %774 = vector.broadcast %cst_325 : f32 to vector<5x64xf32>
    %775 = arith.mulf %774, %773 : vector<5x64xf32>
    %776 = arith.mulf %763, %775 : vector<5x64xf32>
    %c1_326 = arith.constant 1 : index
    %c0_327 = arith.constant 0 : index
    %c0_328 = arith.constant 0 : index
    %777 = vector.load %arg31[%c1_326, %c0_327, %c0_328] : memref<2x64x64xbf16, #tpu.memory_space<vmem>>, vector<1x64x64xbf16>
    %778 = vector.shape_cast %777 : vector<1x64x64xbf16> to vector<64x64xbf16>
    %779 = arith.truncf %776 : vector<5x64xf32> to vector<5x64xbf16>
    %cst_329 = arith.constant dense<0.000000e+00> : vector<5x64xf32>
    %780 = tpu.matmul %779, %778, %cst_329 {dimension_numbers = #tpu.dot_dimension_numbers<[1], [0], [0], [1], [0, 0, 1, 1], [], []>} : vector<5x64xbf16>, vector<64x64xbf16>, vector<5x64xf32> -> vector<5x64xf32>
    %781 = arith.addf %731, %780 : vector<5x64xf32>
    %c1_330 = arith.constant 1 : index
    %c0_331 = arith.constant 0 : index
    %c0_332 = arith.constant 0 : index
    %782 = vector.load %arg32[%c1_330, %c0_331, %c0_332] : memref<2x1x64xf32, #tpu.memory_space<vmem>>, vector<1x1x64xf32>
    %783 = vector.shape_cast %782 : vector<1x1x64xf32> to vector<1x64xf32>
    %784 = vector.broadcast %783 : vector<1x64xf32> to vector<5x64xf32>
    %785 = arith.addf %781, %784 : vector<5x64xf32>
    %c0_333 = arith.constant 0 : index
    %c0_334 = arith.constant 0 : index
    %786 = vector.load %arg33[%c0_333, %c0_334] : memref<1x64xf32, #tpu.memory_space<vmem>>, vector<1x64xf32>
    %c0_335 = arith.constant 0 : index
    %c0_336 = arith.constant 0 : index
    %787 = vector.load %arg34[%c0_335, %c0_336] : memref<1x64xf32, #tpu.memory_space<vmem>>, vector<1x64xf32>
    %cst_337 = arith.constant dense<0.000000e+00> : vector<5xf32>
    %788 = vector.multi_reduction <add>, %785, %cst_337 [1] : vector<5x64xf32> to vector<5xf32>
    %789 = vector.shape_cast %788 : vector<5xf32> to vector<5x1xf32>
    %cst_338 = arith.constant 6.400000e+01 : f32
    %790 = vector.broadcast %cst_338 : f32 to vector<5x1xf32>
    %791 = arith.divf %789, %790 : vector<5x1xf32>
    %792 = vector.broadcast %791 : vector<5x1xf32> to vector<5x64xf32>
    %793 = arith.subf %785, %792 : vector<5x64xf32>
    %794 = arith.mulf %793, %793 : vector<5x64xf32>
    %cst_339 = arith.constant dense<0.000000e+00> : vector<5xf32>
    %795 = vector.multi_reduction <add>, %794, %cst_339 [1] : vector<5x64xf32> to vector<5xf32>
    %796 = vector.shape_cast %795 : vector<5xf32> to vector<5x1xf32>
    %cst_340 = arith.constant 6.400000e+01 : f32
    %797 = vector.broadcast %cst_340 : f32 to vector<5x1xf32>
    %798 = arith.divf %796, %797 : vector<5x1xf32>
    %cst_341 = arith.constant 9.99999997E-7 : f32
    %799 = vector.broadcast %cst_341 : f32 to vector<5x1xf32>
    %800 = arith.addf %798, %799 : vector<5x1xf32>
    %801 = math.rsqrt %800 : vector<5x1xf32>
    %802 = vector.broadcast %801 : vector<5x1xf32> to vector<5x64xf32>
    %803 = arith.mulf %793, %802 : vector<5x64xf32>
    %804 = vector.broadcast %786 : vector<1x64xf32> to vector<5x64xf32>
    %805 = arith.mulf %803, %804 : vector<5x64xf32>
    %806 = vector.broadcast %787 : vector<1x64xf32> to vector<5x64xf32>
    %807 = arith.addf %805, %806 : vector<5x64xf32>
    %cst_342 = arith.constant dense<0.000000e+00> : vector<64xf32>
    %808 = vector.multi_reduction <add>, %807, %cst_342 [0] : vector<5x64xf32> to vector<64xf32>
    %809 = vector.shape_cast %808 : vector<64xf32> to vector<1x64xf32>
    %cst_343 = arith.constant 2.000000e-01 : f32
    %810 = vector.broadcast %cst_343 : f32 to vector<1x64xf32>
    %811 = arith.mulf %809, %810 : vector<1x64xf32>
    %c0_344 = arith.constant 0 : index
    %c0_345 = arith.constant 0 : index
    %812 = vector.load %arg35[%c0_344, %c0_345] : memref<64x5xbf16, #tpu.memory_space<vmem>>, vector<64x5xbf16>
    %813 = arith.truncf %811 : vector<1x64xf32> to vector<1x64xbf16>
    %cst_346 = arith.constant dense<0.000000e+00> : vector<1x5xf32>
    %814 = tpu.matmul %813, %812, %cst_346 {dimension_numbers = #tpu.dot_dimension_numbers<[1], [0], [0], [1], [0, 0, 1, 1], [], []>} : vector<1x64xbf16>, vector<64x5xbf16>, vector<1x5xf32> -> vector<1x5xf32>
    %c0_347 = arith.constant 0 : index
    %c0_348 = arith.constant 0 : index
    %815 = vector.load %arg36[%c0_347, %c0_348] : memref<1x5xf32, #tpu.memory_space<vmem>>, vector<1x5xf32>
    %816 = arith.addf %814, %815 : vector<1x5xf32>
    %c0_349 = arith.constant 0 : index
    %c0_350 = arith.constant 0 : index
    %c0_351 = arith.constant 0 : index
    %817 = vector.load %arg37[%c0_349, %c0_350, %c0_351] : memref<1x1x5xf32, #tpu.memory_space<vmem>>, vector<1x1x5xf32>
    %818 = vector.shape_cast %817 : vector<1x1x5xf32> to vector<1x5xf32>
    %819 = vector.shape_cast %816 : vector<1x5xf32> to vector<1x1x5xf32>
    tpu.vector_store %arg37[%c0_349, %c0_350, %c0_351], %819 {strides = array<i32>} : memref<1x1x5xf32, #tpu.memory_space<vmem>>, vector<1x1x5xf32>,
    return
  }
  func.func @transform_0(%arg0: i32) -> (i32, i32, i32) {
    %c0_i32 = arith.constant 0 : i32
    %c0_i32_0 = arith.constant 0 : i32
    %c0_i32_1 = arith.constant 0 : i32
    return %arg0, %c0_i32, %c0_i32_0 : i32, i32, i32
  }
  func.func @transform_1(%arg0: i32) -> (i32, i32) {
    %c0_i32 = arith.constant 0 : i32
    %c0_i32_0 = arith.constant 0 : i32
    %c0_i32_1 = arith.constant 0 : i32
    return %c0_i32, %c0_i32_0 : i32, i32
  }
  func.func @transform_2(%arg0: i32) -> (i32, i32) {
    %c0_i32 = arith.constant 0 : i32
    %c0_i32_0 = arith.constant 0 : i32
    %c0_i32_1 = arith.constant 0 : i32
    return %c0_i32, %c0_i32_0 : i32, i32
  }
  func.func @transform_3(%arg0: i32) -> (i32, i32) {
    %c0_i32 = arith.constant 0 : i32
    %c0_i32_0 = arith.constant 0 : i32
    %c0_i32_1 = arith.constant 0 : i32
    return %c0_i32, %c0_i32_0 : i32, i32
  }
  func.func @transform_4(%arg0: i32) -> (i32, i32) {
    %c0_i32 = arith.constant 0 : i32
    %c0_i32_0 = arith.constant 0 : i32
    %c0_i32_1 = arith.constant 0 : i32
    return %c0_i32, %c0_i32_0 : i32, i32
  }
  func.func @transform_5(%arg0: i32) -> (i32, i32, i32) {
    %c0_i32 = arith.constant 0 : i32
    %c0_i32_0 = arith.constant 0 : i32
    %c0_i32_1 = arith.constant 0 : i32
    %c0_i32_2 = arith.constant 0 : i32
    return %c0_i32, %c0_i32_0, %c0_i32_1 : i32, i32, i32
  }
  func.func @transform_6(%arg0: i32) -> (i32, i32, i32) {
    %c0_i32 = arith.constant 0 : i32
    %c0_i32_0 = arith.constant 0 : i32
    %c0_i32_1 = arith.constant 0 : i32
    %c0_i32_2 = arith.constant 0 : i32
    return %c0_i32, %c0_i32_0, %c0_i32_1 : i32, i32, i32
  }
  func.func @transform_7(%arg0: i32) -> (i32, i32, i32) {
    %c0_i32 = arith.constant 0 : i32
    %c0_i32_0 = arith.constant 0 : i32
    %c0_i32_1 = arith.constant 0 : i32
    %c0_i32_2 = arith.constant 0 : i32
    return %c0_i32, %c0_i32_0, %c0_i32_1 : i32, i32, i32
  }
  func.func @transform_8(%arg0: i32) -> (i32, i32, i32) {
    %c0_i32 = arith.constant 0 : i32
    %c0_i32_0 = arith.constant 0 : i32
    %c0_i32_1 = arith.constant 0 : i32
    %c0_i32_2 = arith.constant 0 : i32
    return %c0_i32, %c0_i32_0, %c0_i32_1 : i32, i32, i32
  }
  func.func @transform_9(%arg0: i32) -> (i32, i32, i32) {
    %c0_i32 = arith.constant 0 : i32
    %c0_i32_0 = arith.constant 0 : i32
    %c0_i32_1 = arith.constant 0 : i32
    %c0_i32_2 = arith.constant 0 : i32
    return %c0_i32, %c0_i32_0, %c0_i32_1 : i32, i32, i32
  }
  func.func @transform_10(%arg0: i32) -> (i32, i32, i32) {
    %c0_i32 = arith.constant 0 : i32
    %c0_i32_0 = arith.constant 0 : i32
    %c0_i32_1 = arith.constant 0 : i32
    %c0_i32_2 = arith.constant 0 : i32
    return %c0_i32, %c0_i32_0, %c0_i32_1 : i32, i32, i32
  }
  func.func @transform_11(%arg0: i32) -> (i32, i32, i32) {
    %c0_i32 = arith.constant 0 : i32
    %c0_i32_0 = arith.constant 0 : i32
    %c0_i32_1 = arith.constant 0 : i32
    %c0_i32_2 = arith.constant 0 : i32
    return %c0_i32, %c0_i32_0, %c0_i32_1 : i32, i32, i32
  }
  func.func @transform_12(%arg0: i32) -> (i32, i32, i32) {
    %c0_i32 = arith.constant 0 : i32
    %c0_i32_0 = arith.constant 0 : i32
    %c0_i32_1 = arith.constant 0 : i32
    %c0_i32_2 = arith.constant 0 : i32
    return %c0_i32, %c0_i32_0, %c0_i32_1 : i32, i32, i32
  }
  func.func @transform_13(%arg0: i32) -> (i32, i32, i32) {
    %c0_i32 = arith.constant 0 : i32
    %c0_i32_0 = arith.constant 0 : i32
    %c0_i32_1 = arith.constant 0 : i32
    %c0_i32_2 = arith.constant 0 : i32
    return %c0_i32, %c0_i32_0, %c0_i32_1 : i32, i32, i32
  }
  func.func @transform_14(%arg0: i32) -> (i32, i32, i32) {
    %c0_i32 = arith.constant 0 : i32
    %c0_i32_0 = arith.constant 0 : i32
    %c0_i32_1 = arith.constant 0 : i32
    %c0_i32_2 = arith.constant 0 : i32
    return %c0_i32, %c0_i32_0, %c0_i32_1 : i32, i32, i32
  }
  func.func @transform_15(%arg0: i32) -> (i32, i32, i32) {
    %c0_i32 = arith.constant 0 : i32
    %c0_i32_0 = arith.constant 0 : i32
    %c0_i32_1 = arith.constant 0 : i32
    %c0_i32_2 = arith.constant 0 : i32
    return %c0_i32, %c0_i32_0, %c0_i32_1 : i32, i32, i32
  }
  func.func @transform_16(%arg0: i32) -> (i32, i32, i32) {
    %c0_i32 = arith.constant 0 : i32
    %c0_i32_0 = arith.constant 0 : i32
    %c0_i32_1 = arith.constant 0 : i32
    %c0_i32_2 = arith.constant 0 : i32
    return %c0_i32, %c0_i32_0, %c0_i32_1 : i32, i32, i32
  }
  func.func @transform_17(%arg0: i32) -> (i32, i32) {
    %c0_i32 = arith.constant 0 : i32
    %c0_i32_0 = arith.constant 0 : i32
    %c0_i32_1 = arith.constant 0 : i32
    return %c0_i32, %c0_i32_0 : i32, i32
  }
  func.func @transform_18(%arg0: i32) -> (i32, i32) {
    %c0_i32 = arith.constant 0 : i32
    %c0_i32_0 = arith.constant 0 : i32
    %c0_i32_1 = arith.constant 0 : i32
    return %c0_i32, %c0_i32_0 : i32, i32
  }
  func.func @transform_19(%arg0: i32) -> (i32, i32) {
    %c0_i32 = arith.constant 0 : i32
    %c0_i32_0 = arith.constant 0 : i32
    %c0_i32_1 = arith.constant 0 : i32
    return %c0_i32, %c0_i32_0 : i32, i32
  }
  func.func @transform_20(%arg0: i32) -> (i32, i32, i32) {
    %c0_i32 = arith.constant 0 : i32
    %c0_i32_0 = arith.constant 0 : i32
    %c0_i32_1 = arith.constant 0 : i32
    %c0_i32_2 = arith.constant 0 : i32
    return %c0_i32, %c0_i32_0, %c0_i32_1 : i32, i32, i32
  }
  func.func @transform_21(%arg0: i32) -> (i32, i32, i32) {
    %c0_i32 = arith.constant 0 : i32
    %c0_i32_0 = arith.constant 0 : i32
    %c0_i32_1 = arith.constant 0 : i32
    %c0_i32_2 = arith.constant 0 : i32
    return %c0_i32, %c0_i32_0, %c0_i32_1 : i32, i32, i32
  }
  func.func @transform_22(%arg0: i32) -> (i32, i32, i32) {
    %c0_i32 = arith.constant 0 : i32
    %c0_i32_0 = arith.constant 0 : i32
    %c0_i32_1 = arith.constant 0 : i32
    %c0_i32_2 = arith.constant 0 : i32
    return %c0_i32, %c0_i32_0, %c0_i32_1 : i32, i32, i32
  }
  func.func @transform_23(%arg0: i32) -> (i32, i32, i32) {
    %c0_i32 = arith.constant 0 : i32
    %c0_i32_0 = arith.constant 0 : i32
    %c0_i32_1 = arith.constant 0 : i32
    %c0_i32_2 = arith.constant 0 : i32
    return %c0_i32, %c0_i32_0, %c0_i32_1 : i32, i32, i32
  }
  func.func @transform_24(%arg0: i32) -> (i32, i32, i32) {
    %c0_i32 = arith.constant 0 : i32
    %c0_i32_0 = arith.constant 0 : i32
    %c0_i32_1 = arith.constant 0 : i32
    %c0_i32_2 = arith.constant 0 : i32
    return %c0_i32, %c0_i32_0, %c0_i32_1 : i32, i32, i32
  }
  func.func @transform_25(%arg0: i32) -> (i32, i32, i32) {
    %c0_i32 = arith.constant 0 : i32
    %c0_i32_0 = arith.constant 0 : i32
    %c0_i32_1 = arith.constant 0 : i32
    %c0_i32_2 = arith.constant 0 : i32
    return %c0_i32, %c0_i32_0, %c0_i32_1 : i32, i32, i32
  }
  func.func @transform_26(%arg0: i32) -> (i32, i32, i32) {
    %c0_i32 = arith.constant 0 : i32
    %c0_i32_0 = arith.constant 0 : i32
    %c0_i32_1 = arith.constant 0 : i32
    %c0_i32_2 = arith.constant 0 : i32
    return %c0_i32, %c0_i32_0, %c0_i32_1 : i32, i32, i32
  }
  func.func @transform_27(%arg0: i32) -> (i32, i32, i32) {
    %c0_i32 = arith.constant 0 : i32
    %c0_i32_0 = arith.constant 0 : i32
    %c0_i32_1 = arith.constant 0 : i32
    %c0_i32_2 = arith.constant 0 : i32
    return %c0_i32, %c0_i32_0, %c0_i32_1 : i32, i32, i32
  }
  func.func @transform_28(%arg0: i32) -> (i32, i32, i32) {
    %c0_i32 = arith.constant 0 : i32
    %c0_i32_0 = arith.constant 0 : i32
    %c0_i32_1 = arith.constant 0 : i32
    %c0_i32_2 = arith.constant 0 : i32
    return %c0_i32, %c0_i32_0, %c0_i32_1 : i32, i32, i32
  }
  func.func @transform_29(%arg0: i32) -> (i32, i32, i32) {
    %c0_i32 = arith.constant 0 : i32
    %c0_i32_0 = arith.constant 0 : i32
    %c0_i32_1 = arith.constant 0 : i32
    %c0_i32_2 = arith.constant 0 : i32
    return %c0_i32, %c0_i32_0, %c0_i32_1 : i32, i32, i32
  }
  func.func @transform_30(%arg0: i32) -> (i32, i32, i32) {
    %c0_i32 = arith.constant 0 : i32
    %c0_i32_0 = arith.constant 0 : i32
    %c0_i32_1 = arith.constant 0 : i32
    %c0_i32_2 = arith.constant 0 : i32
    return %c0_i32, %c0_i32_0, %c0_i32_1 : i32, i32, i32
  }
  func.func @transform_31(%arg0: i32) -> (i32, i32, i32) {
    %c0_i32 = arith.constant 0 : i32
    %c0_i32_0 = arith.constant 0 : i32
    %c0_i32_1 = arith.constant 0 : i32
    %c0_i32_2 = arith.constant 0 : i32
    return %c0_i32, %c0_i32_0, %c0_i32_1 : i32, i32, i32
  }
  func.func @transform_32(%arg0: i32) -> (i32, i32) {
    %c0_i32 = arith.constant 0 : i32
    %c0_i32_0 = arith.constant 0 : i32
    %c0_i32_1 = arith.constant 0 : i32
    return %c0_i32, %c0_i32_0 : i32, i32
  }
  func.func @transform_33(%arg0: i32) -> (i32, i32) {
    %c0_i32 = arith.constant 0 : i32
    %c0_i32_0 = arith.constant 0 : i32
    %c0_i32_1 = arith.constant 0 : i32
    return %c0_i32, %c0_i32_0 : i32, i32
  }
  func.func @transform_34(%arg0: i32) -> (i32, i32) {
    %c0_i32 = arith.constant 0 : i32
    %c0_i32_0 = arith.constant 0 : i32
    %c0_i32_1 = arith.constant 0 : i32
    return %c0_i32, %c0_i32_0 : i32, i32
  }
  func.func @transform_35(%arg0: i32) -> (i32, i32) {
    %c0_i32 = arith.constant 0 : i32
    %c0_i32_0 = arith.constant 0 : i32
    %c0_i32_1 = arith.constant 0 : i32
    return %c0_i32, %c0_i32_0 : i32, i32
  }
  func.func @transform_36(%arg0: i32) -> (i32, i32, i32) {
    %c0_i32 = arith.constant 0 : i32
    %c0_i32_0 = arith.constant 0 : i32
    %c0_i32_1 = arith.constant 0 : i32
    return %arg0, %c0_i32, %c0_i32_0 : i32, i32, i32
  }
}

</mosaic_0001>

<llo_original>
// kernel: tile.9
$region0: #{tile.9}
  %s0 = inlined_call_operand.vmem [shape: f32[5,5,64], index: 0, kind: input, shape index: {}]
  %s1 = inlined_call_operand.vmem [shape: f32[25,64], index: 1, kind: output, shape index: {}]
  %v2 = vld [vmem:[%s0] sm:$0x1f]
  %vm3 = vcmask 523264
  %4 = vst.msk [vmem:[%s1] sm:$0x1f] %vm3, %v2
  %s5 = scalar_lea.vmem %s0, 8
  %v6 = vld [vmem:[%s5] sm:$0x1f]
  %vm7 = vcmask 523264
  %s8 = scalar_lea.vmem %s1, 5
  %9 = vst.msk [vmem:[%s8] sm:$0x1f] %vm7, %v6
  %s10 = scalar_lea.vmem %s0, 16
  %v11 = vld [vmem:[%s10] sm:$0x1f]
  %vm12 = vcmask 523264
  %s13 = scalar_lea.vmem %s1, 10
  %14 = vst.msk [vmem:[%s13] sm:$0x1f] %vm12, %v11
  %s15 = scalar_lea.vmem %s0, 24
  %v16 = vld [vmem:[%s15] sm:$0x1f]
  %vm17 = vcmask 523264
  %s18 = scalar_lea.vmem %s1, 15
  %19 = vst.msk [vmem:[%s18] sm:$0x1f] %vm17, %v16
  %s20 = scalar_lea.vmem %s0, 32
  %v21 = vld [vmem:[%s20] sm:$0x1f]
  %vm22 = vcmask 523264
  %s23 = scalar_lea.vmem %s1, 20
  %24 = vst.msk [vmem:[%s23] sm:$0x1f] %vm22, %v21

// kernel: multiscale_forward.1
$region0: #{multiscale_forward.1}
  #allocation0 [shape = 'u32[]', space=smem, size = 0x4, offset = 0x4, fixed_abs, tag = 'smem constant byte address 0x4 - core index']
  #allocation1 [shape = 'u32[144,128]{1,0:T(1,128)}', space=vmem, size = 0x12000, scoped, tag = 'internal scratch']
  %s0 = inlined_call_operand.smem [shape: u32[37], index: -1, kind: input, shape index: {}]
  %s1 = sld [smem:[%s0]]
  %s2 = scalar_lea.smem %s0, 1
  %s3 = sld [smem:[%s2]]
  %s4 = scalar_lea.smem %s0, 2
  %s5 = sld [smem:[%s4]]
  %s6 = scalar_lea.smem %s0, 3
  %s7 = sld [smem:[%s6]]
  %s8 = scalar_lea.smem %s0, 4
  %s9 = sld [smem:[%s8]]
  %s10 = scalar_lea.smem %s0, 5
  %s11 = sld [smem:[%s10]]
  %s12 = scalar_lea.smem %s0, 6
  %s13 = sld [smem:[%s12]]
  %s14 = scalar_lea.smem %s0, 7
  %s15 = sld [smem:[%s14]]
  %s16 = scalar_lea.smem %s0, 8
  %s17 = sld [smem:[%s16]]
  %s18 = scalar_lea.smem %s0, 9
  %s19 = sld [smem:[%s18]]
  %s20 = scalar_lea.smem %s0, 10
  %s21 = sld [smem:[%s20]]
  %s22 = scalar_lea.smem %s0, 11
  %s23 = sld [smem:[%s22]]
  %s24 = scalar_lea.smem %s0, 12
  %s25 = sld [smem:[%s24]]
  %s26 = scalar_lea.smem %s0, 13
  %s27 = sld [smem:[%s26]]
  %s28 = scalar_lea.smem %s0, 14
  %s29 = sld [smem:[%s28]]
  %s30 = scalar_lea.smem %s0, 15
  %s31 = sld [smem:[%s30]]
  %s32 = scalar_lea.smem %s0, 16
  %s33 = sld [smem:[%s32]]
  %s34 = scalar_lea.smem %s0, 17
  %s35 = sld [smem:[%s34]]
  %s36 = scalar_lea.smem %s0, 18
  %s37 = sld [smem:[%s36]]
  %s38 = scalar_lea.smem %s0, 19
  %s39 = sld [smem:[%s38]]
  %s40 = scalar_lea.smem %s0, 20
  %s41 = sld [smem:[%s40]]
  %s42 = scalar_lea.smem %s0, 21
  %s43 = sld [smem:[%s42]]
  %s44 = scalar_lea.smem %s0, 22
  %s45 = sld [smem:[%s44]]
  %s46 = scalar_lea.smem %s0, 23
  %s47 = sld [smem:[%s46]]
  %s48 = scalar_lea.smem %s0, 24
  %s49 = sld [smem:[%s48]]
  %s50 = scalar_lea.smem %s0, 25
  %s51 = sld [smem:[%s50]]
  %s52 = scalar_lea.smem %s0, 26
  %s53 = sld [smem:[%s52]]
  %s54 = scalar_lea.smem %s0, 27
  %s55 = sld [smem:[%s54]]
  %s56 = scalar_lea.smem %s0, 28
  %s57 = sld [smem:[%s56]]
  %s58 = scalar_lea.smem %s0, 29
  %s59 = sld [smem:[%s58]]
  %s60 = scalar_lea.smem %s0, 30
  %s61 = sld [smem:[%s60]]
  %s62 = scalar_lea.smem %s0, 31
  %s63 = sld [smem:[%s62]]
  %s64 = scalar_lea.smem %s0, 32
  %s65 = sld [smem:[%s64]]
  %s66 = scalar_lea.smem %s0, 33
  %s67 = sld [smem:[%s66]]
  %s68 = scalar_lea.smem %s0, 34
  %s69 = sld [smem:[%s68]]
  %s70 = scalar_lea.smem %s0, 35
  %s71 = sld [smem:[%s70]]
  %s72 = scalar_lea.smem %s0, 36
  %s73 = sld [smem:[%s72]]
  %s74 = sld [smem:[#allocation0]]
  $region177: #{multiscale_forward.1} parent=0
    _
  %s76 = ssub.s32 1, %s74
  %s77 = scalar_select 0, %s76, %s74
  $region1: #{multiscale_forward.1} parent=0
    #allocation2 [shape = 'u8[1024]{0}', space=vmem, size = 0x400, scoped, tag = 'output window, operand 0']
    #allocation3 [shape = 's32[2]{0}', space=sflag, size = 0x8, scoped, tag = 'scoped memory for multiscale_forward.1']
    %78 = vsyncpa [#allocation3], 0
    %s79 = scalar_lea.sflag [#allocation3], 1
    %80 = vsyncpa %s79, 0
    loop: start=0, step=1, limit=4
    $region2: #{multiscale_forward.1} parent=1 // loop_pre_header
      _
    $region3: #{multiscale_forward.1} parent=1 // loop_header
      %s82 = sphi 0, %s86
      %p83 = scmp.ge.s32.totalorder %s82, 4
      %s92 = sphi 0, %s94
      %s95 = sphi 0, %s92
      %s96 = sphi 0, %s95
      %s112 = sphi 0, %s96
      %s116 = sphi 0, %s116
      %s118 = sphi 0, %s116
      %s119 = sphi 0, %s118
      %s133 = sphi 0, %s119
      %s137 = sphi 0, %s137
      %s139 = sphi 0, %s137
      %s140 = sphi 0, %s139
      %s154 = sphi 0, %s140
      %s158 = sphi 0, %s158
      %s160 = sphi 0, %s158
      %s161 = sphi 0, %s160
      %s175 = sphi 0, %s161
      %s179 = sphi 0, %s179
      %s181 = sphi 0, %s179
      %s182 = sphi 0, %s181
      %s196 = sphi 0, %s182
      %s200 = sphi 0, %s200
      %s202 = sphi 0, %s200
      %s203 = sphi 0, %s202
      %s217 = sphi 0, %s203
      %s221 = sphi 0, %s221
      %s223 = sphi 0, %s221
      %s224 = sphi 0, %s223
      %s238 = sphi 0, %s224
      %s242 = sphi 0, %s242
      %s244 = sphi 0, %s242
      %s245 = sphi 0, %s244
      %s259 = sphi 0, %s245
      %s263 = sphi 0, %s263
      %s265 = sphi 0, %s263
      %s266 = sphi 0, %s265
      %s280 = sphi 0, %s266
      %s284 = sphi 0, %s284
      %s286 = sphi 0, %s284
      %s287 = sphi 0, %s286
      %s301 = sphi 0, %s287
      %s305 = sphi 0, %s305
      %s307 = sphi 0, %s305
      %s308 = sphi 0, %s307
      %s322 = sphi 0, %s308
      %s326 = sphi 0, %s326
      %s328 = sphi 0, %s326
      %s329 = sphi 0, %s328
      %s343 = sphi 0, %s329
      %s347 = sphi 0, %s347
      %s349 = sphi 0, %s347
      %s350 = sphi 0, %s349
      %s364 = sphi 0, %s350
      %s368 = sphi 0, %s368
      %s370 = sphi 0, %s368
      %s371 = sphi 0, %s370
      %s385 = sphi 0, %s371
      %s389 = sphi 0, %s389
      %s391 = sphi 0, %s389
      %s392 = sphi 0, %s391
      %s406 = sphi 0, %s392
      %s410 = sphi 0, %s410
      %s412 = sphi 0, %s410
      %s413 = sphi 0, %s412
      %s427 = sphi 0, %s413
      %s431 = sphi 0, %s431
      %s433 = sphi 0, %s431
      %s434 = sphi 0, %s433
      %s448 = sphi 0, %s434
      %s452 = sphi 0, %s452
      %s454 = sphi 0, %s452
      %s455 = sphi 0, %s454
      %s469 = sphi 0, %s455
      %s473 = sphi 0, %s473
      %s475 = sphi 0, %s473
      %s476 = sphi 0, %s475
      %s490 = sphi 0, %s476
      %s494 = sphi 0, %s494
      %s496 = sphi 0, %s494
      %s497 = sphi 0, %s496
      %s511 = sphi 0, %s497
      %s515 = sphi 0, %s515
      %s517 = sphi 0, %s515
      %s518 = sphi 0, %s517
      %s532 = sphi 0, %s518
      %s536 = sphi 0, %s536
      %s538 = sphi 0, %s536
      %s539 = sphi 0, %s538
      %s553 = sphi 0, %s539
      %s557 = sphi 0, %s557
      %s559 = sphi 0, %s557
      %s560 = sphi 0, %s559
      %s574 = sphi 0, %s560
      %s578 = sphi 0, %s578
      %s580 = sphi 0, %s578
      %s581 = sphi 0, %s580
      %s595 = sphi 0, %s581
      %s599 = sphi 0, %s599
      %s601 = sphi 0, %s599
      %s602 = sphi 0, %s601
      %s616 = sphi 0, %s602
      %s620 = sphi 0, %s620
      %s622 = sphi 0, %s620
      %s623 = sphi 0, %s622
      %s637 = sphi 0, %s623
      %s641 = sphi 0, %s641
      %s643 = sphi 0, %s641
      %s644 = sphi 0, %s643
      %s658 = sphi 0, %s644
      %s662 = sphi 0, %s662
      %s664 = sphi 0, %s662
      %s665 = sphi 0, %s664
      %s679 = sphi 0, %s665
      %s683 = sphi 0, %s683
      %s685 = sphi 0, %s683
      %s686 = sphi 0, %s685
      %s700 = sphi 0, %s686
      %s704 = sphi 0, %s704
      %s706 = sphi 0, %s704
      %s707 = sphi 0, %s706
      %s721 = sphi 0, %s707
      %s725 = sphi 0, %s725
      %s727 = sphi 0, %s725
      %s728 = sphi 0, %s727
      %s742 = sphi 0, %s728
      %s746 = sphi 0, %s746
      %s748 = sphi 0, %s746
      %s749 = sphi 0, %s748
      %s763 = sphi 0, %s749
      %s767 = sphi 0, %s767
      %s769 = sphi 0, %s767
      %s770 = sphi 0, %s769
      %s784 = sphi 0, %s770
      %s788 = sphi 0, %s788
      %s790 = sphi 0, %s788
      %s791 = sphi 0, %s790
      %s805 = sphi 0, %s791
      %s809 = sphi 0, %s809
      %s811 = sphi 0, %s809
      %s812 = sphi 0, %s811
      %s826 = sphi 0, %s812
      %s830 = sphi 0, %s830
      %s832 = sphi 0, %s830
      %s833 = sphi 0, %s832
      %s847 = sphi 0, %s833
      %s853 = sphi 0, %s855
      %s856 = sphi 0, %s853
      %s857 = sphi 0, %s856
      %s873 = sphi 0, %s857
    $region4: #{multiscale_forward.1} parent=1 // loop_header_branch
      %85 = sbr.rel (%p83) target = $region8
    $region5: #{multiscale_forward.1} parent=1 // loop_body
      %s87 = ssub.s32 %s82, 1
      %s88 = ssub.s32 %s82, 2
      %s89 = sadd.s32 %s82, 1
      %s90 = ssub.s32 %s82, %s89
      %p91 = scmp.eq.s32.totalorder %s90, 0
      %s93 = sadd.s32 %s92, 1
      %s94 = scalar_select %p91, %s92, %s93
      %p97 = pneg %p91
      %p98 = scmp.eq.s32.totalorder %s82, 1
      %p99 = por %p97, %p98
      %p100 = scmp.ne.s32.totalorder %s92, %s95
      %p101 = scmp.eq.s32.totalorder %s82, 0
      %p102 = por %p100, %p101
      %p103 = scmp.ne.s32.totalorder %s92, %s95
      %p104 = scmp.eq.s32.totalorder %s87, 1
      %p105 = por %p103, %p104
      %p106 = scmp.ne.s32.totalorder %s95, %s96
      %p107 = scmp.eq.s32.totalorder %s87, 0
      %p108 = por %p106, %p107
      %p109 = scmp.ne.s32.totalorder %s95, %s96
      %p110 = scmp.eq.s32.totalorder %s88, 1
      %p111 = por %p109, %p110
      %p113 = scmp.ne.s32.totalorder %s96, %s112
      %p114 = scmp.eq.s32.totalorder %s88, 0
      %p115 = por %p113, %p114
      %s117 = sadd.s32 %s116, 1
      %p120 = scmp.eq.s32.totalorder %s82, 1
      %p121 = scmp.ne.s32.totalorder %s116, %s118
      %p122 = scmp.eq.s32.totalorder %s82, 0
      %p123 = por %p121, %p122
      %p124 = scmp.ne.s32.totalorder %s116, %s118
      %p125 = scmp.eq.s32.totalorder %s87, 1
      %p126 = por %p124, %p125
      %p127 = scmp.ne.s32.totalorder %s118, %s119
      %p128 = scmp.eq.s32.totalorder %s87, 0
      %p129 = por %p127, %p128
      %p130 = scmp.ne.s32.totalorder %s118, %s119
      %p131 = scmp.eq.s32.totalorder %s88, 1
      %p132 = por %p130, %p131
      %p134 = scmp.ne.s32.totalorder %s119, %s133
      %p135 = scmp.eq.s32.totalorder %s88, 0
      %p136 = por %p134, %p135
      %s138 = sadd.s32 %s137, 1
      %p141 = scmp.eq.s32.totalorder %s82, 1
      %p142 = scmp.ne.s32.totalorder %s137, %s139
      %p143 = scmp.eq.s32.totalorder %s82, 0
      %p144 = por %p142, %p143
      %p145 = scmp.ne.s32.totalorder %s137, %s139
      %p146 = scmp.eq.s32.totalorder %s87, 1
      %p147 = por %p145, %p146
      %p148 = scmp.ne.s32.totalorder %s139, %s140
      %p149 = scmp.eq.s32.totalorder %s87, 0
      %p150 = por %p148, %p149
      %p151 = scmp.ne.s32.totalorder %s139, %s140
      %p152 = scmp.eq.s32.totalorder %s88, 1
      %p153 = por %p151, %p152
      %p155 = scmp.ne.s32.totalorder %s140, %s154
      %p156 = scmp.eq.s32.totalorder %s88, 0
      %p157 = por %p155, %p156
      %s159 = sadd.s32 %s158, 1
      %p162 = scmp.eq.s32.totalorder %s82, 1
      %p163 = scmp.ne.s32.totalorder %s158, %s160
      %p164 = scmp.eq.s32.totalorder %s82, 0
      %p165 = por %p163, %p164
      %p166 = scmp.ne.s32.totalorder %s158, %s160
      %p167 = scmp.eq.s32.totalorder %s87, 1
      %p168 = por %p166, %p167
      %p169 = scmp.ne.s32.totalorder %s160, %s161
      %p170 = scmp.eq.s32.totalorder %s87, 0
      %p171 = por %p169, %p170
      %p172 = scmp.ne.s32.totalorder %s160, %s161
      %p173 = scmp.eq.s32.totalorder %s88, 1
      %p174 = por %p172, %p173
      %p176 = scmp.ne.s32.totalorder %s161, %s175
      %p177 = scmp.eq.s32.totalorder %s88, 0
      %p178 = por %p176, %p177
      %s180 = sadd.s32 %s179, 1
      %p183 = scmp.eq.s32.totalorder %s82, 1
      %p184 = scmp.ne.s32.totalorder %s179, %s181
      %p185 = scmp.eq.s32.totalorder %s82, 0
      %p186 = por %p184, %p185
      %p187 = scmp.ne.s32.totalorder %s179, %s181
      %p188 = scmp.eq.s32.totalorder %s87, 1
      %p189 = por %p187, %p188
      %p190 = scmp.ne.s32.totalorder %s181, %s182
      %p191 = scmp.eq.s32.totalorder %s87, 0
      %p192 = por %p190, %p191
      %p193 = scmp.ne.s32.totalorder %s181, %s182
      %p194 = scmp.eq.s32.totalorder %s88, 1
      %p195 = por %p193, %p194
      %p197 = scmp.ne.s32.totalorder %s182, %s196
      %p198 = scmp.eq.s32.totalorder %s88, 0
      %p199 = por %p197, %p198
      %s201 = sadd.s32 %s200, 1
      %p204 = scmp.eq.s32.totalorder %s82, 1
      %p205 = scmp.ne.s32.totalorder %s200, %s202
      %p206 = scmp.eq.s32.totalorder %s82, 0
      %p207 = por %p205, %p206
      %p208 = scmp.ne.s32.totalorder %s200, %s202
      %p209 = scmp.eq.s32.totalorder %s87, 1
      %p210 = por %p208, %p209
      %p211 = scmp.ne.s32.totalorder %s202, %s203
      %p212 = scmp.eq.s32.totalorder %s87, 0
      %p213 = por %p211, %p212
      %p214 = scmp.ne.s32.totalorder %s202, %s203
      %p215 = scmp.eq.s32.totalorder %s88, 1
      %p216 = por %p214, %p215
      %p218 = scmp.ne.s32.totalorder %s203, %s217
      %p219 = scmp.eq.s32.totalorder %s88, 0
      %p220 = por %p218, %p219
      %s222 = sadd.s32 %s221, 1
      %p225 = scmp.eq.s32.totalorder %s82, 1
      %p226 = scmp.ne.s32.totalorder %s221, %s223
      %p227 = scmp.eq.s32.totalorder %s82, 0
      %p228 = por %p226, %p227
      %p229 = scmp.ne.s32.totalorder %s221, %s223
      %p230 = scmp.eq.s32.totalorder %s87, 1
      %p231 = por %p229, %p230
      %p232 = scmp.ne.s32.totalorder %s223, %s224
      %p233 = scmp.eq.s32.totalorder %s87, 0
      %p234 = por %p232, %p233
      %p235 = scmp.ne.s32.totalorder %s223, %s224
      %p236 = scmp.eq.s32.totalorder %s88, 1
      %p237 = por %p235, %p236
      %p239 = scmp.ne.s32.totalorder %s224, %s238
      %p240 = scmp.eq.s32.totalorder %s88, 0
      %p241 = por %p239, %p240
      %s243 = sadd.s32 %s242, 1
      %p246 = scmp.eq.s32.totalorder %s82, 1
      %p247 = scmp.ne.s32.totalorder %s242, %s244
      %p248 = scmp.eq.s32.totalorder %s82, 0
      %p249 = por %p247, %p248
      %p250 = scmp.ne.s32.totalorder %s242, %s244
      %p251 = scmp.eq.s32.totalorder %s87, 1
      %p252 = por %p250, %p251
      %p253 = scmp.ne.s32.totalorder %s244, %s245
      %p254 = scmp.eq.s32.totalorder %s87, 0
      %p255 = por %p253, %p254
      %p256 = scmp.ne.s32.totalorder %s244, %s245
      %p257 = scmp.eq.s32.totalorder %s88, 1
      %p258 = por %p256, %p257
      %p260 = scmp.ne.s32.totalorder %s245, %s259
      %p261 = scmp.eq.s32.totalorder %s88, 0
      %p262 = por %p260, %p261
      %s264 = sadd.s32 %s263, 1
      %p267 = scmp.eq.s32.totalorder %s82, 1
      %p268 = scmp.ne.s32.totalorder %s263, %s265
      %p269 = scmp.eq.s32.totalorder %s82, 0
      %p270 = por %p268, %p269
      %p271 = scmp.ne.s32.totalorder %s263, %s265
      %p272 = scmp.eq.s32.totalorder %s87, 1
      %p273 = por %p271, %p272
      %p274 = scmp.ne.s32.totalorder %s265, %s266
      %p275 = scmp.eq.s32.totalorder %s87, 0
      %p276 = por %p274, %p275
      %p277 = scmp.ne.s32.totalorder %s265, %s266
      %p278 = scmp.eq.s32.totalorder %s88, 1
      %p279 = por %p277, %p278
      %p281 = scmp.ne.s32.totalorder %s266, %s280
      %p282 = scmp.eq.s32.totalorder %s88, 0
      %p283 = por %p281, %p282
      %s285 = sadd.s32 %s284, 1
      %p288 = scmp.eq.s32.totalorder %s82, 1
      %p289 = scmp.ne.s32.totalorder %s284, %s286
      %p290 = scmp.eq.s32.totalorder %s82, 0
      %p291 = por %p289, %p290
      %p292 = scmp.ne.s32.totalorder %s284, %s286
      %p293 = scmp.eq.s32.totalorder %s87, 1
      %p294 = por %p292, %p293
      %p295 = scmp.ne.s32.totalorder %s286, %s287
      %p296 = scmp.eq.s32.totalorder %s87, 0
      %p297 = por %p295, %p296
      %p298 = scmp.ne.s32.totalorder %s286, %s287
      %p299 = scmp.eq.s32.totalorder %s88, 1
      %p300 = por %p298, %p299
      %p302 = scmp.ne.s32.totalorder %s287, %s301
      %p303 = scmp.eq.s32.totalorder %s88, 0
      %p304 = por %p302, %p303
      %s306 = sadd.s32 %s305, 1
      %p309 = scmp.eq.s32.totalorder %s82, 1
      %p310 = scmp.ne.s32.totalorder %s305, %s307
      %p311 = scmp.eq.s32.totalorder %s82, 0
      %p312 = por %p310, %p311
      %p313 = scmp.ne.s32.totalorder %s305, %s307
      %p314 = scmp.eq.s32.totalorder %s87, 1
      %p315 = por %p313, %p314
      %p316 = scmp.ne.s32.totalorder %s307, %s308
      %p317 = scmp.eq.s32.totalorder %s87, 0
      %p318 = por %p316, %p317
      %p319 = scmp.ne.s32.totalorder %s307, %s308
      %p320 = scmp.eq.s32.totalorder %s88, 1
      %p321 = por %p319, %p320
      %p323 = scmp.ne.s32.totalorder %s308, %s322
      %p324 = scmp.eq.s32.totalorder %s88, 0
      %p325 = por %p323, %p324
      %s327 = sadd.s32 %s326, 1
      %p330 = scmp.eq.s32.totalorder %s82, 1
      %p331 = scmp.ne.s32.totalorder %s326, %s328
      %p332 = scmp.eq.s32.totalorder %s82, 0
      %p333 = por %p331, %p332
      %p334 = scmp.ne.s32.totalorder %s326, %s328
      %p335 = scmp.eq.s32.totalorder %s87, 1
      %p336 = por %p334, %p335
      %p337 = scmp.ne.s32.totalorder %s328, %s329
      %p338 = scmp.eq.s32.totalorder %s87, 0
      %p339 = por %p337, %p338
      %p340 = scmp.ne.s32.totalorder %s328, %s329
      %p341 = scmp.eq.s32.totalorder %s88, 1
      %p342 = por %p340, %p341
      %p344 = scmp.ne.s32.totalorder %s329, %s343
      %p345 = scmp.eq.s32.totalorder %s88, 0
      %p346 = por %p344, %p345
      %s348 = sadd.s32 %s347, 1
      %p351 = scmp.eq.s32.totalorder %s82, 1
      %p352 = scmp.ne.s32.totalorder %s347, %s349
      %p353 = scmp.eq.s32.totalorder %s82, 0
      %p354 = por %p352, %p353
      %p355 = scmp.ne.s32.totalorder %s347, %s349
      %p356 = scmp.eq.s32.totalorder %s87, 1
      %p357 = por %p355, %p356
      %p358 = scmp.ne.s32.totalorder %s349, %s350
      %p359 = scmp.eq.s32.totalorder %s87, 0
      %p360 = por %p358, %p359
      %p361 = scmp.ne.s32.totalorder %s349, %s350
      %p362 = scmp.eq.s32.totalorder %s88, 1
      %p363 = por %p361, %p362
      %p365 = scmp.ne.s32.totalorder %s350, %s364
      %p366 = scmp.eq.s32.totalorder %s88, 0
      %p367 = por %p365, %p366
      %s369 = sadd.s32 %s368, 1
      %p372 = scmp.eq.s32.totalorder %s82, 1
      %p373 = scmp.ne.s32.totalorder %s368, %s370
      %p374 = scmp.eq.s32.totalorder %s82, 0
      %p375 = por %p373, %p374
      %p376 = scmp.ne.s32.totalorder %s368, %s370
      %p377 = scmp.eq.s32.totalorder %s87, 1
      %p378 = por %p376, %p377
      %p379 = scmp.ne.s32.totalorder %s370, %s371
      %p380 = scmp.eq.s32.totalorder %s87, 0
      %p381 = por %p379, %p380
      %p382 = scmp.ne.s32.totalorder %s370, %s371
      %p383 = scmp.eq.s32.totalorder %s88, 1
      %p384 = por %p382, %p383
      %p386 = scmp.ne.s32.totalorder %s371, %s385
      %p387 = scmp.eq.s32.totalorder %s88, 0
      %p388 = por %p386, %p387
      %s390 = sadd.s32 %s389, 1
      %p393 = scmp.eq.s32.totalorder %s82, 1
      %p394 = scmp.ne.s32.totalorder %s389, %s391
      %p395 = scmp.eq.s32.totalorder %s82, 0
      %p396 = por %p394, %p395
      %p397 = scmp.ne.s32.totalorder %s389, %s391
      %p398 = scmp.eq.s32.totalorder %s87, 1
      %p399 = por %p397, %p398
      %p400 = scmp.ne.s32.totalorder %s391, %s392
      %p401 = scmp.eq.s32.totalorder %s87, 0
      %p402 = por %p400, %p401
      %p403 = scmp.ne.s32.totalorder %s391, %s392
      %p404 = scmp.eq.s32.totalorder %s88, 1
      %p405 = por %p403, %p404
      %p407 = scmp.ne.s32.totalorder %s392, %s406
      %p408 = scmp.eq.s32.totalorder %s88, 0
      %p409 = por %p407, %p408
      %s411 = sadd.s32 %s410, 1
      %p414 = scmp.eq.s32.totalorder %s82, 1
      %p415 = scmp.ne.s32.totalorder %s410, %s412
      %p416 = scmp.eq.s32.totalorder %s82, 0
      %p417 = por %p415, %p416
      %p418 = scmp.ne.s32.totalorder %s410, %s412
      %p419 = scmp.eq.s32.totalorder %s87, 1
      %p420 = por %p418, %p419
      %p421 = scmp.ne.s32.totalorder %s412, %s413
      %p422 = scmp.eq.s32.totalorder %s87, 0
      %p423 = por %p421, %p422
      %p424 = scmp.ne.s32.totalorder %s412, %s413
      %p425 = scmp.eq.s32.totalorder %s88, 1
      %p426 = por %p424, %p425
      %p428 = scmp.ne.s32.totalorder %s413, %s427
      %p429 = scmp.eq.s32.totalorder %s88, 0
      %p430 = por %p428, %p429
      %s432 = sadd.s32 %s431, 1
      %p435 = scmp.eq.s32.totalorder %s82, 1
      %p436 = scmp.ne.s32.totalorder %s431, %s433
      %p437 = scmp.eq.s32.totalorder %s82, 0
      %p438 = por %p436, %p437
      %p439 = scmp.ne.s32.totalorder %s431, %s433
      %p440 = scmp.eq.s32.totalorder %s87, 1
      %p441 = por %p439, %p440
      %p442 = scmp.ne.s32.totalorder %s433, %s434
      %p443 = scmp.eq.s32.totalorder %s87, 0
      %p444 = por %p442, %p443
      %p445 = scmp.ne.s32.totalorder %s433, %s434
      %p446 = scmp.eq.s32.totalorder %s88, 1
      %p447 = por %p445, %p446
      %p449 = scmp.ne.s32.totalorder %s434, %s448
      %p450 = scmp.eq.s32.totalorder %s88, 0
      %p451 = por %p449, %p450
      %s453 = sadd.s32 %s452, 1
      %p456 = scmp.eq.s32.totalorder %s82, 1
      %p457 = scmp.ne.s32.totalorder %s452, %s454
      %p458 = scmp.eq.s32.totalorder %s82, 0
      %p459 = por %p457, %p458
      %p460 = scmp.ne.s32.totalorder %s452, %s454
      %p461 = scmp.eq.s32.totalorder %s87, 1
      %p462 = por %p460, %p461
      %p463 = scmp.ne.s32.totalorder %s454, %s455
      %p464 = scmp.eq.s32.totalorder %s87, 0
      %p465 = por %p463, %p464
      %p466 = scmp.ne.s32.totalorder %s454, %s455
      %p467 = scmp.eq.s32.totalorder %s88, 1
      %p468 = por %p466, %p467
      %p470 = scmp.ne.s32.totalorder %s455, %s469
      %p471 = scmp.eq.s32.totalorder %s88, 0
      %p472 = por %p470, %p471
      %s474 = sadd.s32 %s473, 1
      %p477 = scmp.eq.s32.totalorder %s82, 1
      %p478 = scmp.ne.s32.totalorder %s473, %s475
      %p479 = scmp.eq.s32.totalorder %s82, 0
      %p480 = por %p478, %p479
      %p481 = scmp.ne.s32.totalorder %s473, %s475
      %p482 = scmp.eq.s32.totalorder %s87, 1
      %p483 = por %p481, %p482
      %p484 = scmp.ne.s32.totalorder %s475, %s476
      %p485 = scmp.eq.s32.totalorder %s87, 0
      %p486 = por %p484, %p485
      %p487 = scmp.ne.s32.totalorder %s475, %s476
      %p488 = scmp.eq.s32.totalorder %s88, 1
      %p489 = por %p487, %p488
      %p491 = scmp.ne.s32.totalorder %s476, %s490
      %p492 = scmp.eq.s32.totalorder %s88, 0
      %p493 = por %p491, %p492
      %s495 = sadd.s32 %s494, 1
      %p498 = scmp.eq.s32.totalorder %s82, 1
      %p499 = scmp.ne.s32.totalorder %s494, %s496
      %p500 = scmp.eq.s32.totalorder %s82, 0
      %p501 = por %p499, %p500
      %p502 = scmp.ne.s32.totalorder %s494, %s496
      %p503 = scmp.eq.s32.totalorder %s87, 1
      %p504 = por %p502, %p503
      %p505 = scmp.ne.s32.totalorder %s496, %s497
      %p506 = scmp.eq.s32.totalorder %s87, 0
      %p507 = por %p505, %p506
      %p508 = scmp.ne.s32.totalorder %s496, %s497
      %p509 = scmp.eq.s32.totalorder %s88, 1
      %p510 = por %p508, %p509
      %p512 = scmp.ne.s32.totalorder %s497, %s511
      %p513 = scmp.eq.s32.totalorder %s88, 0
      %p514 = por %p512, %p513
      %s516 = sadd.s32 %s515, 1
      %p519 = scmp.eq.s32.totalorder %s82, 1
      %p520 = scmp.ne.s32.totalorder %s515, %s517
      %p521 = scmp.eq.s32.totalorder %s82, 0
      %p522 = por %p520, %p521
      %p523 = scmp.ne.s32.totalorder %s515, %s517
      %p524 = scmp.eq.s32.totalorder %s87, 1
      %p525 = por %p523, %p524
      %p526 = scmp.ne.s32.totalorder %s517, %s518
      %p527 = scmp.eq.s32.totalorder %s87, 0
      %p528 = por %p526, %p527
      %p529 = scmp.ne.s32.totalorder %s517, %s518
      %p530 = scmp.eq.s32.totalorder %s88, 1
      %p531 = por %p529, %p530
      %p533 = scmp.ne.s32.totalorder %s518, %s532
      %p534 = scmp.eq.s32.totalorder %s88, 0
      %p535 = por %p533, %p534
      %s537 = sadd.s32 %s536, 1
      %p540 = scmp.eq.s32.totalorder %s82, 1
      %p541 = scmp.ne.s32.totalorder %s536, %s538
      %p542 = scmp.eq.s32.totalorder %s82, 0
      %p543 = por %p541, %p542
      %p544 = scmp.ne.s32.totalorder %s536, %s538
      %p545 = scmp.eq.s32.totalorder %s87, 1
      %p546 = por %p544, %p545
      %p547 = scmp.ne.s32.totalorder %s538, %s539
      %p548 = scmp.eq.s32.totalorder %s87, 0
      %p549 = por %p547, %p548
      %p550 = scmp.ne.s32.totalorder %s538, %s539
      %p551 = scmp.eq.s32.totalorder %s88, 1
      %p552 = por %p550, %p551
      %p554 = scmp.ne.s32.totalorder %s539, %s553
      %p555 = scmp.eq.s32.totalorder %s88, 0
      %p556 = por %p554, %p555
      %s558 = sadd.s32 %s557, 1
      %p561 = scmp.eq.s32.totalorder %s82, 1
      %p562 = scmp.ne.s32.totalorder %s557, %s559
      %p563 = scmp.eq.s32.totalorder %s82, 0
      %p564 = por %p562, %p563
      %p565 = scmp.ne.s32.totalorder %s557, %s559
      %p566 = scmp.eq.s32.totalorder %s87, 1
      %p567 = por %p565, %p566
      %p568 = scmp.ne.s32.totalorder %s559, %s560
      %p569 = scmp.eq.s32.totalorder %s87, 0
      %p570 = por %p568, %p569
      %p571 = scmp.ne.s32.totalorder %s559, %s560
      %p572 = scmp.eq.s32.totalorder %s88, 1
      %p573 = por %p571, %p572
      %p575 = scmp.ne.s32.totalorder %s560, %s574
      %p576 = scmp.eq.s32.totalorder %s88, 0
      %p577 = por %p575, %p576
      %s579 = sadd.s32 %s578, 1
      %p582 = scmp.eq.s32.totalorder %s82, 1
      %p583 = scmp.ne.s32.totalorder %s578, %s580
      %p584 = scmp.eq.s32.totalorder %s82, 0
      %p585 = por %p583, %p584
      %p586 = scmp.ne.s32.totalorder %s578, %s580
      %p587 = scmp.eq.s32.totalorder %s87, 1
      %p588 = por %p586, %p587
      %p589 = scmp.ne.s32.totalorder %s580, %s581
      %p590 = scmp.eq.s32.totalorder %s87, 0
      %p591 = por %p589, %p590
      %p592 = scmp.ne.s32.totalorder %s580, %s581
      %p593 = scmp.eq.s32.totalorder %s88, 1
      %p594 = por %p592, %p593
      %p596 = scmp.ne.s32.totalorder %s581, %s595
      %p597 = scmp.eq.s32.totalorder %s88, 0
      %p598 = por %p596, %p597
      %s600 = sadd.s32 %s599, 1
      %p603 = scmp.eq.s32.totalorder %s82, 1
      %p604 = scmp.ne.s32.totalorder %s599, %s601
      %p605 = scmp.eq.s32.totalorder %s82, 0
      %p606 = por %p604, %p605
      %p607 = scmp.ne.s32.totalorder %s599, %s601
      %p608 = scmp.eq.s32.totalorder %s87, 1
      %p609 = por %p607, %p608
      %p610 = scmp.ne.s32.totalorder %s601, %s602
      %p611 = scmp.eq.s32.totalorder %s87, 0
      %p612 = por %p610, %p611
      %p613 = scmp.ne.s32.totalorder %s601, %s602
      %p614 = scmp.eq.s32.totalorder %s88, 1
      %p615 = por %p613, %p614
      %p617 = scmp.ne.s32.totalorder %s602, %s616
      %p618 = scmp.eq.s32.totalorder %s88, 0
      %p619 = por %p617, %p618
      %s621 = sadd.s32 %s620, 1
      %p624 = scmp.eq.s32.totalorder %s82, 1
      %p625 = scmp.ne.s32.totalorder %s620, %s622
      %p626 = scmp.eq.s32.totalorder %s82, 0
      %p627 = por %p625, %p626
      %p628 = scmp.ne.s32.totalorder %s620, %s622
      %p629 = scmp.eq.s32.totalorder %s87, 1
      %p630 = por %p628, %p629
      %p631 = scmp.ne.s32.totalorder %s622, %s623
      %p632 = scmp.eq.s32.totalorder %s87, 0
      %p633 = por %p631, %p632
      %p634 = scmp.ne.s32.totalorder %s622, %s623
      %p635 = scmp.eq.s32.totalorder %s88, 1
      %p636 = por %p634, %p635
      %p638 = scmp.ne.s32.totalorder %s623, %s637
      %p639 = scmp.eq.s32.totalorder %s88, 0
      %p640 = por %p638, %p639
      %s642 = sadd.s32 %s641, 1
      %p645 = scmp.eq.s32.totalorder %s82, 1
      %p646 = scmp.ne.s32.totalorder %s641, %s643
      %p647 = scmp.eq.s32.totalorder %s82, 0
      %p648 = por %p646, %p647
      %p649 = scmp.ne.s32.totalorder %s641, %s643
      %p650 = scmp.eq.s32.totalorder %s87, 1
      %p651 = por %p649, %p650
      %p652 = scmp.ne.s32.totalorder %s643, %s644
      %p653 = scmp.eq.s32.totalorder %s87, 0
      %p654 = por %p652, %p653
      %p655 = scmp.ne.s32.totalorder %s643, %s644
      %p656 = scmp.eq.s32.totalorder %s88, 1
      %p657 = por %p655, %p656
      %p659 = scmp.ne.s32.totalorder %s644, %s658
      %p660 = scmp.eq.s32.totalorder %s88, 0
      %p661 = por %p659, %p660
      %s663 = sadd.s32 %s662, 1
      %p666 = scmp.eq.s32.totalorder %s82, 1
      %p667 = scmp.ne.s32.totalorder %s662, %s664
      %p668 = scmp.eq.s32.totalorder %s82, 0
      %p669 = por %p667, %p668
      %p670 = scmp.ne.s32.totalorder %s662, %s664
      %p671 = scmp.eq.s32.totalorder %s87, 1
      %p672 = por %p670, %p671
      %p673 = scmp.ne.s32.totalorder %s664, %s665
      %p674 = scmp.eq.s32.totalorder %s87, 0
      %p675 = por %p673, %p674
      %p676 = scmp.ne.s32.totalorder %s664, %s665
      %p677 = scmp.eq.s32.totalorder %s88, 1
      %p678 = por %p676, %p677
      %p680 = scmp.ne.s32.totalorder %s665, %s679
      %p681 = scmp.eq.s32.totalorder %s88, 0
      %p682 = por %p680, %p681
      %s684 = sadd.s32 %s683, 1
      %p687 = scmp.eq.s32.totalorder %s82, 1
      %p688 = scmp.ne.s32.totalorder %s683, %s685
      %p689 = scmp.eq.s32.totalorder %s82, 0
      %p690 = por %p688, %p689
      %p691 = scmp.ne.s32.totalorder %s683, %s685
      %p692 = scmp.eq.s32.totalorder %s87, 1
      %p693 = por %p691, %p692
      %p694 = scmp.ne.s32.totalorder %s685, %s686
      %p695 = scmp.eq.s32.totalorder %s87, 0
      %p696 = por %p694, %p695
      %p697 = scmp.ne.s32.totalorder %s685, %s686
      %p698 = scmp.eq.s32.totalorder %s88, 1
      %p699 = por %p697, %p698
      %p701 = scmp.ne.s32.totalorder %s686, %s700
      %p702 = scmp.eq.s32.totalorder %s88, 0
      %p703 = por %p701, %p702
      %s705 = sadd.s32 %s704, 1
      %p708 = scmp.eq.s32.totalorder %s82, 1
      %p709 = scmp.ne.s32.totalorder %s704, %s706
      %p710 = scmp.eq.s32.totalorder %s82, 0
      %p711 = por %p709, %p710
      %p712 = scmp.ne.s32.totalorder %s704, %s706
      %p713 = scmp.eq.s32.totalorder %s87, 1
      %p714 = por %p712, %p713
      %p715 = scmp.ne.s32.totalorder %s706, %s707
      %p716 = scmp.eq.s32.totalorder %s87, 0
      %p717 = por %p715, %p716
      %p718 = scmp.ne.s32.totalorder %s706, %s707
      %p719 = scmp.eq.s32.totalorder %s88, 1
      %p720 = por %p718, %p719
      %p722 = scmp.ne.s32.totalorder %s707, %s721
      %p723 = scmp.eq.s32.totalorder %s88, 0
      %p724 = por %p722, %p723
      %s726 = sadd.s32 %s725, 1
      %p729 = scmp.eq.s32.totalorder %s82, 1
      %p730 = scmp.ne.s32.totalorder %s725, %s727
      %p731 = scmp.eq.s32.totalorder %s82, 0
      %p732 = por %p730, %p731
      %p733 = scmp.ne.s32.totalorder %s725, %s727
      %p734 = scmp.eq.s32.totalorder %s87, 1
      %p735 = por %p733, %p734
      %p736 = scmp.ne.s32.totalorder %s727, %s728
      %p737 = scmp.eq.s32.totalorder %s87, 0
      %p738 = por %p736, %p737
      %p739 = scmp.ne.s32.totalorder %s727, %s728
      %p740 = scmp.eq.s32.totalorder %s88, 1
      %p741 = por %p739, %p740
      %p743 = scmp.ne.s32.totalorder %s728, %s742
      %p744 = scmp.eq.s32.totalorder %s88, 0
      %p745 = por %p743, %p744
      %s747 = sadd.s32 %s746, 1
      %p750 = scmp.eq.s32.totalorder %s82, 1
      %p751 = scmp.ne.s32.totalorder %s746, %s748
      %p752 = scmp.eq.s32.totalorder %s82, 0
      %p753 = por %p751, %p752
      %p754 = scmp.ne.s32.totalorder %s746, %s748
      %p755 = scmp.eq.s32.totalorder %s87, 1
      %p756 = por %p754, %p755
      %p757 = scmp.ne.s32.totalorder %s748, %s749
      %p758 = scmp.eq.s32.totalorder %s87, 0
      %p759 = por %p757, %p758
      %p760 = scmp.ne.s32.totalorder %s748, %s749
      %p761 = scmp.eq.s32.totalorder %s88, 1
      %p762 = por %p760, %p761
      %p764 = scmp.ne.s32.totalorder %s749, %s763
      %p765 = scmp.eq.s32.totalorder %s88, 0
      %p766 = por %p764, %p765
      %s768 = sadd.s32 %s767, 1
      %p771 = scmp.eq.s32.totalorder %s82, 1
      %p772 = scmp.ne.s32.totalorder %s767, %s769
      %p773 = scmp.eq.s32.totalorder %s82, 0
      %p774 = por %p772, %p773
      %p775 = scmp.ne.s32.totalorder %s767, %s769
      %p776 = scmp.eq.s32.totalorder %s87, 1
      %p777 = por %p775, %p776
      %p778 = scmp.ne.s32.totalorder %s769, %s770
      %p779 = scmp.eq.s32.totalorder %s87, 0
      %p780 = por %p778, %p779
      %p781 = scmp.ne.s32.totalorder %s769, %s770
      %p782 = scmp.eq.s32.totalorder %s88, 1
      %p783 = por %p781, %p782
      %p785 = scmp.ne.s32.totalorder %s770, %s784
      %p786 = scmp.eq.s32.totalorder %s88, 0
      %p787 = por %p785, %p786
      %s789 = sadd.s32 %s788, 1
      %p792 = scmp.eq.s32.totalorder %s82, 1
      %p793 = scmp.ne.s32.totalorder %s788, %s790
      %p794 = scmp.eq.s32.totalorder %s82, 0
      %p795 = por %p793, %p794
      %p796 = scmp.ne.s32.totalorder %s788, %s790
      %p797 = scmp.eq.s32.totalorder %s87, 1
      %p798 = por %p796, %p797
      %p799 = scmp.ne.s32.totalorder %s790, %s791
      %p800 = scmp.eq.s32.totalorder %s87, 0
      %p801 = por %p799, %p800
      %p802 = scmp.ne.s32.totalorder %s790, %s791
      %p803 = scmp.eq.s32.totalorder %s88, 1
      %p804 = por %p802, %p803
      %p806 = scmp.ne.s32.totalorder %s791, %s805
      %p807 = scmp.eq.s32.totalorder %s88, 0
      %p808 = por %p806, %p807
      %s810 = sadd.s32 %s809, 1
      %p813 = scmp.eq.s32.totalorder %s82, 1
      %p814 = scmp.ne.s32.totalorder %s809, %s811
      %p815 = scmp.eq.s32.totalorder %s82, 0
      %p816 = por %p814, %p815
      %p817 = scmp.ne.s32.totalorder %s809, %s811
      %p818 = scmp.eq.s32.totalorder %s87, 1
      %p819 = por %p817, %p818
      %p820 = scmp.ne.s32.totalorder %s811, %s812
      %p821 = scmp.eq.s32.totalorder %s87, 0
      %p822 = por %p820, %p821
      %p823 = scmp.ne.s32.totalorder %s811, %s812
      %p824 = scmp.eq.s32.totalorder %s88, 1
      %p825 = por %p823, %p824
      %p827 = scmp.ne.s32.totalorder %s812, %s826
      %p828 = scmp.eq.s32.totalorder %s88, 0
      %p829 = por %p827, %p828
      %s831 = sadd.s32 %s830, 1
      %p834 = scmp.eq.s32.totalorder %s82, 1
      %p835 = scmp.ne.s32.totalorder %s830, %s832
      %p836 = scmp.eq.s32.totalorder %s82, 0
      %p837 = por %p835, %p836
      %p838 = scmp.ne.s32.totalorder %s830, %s832
      %p839 = scmp.eq.s32.totalorder %s87, 1
      %p840 = por %p838, %p839
      %p841 = scmp.ne.s32.totalorder %s832, %s833
      %p842 = scmp.eq.s32.totalorder %s87, 0
      %p843 = por %p841, %p842
      %p844 = scmp.ne.s32.totalorder %s832, %s833
      %p845 = scmp.eq.s32.totalorder %s88, 1
      %p846 = por %p844, %p845
      %p848 = scmp.ne.s32.totalorder %s833, %s847
      %p849 = scmp.eq.s32.totalorder %s88, 0
      %p850 = por %p848, %p849
      %s851 = ssub.s32 %s82, %s89
      %p852 = scmp.eq.s32.totalorder %s851, 0
      %s854 = sadd.s32 %s853, 1
      %s855 = scalar_select %p852, %s853, %s854
      %p858 = pneg %p852
      %p859 = scmp.eq.s32.totalorder %s82, 1
      %p860 = por %p858, %p859
      %p861 = scmp.ne.s32.totalorder %s853, %s856
      %p862 = scmp.eq.s32.totalorder %s82, 0
      %p863 = por %p861, %p862
      %p864 = scmp.ne.s32.totalorder %s853, %s856
      %p865 = scmp.eq.s32.totalorder %s87, 1
      %p866 = por %p864, %p865
      %p867 = scmp.ne.s32.totalorder %s856, %s857
      %p868 = scmp.eq.s32.totalorder %s87, 0
      %p869 = por %p867, %p868
      %p870 = scmp.ne.s32.totalorder %s856, %s857
      %p871 = scmp.eq.s32.totalorder %s88, 1
      %p872 = por %p870, %p871
      %p874 = scmp.ne.s32.totalorder %s857, %s873
      %p875 = scmp.eq.s32.totalorder %s88, 0
      %p876 = por %p874, %p875
      %p877 = scmp.le.s32.totalorder 1, %s82
      %p878 = scmp.lt.s32.totalorder %s82, 3
      %p879 = pnand %p877, %p878
      %p880 = pneg %p879
      // Predicated region
      $region9: #{multiscale_forward.1} parent=5 // pred_check
        _
      $region10: #{multiscale_forward.1} parent=5 // pred_check_branch
        %882 = sbr.rel (%p879) target = $region12
      $region11: #{multiscale_forward.1} parent=5 // pred_region
        %s883 = ssub.s32 %s82, 1
        // Predicated region
        $region13: #{multiscale_forward.1} parent=11 // pred_check
          %p884 = pneg %p129
        $region14: #{multiscale_forward.1} parent=11 // pred_check_branch
          %886 = sbr.rel (%p884) target = $region16
        $region15: #{multiscale_forward.1} parent=11 // pred_region
          _
        $region16: #{multiscale_forward.1} parent=11 // pred_fallthru
          _
        // Predicated region
        $region17: #{multiscale_forward.1} parent=11 // pred_check
          %p887 = pneg %p150
        $region18: #{multiscale_forward.1} parent=11 // pred_check_branch
          %889 = sbr.rel (%p887) target = $region20
        $region19: #{multiscale_forward.1} parent=11 // pred_region
          _
        $region20: #{multiscale_forward.1} parent=11 // pred_fallthru
          _
        // Predicated region
        $region21: #{multiscale_forward.1} parent=11 // pred_check
          %p890 = pneg %p171
        $region22: #{multiscale_forward.1} parent=11 // pred_check_branch
          %892 = sbr.rel (%p890) target = $region24
        $region23: #{multiscale_forward.1} parent=11 // pred_region
          _
        $region24: #{multiscale_forward.1} parent=11 // pred_fallthru
          _
        // Predicated region
        $region25: #{multiscale_forward.1} parent=11 // pred_check
          %p893 = pneg %p192
        $region26: #{multiscale_forward.1} parent=11 // pred_check_branch
          %895 = sbr.rel (%p893) target = $region28
        $region27: #{multiscale_forward.1} parent=11 // pred_region
          _
        $region28: #{multiscale_forward.1} parent=11 // pred_fallthru
          _
        // Predicated region
        $region29: #{multiscale_forward.1} parent=11 // pred_check
          %p896 = pneg %p213
        $region30: #{multiscale_forward.1} parent=11 // pred_check_branch
          %898 = sbr.rel (%p896) target = $region32
        $region31: #{multiscale_forward.1} parent=11 // pred_region
          _
        $region32: #{multiscale_forward.1} parent=11 // pred_fallthru
          _
        // Predicated region
        $region33: #{multiscale_forward.1} parent=11 // pred_check
          %p899 = pneg %p234
        $region34: #{multiscale_forward.1} parent=11 // pred_check_branch
          %901 = sbr.rel (%p899) target = $region36
        $region35: #{multiscale_forward.1} parent=11 // pred_region
          _
        $region36: #{multiscale_forward.1} parent=11 // pred_fallthru
          _
        // Predicated region
        $region37: #{multiscale_forward.1} parent=11 // pred_check
          %p902 = pneg %p255
        $region38: #{multiscale_forward.1} parent=11 // pred_check_branch
          %904 = sbr.rel (%p902) target = $region40
        $region39: #{multiscale_forward.1} parent=11 // pred_region
          _
        $region40: #{multiscale_forward.1} parent=11 // pred_fallthru
          _
        // Predicated region
        $region41: #{multiscale_forward.1} parent=11 // pred_check
          %p905 = pneg %p276
        $region42: #{multiscale_forward.1} parent=11 // pred_check_branch
          %907 = sbr.rel (%p905) target = $region44
        $region43: #{multiscale_forward.1} parent=11 // pred_region
          _
        $region44: #{multiscale_forward.1} parent=11 // pred_fallthru
          _
        // Predicated region
        $region45: #{multiscale_forward.1} parent=11 // pred_check
          %p908 = pneg %p297
        $region46: #{multiscale_forward.1} parent=11 // pred_check_branch
          %910 = sbr.rel (%p908) target = $region48
        $region47: #{multiscale_forward.1} parent=11 // pred_region
          _
        $region48: #{multiscale_forward.1} parent=11 // pred_fallthru
          _
        // Predicated region
        $region49: #{multiscale_forward.1} parent=11 // pred_check
          %p911 = pneg %p318
        $region50: #{multiscale_forward.1} parent=11 // pred_check_branch
          %913 = sbr.rel (%p911) target = $region52
        $region51: #{multiscale_forward.1} parent=11 // pred_region
          _
        $region52: #{multiscale_forward.1} parent=11 // pred_fallthru
          _
        // Predicated region
        $region53: #{multiscale_forward.1} parent=11 // pred_check
          %p914 = pneg %p339
        $region54: #{multiscale_forward.1} parent=11 // pred_check_branch
          %916 = sbr.rel (%p914) target = $region56
        $region55: #{multiscale_forward.1} parent=11 // pred_region
          _
        $region56: #{multiscale_forward.1} parent=11 // pred_fallthru
          _
        // Predicated region
        $region57: #{multiscale_forward.1} parent=11 // pred_check
          %p917 = pneg %p360
        $region58: #{multiscale_forward.1} parent=11 // pred_check_branch
          %919 = sbr.rel (%p917) target = $region60
        $region59: #{multiscale_forward.1} parent=11 // pred_region
          _
        $region60: #{multiscale_forward.1} parent=11 // pred_fallthru
          _
        // Predicated region
        $region61: #{multiscale_forward.1} parent=11 // pred_check
          %p920 = pneg %p381
        $region62: #{multiscale_forward.1} parent=11 // pred_check_branch
          %922 = sbr.rel (%p920) target = $region64
        $region63: #{multiscale_forward.1} parent=11 // pred_region
          _
        $region64: #{multiscale_forward.1} parent=11 // pred_fallthru
          _
        // Predicated region
        $region65: #{multiscale_forward.1} parent=11 // pred_check
          %p923 = pneg %p402
        $region66: #{multiscale_forward.1} parent=11 // pred_check_branch
          %925 = sbr.rel (%p923) target = $region68
        $region67: #{multiscale_forward.1} parent=11 // pred_region
          _
        $region68: #{multiscale_forward.1} parent=11 // pred_fallthru
          _
        // Predicated region
        $region69: #{multiscale_forward.1} parent=11 // pred_check
          %p926 = pneg %p423
        $region70: #{multiscale_forward.1} parent=11 // pred_check_branch
          %928 = sbr.rel (%p926) target = $region72
        $region71: #{multiscale_forward.1} parent=11 // pred_region
          _
        $region72: #{multiscale_forward.1} parent=11 // pred_fallthru
          _
        // Predicated region
        $region73: #{multiscale_forward.1} parent=11 // pred_check
          %p929 = pneg %p444
        $region74: #{multiscale_forward.1} parent=11 // pred_check_branch
          %931 = sbr.rel (%p929) target = $region76
        $region75: #{multiscale_forward.1} parent=11 // pred_region
          _
        $region76: #{multiscale_forward.1} parent=11 // pred_fallthru
          _
        // Predicated region
        $region77: #{multiscale_forward.1} parent=11 // pred_check
          %p932 = pneg %p465
        $region78: #{multiscale_forward.1} parent=11 // pred_check_branch
          %934 = sbr.rel (%p932) target = $region80
        $region79: #{multiscale_forward.1} parent=11 // pred_region
          _
        $region80: #{multiscale_forward.1} parent=11 // pred_fallthru
          _
        // Predicated region
        $region81: #{multiscale_forward.1} parent=11 // pred_check
          %p935 = pneg %p486
        $region82: #{multiscale_forward.1} parent=11 // pred_check_branch
          %937 = sbr.rel (%p935) target = $region84
        $region83: #{multiscale_forward.1} parent=11 // pred_region
          _
        $region84: #{multiscale_forward.1} parent=11 // pred_fallthru
          _
        // Predicated region
        $region85: #{multiscale_forward.1} parent=11 // pred_check
          %p938 = pneg %p507
        $region86: #{multiscale_forward.1} parent=11 // pred_check_branch
          %940 = sbr.rel (%p938) target = $region88
        $region87: #{multiscale_forward.1} parent=11 // pred_region
          _
        $region88: #{multiscale_forward.1} parent=11 // pred_fallthru
          _
        // Predicated region
        $region89: #{multiscale_forward.1} parent=11 // pred_check
          %p941 = pneg %p528
        $region90: #{multiscale_forward.1} parent=11 // pred_check_branch
          %943 = sbr.rel (%p941) target = $region92
        $region91: #{multiscale_forward.1} parent=11 // pred_region
          _
        $region92: #{multiscale_forward.1} parent=11 // pred_fallthru
          _
        // Predicated region
        $region93: #{multiscale_forward.1} parent=11 // pred_check
          %p944 = pneg %p549
        $region94: #{multiscale_forward.1} parent=11 // pred_check_branch
          %946 = sbr.rel (%p944) target = $region96
        $region95: #{multiscale_forward.1} parent=11 // pred_region
          _
        $region96: #{multiscale_forward.1} parent=11 // pred_fallthru
          _
        // Predicated region
        $region97: #{multiscale_forward.1} parent=11 // pred_check
          %p947 = pneg %p570
        $region98: #{multiscale_forward.1} parent=11 // pred_check_branch
          %949 = sbr.rel (%p947) target = $region100
        $region99: #{multiscale_forward.1} parent=11 // pred_region
          _
        $region100: #{multiscale_forward.1} parent=11 // pred_fallthru
          _
        // Predicated region
        $region101: #{multiscale_forward.1} parent=11 // pred_check
          %p950 = pneg %p591
        $region102: #{multiscale_forward.1} parent=11 // pred_check_branch
          %952 = sbr.rel (%p950) target = $region104
        $region103: #{multiscale_forward.1} parent=11 // pred_region
          _
        $region104: #{multiscale_forward.1} parent=11 // pred_fallthru
          _
        // Predicated region
        $region105: #{multiscale_forward.1} parent=11 // pred_check
          %p953 = pneg %p612
        $region106: #{multiscale_forward.1} parent=11 // pred_check_branch
          %955 = sbr.rel (%p953) target = $region108
        $region107: #{multiscale_forward.1} parent=11 // pred_region
          _
        $region108: #{multiscale_forward.1} parent=11 // pred_fallthru
          _
        // Predicated region
        $region109: #{multiscale_forward.1} parent=11 // pred_check
          %p956 = pneg %p633
        $region110: #{multiscale_forward.1} parent=11 // pred_check_branch
          %958 = sbr.rel (%p956) target = $region112
        $region111: #{multiscale_forward.1} parent=11 // pred_region
          _
        $region112: #{multiscale_forward.1} parent=11 // pred_fallthru
          _
        // Predicated region
        $region113: #{multiscale_forward.1} parent=11 // pred_check
          %p959 = pneg %p654
        $region114: #{multiscale_forward.1} parent=11 // pred_check_branch
          %961 = sbr.rel (%p959) target = $region116
        $region115: #{multiscale_forward.1} parent=11 // pred_region
          _
        $region116: #{multiscale_forward.1} parent=11 // pred_fallthru
          _
        // Predicated region
        $region117: #{multiscale_forward.1} parent=11 // pred_check
          %p962 = pneg %p675
        $region118: #{multiscale_forward.1} parent=11 // pred_check_branch
          %964 = sbr.rel (%p962) target = $region120
        $region119: #{multiscale_forward.1} parent=11 // pred_region
          _
        $region120: #{multiscale_forward.1} parent=11 // pred_fallthru
          _
        // Predicated region
        $region121: #{multiscale_forward.1} parent=11 // pred_check
          %p965 = pneg %p696
        $region122: #{multiscale_forward.1} parent=11 // pred_check_branch
          %967 = sbr.rel (%p965) target = $region124
        $region123: #{multiscale_forward.1} parent=11 // pred_region
          _
        $region124: #{multiscale_forward.1} parent=11 // pred_fallthru
          _
        // Predicated region
        $region125: #{multiscale_forward.1} parent=11 // pred_check
          %p968 = pneg %p717
        $region126: #{multiscale_forward.1} parent=11 // pred_check_branch
          %970 = sbr.rel (%p968) target = $region128
        $region127: #{multiscale_forward.1} parent=11 // pred_region
          _
        $region128: #{multiscale_forward.1} parent=11 // pred_fallthru
          _
        // Predicated region
        $region129: #{multiscale_forward.1} parent=11 // pred_check
          %p971 = pneg %p738
        $region130: #{multiscale_forward.1} parent=11 // pred_check_branch
          %973 = sbr.rel (%p971) target = $region132
        $region131: #{multiscale_forward.1} parent=11 // pred_region
          _
        $region132: #{multiscale_forward.1} parent=11 // pred_fallthru
          _
        // Predicated region
        $region133: #{multiscale_forward.1} parent=11 // pred_check
          %p974 = pneg %p759
        $region134: #{multiscale_forward.1} parent=11 // pred_check_branch
          %976 = sbr.rel (%p974) target = $region136
        $region135: #{multiscale_forward.1} parent=11 // pred_region
          _
        $region136: #{multiscale_forward.1} parent=11 // pred_fallthru
          _
        // Predicated region
        $region137: #{multiscale_forward.1} parent=11 // pred_check
          %p977 = pneg %p780
        $region138: #{multiscale_forward.1} parent=11 // pred_check_branch
          %979 = sbr.rel (%p977) target = $region140
        $region139: #{multiscale_forward.1} parent=11 // pred_region
          _
        $region140: #{multiscale_forward.1} parent=11 // pred_fallthru
          _
        // Predicated region
        $region141: #{multiscale_forward.1} parent=11 // pred_check
          %p980 = pneg %p801
        $region142: #{multiscale_forward.1} parent=11 // pred_check_branch
          %982 = sbr.rel (%p980) target = $region144
        $region143: #{multiscale_forward.1} parent=11 // pred_region
          _
        $region144: #{multiscale_forward.1} parent=11 // pred_fallthru
          _
        // Predicated region
        $region145: #{multiscale_forward.1} parent=11 // pred_check
          %p983 = pneg %p822
        $region146: #{multiscale_forward.1} parent=11 // pred_check_branch
          %985 = sbr.rel (%p983) target = $region148
        $region147: #{multiscale_forward.1} parent=11 // pred_region
          _
        $region148: #{multiscale_forward.1} parent=11 // pred_fallthru
          _
        // Predicated region
        $region149: #{multiscale_forward.1} parent=11 // pred_check
          %p986 = pneg %p843
        $region150: #{multiscale_forward.1} parent=11 // pred_check_branch
          %988 = sbr.rel (%p986) target = $region152
        $region151: #{multiscale_forward.1} parent=11 // pred_region
          _
        $region152: #{multiscale_forward.1} parent=11 // pred_fallthru
          _
      $region12: #{multiscale_forward.1} parent=5 // pred_fallthru
        _
      %p989 = scmp.lt.s32.totalorder %s82, 2
      // Predicated region
      $region153: #{multiscale_forward.1} parent=5 // pred_check
        %p990 = pneg %p989
      $region154: #{multiscale_forward.1} parent=5 // pred_check_branch
        %992 = sbr.rel (%p990) target = $region156
      $region155: #{multiscale_forward.1} parent=5 // pred_region
        // Predicated region
        $region157: #{multiscale_forward.1} parent=155 // pred_check
          %p993 = pneg %p102
        $region158: #{multiscale_forward.1} parent=155 // pred_check_branch
          %995 = sbr.rel (%p993) target = $region160
        $region159: #{multiscale_forward.1} parent=155 // pred_region
          %p996 = scmp.lt.s32.totalorder %s82, 1
          %s997 = scalar_select %p996, %s82, 1
          %s998 = smul.addr %s997, 24
          %s999 = smul.addr %s998, 8
          %s1000 = scalar_lea.vmem %s1, %s999
        $region160: #{multiscale_forward.1} parent=155 // pred_fallthru
          _
      $region156: #{multiscale_forward.1} parent=5 // pred_fallthru
        _
      %p1001 = scmp.le.s32.totalorder 1, %s82
      %p1002 = scmp.lt.s32.totalorder %s82, 3
      %p1003 = pnand %p1001, %p1002
      %p1004 = pneg %p1003
      // Predicated region
      $region161: #{multiscale_forward.1} parent=5 // pred_check
        _
      $region162: #{multiscale_forward.1} parent=5 // pred_check_branch
        %1006 = sbr.rel (%p1003) target = $region164
      $region163: #{multiscale_forward.1} parent=5 // pred_region
        %s1007 = ssub.s32 %s82, 1
        %p1008 = scmp.lt.s32.totalorder %s87, 1
        %s1009 = scalar_select %p1008, %s87, 1
        %s1010 = smul.addr %s1009, 24
        %s1011 = smul.addr %s1010, 8
        %s1012 = scalar_lea.vmem %s1, %s1011
        %p1013 = pneg %p108
        %p1014 = pneg %p105
        %p1015 = pneg %p129
        %p1016 = pneg %p126
        %p1017 = pneg %p150
        %p1018 = pneg %p147
        %p1019 = pneg %p171
        %p1020 = pneg %p168
        %p1021 = pneg %p192
        %p1022 = pneg %p189
        %p1023 = pneg %p213
        %p1024 = pneg %p210
        %p1025 = pneg %p234
        %p1026 = pneg %p231
        %p1027 = pneg %p255
        %p1028 = pneg %p252
        %p1029 = pneg %p276
        %p1030 = pneg %p273
        %p1031 = pneg %p297
        %p1032 = pneg %p294
        %p1033 = pneg %p318
        %p1034 = pneg %p315
        %p1035 = pneg %p339
        %p1036 = pneg %p336
        %p1037 = pneg %p360
        %p1038 = pneg %p357
        %p1039 = pneg %p381
        %p1040 = pneg %p378
        %p1041 = pneg %p402
        %p1042 = pneg %p399
        %p1043 = pneg %p423
        %p1044 = pneg %p420
        %p1045 = pneg %p444
        %p1046 = pneg %p441
        %p1047 = pneg %p465
        %p1048 = pneg %p462
        %p1049 = pneg %p486
        %p1050 = pneg %p483
        %p1051 = pneg %p507
        %p1052 = pneg %p504
        %p1053 = pneg %p528
        %p1054 = pneg %p525
        %p1055 = pneg %p549
        %p1056 = pneg %p546
        %p1057 = pneg %p570
        %p1058 = pneg %p567
        %p1059 = pneg %p591
        %p1060 = pneg %p588
        %p1061 = pneg %p612
        %p1062 = pneg %p609
        %p1063 = pneg %p633
        %p1064 = pneg %p630
        %p1065 = pneg %p654
        %p1066 = pneg %p651
        %p1067 = pneg %p675
        %p1068 = pneg %p672
        %p1069 = pneg %p696
        %p1070 = pneg %p693
        %p1071 = pneg %p717
        %p1072 = pneg %p714
        %p1073 = pneg %p738
        %p1074 = pneg %p735
        %p1075 = pneg %p759
        %p1076 = pneg %p756
        %p1077 = pneg %p780
        %p1078 = pneg %p777
        %p1079 = pneg %p801
        %p1080 = pneg %p798
        %p1081 = pneg %p822
        %p1082 = pneg %p819
        %p1083 = pneg %p843
        %p1084 = pneg %p840
        %p1085 = pneg %p869
        %p1086 = pneg %p866
        %s1087 = sand.u32 %s856, 1
        %s1088 = scalar_lea.sflag [#allocation3], %s1087
        %s1089 = sand.u32 %s856, 1
        %s1090 = scalar_lea.vmem [#allocation2], %s1089
        %p1091 = scmp.lt.s32.totalorder %s87, 1
        %s1092 = scalar_select %p1091, %s87, 1
        %s1093 = smul.addr %s1092, 24
        %s1094 = smul.addr %s1093, 8
        %s1095 = scalar_lea.vmem %s1, %s1094
        %v1097 = vld [vmem:[%s1095] sm:$0xff]
        %v1098 = vld [vmem:[%s1095 + $0x8] sm:$0xff]
        %v1099 = vld [vmem:[%s1095 + $0x10] sm:$0xff]
        %v1100 = vld [vmem:[%s1095 + $0x18] sm:$0xff]
        %v1101 = vld [vmem:[%s1095 + $0x20] sm:$0xff]
        %v1102 = vld [vmem:[%s1095 + $0x28] sm:$0xff]
        %v1103 = vld [vmem:[%s1095 + $0x30] sm:$0xff]
        %v1104 = vld [vmem:[%s1095 + $0x38] sm:$0xff]
        %v1105 = vld [vmem:[%s1095 + $0x40] sm:$0xff]
        %v1106 = vld [vmem:[%s1095 + $0x48] sm:$0xff]
        %v1107 = vld [vmem:[%s1095 + $0x50] sm:$0xff]
        %v1108 = vld [vmem:[%s1095 + $0x58] sm:$0xff]
        %v1109 = vld [vmem:[%s1095 + $0x60] sm:$0xff]
        %v1110 = vld [vmem:[%s1095 + $0x68] sm:$0xff]
        %v1111 = vld [vmem:[%s1095 + $0x70] sm:$0xff]
        %v1112 = vld [vmem:[%s1095 + $0x78] sm:$0xff]
        %v1113 = vld [vmem:[%s1095 + $0x80] sm:$0xff]
        %v1114 = vld [vmem:[%s1095 + $0x88] sm:$0xff]
        %v1115 = vld [vmem:[%s1095 + $0x90] sm:$0x1]
        %v1116 = vld [vmem:[%s1095 + $0x98] sm:$0x1]
        %v1117 = vld [vmem:[%s1095 + $0xa0] sm:$0x1]
        %v1118 = vld [vmem:[%s1095 + $0xa8] sm:$0x1]
        %v1119 = vld [vmem:[%s1095 + $0xb0] sm:$0x1]
        %v1120 = vld [vmem:[%s1095 + $0xb8] sm:$0x1]
        %v1121 = vld [vmem:[%s9] sm:$0xf]
        %v1122 = vld [vmem:[%s9 + $0x4] sm:$0xf]
        %v1123 = vld [vmem:[%s9 + $0x8] sm:$0xf]
        %v1124 = vld [vmem:[%s9 + $0xc] sm:$0xf]
        %v1125 = vld [vmem:[%s9 + $0x10] sm:$0xf]
        %v1126 = vld [vmem:[%s9 + $0x14] sm:$0xf]
        %v1127 = vld [vmem:[%s9 + $0x18] sm:$0xf]
        %v1128 = vld [vmem:[%s9 + $0x1c] sm:$0xf]
        %v1129 = vld [vmem:[%s9 + $0x20] sm:$0xf]
        %v1130 = vld [vmem:[%s9 + $0x24] sm:$0xf]
        %v1131 = vld [vmem:[%s9 + $0x28] sm:$0xf]
        %v1132 = vld [vmem:[%s9 + $0x2c] sm:$0xf]
        %v1133 = vld [vmem:[%s9 + $0x30] sm:$0xf]
        %v1134 = vld [vmem:[%s9 + $0x34] sm:$0xf]
        %v1135 = vld [vmem:[%s9 + $0x38] sm:$0xf]
        %v1136 = vld [vmem:[%s9 + $0x3c] sm:$0xf]
        %v1137 = vld [vmem:[%s9 + $0x40] sm:$0xf]
        %v1138 = vld [vmem:[%s9 + $0x44] sm:$0xf]
        %v1139 = vld [vmem:[%s9 + $0x48] sm:$0xf]
        %v1140 = vld [vmem:[%s9 + $0x4c] sm:$0xf]
        %v1141 = vld [vmem:[%s9 + $0x50] sm:$0xf]
        %v1142 = vld [vmem:[%s9 + $0x54] sm:$0xf]
        %v1143 = vld [vmem:[%s9 + $0x58] sm:$0xf]
        %v1144 = vld [vmem:[%s9 + $0x5c] sm:$0xf]
        %v1145 = vld [vmem:[%s9 + $0x60] sm:$0xf]
        %v1146 = vld [vmem:[%s9 + $0x64] sm:$0xf]
        %v1147 = vld [vmem:[%s9 + $0x68] sm:$0xf]
        %v1148 = vld [vmem:[%s9 + $0x6c] sm:$0xf]
        %v1149 = vld [vmem:[%s9 + $0x70] sm:$0xf]
        %v1150 = vld [vmem:[%s9 + $0x74] sm:$0xf]
        %v1151 = vld [vmem:[%s9 + $0x78] sm:$0xf]
        %v1152 = vld [vmem:[%s9 + $0x7c] sm:$0xf]
        %v1153 = vld [vmem:[%s9 + $0x80] sm:$0xf]
        %v1154 = vld [vmem:[%s9 + $0x84] sm:$0xf]
        %v1155 = vld [vmem:[%s9 + $0x88] sm:$0xf]
        %v1156 = vld [vmem:[%s9 + $0x8c] sm:$0xf]
        %v1157 = vld [vmem:[%s9 + $0x90] sm:$0xf]
        %v1158 = vld [vmem:[%s9 + $0x94] sm:$0xf]
        %v1159 = vld [vmem:[%s9 + $0x98] sm:$0xf]
        %v1160 = vld [vmem:[%s9 + $0x9c] sm:$0xf]
        %v1161 = vld [vmem:[%s9 + $0xa0] sm:$0xf]
        %v1162 = vld [vmem:[%s9 + $0xa4] sm:$0xf]
        %v1163 = vld [vmem:[%s9 + $0xa8] sm:$0xf]
        %v1164 = vld [vmem:[%s9 + $0xac] sm:$0xf]
        %v1165 = vld [vmem:[%s9 + $0xb0] sm:$0xf]
        %v1166 = vld [vmem:[%s9 + $0xb4] sm:$0xf]
        %v1167 = vld [vmem:[%s9 + $0xb8] sm:$0xf]
        %v1168 = vld [vmem:[%s9 + $0xbc] sm:$0xf]
        %v1169 = vld [vmem:[%s9 + $0xc0] sm:$0xf]
        %v1170 = vld [vmem:[%s9 + $0xc4] sm:$0xf]
        %v1171 = vld [vmem:[%s9 + $0xc8] sm:$0xf]
        %v1172 = vld [vmem:[%s9 + $0xcc] sm:$0xf]
        %v1173 = vld [vmem:[%s9 + $0xd0] sm:$0xf]
        %v1174 = vld [vmem:[%s9 + $0xd4] sm:$0xf]
        %v1175 = vld [vmem:[%s9 + $0xd8] sm:$0xf]
        %v1176 = vld [vmem:[%s9 + $0xdc] sm:$0xf]
        %v1177 = vld [vmem:[%s9 + $0xe0] sm:$0xf]
        %v1178 = vld [vmem:[%s9 + $0xe4] sm:$0xf]
        %v1179 = vld [vmem:[%s9 + $0xe8] sm:$0xf]
        %v1180 = vld [vmem:[%s9 + $0xec] sm:$0xf]
        %v1181 = vld [vmem:[%s9 + $0xf0] sm:$0xf]
        %v1182 = vld [vmem:[%s9 + $0xf4] sm:$0xf]
        %v1183 = vld [vmem:[%s9 + $0xf8] sm:$0xf]
        %v1184 = vld [vmem:[%s9 + $0xfc] sm:$0xf]
        %v1185 = vld [vmem:[%s9 + $0x100] sm:$0xf]
        %v1186 = vld [vmem:[%s9 + $0x104] sm:$0xf]
        %v1187 = vld [vmem:[%s9 + $0x108] sm:$0xf]
        %v1188 = vld [vmem:[%s9 + $0x10c] sm:$0xf]
        %v1189 = vld [vmem:[%s9 + $0x110] sm:$0xf]
        %v1190 = vld [vmem:[%s9 + $0x114] sm:$0xf]
        %v1191 = vld [vmem:[%s9 + $0x118] sm:$0xf]
        %v1192 = vld [vmem:[%s9 + $0x11c] sm:$0xf]
        %v1193 = vld [vmem:[%s9 + $0x120] sm:$0xf]
        %v1194 = vld [vmem:[%s9 + $0x124] sm:$0xf]
        %v1195 = vld [vmem:[%s9 + $0x128] sm:$0xf]
        %v1196 = vld [vmem:[%s9 + $0x12c] sm:$0xf]
        %v1197 = vld [vmem:[%s9 + $0x130] sm:$0xf]
        %v1198 = vld [vmem:[%s9 + $0x134] sm:$0xf]
        %v1199 = vld [vmem:[%s9 + $0x138] sm:$0xf]
        %v1200 = vld [vmem:[%s9 + $0x13c] sm:$0xf]
        %v1201 = vld [vmem:[%s9 + $0x140] sm:$0xf]
        %v1202 = vld [vmem:[%s9 + $0x144] sm:$0xf]
        %v1203 = vld [vmem:[%s9 + $0x148] sm:$0xf]
        %v1204 = vld [vmem:[%s9 + $0x14c] sm:$0xf]
        %v1205 = vld [vmem:[%s9 + $0x150] sm:$0xf]
        %v1206 = vld [vmem:[%s9 + $0x154] sm:$0xf]
        %v1207 = vld [vmem:[%s9 + $0x158] sm:$0xf]
        %v1208 = vld [vmem:[%s9 + $0x15c] sm:$0xf]
        %v1209 = vld [vmem:[%s9 + $0x160] sm:$0xf]
        %v1210 = vld [vmem:[%s9 + $0x164] sm:$0xf]
        %v1211 = vld [vmem:[%s9 + $0x168] sm:$0xf]
        %v1212 = vld [vmem:[%s9 + $0x16c] sm:$0xf]
        %v1213 = vld [vmem:[%s9 + $0x170] sm:$0xf]
        %v1214 = vld [vmem:[%s9 + $0x174] sm:$0xf]
        %v1215 = vld [vmem:[%s9 + $0x178] sm:$0xf]
        %v1216 = vld [vmem:[%s9 + $0x17c] sm:$0xf]
        %v1217 = vpack.c.bf16 %v1103, %v1097
        %v1218 = vpack.c.bf16 %v1104, %v1098
        %v1219 = vpack.c.bf16 %v1105, %v1099
        %v1220 = vpack.c.bf16 %v1106, %v1100
        %v1221 = vpack.c.bf16 %v1107, %v1101
        %v1222 = vpack.c.bf16 %v1108, %v1102
        %v1223 = vpack.c.bf16 %v1115, %v1109
        %v1224 = vpack.c.bf16 %v1116, %v1110
        %v1225 = vpack.c.bf16 %v1117, %v1111
        %v1226 = vpack.c.bf16 %v1118, %v1112
        %v1227 = vpack.c.bf16 %v1119, %v1113
        %v1228 = vpack.c.bf16 %v1120, %v1114
        %v1229 = vld [vmem:[%s3] sm:$0xff]
        %v1230 = vld [vmem:[%s3 + $0x8] sm:$0xff]
        %v1231 = vld [vmem:[%s3 + $0x10] sm:$0xff]
        %v1232 = vld [vmem:[%s3 + $0x18] sm:$0x1]
        %v1329 = vunpack.c.l.b16 %v1121
        %v1330 = vunpack.c.l.b16 %v1122
        %v1331 = vunpack.c.l.b16 %v1123
        %v1332 = vunpack.c.l.b16 %v1124
        %v1333 = vunpack.c.l.b16 %v1125
        %v1334 = vunpack.c.l.b16 %v1126
        %v1335 = vunpack.c.l.b16 %v1127
        %v1336 = vunpack.c.l.b16 %v1128
        %v1337 = vunpack.c.l.b16 %v1129
        %v1338 = vunpack.c.l.b16 %v1130
        %v1339 = vunpack.c.l.b16 %v1131
        %v1340 = vunpack.c.l.b16 %v1132
        %v1341 = vunpack.c.l.b16 %v1133
        %v1342 = vunpack.c.l.b16 %v1134
        %v1343 = vunpack.c.l.b16 %v1135
        %v1344 = vunpack.c.l.b16 %v1136
        %v1345 = vunpack.c.l.b16 %v1137
        %v1346 = vunpack.c.l.b16 %v1138
        %v1347 = vunpack.c.l.b16 %v1139
        %v1348 = vunpack.c.l.b16 %v1140
        %v1349 = vunpack.c.l.b16 %v1141
        %v1350 = vunpack.c.l.b16 %v1142
        %v1351 = vunpack.c.l.b16 %v1143
        %v1352 = vunpack.c.l.b16 %v1144
        %v1353 = vunpack.c.l.b16 %v1145
        %v1354 = vunpack.c.l.b16 %v1146
        %v1355 = vunpack.c.l.b16 %v1147
        %v1356 = vunpack.c.l.b16 %v1148
        %v1357 = vunpack.c.l.b16 %v1149
        %v1358 = vunpack.c.l.b16 %v1150
        %v1359 = vunpack.c.l.b16 %v1151
        %v1360 = vunpack.c.l.b16 %v1152
        %v1361 = vunpack.c.l.b16 %v1153
        %v1362 = vunpack.c.l.b16 %v1154
        %v1363 = vunpack.c.l.b16 %v1155
        %v1364 = vunpack.c.l.b16 %v1156
        %v1365 = vunpack.c.l.b16 %v1157
        %v1366 = vunpack.c.l.b16 %v1158
        %v1367 = vunpack.c.l.b16 %v1159
        %v1368 = vunpack.c.l.b16 %v1160
        %v1369 = vunpack.c.l.b16 %v1161
        %v1370 = vunpack.c.l.b16 %v1162
        %v1371 = vunpack.c.l.b16 %v1163
        %v1372 = vunpack.c.l.b16 %v1164
        %v1373 = vunpack.c.l.b16 %v1165
        %v1374 = vunpack.c.l.b16 %v1166
        %v1375 = vunpack.c.l.b16 %v1167
        %v1376 = vunpack.c.l.b16 %v1168
        %v1377 = vunpack.c.l.b16 %v1169
        %v1378 = vunpack.c.l.b16 %v1170
        %v1379 = vunpack.c.l.b16 %v1171
        %v1380 = vunpack.c.l.b16 %v1172
        %v1381 = vunpack.c.l.b16 %v1173
        %v1382 = vunpack.c.l.b16 %v1174
        %v1383 = vunpack.c.l.b16 %v1175
        %v1384 = vunpack.c.l.b16 %v1176
        %v1385 = vunpack.c.l.b16 %v1177
        %v1386 = vunpack.c.l.b16 %v1178
        %v1387 = vunpack.c.l.b16 %v1179
        %v1388 = vunpack.c.l.b16 %v1180
        %v1389 = vunpack.c.l.b16 %v1181
        %v1390 = vunpack.c.l.b16 %v1182
        %v1391 = vunpack.c.l.b16 %v1183
        %v1392 = vunpack.c.l.b16 %v1184
        %v1393 = vunpack.c.l.b16 %v1185
        %v1394 = vunpack.c.l.b16 %v1186
        %v1395 = vunpack.c.l.b16 %v1187
        %v1396 = vunpack.c.l.b16 %v1188
        %v1397 = vunpack.c.l.b16 %v1189
        %v1398 = vunpack.c.l.b16 %v1190
        %v1399 = vunpack.c.l.b16 %v1191
        %v1400 = vunpack.c.l.b16 %v1192
        %v1401 = vunpack.c.l.b16 %v1193
        %v1402 = vunpack.c.l.b16 %v1194
        %v1403 = vunpack.c.l.b16 %v1195
        %v1404 = vunpack.c.l.b16 %v1196
        %v1405 = vunpack.c.l.b16 %v1197
        %v1406 = vunpack.c.l.b16 %v1198
        %v1407 = vunpack.c.l.b16 %v1199
        %v1408 = vunpack.c.l.b16 %v1200
        %v1409 = vunpack.c.l.b16 %v1201
        %v1410 = vunpack.c.l.b16 %v1202
        %v1411 = vunpack.c.l.b16 %v1203
        %v1412 = vunpack.c.l.b16 %v1204
        %v1413 = vunpack.c.l.b16 %v1205
        %v1414 = vunpack.c.l.b16 %v1206
        %v1415 = vunpack.c.l.b16 %v1207
        %v1416 = vunpack.c.l.b16 %v1208
        %v1417 = vunpack.c.l.b16 %v1209
        %v1418 = vunpack.c.l.b16 %v1210
        %v1419 = vunpack.c.l.b16 %v1211
        %v1420 = vunpack.c.l.b16 %v1212
        %v1421 = vunpack.c.l.b16 %v1213
        %v1422 = vunpack.c.l.b16 %v1214
        %v1423 = vunpack.c.l.b16 %v1215
        %v1424 = vunpack.c.l.b16 %v1216
        %v1425 = vpack.c.b16 %v1330, %v1329
        %v1426 = vpack.c.b16 %v1332, %v1331
        %v1427 = vpack.c.b16 %v1334, %v1333
        %v1428 = vpack.c.b16 %v1336, %v1335
        %v1429 = vpack.c.b16 %v1338, %v1337
        %v1430 = vpack.c.b16 %v1340, %v1339
        %v1431 = vpack.c.b16 %v1342, %v1341
        %v1432 = vpack.c.b16 %v1344, %v1343
        %v1433 = vpack.c.b16 %v1346, %v1345
        %v1434 = vpack.c.b16 %v1348, %v1347
        %v1435 = vpack.c.b16 %v1350, %v1349
        %v1436 = vpack.c.b16 %v1352, %v1351
        %v1437 = vpack.c.b16 %v1354, %v1353
        %v1438 = vpack.c.b16 %v1356, %v1355
        %v1439 = vpack.c.b16 %v1358, %v1357
        %v1440 = vpack.c.b16 %v1360, %v1359
        %v1441 = vpack.c.b16 %v1362, %v1361
        %v1442 = vpack.c.b16 %v1364, %v1363
        %v1443 = vpack.c.b16 %v1366, %v1365
        %v1444 = vpack.c.b16 %v1368, %v1367
        %v1445 = vpack.c.b16 %v1370, %v1369
        %v1446 = vpack.c.b16 %v1372, %v1371
        %v1447 = vpack.c.b16 %v1374, %v1373
        %v1448 = vpack.c.b16 %v1376, %v1375
        %v1449 = vpack.c.b16 %v1378, %v1377
        %v1450 = vpack.c.b16 %v1380, %v1379
        %v1451 = vpack.c.b16 %v1382, %v1381
        %v1452 = vpack.c.b16 %v1384, %v1383
        %v1453 = vpack.c.b16 %v1386, %v1385
        %v1454 = vpack.c.b16 %v1388, %v1387
        %v1455 = vpack.c.b16 %v1390, %v1389
        %v1456 = vpack.c.b16 %v1392, %v1391
        %v1457 = vpack.c.b16 %v1394, %v1393
        %v1458 = vpack.c.b16 %v1396, %v1395
        %v1459 = vpack.c.b16 %v1398, %v1397
        %v1460 = vpack.c.b16 %v1400, %v1399
        %v1461 = vpack.c.b16 %v1402, %v1401
        %v1462 = vpack.c.b16 %v1404, %v1403
        %v1463 = vpack.c.b16 %v1406, %v1405
        %v1464 = vpack.c.b16 %v1408, %v1407
        %v1465 = vpack.c.b16 %v1410, %v1409
        %v1466 = vpack.c.b16 %v1412, %v1411
        %v1467 = vpack.c.b16 %v1414, %v1413
        %v1468 = vpack.c.b16 %v1416, %v1415
        %v1469 = vpack.c.b16 %v1418, %v1417
        %v1470 = vpack.c.b16 %v1420, %v1419
        %v1471 = vpack.c.b16 %v1422, %v1421
        %v1472 = vpack.c.b16 %v1424, %v1423
        %1521 = vmatprep.subr.bf16.mxu0 0
        %1522 = vmatpush1.bf16.msra.mxu0 %v1425
        %1523 = vmatprep.subr.bf16.mxu0 0
        %1524 = vmatpush1.bf16.msra.mxu0 %v1426
        %1525 = vmatprep.subr.bf16.mxu0 0
        %1526 = vmatpush1.bf16.msra.mxu0 %v1427
        %1527 = vmatprep.subr.bf16.mxu0 0
        %1528 = vmatpush1.bf16.msra.mxu0 %v1428
        %1529 = vmatprep.subr.bf16.mxu0 0
        %1530 = vmatpush1.bf16.msra.mxu0 %v1429
        %1531 = vmatprep.subr.bf16.mxu0 0
        %1532 = vmatpush1.bf16.msra.mxu0 %v1430
        %1533 = vmatprep.subr.bf16.mxu0 0
        %1534 = vmatpush1.bf16.msra.mxu0 %v1431
        %1535 = vmatprep.subr.bf16.mxu0 0
        %1536 = vmatpush1.bf16.msra.mxu0 %v1432
        %1537 = vmatprep.subr.bf16.mxu0 0
        %1538 = vmatpush1.bf16.msra.mxu0 %v1433
        %1539 = vmatprep.subr.bf16.mxu0 0
        %1540 = vmatpush1.bf16.msra.mxu0 %v1434
        %1541 = vmatprep.subr.bf16.mxu0 0
        %1542 = vmatpush1.bf16.msra.mxu0 %v1435
        %1543 = vmatprep.subr.bf16.mxu0 0
        %1544 = vmatpush1.bf16.msra.mxu0 %v1436
        %1545 = vmatprep.subr.bf16.mxu0 0
        %1546 = vmatpush1.bf16.msra.mxu0 %v1437
        %1547 = vmatprep.subr.bf16.mxu0 0
        %1548 = vmatpush1.bf16.msra.mxu0 %v1438
        %1549 = vmatprep.subr.bf16.mxu0 0
        %1550 = vmatpush1.bf16.msra.mxu0 %v1439
        %1551 = vmatprep.subr.bf16.mxu0 0
        %1552 = vmatpush1.bf16.msra.mxu0 %v1440
        %1553 = vmatprep.mubr.bf16.mxu0 %v1218
        %1554 = vmatmul.mubr.bf16.gmra.mrb[0].mxu0 %v1217
        %v1555 = vpop.f32.mrb[0].mxu0
        %v1556 = vadd.f32 %v1229, %v1555
        %v1557 = vpop.f32.mrb[0].mxu0
        %v1558 = vpop.f32.mrb[0].mxu0
        %v1559 = vadd.f32 %v1230, %v1558
        %v1560 = vpop.f32.mrb[0].mxu0
        %1561 = vmatprep.mubr.bf16.mxu0 %v1224
        %1562 = vmatmul.mubr.bf16.gmra.mrb[0].mxu0 %v1223
        %v1563 = vpop.f32.mrb[0].mxu0
        %v1564 = vadd.f32 %v1231, %v1563
        %v1565 = vpop.f32.mrb[0].mxu0
        %v1566 = vpop.f32.mrb[0].mxu0
        %v1567 = vadd.f32 %v1232, %v1566
        %v1568 = vpop.f32.mrb[0].mxu0
        %1569 = vdwg.mxu0
        %1570 = vmatprep.subr.bf16.mxu0 0
        %1571 = vmatpush1.bf16.msra.mxu0 %v1441
        %1572 = vmatprep.subr.bf16.mxu0 0
        %1573 = vmatpush1.bf16.msra.mxu0 %v1442
        %1574 = vmatprep.subr.bf16.mxu0 0
        %1575 = vmatpush1.bf16.msra.mxu0 %v1443
        %1576 = vmatprep.subr.bf16.mxu0 0
        %1577 = vmatpush1.bf16.msra.mxu0 %v1444
        %1578 = vmatprep.subr.bf16.mxu0 0
        %1579 = vmatpush1.bf16.msra.mxu0 %v1445
        %1580 = vmatprep.subr.bf16.mxu0 0
        %1581 = vmatpush1.bf16.msra.mxu0 %v1446
        %1582 = vmatprep.subr.bf16.mxu0 0
        %1583 = vmatpush1.bf16.msra.mxu0 %v1447
        %1584 = vmatprep.subr.bf16.mxu0 0
        %1585 = vmatpush1.bf16.msra.mxu0 %v1448
        %1586 = vmatprep.subr.bf16.mxu0 0
        %1587 = vmatpush1.bf16.msra.mxu0 %v1449
        %1588 = vmatprep.subr.bf16.mxu0 0
        %1589 = vmatpush1.bf16.msra.mxu0 %v1450
        %1590 = vmatprep.subr.bf16.mxu0 0
        %1591 = vmatpush1.bf16.msra.mxu0 %v1451
        %1592 = vmatprep.subr.bf16.mxu0 0
        %1593 = vmatpush1.bf16.msra.mxu0 %v1452
        %1594 = vmatprep.subr.bf16.mxu0 0
        %1595 = vmatpush1.bf16.msra.mxu0 %v1453
        %1596 = vmatprep.subr.bf16.mxu0 0
        %1597 = vmatpush1.bf16.msra.mxu0 %v1454
        %1598 = vmatprep.subr.bf16.mxu0 0
        %1599 = vmatpush1.bf16.msra.mxu0 %v1455
        %1600 = vmatprep.subr.bf16.mxu0 0
        %1601 = vmatpush1.bf16.msra.mxu0 %v1456
        %1602 = vmatprep.mubr.bf16.mxu0 %v1220
        %1603 = vmatmul.mubr.bf16.gmra.mrb[0].mxu0 %v1219
        %v1604 = vpop.f32.mrb[0].mxu0
        %v1605 = vadd.f32 %v1556, %v1604
        %v1606 = vpop.f32.mrb[0].mxu0
        %v1607 = vpop.f32.mrb[0].mxu0
        %v1608 = vadd.f32 %v1559, %v1607
        %v1609 = vpop.f32.mrb[0].mxu0
        %1610 = vmatprep.mubr.bf16.mxu0 %v1226
        %1611 = vmatmul.mubr.bf16.gmra.mrb[0].mxu0 %v1225
        %v1612 = vpop.f32.mrb[0].mxu0
        %v1613 = vadd.f32 %v1564, %v1612
        %v1614 = vpop.f32.mrb[0].mxu0
        %v1615 = vpop.f32.mrb[0].mxu0
        %v1616 = vadd.f32 %v1567, %v1615
        %v1617 = vpop.f32.mrb[0].mxu0
        %1618 = vdwg.mxu0
        %1619 = vmatprep.subr.bf16.mxu0 0
        %1620 = vmatpush1.bf16.msra.mxu0 %v1457
        %1621 = vmatprep.subr.bf16.mxu0 0
        %1622 = vmatpush1.bf16.msra.mxu0 %v1458
        %1623 = vmatprep.subr.bf16.mxu0 0
        %1624 = vmatpush1.bf16.msra.mxu0 %v1459
        %1625 = vmatprep.subr.bf16.mxu0 0
        %1626 = vmatpush1.bf16.msra.mxu0 %v1460
        %1627 = vmatprep.subr.bf16.mxu0 0
        %1628 = vmatpush1.bf16.msra.mxu0 %v1461
        %1629 = vmatprep.subr.bf16.mxu0 0
        %1630 = vmatpush1.bf16.msra.mxu0 %v1462
        %1631 = vmatprep.subr.bf16.mxu0 0
        %1632 = vmatpush1.bf16.msra.mxu0 %v1463
        %1633 = vmatprep.subr.bf16.mxu0 0
        %1634 = vmatpush1.bf16.msra.mxu0 %v1464
        %1635 = vmatprep.subr.bf16.mxu0 0
        %1636 = vmatpush1.bf16.msra.mxu0 %v1465
        %1637 = vmatprep.subr.bf16.mxu0 0
        %1638 = vmatpush1.bf16.msra.mxu0 %v1466
        %1639 = vmatprep.subr.bf16.mxu0 0
        %1640 = vmatpush1.bf16.msra.mxu0 %v1467
        %1641 = vmatprep.subr.bf16.mxu0 0
        %1642 = vmatpush1.bf16.msra.mxu0 %v1468
        %1643 = vmatprep.subr.bf16.mxu0 0
        %1644 = vmatpush1.bf16.msra.mxu0 %v1469
        %1645 = vmatprep.subr.bf16.mxu0 0
        %1646 = vmatpush1.bf16.msra.mxu0 %v1470
        %1647 = vmatprep.subr.bf16.mxu0 0
        %1648 = vmatpush1.bf16.msra.mxu0 %v1471
        %1649 = vmatprep.subr.bf16.mxu0 0
        %1650 = vmatpush1.bf16.msra.mxu0 %v1472
        %1651 = vmatprep.mubr.bf16.mxu0 %v1222
        %1652 = vmatmul.mubr.bf16.gmra.mrb[0].mxu0 %v1221
        %v1653 = vpop.f32.mrb[0].mxu0
        %v1654 = vadd.f32 %v1605, %v1653
        %v1655 = vpop.f32.mrb[0].mxu0
        %v1656 = vpop.f32.mrb[0].mxu0
        %v1657 = vadd.f32 %v1608, %v1656
        %v1658 = vpop.f32.mrb[0].mxu0
        %1659 = vmatprep.mubr.bf16.mxu0 %v1228
        %1660 = vmatmul.mubr.bf16.gmra.mrb[0].mxu0 %v1227
        %v1661 = vpop.f32.mrb[0].mxu0
        %v1662 = vadd.f32 %v1613, %v1661
        %v1663 = vpop.f32.mrb[0].mxu0
        %v1664 = vpop.f32.mrb[0].mxu0
        %v1665 = vadd.f32 %v1616, %v1664
        %v1666 = vpop.f32.mrb[0].mxu0
        %1667 = vdwg.mxu0
        %v1668 = vld [vmem:[%s5] sm:$0xff]
        %v1669 = vld [vmem:[%s5 + $0x8] sm:$0xff]
        %v1670 = vld [vmem:[%s5 + $0x10] sm:$0xff]
        %v1671 = vld [vmem:[%s5 + $0x18] sm:$0x1]
        %v1672 = vld [vmem:[%s11] sm:$0x1]
        %v1673 = vld [vmem:[%s13] sm:$0x1]
        %vm1674 = vcmask 523264
        %v1675 = vsel %vm1674, %v1654, 0.0
        %1676 = vadd.xlane.f32.xlu0 %v1675
        %v1677 = vpop.xlane.xlu0 %1676
        %v1678 = vsel %vm1674, %v1657, 0.0
        %1679 = vadd.xlane.f32.xlu0 %v1678
        %v1680 = vpop.xlane.xlu0 %1679
        %v1681 = vsel %vm1674, %v1662, 0.0
        %1682 = vadd.xlane.f32.xlu0 %v1681
        %v1683 = vpop.xlane.xlu0 %1682
        %vm1684 = vcmask 516096
        %v1685 = vsel %vm1684, %v1665, 0.0
        %1686 = vadd.xlane.f32.xlu0 %v1685
        %v1687 = vpop.xlane.xlu0 %1686
        %v1688 = vrcp.pop 64.0
        %v1689 = vmul.f32 %v1677, %v1688
        %v1690 = vmul.f32 %v1680, %v1688
        %v1691 = vmul.f32 %v1683, %v1688
        %v1692 = vmul.f32 %v1687, %v1688
        %v1693 = vsub.f32 %v1654, %v1689
        %v1694 = vsub.f32 %v1657, %v1690
        %v1695 = vsub.f32 %v1662, %v1691
        %v1696 = vsub.f32 %v1665, %v1692
        %v1697 = vmul.f32 %v1693, %v1693
        %v1698 = vmul.f32 %v1694, %v1694
        %v1699 = vmul.f32 %v1695, %v1695
        %v1700 = vmul.f32 %v1696, %v1696
        %v1701 = vsel %vm1674, %v1697, 0.0
        %1702 = vadd.xlane.f32.xlu0 %v1701
        %v1703 = vpop.xlane.xlu0 %1702
        %v1704 = vsel %vm1674, %v1698, 0.0
        %1705 = vadd.xlane.f32.xlu0 %v1704
        %v1706 = vpop.xlane.xlu0 %1705
        %v1707 = vsel %vm1674, %v1699, 0.0
        %1708 = vadd.xlane.f32.xlu0 %v1707
        %v1709 = vpop.xlane.xlu0 %1708
        %v1710 = vsel %vm1684, %v1700, 0.0
        %1711 = vadd.xlane.f32.xlu0 %v1710
        %v1712 = vpop.xlane.xlu0 %1711
        %v1713 = vmul.f32 %v1703, %v1688
        %v1714 = vmul.f32 %v1706, %v1688
        %v1715 = vmul.f32 %v1709, %v1688
        %v1716 = vmul.f32 %v1712, %v1688
        %v1717 = vadd.f32 %v1713, 1e-06
        %v1718 = vadd.f32 %v1714, 1e-06
        %v1719 = vadd.f32 %v1715, 1e-06
        %v1720 = vadd.f32 %v1716, 1e-06
        %v1721 = vrsqrt.pop %v1717
        %v1722 = vrsqrt.pop %v1718
        %v1723 = vrsqrt.pop %v1719
        %v1724 = vrsqrt.pop %v1720
        %v1725 = vmul.f32 %v1693, %v1721
        %v1726 = vmul.f32 %v1694, %v1722
        %v1727 = vmul.f32 %v1695, %v1723
        %v1728 = vmul.f32 %v1696, %v1724
        %v1730 = vlaneseq
        %v1731 = vshrl.u32 %v1730, 7
        %v1732 = vsub.s32 0, %v1731
        %v1733 = vrot.slane %v1672, %v1732
        %v1735 = vmul.f32 %v1725, %v1733
        %v1736 = vmul.f32 %v1726, %v1733
        %v1737 = vmul.f32 %v1727, %v1733
        %v1738 = vmul.f32 %v1728, %v1733
        %v1740 = vlaneseq
        %v1741 = vshrl.u32 %v1740, 7
        %v1742 = vsub.s32 0, %v1741
        %v1743 = vrot.slane %v1673, %v1742
        %v1745 = vadd.f32 %v1735, %v1743
        %v1746 = vadd.f32 %v1736, %v1743
        %v1747 = vadd.f32 %v1737, %v1743
        %v1748 = vadd.f32 %v1738, %v1743
        %v1749 = vld [vmem:[%s15] sm:$0xff]
        %v1750 = vld [vmem:[%s15 + $0x8] sm:$0xff]
        %v1751 = vld [vmem:[%s15 + $0x10] sm:$0xff]
        %v1752 = vld [vmem:[%s15 + $0x18] sm:$0xff]
        %v1753 = vld [vmem:[%s15 + $0x20] sm:$0xff]
        %v1754 = vld [vmem:[%s15 + $0x28] sm:$0xff]
        %v1755 = vld [vmem:[%s15 + $0x30] sm:$0xff]
        %v1756 = vld [vmem:[%s15 + $0x38] sm:$0xff]
        %v1757 = vpack.c.bf16 %v1746, %v1745
        %v1758 = vpack.c.bf16 %v1748, %v1747
        %v1759 = vld [vmem:[%s17] sm:$0x3]
        %v1761 = vlaneseq
        %v1762 = vshrl.u32 %v1761, 7
        %v1763 = vsub.s32 0, %v1762
        %v1764 = vrot.slane %v1759, %v1763
        %v1765 = vlaneseq
        %v1766 = vshrl.u32 %v1765, 7
        %v1767 = vsub.s32 1, %v1766
        %v1768 = vrot.slane %v1759, %v1767
        %v1779 = vunpack.c.l.b16 %v1749
        %v1780 = vunpack.c.h.b16 %v1749
        %v1781 = vunpack.c.l.b16 %v1750
        %v1782 = vunpack.c.h.b16 %v1750
        %v1783 = vunpack.c.l.b16 %v1751
        %v1784 = vunpack.c.h.b16 %v1751
        %v1785 = vunpack.c.l.b16 %v1752
        %v1786 = vunpack.c.h.b16 %v1752
        %v1787 = vunpack.c.l.b16 %v1753
        %v1788 = vunpack.c.h.b16 %v1753
        %v1789 = vunpack.c.l.b16 %v1754
        %v1790 = vunpack.c.h.b16 %v1754
        %v1791 = vunpack.c.l.b16 %v1755
        %v1792 = vunpack.c.h.b16 %v1755
        %v1793 = vunpack.c.l.b16 %v1756
        %v1794 = vunpack.c.h.b16 %v1756
        %v1795 = vpack.c.b16 %v1781, %v1779
        %v1796 = vpack.c.b16 %v1782, %v1780
        %v1797 = vpack.c.b16 %v1785, %v1783
        %v1798 = vpack.c.b16 %v1786, %v1784
        %v1799 = vpack.c.b16 %v1789, %v1787
        %v1800 = vpack.c.b16 %v1790, %v1788
        %v1801 = vpack.c.b16 %v1793, %v1791
        %v1802 = vpack.c.b16 %v1794, %v1792
        %v1812 = vsel %vm1674, %v1757, 0
        %v1815 = vsel %vm1674, %v1758, 0
        %1817 = vmatprep.subr.bf16.mxu0 %v1796
        %1818 = vmatpush1.bf16.msra.mxu0 %v1795
        %1819 = vmatprep.subr.bf16.mxu0 %v1798
        %1820 = vmatpush1.bf16.msra.mxu0 %v1797
        %1821 = vmatprep.subr.bf16.mxu0 %v1800
        %1822 = vmatpush1.bf16.msra.mxu0 %v1799
        %1823 = vmatprep.subr.bf16.mxu0 %v1802
        %1824 = vmatpush1.bf16.msra.mxu0 %v1801
        %1825 = vmatprep.subr.bf16.mxu0 0
        %1826 = vmatpush1.bf16.msra.mxu0 0
        %1827 = vmatprep.subr.bf16.mxu0 0
        %1828 = vmatpush1.bf16.msra.mxu0 0
        %1829 = vmatprep.subr.bf16.mxu0 0
        %1830 = vmatpush1.bf16.msra.mxu0 0
        %1831 = vmatprep.subr.bf16.mxu0 0
        %1832 = vmatpush1.bf16.msra.mxu0 0
        %1833 = vmatprep.subr.bf16.mxu0 0
        %1834 = vmatpush1.bf16.msra.mxu0 0
        %1835 = vmatprep.subr.bf16.mxu0 0
        %1836 = vmatpush1.bf16.msra.mxu0 0
        %1837 = vmatprep.subr.bf16.mxu0 0
        %1838 = vmatpush1.bf16.msra.mxu0 0
        %1839 = vmatprep.subr.bf16.mxu0 0
        %1840 = vmatpush1.bf16.msra.mxu0 0
        %1841 = vmatprep.subr.bf16.mxu0 0
        %1842 = vmatpush1.bf16.msra.mxu0 0
        %1843 = vmatprep.subr.bf16.mxu0 0
        %1844 = vmatpush1.bf16.msra.mxu0 0
        %1845 = vmatprep.subr.bf16.mxu0 0
        %1846 = vmatpush1.bf16.msra.mxu0 0
        %1847 = vmatprep.subr.bf16.mxu0 0
        %1848 = vmatpush1.bf16.msra.mxu0 0
        %1849 = vmatprep.mubr.bf16.mxu0 0
        %1850 = vmatmul.mubr.bf16.gmra.mrb[0].mxu0 %v1812
        %v1851 = vpop.f32.mrb[0].mxu0
        %v1852 = vadd.f32 %v1764, %v1851
        %v1853 = vpop.f32.mrb[0].mxu0
        %v1854 = vadd.f32 %v1768, %v1853
        %v1855 = vpop.f32.mrb[0].mxu0
        %v1856 = vadd.f32 %v1764, %v1855
        %v1857 = vpop.f32.mrb[0].mxu0
        %v1858 = vadd.f32 %v1768, %v1857
        %1859 = vmatprep.mubr.bf16.mxu0 0
        %1860 = vmatmul.mubr.bf16.gmra.mrb[0].mxu0 %v1815
        %v1861 = vpop.f32.mrb[0].mxu0
        %v1862 = vadd.f32 %v1764, %v1861
        %v1863 = vpop.f32.mrb[0].mxu0
        %v1864 = vadd.f32 %v1768, %v1863
        %v1865 = vpop.f32.mrb[0].mxu0
        %v1866 = vadd.f32 %v1764, %v1865
        %v1867 = vpop.f32.mrb[0].mxu0
        %v1868 = vadd.f32 %v1768, %v1867
        %1869 = vdwg.mxu0
        %v1870 = vpack.c.bf16 %v1856, %v1852
        %v1871 = vpack.c.bf16 %v1866, %v1862
        %1874 = vrot.lane.b32.xlu0 %v1870, 64
        %v1875 = vpop.permute.xlu0 %1874
        %1876 = vrot.lane.b32.xlu0 %v1871, 64
        %v1877 = vpop.permute.xlu0 %1876
        %vm1878 = vcmask 130048
        %v1880 = vsel %vm1878, %v1870, 0
        %v1883 = vsel %vm1878, %v1871, 0
        %v1886 = vsel %vm1878, %v1875, 0
        %v1889 = vsel %vm1878, %v1877, 0
        %1891 = vmatprep.subr.bf16.mxu0 0
        %1892 = vmatpush1.bf16.xpose.msra.mxu0 %v1886
        %1893 = vmatprep.subr.bf16.mxu0 0
        %1894 = vmatpush1.bf16.xpose.msra.mxu0 %v1889
        %1895 = vmatprep.subr.bf16.mxu0 0
        %1896 = vmatpush1.bf16.xpose.msra.mxu0 0
        %1897 = vmatprep.subr.bf16.mxu0 0
        %1898 = vmatpush1.bf16.xpose.msra.mxu0 0
        %1899 = vmatprep.subr.bf16.mxu0 0
        %1900 = vmatpush1.bf16.xpose.msra.mxu0 0
        %1901 = vmatprep.subr.bf16.mxu0 0
        %1902 = vmatpush1.bf16.xpose.msra.mxu0 0
        %1903 = vmatprep.subr.bf16.mxu0 0
        %1904 = vmatpush1.bf16.xpose.msra.mxu0 0
        %1905 = vmatprep.subr.bf16.mxu0 0
        %1906 = vmatpush1.bf16.xpose.msra.mxu0 0
        %1907 = vmatprep.subr.bf16.mxu0 0
        %1908 = vmatpush1.bf16.xpose.msra.mxu0 0
        %1909 = vmatprep.subr.bf16.mxu0 0
        %1910 = vmatpush1.bf16.xpose.msra.mxu0 0
        %1911 = vmatprep.subr.bf16.mxu0 0
        %1912 = vmatpush1.bf16.xpose.msra.mxu0 0
        %1913 = vmatprep.subr.bf16.mxu0 0
        %1914 = vmatpush1.bf16.xpose.msra.mxu0 0
        %1915 = vmatprep.subr.bf16.mxu0 0
        %1916 = vmatpush1.bf16.xpose.msra.mxu0 0
        %1917 = vmatprep.subr.bf16.mxu0 0
        %1918 = vmatpush1.bf16.xpose.msra.mxu0 0
        %1919 = vmatprep.subr.bf16.mxu0 0
        %1920 = vmatpush1.bf16.xpose.msra.mxu0 0
        %1921 = vmatprep.subr.bf16.mxu0 0
        %1922 = vmatpush1.bf16.xpose.msra.mxu0 0
        %1923 = vmatprep.mubr.bf16.mxu0 0
        %1924 = vmatmul.mubr.bf16.gmra.mrb[0].mxu0 %v1880
        %v1925 = vpop.f32.mrb[0].mxu0
        %v1926 = vadd.f32 0.0, %v1925
        %v1927 = vpop.f32.mrb[0].mxu0
        %v1928 = vpop.f32.mrb[0].mxu0
        %v1929 = vadd.f32 0.0, %v1928
        %v1930 = vpop.f32.mrb[0].mxu0
        %1931 = vmatprep.mubr.bf16.mxu0 0
        %1932 = vmatmul.mubr.bf16.gmra.mrb[0].mxu0 %v1883
        %v1933 = vpop.f32.mrb[0].mxu0
        %v1934 = vadd.f32 0.0, %v1933
        %v1935 = vpop.f32.mrb[0].mxu0
        %v1936 = vpop.f32.mrb[0].mxu0
        %v1937 = vadd.f32 0.0, %v1936
        %v1938 = vpop.f32.mrb[0].mxu0
        %1939 = vdwg.mxu0
        %v1940 = vmul.f32 %v1926, 0.25
        %v1941 = vmul.f32 %v1929, 0.25
        %v1942 = vmul.f32 %v1934, 0.25
        %v1943 = vmul.f32 %v1937, 0.25
        %v1944 = vsub.f32 1.0, %v1668
        %v1945 = vsub.f32 1.0, %v1669
        %v1946 = vsub.f32 1.0, %v1670
        %v1947 = vsub.f32 1.0, %v1671
        %v1948 = vmul.f32 %v1944, 1e+09
        %v1949 = vmul.f32 %v1945, 1e+09
        %v1950 = vmul.f32 %v1946, 1e+09
        %v1951 = vmul.f32 %v1947, 1e+09
        %v1952 = vsub.f32 %v1940, %v1948
        %v1953 = vsub.f32 %v1941, %v1949
        %v1954 = vsub.f32 %v1942, %v1950
        %v1955 = vsub.f32 %v1943, %v1951
        %vm1956 = vcmask 203776
        %v1957 = vsel %vm1956, %v1952, -inf
        %1958 = vmax.xlane.f32.xlu0 %v1957
        %v1959 = vpop.xlane.xlu0 %1958
        %v1960 = vsel %vm1956, %v1953, -inf
        %1961 = vmax.xlane.f32.xlu0 %v1960
        %v1962 = vpop.xlane.xlu0 %1961
        %v1963 = vsel %vm1956, %v1954, -inf
        %1964 = vmax.xlane.f32.xlu0 %v1963
        %v1965 = vpop.xlane.xlu0 %1964
        %vm1966 = vcmask 196608
        %v1967 = vsel %vm1966, %v1955, -inf
        %1968 = vmax.xlane.f32.xlu0 %v1967
        %v1969 = vpop.xlane.xlu0 %1968
        %v1970 = vsub.f32 %v1952, %v1959
        %v1971 = vsub.f32 %v1953, %v1962
        %v1972 = vsub.f32 %v1954, %v1965
        %v1973 = vsub.f32 %v1955, %v1969
        %v1974 = vmul.f32 %v1970, 1.442695
        %v1975 = vpow.pop %v1974
        %v1976 = vmul.f32 %v1971, 1.442695
        %v1977 = vpow.pop %v1976
        %v1978 = vmul.f32 %v1972, 1.442695
        %v1979 = vpow.pop %v1978
        %v1980 = vmul.f32 %v1973, 1.442695
        %v1981 = vpow.pop %v1980
        %v1982 = vmul.f32 %v1975, %v1668
        %v1983 = vmul.f32 %v1977, %v1669
        %v1984 = vmul.f32 %v1979, %v1670
        %v1985 = vmul.f32 %v1981, %v1671
        %v1986 = vsel %vm1956, %v1982, 0.0
        %1987 = vadd.xlane.f32.xlu0 %v1986
        %v1988 = vpop.xlane.xlu0 %1987
        %v1989 = vsel %vm1956, %v1983, 0.0
        %1990 = vadd.xlane.f32.xlu0 %v1989
        %v1991 = vpop.xlane.xlu0 %1990
        %v1992 = vsel %vm1956, %v1984, 0.0
        %1993 = vadd.xlane.f32.xlu0 %v1992
        %v1994 = vpop.xlane.xlu0 %1993
        %v1995 = vsel %vm1966, %v1985, 0.0
        %1996 = vadd.xlane.f32.xlu0 %v1995
        %v1997 = vpop.xlane.xlu0 %1996
        %v1998 = vrcp.pop %v1988
        %v1999 = vmul.f32 %v1982, %v1998
        %v2000 = vrcp.pop %v1991
        %v2001 = vmul.f32 %v1983, %v2000
        %v2002 = vrcp.pop %v1994
        %v2003 = vmul.f32 %v1984, %v2002
        %v2004 = vrcp.pop %v1997
        %v2005 = vmul.f32 %v1985, %v2004
        %v2006 = vpack.c.bf16 %v2001, %v1999
        %v2007 = vpack.c.bf16 %v2005, %v2003
        %v2008 = vpack.c.bf16 %v1858, %v1854
        %v2009 = vpack.c.bf16 %v1868, %v1864
        %v2011 = vsel %vm1956, %v2006, 0
        %v2014 = vsel %vm1956, %v2007, 0
        %vm2016 = vcmask 1043456
        %vm2017 = vcmask 1044480
        %v2018 = vsel %vm2016, 4294967295, 65535
        %v2019 = vsel %vm2017, %v2018, 0
        %v2021 = vand.u32 %v2009, %v2019
        %2023 = vmatprep.subr.bf16.mxu0 0
        %2024 = vmatpush1.bf16.msra.mxu0 %v2008
        %2025 = vmatprep.subr.bf16.mxu0 0
        %2026 = vmatpush1.bf16.msra.mxu0 %v2021
        %2027 = vmatprep.subr.bf16.mxu0 0
        %2028 = vmatpush1.bf16.msra.mxu0 0
        %2029 = vmatprep.subr.bf16.mxu0 0
        %2030 = vmatpush1.bf16.msra.mxu0 0
        %2031 = vmatprep.subr.bf16.mxu0 0
        %2032 = vmatpush1.bf16.msra.mxu0 0
        %2033 = vmatprep.subr.bf16.mxu0 0
        %2034 = vmatpush1.bf16.msra.mxu0 0
        %2035 = vmatprep.subr.bf16.mxu0 0
        %2036 = vmatpush1.bf16.msra.mxu0 0
        %2037 = vmatprep.subr.bf16.mxu0 0
        %2038 = vmatpush1.bf16.msra.mxu0 0
        %2039 = vmatprep.subr.bf16.mxu0 0
        %2040 = vmatpush1.bf16.msra.mxu0 0
        %2041 = vmatprep.subr.bf16.mxu0 0
        %2042 = vmatpush1.bf16.msra.mxu0 0
        %2043 = vmatprep.subr.bf16.mxu0 0
        %2044 = vmatpush1.bf16.msra.mxu0 0
        %2045 = vmatprep.subr.bf16.mxu0 0
        %2046 = vmatpush1.bf16.msra.mxu0 0
        %2047 = vmatprep.subr.bf16.mxu0 0
        %2048 = vmatpush1.bf16.msra.mxu0 0
        %2049 = vmatprep.subr.bf16.mxu0 0
        %2050 = vmatpush1.bf16.msra.mxu0 0
        %2051 = vmatprep.subr.bf16.mxu0 0
        %2052 = vmatpush1.bf16.msra.mxu0 0
        %2053 = vmatprep.subr.bf16.mxu0 0
        %2054 = vmatpush1.bf16.msra.mxu0 0
        %2055 = vmatprep.mubr.bf16.mxu0 0
        %2056 = vmatmul.mubr.bf16.gmra.mrb[0].mxu0 %v2011
        %v2057 = vpop.f32.mrb[0].mxu0
        %v2058 = vadd.f32 0.0, %v2057
        %v2059 = vpop.f32.mrb[0].mxu0
        %v2060 = vpop.f32.mrb[0].mxu0
        %v2061 = vadd.f32 0.0, %v2060
        %v2062 = vpop.f32.mrb[0].mxu0
        %2063 = vmatprep.mubr.bf16.mxu0 0
        %2064 = vmatmul.mubr.bf16.gmra.mrb[0].mxu0 %v2014
        %v2065 = vpop.f32.mrb[0].mxu0
        %v2066 = vadd.f32 0.0, %v2065
        %v2067 = vpop.f32.mrb[0].mxu0
        %v2068 = vpop.f32.mrb[0].mxu0
        %v2069 = vadd.f32 0.0, %v2068
        %v2070 = vpop.f32.mrb[0].mxu0
        %2071 = vdwg.mxu0
        %2072 = vrot.lane.b32.xlu0 %v1870, 112
        %v2073 = vpop.permute.xlu0 %2072
        %2074 = vrot.lane.b32.xlu0 %v1871, 112
        %v2075 = vpop.permute.xlu0 %2074
        %2076 = vrot.lane.b32.xlu0 %v1870, 48
        %v2077 = vpop.permute.xlu0 %2076
        %2078 = vrot.lane.b32.xlu0 %v1871, 48
        %v2079 = vpop.permute.xlu0 %2078
        %v2081 = vsel %vm1878, %v2073, 0
        %v2084 = vsel %vm1878, %v2075, 0
        %v2087 = vsel %vm1878, %v2077, 0
        %v2090 = vsel %vm1878, %v2079, 0
        %2092 = vmatprep.subr.bf16.mxu0 0
        %2093 = vmatpush1.bf16.xpose.msra.mxu0 %v2087
        %2094 = vmatprep.subr.bf16.mxu0 0
        %2095 = vmatpush1.bf16.xpose.msra.mxu0 %v2090
        %2096 = vmatprep.subr.bf16.mxu0 0
        %2097 = vmatpush1.bf16.xpose.msra.mxu0 0
        %2098 = vmatprep.subr.bf16.mxu0 0
        %2099 = vmatpush1.bf16.xpose.msra.mxu0 0
        %2100 = vmatprep.subr.bf16.mxu0 0
        %2101 = vmatpush1.bf16.xpose.msra.mxu0 0
        %2102 = vmatprep.subr.bf16.mxu0 0
        %2103 = vmatpush1.bf16.xpose.msra.mxu0 0
        %2104 = vmatprep.subr.bf16.mxu0 0
        %2105 = vmatpush1.bf16.xpose.msra.mxu0 0
        %2106 = vmatprep.subr.bf16.mxu0 0
        %2107 = vmatpush1.bf16.xpose.msra.mxu0 0
        %2108 = vmatprep.subr.bf16.mxu0 0
        %2109 = vmatpush1.bf16.xpose.msra.mxu0 0
        %2110 = vmatprep.subr.bf16.mxu0 0
        %2111 = vmatpush1.bf16.xpose.msra.mxu0 0
        %2112 = vmatprep.subr.bf16.mxu0 0
        %2113 = vmatpush1.bf16.xpose.msra.mxu0 0
        %2114 = vmatprep.subr.bf16.mxu0 0
        %2115 = vmatpush1.bf16.xpose.msra.mxu0 0
        %2116 = vmatprep.subr.bf16.mxu0 0
        %2117 = vmatpush1.bf16.xpose.msra.mxu0 0
        %2118 = vmatprep.subr.bf16.mxu0 0
        %2119 = vmatpush1.bf16.xpose.msra.mxu0 0
        %2120 = vmatprep.subr.bf16.mxu0 0
        %2121 = vmatpush1.bf16.xpose.msra.mxu0 0
        %2122 = vmatprep.subr.bf16.mxu0 0
        %2123 = vmatpush1.bf16.xpose.msra.mxu0 0
        %2124 = vmatprep.mubr.bf16.mxu0 0
        %2125 = vmatmul.mubr.bf16.gmra.mrb[0].mxu0 %v2081
        %v2126 = vpop.f32.mrb[0].mxu0
        %v2127 = vadd.f32 0.0, %v2126
        %v2128 = vpop.f32.mrb[0].mxu0
        %v2129 = vpop.f32.mrb[0].mxu0
        %v2130 = vadd.f32 0.0, %v2129
        %v2131 = vpop.f32.mrb[0].mxu0
        %2132 = vmatprep.mubr.bf16.mxu0 0
        %2133 = vmatmul.mubr.bf16.gmra.mrb[0].mxu0 %v2084
        %v2134 = vpop.f32.mrb[0].mxu0
        %v2135 = vadd.f32 0.0, %v2134
        %v2136 = vpop.f32.mrb[0].mxu0
        %v2137 = vpop.f32.mrb[0].mxu0
        %v2138 = vadd.f32 0.0, %v2137
        %v2139 = vpop.f32.mrb[0].mxu0
        %2140 = vdwg.mxu0
        %v2141 = vmul.f32 %v2127, 0.25
        %v2142 = vmul.f32 %v2130, 0.25
        %v2143 = vmul.f32 %v2135, 0.25
        %v2144 = vmul.f32 %v2138, 0.25
        %v2145 = vsub.f32 %v2141, %v1948
        %v2146 = vsub.f32 %v2142, %v1949
        %v2147 = vsub.f32 %v2143, %v1950
        %v2148 = vsub.f32 %v2144, %v1951
        %v2149 = vsel %vm1956, %v2145, -inf
        %2150 = vmax.xlane.f32.xlu0 %v2149
        %v2151 = vpop.xlane.xlu0 %2150
        %v2152 = vsel %vm1956, %v2146, -inf
        %2153 = vmax.xlane.f32.xlu0 %v2152
        %v2154 = vpop.xlane.xlu0 %2153
        %v2155 = vsel %vm1956, %v2147, -inf
        %2156 = vmax.xlane.f32.xlu0 %v2155
        %v2157 = vpop.xlane.xlu0 %2156
        %v2158 = vsel %vm1966, %v2148, -inf
        %2159 = vmax.xlane.f32.xlu0 %v2158
        %v2160 = vpop.xlane.xlu0 %2159
        %v2161 = vsub.f32 %v2145, %v2151
        %v2162 = vsub.f32 %v2146, %v2154
        %v2163 = vsub.f32 %v2147, %v2157
        %v2164 = vsub.f32 %v2148, %v2160
        %v2165 = vmul.f32 %v2161, 1.442695
        %v2166 = vpow.pop %v2165
        %v2167 = vmul.f32 %v2162, 1.442695
        %v2168 = vpow.pop %v2167
        %v2169 = vmul.f32 %v2163, 1.442695
        %v2170 = vpow.pop %v2169
        %v2171 = vmul.f32 %v2164, 1.442695
        %v2172 = vpow.pop %v2171
        %v2173 = vmul.f32 %v2166, %v1668
        %v2174 = vmul.f32 %v2168, %v1669
        %v2175 = vmul.f32 %v2170, %v1670
        %v2176 = vmul.f32 %v2172, %v1671
        %v2177 = vsel %vm1956, %v2173, 0.0
        %2178 = vadd.xlane.f32.xlu0 %v2177
        %v2179 = vpop.xlane.xlu0 %2178
        %v2180 = vsel %vm1956, %v2174, 0.0
        %2181 = vadd.xlane.f32.xlu0 %v2180
        %v2182 = vpop.xlane.xlu0 %2181
        %v2183 = vsel %vm1956, %v2175, 0.0
        %2184 = vadd.xlane.f32.xlu0 %v2183
        %v2185 = vpop.xlane.xlu0 %2184
        %v2186 = vsel %vm1966, %v2176, 0.0
        %2187 = vadd.xlane.f32.xlu0 %v2186
        %v2188 = vpop.xlane.xlu0 %2187
        %v2189 = vrcp.pop %v2179
        %v2190 = vmul.f32 %v2173, %v2189
        %v2191 = vrcp.pop %v2182
        %v2192 = vmul.f32 %v2174, %v2191
        %v2193 = vrcp.pop %v2185
        %v2194 = vmul.f32 %v2175, %v2193
        %v2195 = vrcp.pop %v2188
        %v2196 = vmul.f32 %v2176, %v2195
        %v2197 = vpack.c.bf16 %v2192, %v2190
        %v2198 = vpack.c.bf16 %v2196, %v2194
        %2201 = vrot.lane.b32.xlu0 %v2008, 112
        %v2202 = vpop.permute.xlu0 %2201
        %2203 = vrot.lane.b32.xlu0 %v2009, 112
        %v2204 = vpop.permute.xlu0 %2203
        %v2207 = vsel %vm1956, %v2197, 0
        %v2210 = vsel %vm1956, %v2198, 0
        %v2213 = vand.u32 %v2204, %v2019
        %2215 = vmatprep.subr.bf16.mxu0 0
        %2216 = vmatpush1.bf16.msra.mxu0 %v2202
        %2217 = vmatprep.subr.bf16.mxu0 0
        %2218 = vmatpush1.bf16.msra.mxu0 %v2213
        %2219 = vmatprep.subr.bf16.mxu0 0
        %2220 = vmatpush1.bf16.msra.mxu0 0
        %2221 = vmatprep.subr.bf16.mxu0 0
        %2222 = vmatpush1.bf16.msra.mxu0 0
        %2223 = vmatprep.subr.bf16.mxu0 0
        %2224 = vmatpush1.bf16.msra.mxu0 0
        %2225 = vmatprep.subr.bf16.mxu0 0
        %2226 = vmatpush1.bf16.msra.mxu0 0
        %2227 = vmatprep.subr.bf16.mxu0 0
        %2228 = vmatpush1.bf16.msra.mxu0 0
        %2229 = vmatprep.subr.bf16.mxu0 0
        %2230 = vmatpush1.bf16.msra.mxu0 0
        %2231 = vmatprep.subr.bf16.mxu0 0
        %2232 = vmatpush1.bf16.msra.mxu0 0
        %2233 = vmatprep.subr.bf16.mxu0 0
        %2234 = vmatpush1.bf16.msra.mxu0 0
        %2235 = vmatprep.subr.bf16.mxu0 0
        %2236 = vmatpush1.bf16.msra.mxu0 0
        %2237 = vmatprep.subr.bf16.mxu0 0
        %2238 = vmatpush1.bf16.msra.mxu0 0
        %2239 = vmatprep.subr.bf16.mxu0 0
        %2240 = vmatpush1.bf16.msra.mxu0 0
        %2241 = vmatprep.subr.bf16.mxu0 0
        %2242 = vmatpush1.bf16.msra.mxu0 0
        %2243 = vmatprep.subr.bf16.mxu0 0
        %2244 = vmatpush1.bf16.msra.mxu0 0
        %2245 = vmatprep.subr.bf16.mxu0 0
        %2246 = vmatpush1.bf16.msra.mxu0 0
        %2247 = vmatprep.mubr.bf16.mxu0 0
        %2248 = vmatmul.mubr.bf16.gmra.mrb[0].mxu0 %v2207
        %v2249 = vpop.f32.mrb[0].mxu0
        %v2250 = vadd.f32 0.0, %v2249
        %v2251 = vpop.f32.mrb[0].mxu0
        %v2252 = vpop.f32.mrb[0].mxu0
        %v2253 = vadd.f32 0.0, %v2252
        %v2254 = vpop.f32.mrb[0].mxu0
        %2255 = vmatprep.mubr.bf16.mxu0 0
        %2256 = vmatmul.mubr.bf16.gmra.mrb[0].mxu0 %v2210
        %v2257 = vpop.f32.mrb[0].mxu0
        %v2258 = vadd.f32 0.0, %v2257
        %v2259 = vpop.f32.mrb[0].mxu0
        %v2260 = vpop.f32.mrb[0].mxu0
        %v2261 = vadd.f32 0.0, %v2260
        %v2262 = vpop.f32.mrb[0].mxu0
        %2263 = vdwg.mxu0
        %2264 = vrot.lane.b32.xlu0 %v1870, 96
        %v2265 = vpop.permute.xlu0 %2264
        %2266 = vrot.lane.b32.xlu0 %v1871, 96
        %v2267 = vpop.permute.xlu0 %2266
        %2268 = vrot.lane.b32.xlu0 %v1870, 32
        %v2269 = vpop.permute.xlu0 %2268
        %2270 = vrot.lane.b32.xlu0 %v1871, 32
        %v2271 = vpop.permute.xlu0 %2270
        %v2273 = vsel %vm1878, %v2265, 0
        %v2276 = vsel %vm1878, %v2267, 0
        %v2279 = vsel %vm1878, %v2269, 0
        %v2282 = vsel %vm1878, %v2271, 0
        %2284 = vmatprep.subr.bf16.mxu0 0
        %2285 = vmatpush1.bf16.xpose.msra.mxu0 %v2279
        %2286 = vmatprep.subr.bf16.mxu0 0
        %2287 = vmatpush1.bf16.xpose.msra.mxu0 %v2282
        %2288 = vmatprep.subr.bf16.mxu0 0
        %2289 = vmatpush1.bf16.xpose.msra.mxu0 0
        %2290 = vmatprep.subr.bf16.mxu0 0
        %2291 = vmatpush1.bf16.xpose.msra.mxu0 0
        %2292 = vmatprep.subr.bf16.mxu0 0
        %2293 = vmatpush1.bf16.xpose.msra.mxu0 0
        %2294 = vmatprep.subr.bf16.mxu0 0
        %2295 = vmatpush1.bf16.xpose.msra.mxu0 0
        %2296 = vmatprep.subr.bf16.mxu0 0
        %2297 = vmatpush1.bf16.xpose.msra.mxu0 0
        %2298 = vmatprep.subr.bf16.mxu0 0
        %2299 = vmatpush1.bf16.xpose.msra.mxu0 0
        %2300 = vmatprep.subr.bf16.mxu0 0
        %2301 = vmatpush1.bf16.xpose.msra.mxu0 0
        %2302 = vmatprep.subr.bf16.mxu0 0
        %2303 = vmatpush1.bf16.xpose.msra.mxu0 0
        %2304 = vmatprep.subr.bf16.mxu0 0
        %2305 = vmatpush1.bf16.xpose.msra.mxu0 0
        %2306 = vmatprep.subr.bf16.mxu0 0
        %2307 = vmatpush1.bf16.xpose.msra.mxu0 0
        %2308 = vmatprep.subr.bf16.mxu0 0
        %2309 = vmatpush1.bf16.xpose.msra.mxu0 0
        %2310 = vmatprep.subr.bf16.mxu0 0
        %2311 = vmatpush1.bf16.xpose.msra.mxu0 0
        %2312 = vmatprep.subr.bf16.mxu0 0
        %2313 = vmatpush1.bf16.xpose.msra.mxu0 0
        %2314 = vmatprep.subr.bf16.mxu0 0
        %2315 = vmatpush1.bf16.xpose.msra.mxu0 0
        %2316 = vmatprep.mubr.bf16.mxu0 0
        %2317 = vmatmul.mubr.bf16.gmra.mrb[0].mxu0 %v2273
        %v2318 = vpop.f32.mrb[0].mxu0
        %v2319 = vadd.f32 0.0, %v2318
        %v2320 = vpop.f32.mrb[0].mxu0
        %v2321 = vpop.f32.mrb[0].mxu0
        %v2322 = vadd.f32 0.0, %v2321
        %v2323 = vpop.f32.mrb[0].mxu0
        %2324 = vmatprep.mubr.bf16.mxu0 0
        %2325 = vmatmul.mubr.bf16.gmra.mrb[0].mxu0 %v2276
        %v2326 = vpop.f32.mrb[0].mxu0
        %v2327 = vadd.f32 0.0, %v2326
        %v2328 = vpop.f32.mrb[0].mxu0
        %v2329 = vpop.f32.mrb[0].mxu0
        %v2330 = vadd.f32 0.0, %v2329
        %v2331 = vpop.f32.mrb[0].mxu0
        %2332 = vdwg.mxu0
        %v2333 = vmul.f32 %v2319, 0.25
        %v2334 = vmul.f32 %v2322, 0.25
        %v2335 = vmul.f32 %v2327, 0.25
        %v2336 = vmul.f32 %v2330, 0.25
        %v2337 = vsub.f32 %v2333, %v1948
        %v2338 = vsub.f32 %v2334, %v1949
        %v2339 = vsub.f32 %v2335, %v1950
        %v2340 = vsub.f32 %v2336, %v1951
        %v2341 = vsel %vm1956, %v2337, -inf
        %2342 = vmax.xlane.f32.xlu0 %v2341
        %v2343 = vpop.xlane.xlu0 %2342
        %v2344 = vsel %vm1956, %v2338, -inf
        %2345 = vmax.xlane.f32.xlu0 %v2344
        %v2346 = vpop.xlane.xlu0 %2345
        %v2347 = vsel %vm1956, %v2339, -inf
        %2348 = vmax.xlane.f32.xlu0 %v2347
        %v2349 = vpop.xlane.xlu0 %2348
        %v2350 = vsel %vm1966, %v2340, -inf
        %2351 = vmax.xlane.f32.xlu0 %v2350
        %v2352 = vpop.xlane.xlu0 %2351
        %v2353 = vsub.f32 %v2337, %v2343
        %v2354 = vsub.f32 %v2338, %v2346
        %v2355 = vsub.f32 %v2339, %v2349
        %v2356 = vsub.f32 %v2340, %v2352
        %v2357 = vmul.f32 %v2353, 1.442695
        %v2358 = vpow.pop %v2357
        %v2359 = vmul.f32 %v2354, 1.442695
        %v2360 = vpow.pop %v2359
        %v2361 = vmul.f32 %v2355, 1.442695
        %v2362 = vpow.pop %v2361
        %v2363 = vmul.f32 %v2356, 1.442695
        %v2364 = vpow.pop %v2363
        %v2365 = vmul.f32 %v2358, %v1668
        %v2366 = vmul.f32 %v2360, %v1669
        %v2367 = vmul.f32 %v2362, %v1670
        %v2368 = vmul.f32 %v2364, %v1671
        %v2369 = vsel %vm1956, %v2365, 0.0
        %2370 = vadd.xlane.f32.xlu0 %v2369
        %v2371 = vpop.xlane.xlu0 %2370
        %v2372 = vsel %vm1956, %v2366, 0.0
        %2373 = vadd.xlane.f32.xlu0 %v2372
        %v2374 = vpop.xlane.xlu0 %2373
        %v2375 = vsel %vm1956, %v2367, 0.0
        %2376 = vadd.xlane.f32.xlu0 %v2375
        %v2377 = vpop.xlane.xlu0 %2376
        %v2378 = vsel %vm1966, %v2368, 0.0
        %2379 = vadd.xlane.f32.xlu0 %v2378
        %v2380 = vpop.xlane.xlu0 %2379
        %v2381 = vrcp.pop %v2371
        %v2382 = vmul.f32 %v2365, %v2381
        %v2383 = vrcp.pop %v2374
        %v2384 = vmul.f32 %v2366, %v2383
        %v2385 = vrcp.pop %v2377
        %v2386 = vmul.f32 %v2367, %v2385
        %v2387 = vrcp.pop %v2380
        %v2388 = vmul.f32 %v2368, %v2387
        %v2389 = vpack.c.bf16 %v2384, %v2382
        %v2390 = vpack.c.bf16 %v2388, %v2386
        %2391 = vrot.lane.b32.xlu0 %v2008, 96
        %v2392 = vpop.permute.xlu0 %2391
        %2393 = vrot.lane.b32.xlu0 %v2009, 96
        %v2394 = vpop.permute.xlu0 %2393
        %v2397 = vsel %vm1956, %v2389, 0
        %v2400 = vsel %vm1956, %v2390, 0
        %v2403 = vand.u32 %v2394, %v2019
        %2405 = vmatprep.subr.bf16.mxu0 0
        %2406 = vmatpush1.bf16.msra.mxu0 %v2392
        %2407 = vmatprep.subr.bf16.mxu0 0
        %2408 = vmatpush1.bf16.msra.mxu0 %v2403
        %2409 = vmatprep.subr.bf16.mxu0 0
        %2410 = vmatpush1.bf16.msra.mxu0 0
        %2411 = vmatprep.subr.bf16.mxu0 0
        %2412 = vmatpush1.bf16.msra.mxu0 0
        %2413 = vmatprep.subr.bf16.mxu0 0
        %2414 = vmatpush1.bf16.msra.mxu0 0
        %2415 = vmatprep.subr.bf16.mxu0 0
        %2416 = vmatpush1.bf16.msra.mxu0 0
        %2417 = vmatprep.subr.bf16.mxu0 0
        %2418 = vmatpush1.bf16.msra.mxu0 0
        %2419 = vmatprep.subr.bf16.mxu0 0
        %2420 = vmatpush1.bf16.msra.mxu0 0
        %2421 = vmatprep.subr.bf16.mxu0 0
        %2422 = vmatpush1.bf16.msra.mxu0 0
        %2423 = vmatprep.subr.bf16.mxu0 0
        %2424 = vmatpush1.bf16.msra.mxu0 0
        %2425 = vmatprep.subr.bf16.mxu0 0
        %2426 = vmatpush1.bf16.msra.mxu0 0
        %2427 = vmatprep.subr.bf16.mxu0 0
        %2428 = vmatpush1.bf16.msra.mxu0 0
        %2429 = vmatprep.subr.bf16.mxu0 0
        %2430 = vmatpush1.bf16.msra.mxu0 0
        %2431 = vmatprep.subr.bf16.mxu0 0
        %2432 = vmatpush1.bf16.msra.mxu0 0
        %2433 = vmatprep.subr.bf16.mxu0 0
        %2434 = vmatpush1.bf16.msra.mxu0 0
        %2435 = vmatprep.subr.bf16.mxu0 0
        %2436 = vmatpush1.bf16.msra.mxu0 0
        %2437 = vmatprep.mubr.bf16.mxu0 0
        %2438 = vmatmul.mubr.bf16.gmra.mrb[0].mxu0 %v2397
        %v2439 = vpop.f32.mrb[0].mxu0
        %v2440 = vadd.f32 0.0, %v2439
        %v2441 = vpop.f32.mrb[0].mxu0
        %v2442 = vpop.f32.mrb[0].mxu0
        %v2443 = vadd.f32 0.0, %v2442
        %v2444 = vpop.f32.mrb[0].mxu0
        %2445 = vmatprep.mubr.bf16.mxu0 0
        %2446 = vmatmul.mubr.bf16.gmra.mrb[0].mxu0 %v2400
        %v2447 = vpop.f32.mrb[0].mxu0
        %v2448 = vadd.f32 0.0, %v2447
        %v2449 = vpop.f32.mrb[0].mxu0
        %v2450 = vpop.f32.mrb[0].mxu0
        %v2451 = vadd.f32 0.0, %v2450
        %v2452 = vpop.f32.mrb[0].mxu0
        %2453 = vdwg.mxu0
        %2454 = vrot.lane.b32.xlu0 %v1870, 80
        %v2455 = vpop.permute.xlu0 %2454
        %2456 = vrot.lane.b32.xlu0 %v1871, 80
        %v2457 = vpop.permute.xlu0 %2456
        %2458 = vrot.lane.b32.xlu0 %v1870, 16
        %v2459 = vpop.permute.xlu0 %2458
        %2460 = vrot.lane.b32.xlu0 %v1871, 16
        %v2461 = vpop.permute.xlu0 %2460
        %v2463 = vsel %vm1878, %v2455, 0
        %v2466 = vsel %vm1878, %v2457, 0
        %v2469 = vsel %vm1878, %v2459, 0
        %v2472 = vsel %vm1878, %v2461, 0
        %2474 = vmatprep.subr.bf16.mxu0 0
        %2475 = vmatpush1.bf16.xpose.msra.mxu0 %v2469
        %2476 = vmatprep.subr.bf16.mxu0 0
        %2477 = vmatpush1.bf16.xpose.msra.mxu0 %v2472
        %2478 = vmatprep.subr.bf16.mxu0 0
        %2479 = vmatpush1.bf16.xpose.msra.mxu0 0
        %2480 = vmatprep.subr.bf16.mxu0 0
        %2481 = vmatpush1.bf16.xpose.msra.mxu0 0
        %2482 = vmatprep.subr.bf16.mxu0 0
        %2483 = vmatpush1.bf16.xpose.msra.mxu0 0
        %2484 = vmatprep.subr.bf16.mxu0 0
        %2485 = vmatpush1.bf16.xpose.msra.mxu0 0
        %2486 = vmatprep.subr.bf16.mxu0 0
        %2487 = vmatpush1.bf16.xpose.msra.mxu0 0
        %2488 = vmatprep.subr.bf16.mxu0 0
        %2489 = vmatpush1.bf16.xpose.msra.mxu0 0
        %2490 = vmatprep.subr.bf16.mxu0 0
        %2491 = vmatpush1.bf16.xpose.msra.mxu0 0
        %2492 = vmatprep.subr.bf16.mxu0 0
        %2493 = vmatpush1.bf16.xpose.msra.mxu0 0
        %2494 = vmatprep.subr.bf16.mxu0 0
        %2495 = vmatpush1.bf16.xpose.msra.mxu0 0
        %2496 = vmatprep.subr.bf16.mxu0 0
        %2497 = vmatpush1.bf16.xpose.msra.mxu0 0
        %2498 = vmatprep.subr.bf16.mxu0 0
        %2499 = vmatpush1.bf16.xpose.msra.mxu0 0
        %2500 = vmatprep.subr.bf16.mxu0 0
        %2501 = vmatpush1.bf16.xpose.msra.mxu0 0
        %2502 = vmatprep.subr.bf16.mxu0 0
        %2503 = vmatpush1.bf16.xpose.msra.mxu0 0
        %2504 = vmatprep.subr.bf16.mxu0 0
        %2505 = vmatpush1.bf16.xpose.msra.mxu0 0
        %2506 = vmatprep.mubr.bf16.mxu0 0
        %2507 = vmatmul.mubr.bf16.gmra.mrb[0].mxu0 %v2463
        %v2508 = vpop.f32.mrb[0].mxu0
        %v2509 = vadd.f32 0.0, %v2508
        %v2510 = vpop.f32.mrb[0].mxu0
        %v2511 = vpop.f32.mrb[0].mxu0
        %v2512 = vadd.f32 0.0, %v2511
        %v2513 = vpop.f32.mrb[0].mxu0
        %2514 = vmatprep.mubr.bf16.mxu0 0
        %2515 = vmatmul.mubr.bf16.gmra.mrb[0].mxu0 %v2466
        %v2516 = vpop.f32.mrb[0].mxu0
        %v2517 = vadd.f32 0.0, %v2516
        %v2518 = vpop.f32.mrb[0].mxu0
        %v2519 = vpop.f32.mrb[0].mxu0
        %v2520 = vadd.f32 0.0, %v2519
        %v2521 = vpop.f32.mrb[0].mxu0
        %2522 = vdwg.mxu0
        %v2523 = vmul.f32 %v2509, 0.25
        %v2524 = vmul.f32 %v2512, 0.25
        %v2525 = vmul.f32 %v2517, 0.25
        %v2526 = vmul.f32 %v2520, 0.25
        %v2527 = vsub.f32 %v2523, %v1948
        %v2528 = vsub.f32 %v2524, %v1949
        %v2529 = vsub.f32 %v2525, %v1950
        %v2530 = vsub.f32 %v2526, %v1951
        %v2531 = vsel %vm1956, %v2527, -inf
        %2532 = vmax.xlane.f32.xlu0 %v2531
        %v2533 = vpop.xlane.xlu0 %2532
        %v2534 = vsel %vm1956, %v2528, -inf
        %2535 = vmax.xlane.f32.xlu0 %v2534
        %v2536 = vpop.xlane.xlu0 %2535
        %v2537 = vsel %vm1956, %v2529, -inf
        %2538 = vmax.xlane.f32.xlu0 %v2537
        %v2539 = vpop.xlane.xlu0 %2538
        %v2540 = vsel %vm1966, %v2530, -inf
        %2541 = vmax.xlane.f32.xlu0 %v2540
        %v2542 = vpop.xlane.xlu0 %2541
        %v2543 = vsub.f32 %v2527, %v2533
        %v2544 = vsub.f32 %v2528, %v2536
        %v2545 = vsub.f32 %v2529, %v2539
        %v2546 = vsub.f32 %v2530, %v2542
        %v2547 = vmul.f32 %v2543, 1.442695
        %v2548 = vpow.pop %v2547
        %v2549 = vmul.f32 %v2544, 1.442695
        %v2550 = vpow.pop %v2549
        %v2551 = vmul.f32 %v2545, 1.442695
        %v2552 = vpow.pop %v2551
        %v2553 = vmul.f32 %v2546, 1.442695
        %v2554 = vpow.pop %v2553
        %v2555 = vmul.f32 %v2548, %v1668
        %v2556 = vmul.f32 %v2550, %v1669
        %v2557 = vmul.f32 %v2552, %v1670
        %v2558 = vmul.f32 %v2554, %v1671
        %v2559 = vsel %vm1956, %v2555, 0.0
        %2560 = vadd.xlane.f32.xlu0 %v2559
        %v2561 = vpop.xlane.xlu0 %2560
        %v2562 = vsel %vm1956, %v2556, 0.0
        %2563 = vadd.xlane.f32.xlu0 %v2562
        %v2564 = vpop.xlane.xlu0 %2563
        %v2565 = vsel %vm1956, %v2557, 0.0
        %2566 = vadd.xlane.f32.xlu0 %v2565
        %v2567 = vpop.xlane.xlu0 %2566
        %v2568 = vsel %vm1966, %v2558, 0.0
        %2569 = vadd.xlane.f32.xlu0 %v2568
        %v2570 = vpop.xlane.xlu0 %2569
        %v2571 = vrcp.pop %v2561
        %v2572 = vmul.f32 %v2555, %v2571
        %v2573 = vrcp.pop %v2564
        %v2574 = vmul.f32 %v2556, %v2573
        %v2575 = vrcp.pop %v2567
        %v2576 = vmul.f32 %v2557, %v2575
        %v2577 = vrcp.pop %v2570
        %v2578 = vmul.f32 %v2558, %v2577
        %v2579 = vpack.c.bf16 %v2574, %v2572
        %v2580 = vpack.c.bf16 %v2578, %v2576
        %2581 = vrot.lane.b32.xlu0 %v2008, 80
        %v2582 = vpop.permute.xlu0 %2581
        %2583 = vrot.lane.b32.xlu0 %v2009, 80
        %v2584 = vpop.permute.xlu0 %2583
        %v2587 = vsel %vm1956, %v2579, 0
        %v2590 = vsel %vm1956, %v2580, 0
        %v2593 = vand.u32 %v2584, %v2019
        %2595 = vmatprep.subr.bf16.mxu0 0
        %2596 = vmatpush1.bf16.msra.mxu0 %v2582
        %2597 = vmatprep.subr.bf16.mxu0 0
        %2598 = vmatpush1.bf16.msra.mxu0 %v2593
        %2599 = vmatprep.subr.bf16.mxu0 0
        %2600 = vmatpush1.bf16.msra.mxu0 0
        %2601 = vmatprep.subr.bf16.mxu0 0
        %2602 = vmatpush1.bf16.msra.mxu0 0
        %2603 = vmatprep.subr.bf16.mxu0 0
        %2604 = vmatpush1.bf16.msra.mxu0 0
        %2605 = vmatprep.subr.bf16.mxu0 0
        %2606 = vmatpush1.bf16.msra.mxu0 0
        %2607 = vmatprep.subr.bf16.mxu0 0
        %2608 = vmatpush1.bf16.msra.mxu0 0
        %2609 = vmatprep.subr.bf16.mxu0 0
        %2610 = vmatpush1.bf16.msra.mxu0 0
        %2611 = vmatprep.subr.bf16.mxu0 0
        %2612 = vmatpush1.bf16.msra.mxu0 0
        %2613 = vmatprep.subr.bf16.mxu0 0
        %2614 = vmatpush1.bf16.msra.mxu0 0
        %2615 = vmatprep.subr.bf16.mxu0 0
        %2616 = vmatpush1.bf16.msra.mxu0 0
        %2617 = vmatprep.subr.bf16.mxu0 0
        %2618 = vmatpush1.bf16.msra.mxu0 0
        %2619 = vmatprep.subr.bf16.mxu0 0
        %2620 = vmatpush1.bf16.msra.mxu0 0
        %2621 = vmatprep.subr.bf16.mxu0 0
        %2622 = vmatpush1.bf16.msra.mxu0 0
        %2623 = vmatprep.subr.bf16.mxu0 0
        %2624 = vmatpush1.bf16.msra.mxu0 0
        %2625 = vmatprep.subr.bf16.mxu0 0
        %2626 = vmatpush1.bf16.msra.mxu0 0
        %2627 = vmatprep.mubr.bf16.mxu0 0
        %2628 = vmatmul.mubr.bf16.gmra.mrb[0].mxu0 %v2587
        %v2629 = vpop.f32.mrb[0].mxu0
        %v2630 = vadd.f32 0.0, %v2629
        %v2631 = vpop.f32.mrb[0].mxu0
        %v2632 = vpop.f32.mrb[0].mxu0
        %v2633 = vadd.f32 0.0, %v2632
        %v2634 = vpop.f32.mrb[0].mxu0
        %2635 = vmatprep.mubr.bf16.mxu0 0
        %2636 = vmatmul.mubr.bf16.gmra.mrb[0].mxu0 %v2590
        %v2637 = vpop.f32.mrb[0].mxu0
        %v2638 = vadd.f32 0.0, %v2637
        %v2639 = vpop.f32.mrb[0].mxu0
        %v2640 = vpop.f32.mrb[0].mxu0
        %v2641 = vadd.f32 0.0, %v2640
        %v2642 = vpop.f32.mrb[0].mxu0
        %2643 = vdwg.mxu0
        %2648 = vrot.lane.b32.xlu0 %v2250, 16
        %v2649 = vpop.permute.xlu0 %2648
        %2650 = vrot.lane.b32.xlu0 %v2253, 16
        %v2651 = vpop.permute.xlu0 %2650
        %2652 = vrot.lane.b32.xlu0 %v2258, 16
        %v2653 = vpop.permute.xlu0 %2652
        %2654 = vrot.lane.b32.xlu0 %v2261, 16
        %v2655 = vpop.permute.xlu0 %2654
        %2664 = vrot.lane.b32.xlu0 %v2440, 32
        %v2665 = vpop.permute.xlu0 %2664
        %2666 = vrot.lane.b32.xlu0 %v2443, 32
        %v2667 = vpop.permute.xlu0 %2666
        %2668 = vrot.lane.b32.xlu0 %v2448, 32
        %v2669 = vpop.permute.xlu0 %2668
        %2670 = vrot.lane.b32.xlu0 %v2451, 32
        %v2671 = vpop.permute.xlu0 %2670
        %2680 = vrot.lane.b32.xlu0 %v2630, 48
        %v2681 = vpop.permute.xlu0 %2680
        %2682 = vrot.lane.b32.xlu0 %v2633, 48
        %v2683 = vpop.permute.xlu0 %2682
        %2684 = vrot.lane.b32.xlu0 %v2638, 48
        %v2685 = vpop.permute.xlu0 %2684
        %2686 = vrot.lane.b32.xlu0 %v2641, 48
        %v2687 = vpop.permute.xlu0 %2686
        %v2692 = vsel %vm1878, %v2058, %v2649
        %v2693 = vsel %vm1878, %v2061, %v2651
        %v2694 = vsel %vm1878, %v2066, %v2653
        %v2695 = vsel %vm1878, %v2069, %v2655
        %vm2696 = vcmask 261120
        %v2697 = vsel %vm2696, %v2692, %v2665
        %v2698 = vsel %vm2696, %v2693, %v2667
        %v2699 = vsel %vm2696, %v2694, %v2669
        %v2700 = vsel %vm2696, %v2695, %v2671
        %vm2701 = vcmask 392192
        %v2702 = vsel %vm2701, %v2697, %v2681
        %v2703 = vsel %vm2701, %v2698, %v2683
        %v2704 = vsel %vm2701, %v2699, %v2685
        %v2705 = vsel %vm2701, %v2700, %v2687
        %v2706 = vld [vmem:[%s19] sm:$0xf]
        %v2707 = vld [vmem:[%s19 + $0x4] sm:$0xf]
        %v2708 = vld [vmem:[%s19 + $0x8] sm:$0xf]
        %v2709 = vld [vmem:[%s19 + $0xc] sm:$0xf]
        %v2710 = vld [vmem:[%s19 + $0x10] sm:$0xf]
        %v2711 = vld [vmem:[%s19 + $0x14] sm:$0xf]
        %v2712 = vld [vmem:[%s19 + $0x18] sm:$0xf]
        %v2713 = vld [vmem:[%s19 + $0x1c] sm:$0xf]
        %v2714 = vpack.c.bf16 %v2703, %v2702
        %v2715 = vpack.c.bf16 %v2705, %v2704
        %v2724 = vunpack.c.l.b16 %v2706
        %v2725 = vunpack.c.l.b16 %v2707
        %v2726 = vunpack.c.l.b16 %v2708
        %v2727 = vunpack.c.l.b16 %v2709
        %v2728 = vunpack.c.l.b16 %v2710
        %v2729 = vunpack.c.l.b16 %v2711
        %v2730 = vunpack.c.l.b16 %v2712
        %v2731 = vunpack.c.l.b16 %v2713
        %v2732 = vpack.c.b16 %v2725, %v2724
        %v2733 = vpack.c.b16 %v2727, %v2726
        %v2734 = vpack.c.b16 %v2729, %v2728
        %v2735 = vpack.c.b16 %v2731, %v2730
        %v2741 = vsel %vm1674, %v2714, 0
        %v2744 = vsel %vm1674, %v2715, 0
        %2746 = vmatprep.subr.bf16.mxu0 0
        %2747 = vmatpush1.bf16.msra.mxu0 %v2732
        %2748 = vmatprep.subr.bf16.mxu0 0
        %2749 = vmatpush1.bf16.msra.mxu0 %v2733
        %2750 = vmatprep.subr.bf16.mxu0 0
        %2751 = vmatpush1.bf16.msra.mxu0 %v2734
        %2752 = vmatprep.subr.bf16.mxu0 0
        %2753 = vmatpush1.bf16.msra.mxu0 %v2735
        %2754 = vmatprep.subr.bf16.mxu0 0
        %2755 = vmatpush1.bf16.msra.mxu0 0
        %2756 = vmatprep.subr.bf16.mxu0 0
        %2757 = vmatpush1.bf16.msra.mxu0 0
        %2758 = vmatprep.subr.bf16.mxu0 0
        %2759 = vmatpush1.bf16.msra.mxu0 0
        %2760 = vmatprep.subr.bf16.mxu0 0
        %2761 = vmatpush1.bf16.msra.mxu0 0
        %2762 = vmatprep.subr.bf16.mxu0 0
        %2763 = vmatpush1.bf16.msra.mxu0 0
        %2764 = vmatprep.subr.bf16.mxu0 0
        %2765 = vmatpush1.bf16.msra.mxu0 0
        %2766 = vmatprep.subr.bf16.mxu0 0
        %2767 = vmatpush1.bf16.msra.mxu0 0
        %2768 = vmatprep.subr.bf16.mxu0 0
        %2769 = vmatpush1.bf16.msra.mxu0 0
        %2770 = vmatprep.subr.bf16.mxu0 0
        %2771 = vmatpush1.bf16.msra.mxu0 0
        %2772 = vmatprep.subr.bf16.mxu0 0
        %2773 = vmatpush1.bf16.msra.mxu0 0
        %2774 = vmatprep.subr.bf16.mxu0 0
        %2775 = vmatpush1.bf16.msra.mxu0 0
        %2776 = vmatprep.subr.bf16.mxu0 0
        %2777 = vmatpush1.bf16.msra.mxu0 0
        %2778 = vmatprep.mubr.bf16.mxu0 0
        %2779 = vmatmul.mubr.bf16.gmra.mrb[0].mxu0 %v2741
        %v2780 = vpop.f32.mrb[0].mxu0
        %v2781 = vadd.f32 0.0, %v2780
        %v2782 = vpop.f32.mrb[0].mxu0
        %v2783 = vpop.f32.mrb[0].mxu0
        %v2784 = vadd.f32 0.0, %v2783
        %v2785 = vpop.f32.mrb[0].mxu0
        %2786 = vmatprep.mubr.bf16.mxu0 0
        %2787 = vmatmul.mubr.bf16.gmra.mrb[0].mxu0 %v2744
        %v2788 = vpop.f32.mrb[0].mxu0
        %v2789 = vadd.f32 0.0, %v2788
        %v2790 = vpop.f32.mrb[0].mxu0
        %v2791 = vpop.f32.mrb[0].mxu0
        %v2792 = vadd.f32 0.0, %v2791
        %v2793 = vpop.f32.mrb[0].mxu0
        %2794 = vdwg.mxu0
        %v2795 = vadd.f32 %v1654, %v2781
        %v2796 = vadd.f32 %v1657, %v2784
        %v2797 = vadd.f32 %v1662, %v2789
        %v2798 = vadd.f32 %v1665, %v2792
        %v2799 = vld [vmem:[%s21] sm:$0x1]
        %v2801 = vlaneseq
        %v2802 = vshrl.u32 %v2801, 7
        %v2803 = vsub.s32 0, %v2802
        %v2804 = vrot.slane %v2799, %v2803
        %v2806 = vadd.f32 %v2795, %v2804
        %v2807 = vadd.f32 %v2796, %v2804
        %v2808 = vadd.f32 %v2797, %v2804
        %v2809 = vadd.f32 %v2798, %v2804
        %v2810 = vld [vmem:[%s23] sm:$0x1]
        %v2811 = vld [vmem:[%s25] sm:$0x1]
        %v2812 = vsel %vm1674, %v2806, 0.0
        %2813 = vadd.xlane.f32.xlu0 %v2812
        %v2814 = vpop.xlane.xlu0 %2813
        %v2815 = vsel %vm1674, %v2807, 0.0
        %2816 = vadd.xlane.f32.xlu0 %v2815
        %v2817 = vpop.xlane.xlu0 %2816
        %v2818 = vsel %vm1674, %v2808, 0.0
        %2819 = vadd.xlane.f32.xlu0 %v2818
        %v2820 = vpop.xlane.xlu0 %2819
        %v2821 = vsel %vm1684, %v2809, 0.0
        %2822 = vadd.xlane.f32.xlu0 %v2821
        %v2823 = vpop.xlane.xlu0 %2822
        %v2824 = vmul.f32 %v2814, %v1688
        %v2825 = vmul.f32 %v2817, %v1688
        %v2826 = vmul.f32 %v2820, %v1688
        %v2827 = vmul.f32 %v2823, %v1688
        %v2828 = vsub.f32 %v2806, %v2824
        %v2829 = vsub.f32 %v2807, %v2825
        %v2830 = vsub.f32 %v2808, %v2826
        %v2831 = vsub.f32 %v2809, %v2827
        %v2832 = vmul.f32 %v2828, %v2828
        %v2833 = vmul.f32 %v2829, %v2829
        %v2834 = vmul.f32 %v2830, %v2830
        %v2835 = vmul.f32 %v2831, %v2831
        %v2836 = vsel %vm1674, %v2832, 0.0
        %2837 = vadd.xlane.f32.xlu0 %v2836
        %v2838 = vpop.xlane.xlu0 %2837
        %v2839 = vsel %vm1674, %v2833, 0.0
        %2840 = vadd.xlane.f32.xlu0 %v2839
        %v2841 = vpop.xlane.xlu0 %2840
        %v2842 = vsel %vm1674, %v2834, 0.0
        %2843 = vadd.xlane.f32.xlu0 %v2842
        %v2844 = vpop.xlane.xlu0 %2843
        %v2845 = vsel %vm1684, %v2835, 0.0
        %2846 = vadd.xlane.f32.xlu0 %v2845
        %v2847 = vpop.xlane.xlu0 %2846
        %v2848 = vmul.f32 %v2838, %v1688
        %v2849 = vmul.f32 %v2841, %v1688
        %v2850 = vmul.f32 %v2844, %v1688
        %v2851 = vmul.f32 %v2847, %v1688
        %v2852 = vadd.f32 %v2848, 1e-06
        %v2853 = vadd.f32 %v2849, 1e-06
        %v2854 = vadd.f32 %v2850, 1e-06
        %v2855 = vadd.f32 %v2851, 1e-06
        %v2856 = vrsqrt.pop %v2852
        %v2857 = vrsqrt.pop %v2853
        %v2858 = vrsqrt.pop %v2854
        %v2859 = vrsqrt.pop %v2855
        %v2860 = vmul.f32 %v2828, %v2856
        %v2861 = vmul.f32 %v2829, %v2857
        %v2862 = vmul.f32 %v2830, %v2858
        %v2863 = vmul.f32 %v2831, %v2859
        %v2865 = vlaneseq
        %v2866 = vshrl.u32 %v2865, 7
        %v2867 = vsub.s32 0, %v2866
        %v2868 = vrot.slane %v2810, %v2867
        %v2870 = vmul.f32 %v2860, %v2868
        %v2871 = vmul.f32 %v2861, %v2868
        %v2872 = vmul.f32 %v2862, %v2868
        %v2873 = vmul.f32 %v2863, %v2868
        %v2875 = vlaneseq
        %v2876 = vshrl.u32 %v2875, 7
        %v2877 = vsub.s32 0, %v2876
        %v2878 = vrot.slane %v2811, %v2877
        %v2880 = vadd.f32 %v2870, %v2878
        %v2881 = vadd.f32 %v2871, %v2878
        %v2882 = vadd.f32 %v2872, %v2878
        %v2883 = vadd.f32 %v2873, %v2878
        %v2884 = vld [vmem:[%s27] sm:$0xf]
        %v2885 = vld [vmem:[%s27 + $0x4] sm:$0xf]
        %v2886 = vld [vmem:[%s27 + $0x8] sm:$0xf]
        %v2887 = vld [vmem:[%s27 + $0xc] sm:$0xf]
        %v2888 = vld [vmem:[%s27 + $0x10] sm:$0xf]
        %v2889 = vld [vmem:[%s27 + $0x14] sm:$0xf]
        %v2890 = vld [vmem:[%s27 + $0x18] sm:$0xf]
        %v2891 = vld [vmem:[%s27 + $0x1c] sm:$0xf]
        %v2892 = vpack.c.bf16 %v2881, %v2880
        %v2893 = vpack.c.bf16 %v2883, %v2882
        %v2894 = vld [vmem:[%s29] sm:$0x1]
        %v2896 = vlaneseq
        %v2897 = vshrl.u32 %v2896, 7
        %v2898 = vsub.s32 0, %v2897
        %v2899 = vrot.slane %v2894, %v2898
        %v2909 = vunpack.c.l.b16 %v2884
        %v2910 = vunpack.c.l.b16 %v2885
        %v2911 = vunpack.c.l.b16 %v2886
        %v2912 = vunpack.c.l.b16 %v2887
        %v2913 = vunpack.c.l.b16 %v2888
        %v2914 = vunpack.c.l.b16 %v2889
        %v2915 = vunpack.c.l.b16 %v2890
        %v2916 = vunpack.c.l.b16 %v2891
        %v2917 = vpack.c.b16 %v2910, %v2909
        %v2918 = vpack.c.b16 %v2912, %v2911
        %v2919 = vpack.c.b16 %v2914, %v2913
        %v2920 = vpack.c.b16 %v2916, %v2915
        %v2926 = vsel %vm1674, %v2892, 0
        %v2929 = vsel %vm1674, %v2893, 0
        %2931 = vmatprep.subr.bf16.mxu0 0
        %2932 = vmatpush1.bf16.msra.mxu0 %v2917
        %2933 = vmatprep.subr.bf16.mxu0 0
        %2934 = vmatpush1.bf16.msra.mxu0 %v2918
        %2935 = vmatprep.subr.bf16.mxu0 0
        %2936 = vmatpush1.bf16.msra.mxu0 %v2919
        %2937 = vmatprep.subr.bf16.mxu0 0
        %2938 = vmatpush1.bf16.msra.mxu0 %v2920
        %2939 = vmatprep.subr.bf16.mxu0 0
        %2940 = vmatpush1.bf16.msra.mxu0 0
        %2941 = vmatprep.subr.bf16.mxu0 0
        %2942 = vmatpush1.bf16.msra.mxu0 0
        %2943 = vmatprep.subr.bf16.mxu0 0
        %2944 = vmatpush1.bf16.msra.mxu0 0
        %2945 = vmatprep.subr.bf16.mxu0 0
        %2946 = vmatpush1.bf16.msra.mxu0 0
        %2947 = vmatprep.subr.bf16.mxu0 0
        %2948 = vmatpush1.bf16.msra.mxu0 0
        %2949 = vmatprep.subr.bf16.mxu0 0
        %2950 = vmatpush1.bf16.msra.mxu0 0
        %2951 = vmatprep.subr.bf16.mxu0 0
        %2952 = vmatpush1.bf16.msra.mxu0 0
        %2953 = vmatprep.subr.bf16.mxu0 0
        %2954 = vmatpush1.bf16.msra.mxu0 0
        %2955 = vmatprep.subr.bf16.mxu0 0
        %2956 = vmatpush1.bf16.msra.mxu0 0
        %2957 = vmatprep.subr.bf16.mxu0 0
        %2958 = vmatpush1.bf16.msra.mxu0 0
        %2959 = vmatprep.subr.bf16.mxu0 0
        %2960 = vmatpush1.bf16.msra.mxu0 0
        %2961 = vmatprep.subr.bf16.mxu0 0
        %2962 = vmatpush1.bf16.msra.mxu0 0
        %2963 = vmatprep.mubr.bf16.mxu0 0
        %2964 = vmatmul.mubr.bf16.gmra.mrb[0].mxu0 %v2926
        %v2965 = vpop.f32.mrb[0].mxu0
        %v2966 = vadd.f32 %v2899, %v2965
        %v2967 = vpop.f32.mrb[0].mxu0
        %v2968 = vpop.f32.mrb[0].mxu0
        %v2969 = vadd.f32 %v2899, %v2968
        %v2970 = vpop.f32.mrb[0].mxu0
        %2971 = vmatprep.mubr.bf16.mxu0 0
        %2972 = vmatmul.mubr.bf16.gmra.mrb[0].mxu0 %v2929
        %v2973 = vpop.f32.mrb[0].mxu0
        %v2974 = vadd.f32 %v2899, %v2973
        %v2975 = vpop.f32.mrb[0].mxu0
        %v2976 = vpop.f32.mrb[0].mxu0
        %v2977 = vadd.f32 %v2899, %v2976
        %v2978 = vpop.f32.mrb[0].mxu0
        %2979 = vdwg.mxu0
        %v2980 = vmul.f32 %v2966, %v2966
        %v2981 = vmul.f32 %v2969, %v2969
        %v2982 = vmul.f32 %v2974, %v2974
        %v2983 = vmul.f32 %v2977, %v2977
        %v2984 = vmul.f32 %v2966, %v2980
        %v2985 = vmul.f32 %v2969, %v2981
        %v2986 = vmul.f32 %v2974, %v2982
        %v2987 = vmul.f32 %v2977, %v2983
        %v2988 = vmul.f32 %v2984, 0.044715
        %v2989 = vmul.f32 %v2985, 0.044715
        %v2990 = vmul.f32 %v2986, 0.044715
        %v2991 = vmul.f32 %v2987, 0.044715
        %v2992 = vadd.f32 %v2966, %v2988
        %v2993 = vadd.f32 %v2969, %v2989
        %v2994 = vadd.f32 %v2974, %v2990
        %v2995 = vadd.f32 %v2977, %v2991
        %v2996 = vmul.f32 %v2992, 0.7978846
        %v2997 = vmul.f32 %v2993, 0.7978846
        %v2998 = vmul.f32 %v2994, 0.7978846
        %v2999 = vmul.f32 %v2995, 0.7978846
        %v3000 = vtanh.pop %v2996
        %v3001 = vtanh.pop %v2997
        %v3002 = vtanh.pop %v2998
        %v3003 = vtanh.pop %v2999
        %v3004 = vadd.f32 %v3000, 1.0
        %v3005 = vadd.f32 %v3001, 1.0
        %v3006 = vadd.f32 %v3002, 1.0
        %v3007 = vadd.f32 %v3003, 1.0
        %v3008 = vmul.f32 %v3004, 0.5
        %v3009 = vmul.f32 %v3005, 0.5
        %v3010 = vmul.f32 %v3006, 0.5
        %v3011 = vmul.f32 %v3007, 0.5
        %v3012 = vmul.f32 %v2966, %v3008
        %v3013 = vmul.f32 %v2969, %v3009
        %v3014 = vmul.f32 %v2974, %v3010
        %v3015 = vmul.f32 %v2977, %v3011
        %v3016 = vld [vmem:[%s31] sm:$0xf]
        %v3017 = vld [vmem:[%s31 + $0x4] sm:$0xf]
        %v3018 = vld [vmem:[%s31 + $0x8] sm:$0xf]
        %v3019 = vld [vmem:[%s31 + $0xc] sm:$0xf]
        %v3020 = vld [vmem:[%s31 + $0x10] sm:$0xf]
        %v3021 = vld [vmem:[%s31 + $0x14] sm:$0xf]
        %v3022 = vld [vmem:[%s31 + $0x18] sm:$0xf]
        %v3023 = vld [vmem:[%s31 + $0x1c] sm:$0xf]
        %v3024 = vld [vmem:[%s31 + $0x20] sm:$0xf]
        %v3025 = vld [vmem:[%s31 + $0x24] sm:$0xf]
        %v3026 = vld [vmem:[%s31 + $0x28] sm:$0xf]
        %v3027 = vld [vmem:[%s31 + $0x2c] sm:$0xf]
        %v3028 = vld [vmem:[%s31 + $0x30] sm:$0xf]
        %v3029 = vld [vmem:[%s31 + $0x34] sm:$0xf]
        %v3030 = vld [vmem:[%s31 + $0x38] sm:$0xf]
        %v3031 = vld [vmem:[%s31 + $0x3c] sm:$0xf]
        %v3032 = vpack.c.bf16 %v3013, %v3012
        %v3033 = vpack.c.bf16 %v3015, %v3014
        %v3050 = vunpack.c.l.b16 %v3016
        %v3051 = vunpack.c.l.b16 %v3017
        %v3052 = vunpack.c.l.b16 %v3018
        %v3053 = vunpack.c.l.b16 %v3019
        %v3054 = vunpack.c.l.b16 %v3020
        %v3055 = vunpack.c.l.b16 %v3021
        %v3056 = vunpack.c.l.b16 %v3022
        %v3057 = vunpack.c.l.b16 %v3023
        %v3058 = vunpack.c.l.b16 %v3024
        %v3059 = vunpack.c.l.b16 %v3025
        %v3060 = vunpack.c.l.b16 %v3026
        %v3061 = vunpack.c.l.b16 %v3027
        %v3062 = vunpack.c.l.b16 %v3028
        %v3063 = vunpack.c.l.b16 %v3029
        %v3064 = vunpack.c.l.b16 %v3030
        %v3065 = vunpack.c.l.b16 %v3031
        %v3066 = vpack.c.b16 %v3051, %v3050
        %v3067 = vpack.c.b16 %v3053, %v3052
        %v3068 = vpack.c.b16 %v3055, %v3054
        %v3069 = vpack.c.b16 %v3057, %v3056
        %v3070 = vpack.c.b16 %v3059, %v3058
        %v3071 = vpack.c.b16 %v3061, %v3060
        %v3072 = vpack.c.b16 %v3063, %v3062
        %v3073 = vpack.c.b16 %v3065, %v3064
        %3082 = vmatprep.subr.bf16.mxu0 0
        %3083 = vmatpush1.bf16.msra.mxu0 %v3066
        %3084 = vmatprep.subr.bf16.mxu0 0
        %3085 = vmatpush1.bf16.msra.mxu0 %v3067
        %3086 = vmatprep.subr.bf16.mxu0 0
        %3087 = vmatpush1.bf16.msra.mxu0 %v3068
        %3088 = vmatprep.subr.bf16.mxu0 0
        %3089 = vmatpush1.bf16.msra.mxu0 %v3069
        %3090 = vmatprep.subr.bf16.mxu0 0
        %3091 = vmatpush1.bf16.msra.mxu0 %v3070
        %3092 = vmatprep.subr.bf16.mxu0 0
        %3093 = vmatpush1.bf16.msra.mxu0 %v3071
        %3094 = vmatprep.subr.bf16.mxu0 0
        %3095 = vmatpush1.bf16.msra.mxu0 %v3072
        %3096 = vmatprep.subr.bf16.mxu0 0
        %3097 = vmatpush1.bf16.msra.mxu0 %v3073
        %3098 = vmatprep.subr.bf16.mxu0 0
        %3099 = vmatpush1.bf16.msra.mxu0 0
        %3100 = vmatprep.subr.bf16.mxu0 0
        %3101 = vmatpush1.bf16.msra.mxu0 0
        %3102 = vmatprep.subr.bf16.mxu0 0
        %3103 = vmatpush1.bf16.msra.mxu0 0
        %3104 = vmatprep.subr.bf16.mxu0 0
        %3105 = vmatpush1.bf16.msra.mxu0 0
        %3106 = vmatprep.subr.bf16.mxu0 0
        %3107 = vmatpush1.bf16.msra.mxu0 0
        %3108 = vmatprep.subr.bf16.mxu0 0
        %3109 = vmatpush1.bf16.msra.mxu0 0
        %3110 = vmatprep.subr.bf16.mxu0 0
        %3111 = vmatpush1.bf16.msra.mxu0 0
        %3112 = vmatprep.subr.bf16.mxu0 0
        %3113 = vmatpush1.bf16.msra.mxu0 0
        %3114 = vmatprep.mubr.bf16.mxu0 0
        %3115 = vmatmul.mubr.bf16.gmra.mrb[0].mxu0 %v3032
        %v3116 = vpop.f32.mrb[0].mxu0
        %v3117 = vadd.f32 0.0, %v3116
        %v3118 = vpop.f32.mrb[0].mxu0
        %v3119 = vpop.f32.mrb[0].mxu0
        %v3120 = vadd.f32 0.0, %v3119
        %v3121 = vpop.f32.mrb[0].mxu0
        %3122 = vmatprep.mubr.bf16.mxu0 0
        %3123 = vmatmul.mubr.bf16.gmra.mrb[0].mxu0 %v3033
        %v3124 = vpop.f32.mrb[0].mxu0
        %v3125 = vadd.f32 0.0, %v3124
        %v3126 = vpop.f32.mrb[0].mxu0
        %v3127 = vpop.f32.mrb[0].mxu0
        %v3128 = vadd.f32 0.0, %v3127
        %v3129 = vpop.f32.mrb[0].mxu0
        %3130 = vdwg.mxu0
        %v3131 = vadd.f32 %v2806, %v3117
        %v3132 = vadd.f32 %v2807, %v3120
        %v3133 = vadd.f32 %v2808, %v3125
        %v3134 = vadd.f32 %v2809, %v3128
        %v3135 = vld [vmem:[%s33] sm:$0x1]
        %v3137 = vlaneseq
        %v3138 = vshrl.u32 %v3137, 7
        %v3139 = vsub.s32 0, %v3138
        %v3140 = vrot.slane %v3135, %v3139
        %v3142 = vadd.f32 %v3131, %v3140
        %v3143 = vadd.f32 %v3132, %v3140
        %v3144 = vadd.f32 %v3133, %v3140
        %v3145 = vadd.f32 %v3134, %v3140
        %s3146 = scalar_lea.vmem %s11, 1
        %v3147 = vld [vmem:[%s3146] sm:$0x1]
        %s3148 = scalar_lea.vmem %s13, 1
        %v3149 = vld [vmem:[%s3148] sm:$0x1]
        %v3150 = vsel %vm1674, %v3142, 0.0
        %3151 = vadd.xlane.f32.xlu0 %v3150
        %v3152 = vpop.xlane.xlu0 %3151
        %v3153 = vsel %vm1674, %v3143, 0.0
        %3154 = vadd.xlane.f32.xlu0 %v3153
        %v3155 = vpop.xlane.xlu0 %3154
        %v3156 = vsel %vm1674, %v3144, 0.0
        %3157 = vadd.xlane.f32.xlu0 %v3156
        %v3158 = vpop.xlane.xlu0 %3157
        %v3159 = vsel %vm1684, %v3145, 0.0
        %3160 = vadd.xlane.f32.xlu0 %v3159
        %v3161 = vpop.xlane.xlu0 %3160
        %v3162 = vmul.f32 %v3152, %v1688
        %v3163 = vmul.f32 %v3155, %v1688
        %v3164 = vmul.f32 %v3158, %v1688
        %v3165 = vmul.f32 %v3161, %v1688
        %v3166 = vsub.f32 %v3142, %v3162
        %v3167 = vsub.f32 %v3143, %v3163
        %v3168 = vsub.f32 %v3144, %v3164
        %v3169 = vsub.f32 %v3145, %v3165
        %v3170 = vmul.f32 %v3166, %v3166
        %v3171 = vmul.f32 %v3167, %v3167
        %v3172 = vmul.f32 %v3168, %v3168
        %v3173 = vmul.f32 %v3169, %v3169
        %v3174 = vsel %vm1674, %v3170, 0.0
        %3175 = vadd.xlane.f32.xlu0 %v3174
        %v3176 = vpop.xlane.xlu0 %3175
        %v3177 = vsel %vm1674, %v3171, 0.0
        %3178 = vadd.xlane.f32.xlu0 %v3177
        %v3179 = vpop.xlane.xlu0 %3178
        %v3180 = vsel %vm1674, %v3172, 0.0
        %3181 = vadd.xlane.f32.xlu0 %v3180
        %v3182 = vpop.xlane.xlu0 %3181
        %v3183 = vsel %vm1684, %v3173, 0.0
        %3184 = vadd.xlane.f32.xlu0 %v3183
        %v3185 = vpop.xlane.xlu0 %3184
        %v3186 = vmul.f32 %v3176, %v1688
        %v3187 = vmul.f32 %v3179, %v1688
        %v3188 = vmul.f32 %v3182, %v1688
        %v3189 = vmul.f32 %v3185, %v1688
        %v3190 = vadd.f32 %v3186, 1e-06
        %v3191 = vadd.f32 %v3187, 1e-06
        %v3192 = vadd.f32 %v3188, 1e-06
        %v3193 = vadd.f32 %v3189, 1e-06
        %v3194 = vrsqrt.pop %v3190
        %v3195 = vrsqrt.pop %v3191
        %v3196 = vrsqrt.pop %v3192
        %v3197 = vrsqrt.pop %v3193
        %v3198 = vmul.f32 %v3166, %v3194
        %v3199 = vmul.f32 %v3167, %v3195
        %v3200 = vmul.f32 %v3168, %v3196
        %v3201 = vmul.f32 %v3169, %v3197
        %v3203 = vlaneseq
        %v3204 = vshrl.u32 %v3203, 7
        %v3205 = vsub.s32 0, %v3204
        %v3206 = vrot.slane %v3147, %v3205
        %v3208 = vmul.f32 %v3198, %v3206
        %v3209 = vmul.f32 %v3199, %v3206
        %v3210 = vmul.f32 %v3200, %v3206
        %v3211 = vmul.f32 %v3201, %v3206
        %v3213 = vlaneseq
        %v3214 = vshrl.u32 %v3213, 7
        %v3215 = vsub.s32 0, %v3214
        %v3216 = vrot.slane %v3149, %v3215
        %v3218 = vadd.f32 %v3208, %v3216
        %v3219 = vadd.f32 %v3209, %v3216
        %v3220 = vadd.f32 %v3210, %v3216
        %v3221 = vadd.f32 %v3211, %v3216
        %s3222 = scalar_lea.vmem %s15, 64
        %v3223 = vld [vmem:[%s3222] sm:$0xff]
        %v3224 = vld [vmem:[%s3222 + $0x8] sm:$0xff]
        %v3225 = vld [vmem:[%s3222 + $0x10] sm:$0xff]
        %v3226 = vld [vmem:[%s3222 + $0x18] sm:$0xff]
        %v3227 = vld [vmem:[%s3222 + $0x20] sm:$0xff]
        %v3228 = vld [vmem:[%s3222 + $0x28] sm:$0xff]
        %v3229 = vld [vmem:[%s3222 + $0x30] sm:$0xff]
        %v3230 = vld [vmem:[%s3222 + $0x38] sm:$0xff]
        %v3231 = vpack.c.bf16 %v3219, %v3218
        %v3232 = vpack.c.bf16 %v3221, %v3220
        %s3233 = scalar_lea.vmem %s17, 2
        %v3234 = vld [vmem:[%s3233] sm:$0x3]
        %v3236 = vlaneseq
        %v3237 = vshrl.u32 %v3236, 7
        %v3238 = vsub.s32 0, %v3237
        %v3239 = vrot.slane %v3234, %v3238
        %v3240 = vlaneseq
        %v3241 = vshrl.u32 %v3240, 7
        %v3242 = vsub.s32 1, %v3241
        %v3243 = vrot.slane %v3234, %v3242
        %v3254 = vunpack.c.l.b16 %v3223
        %v3255 = vunpack.c.h.b16 %v3223
        %v3256 = vunpack.c.l.b16 %v3224
        %v3257 = vunpack.c.h.b16 %v3224
        %v3258 = vunpack.c.l.b16 %v3225
        %v3259 = vunpack.c.h.b16 %v3225
        %v3260 = vunpack.c.l.b16 %v3226
        %v3261 = vunpack.c.h.b16 %v3226
        %v3262 = vunpack.c.l.b16 %v3227
        %v3263 = vunpack.c.h.b16 %v3227
        %v3264 = vunpack.c.l.b16 %v3228
        %v3265 = vunpack.c.h.b16 %v3228
        %v3266 = vunpack.c.l.b16 %v3229
        %v3267 = vunpack.c.h.b16 %v3229
        %v3268 = vunpack.c.l.b16 %v3230
        %v3269 = vunpack.c.h.b16 %v3230
        %v3270 = vpack.c.b16 %v3256, %v3254
        %v3271 = vpack.c.b16 %v3257, %v3255
        %v3272 = vpack.c.b16 %v3260, %v3258
        %v3273 = vpack.c.b16 %v3261, %v3259
        %v3274 = vpack.c.b16 %v3264, %v3262
        %v3275 = vpack.c.b16 %v3265, %v3263
        %v3276 = vpack.c.b16 %v3268, %v3266
        %v3277 = vpack.c.b16 %v3269, %v3267
        %v3287 = vsel %vm1674, %v3231, 0
        %v3290 = vsel %vm1674, %v3232, 0
        %3292 = vmatprep.subr.bf16.mxu0 %v3271
        %3293 = vmatpush1.bf16.msra.mxu0 %v3270
        %3294 = vmatprep.subr.bf16.mxu0 %v3273
        %3295 = vmatpush1.bf16.msra.mxu0 %v3272
        %3296 = vmatprep.subr.bf16.mxu0 %v3275
        %3297 = vmatpush1.bf16.msra.mxu0 %v3274
        %3298 = vmatprep.subr.bf16.mxu0 %v3277
        %3299 = vmatpush1.bf16.msra.mxu0 %v3276
        %3300 = vmatprep.subr.bf16.mxu0 0
        %3301 = vmatpush1.bf16.msra.mxu0 0
        %3302 = vmatprep.subr.bf16.mxu0 0
        %3303 = vmatpush1.bf16.msra.mxu0 0
        %3304 = vmatprep.subr.bf16.mxu0 0
        %3305 = vmatpush1.bf16.msra.mxu0 0
        %3306 = vmatprep.subr.bf16.mxu0 0
        %3307 = vmatpush1.bf16.msra.mxu0 0
        %3308 = vmatprep.subr.bf16.mxu0 0
        %3309 = vmatpush1.bf16.msra.mxu0 0
        %3310 = vmatprep.subr.bf16.mxu0 0
        %3311 = vmatpush1.bf16.msra.mxu0 0
        %3312 = vmatprep.subr.bf16.mxu0 0
        %3313 = vmatpush1.bf16.msra.mxu0 0
        %3314 = vmatprep.subr.bf16.mxu0 0
        %3315 = vmatpush1.bf16.msra.mxu0 0
        %3316 = vmatprep.subr.bf16.mxu0 0
        %3317 = vmatpush1.bf16.msra.mxu0 0
        %3318 = vmatprep.subr.bf16.mxu0 0
        %3319 = vmatpush1.bf16.msra.mxu0 0
        %3320 = vmatprep.subr.bf16.mxu0 0
        %3321 = vmatpush1.bf16.msra.mxu0 0
        %3322 = vmatprep.subr.bf16.mxu0 0
        %3323 = vmatpush1.bf16.msra.mxu0 0
        %3324 = vmatprep.mubr.bf16.mxu0 0
        %3325 = vmatmul.mubr.bf16.gmra.mrb[0].mxu0 %v3287
        %v3326 = vpop.f32.mrb[0].mxu0
        %v3327 = vadd.f32 %v3239, %v3326
        %v3328 = vpop.f32.mrb[0].mxu0
        %v3329 = vadd.f32 %v3243, %v3328
        %v3330 = vpop.f32.mrb[0].mxu0
        %v3331 = vadd.f32 %v3239, %v3330
        %v3332 = vpop.f32.mrb[0].mxu0
        %v3333 = vadd.f32 %v3243, %v3332
        %3334 = vmatprep.mubr.bf16.mxu0 0
        %3335 = vmatmul.mubr.bf16.gmra.mrb[0].mxu0 %v3290
        %v3336 = vpop.f32.mrb[0].mxu0
        %v3337 = vadd.f32 %v3239, %v3336
        %v3338 = vpop.f32.mrb[0].mxu0
        %v3339 = vadd.f32 %v3243, %v3338
        %v3340 = vpop.f32.mrb[0].mxu0
        %v3341 = vadd.f32 %v3239, %v3340
        %v3342 = vpop.f32.mrb[0].mxu0
        %v3343 = vadd.f32 %v3243, %v3342
        %3344 = vdwg.mxu0
        %v3345 = vpack.c.bf16 %v3331, %v3327
        %v3346 = vpack.c.bf16 %v3341, %v3337
        %3349 = vrot.lane.b32.xlu0 %v3345, 64
        %v3350 = vpop.permute.xlu0 %3349
        %3351 = vrot.lane.b32.xlu0 %v3346, 64
        %v3352 = vpop.permute.xlu0 %3351
        %v3354 = vsel %vm1878, %v3345, 0
        %v3357 = vsel %vm1878, %v3346, 0
        %v3360 = vsel %vm1878, %v3350, 0
        %v3363 = vsel %vm1878, %v3352, 0
        %3365 = vmatprep.subr.bf16.mxu0 0
        %3366 = vmatpush1.bf16.xpose.msra.mxu0 %v3360
        %3367 = vmatprep.subr.bf16.mxu0 0
        %3368 = vmatpush1.bf16.xpose.msra.mxu0 %v3363
        %3369 = vmatprep.subr.bf16.mxu0 0
        %3370 = vmatpush1.bf16.xpose.msra.mxu0 0
        %3371 = vmatprep.subr.bf16.mxu0 0
        %3372 = vmatpush1.bf16.xpose.msra.mxu0 0
        %3373 = vmatprep.subr.bf16.mxu0 0
        %3374 = vmatpush1.bf16.xpose.msra.mxu0 0
        %3375 = vmatprep.subr.bf16.mxu0 0
        %3376 = vmatpush1.bf16.xpose.msra.mxu0 0
        %3377 = vmatprep.subr.bf16.mxu0 0
        %3378 = vmatpush1.bf16.xpose.msra.mxu0 0
        %3379 = vmatprep.subr.bf16.mxu0 0
        %3380 = vmatpush1.bf16.xpose.msra.mxu0 0
        %3381 = vmatprep.subr.bf16.mxu0 0
        %3382 = vmatpush1.bf16.xpose.msra.mxu0 0
        %3383 = vmatprep.subr.bf16.mxu0 0
        %3384 = vmatpush1.bf16.xpose.msra.mxu0 0
        %3385 = vmatprep.subr.bf16.mxu0 0
        %3386 = vmatpush1.bf16.xpose.msra.mxu0 0
        %3387 = vmatprep.subr.bf16.mxu0 0
        %3388 = vmatpush1.bf16.xpose.msra.mxu0 0
        %3389 = vmatprep.subr.bf16.mxu0 0
        %3390 = vmatpush1.bf16.xpose.msra.mxu0 0
        %3391 = vmatprep.subr.bf16.mxu0 0
        %3392 = vmatpush1.bf16.xpose.msra.mxu0 0
        %3393 = vmatprep.subr.bf16.mxu0 0
        %3394 = vmatpush1.bf16.xpose.msra.mxu0 0
        %3395 = vmatprep.subr.bf16.mxu0 0
        %3396 = vmatpush1.bf16.xpose.msra.mxu0 0
        %3397 = vmatprep.mubr.bf16.mxu0 0
        %3398 = vmatmul.mubr.bf16.gmra.mrb[0].mxu0 %v3354
        %v3399 = vpop.f32.mrb[0].mxu0
        %v3400 = vadd.f32 0.0, %v3399
        %v3401 = vpop.f32.mrb[0].mxu0
        %v3402 = vpop.f32.mrb[0].mxu0
        %v3403 = vadd.f32 0.0, %v3402
        %v3404 = vpop.f32.mrb[0].mxu0
        %3405 = vmatprep.mubr.bf16.mxu0 0
        %3406 = vmatmul.mubr.bf16.gmra.mrb[0].mxu0 %v3357
        %v3407 = vpop.f32.mrb[0].mxu0
        %v3408 = vadd.f32 0.0, %v3407
        %v3409 = vpop.f32.mrb[0].mxu0
        %v3410 = vpop.f32.mrb[0].mxu0
        %v3411 = vadd.f32 0.0, %v3410
        %v3412 = vpop.f32.mrb[0].mxu0
        %3413 = vdwg.mxu0
        %v3414 = vmul.f32 %v3400, 0.25
        %v3415 = vmul.f32 %v3403, 0.25
        %v3416 = vmul.f32 %v3408, 0.25
        %v3417 = vmul.f32 %v3411, 0.25
        %v3418 = vsub.f32 %v3414, %v1948
        %v3419 = vsub.f32 %v3415, %v1949
        %v3420 = vsub.f32 %v3416, %v1950
        %v3421 = vsub.f32 %v3417, %v1951
        %v3422 = vsel %vm1956, %v3418, -inf
        %3423 = vmax.xlane.f32.xlu0 %v3422
        %v3424 = vpop.xlane.xlu0 %3423
        %v3425 = vsel %vm1956, %v3419, -inf
        %3426 = vmax.xlane.f32.xlu0 %v3425
        %v3427 = vpop.xlane.xlu0 %3426
        %v3428 = vsel %vm1956, %v3420, -inf
        %3429 = vmax.xlane.f32.xlu0 %v3428
        %v3430 = vpop.xlane.xlu0 %3429
        %v3431 = vsel %vm1966, %v3421, -inf
        %3432 = vmax.xlane.f32.xlu0 %v3431
        %v3433 = vpop.xlane.xlu0 %3432
        %v3434 = vsub.f32 %v3418, %v3424
        %v3435 = vsub.f32 %v3419, %v3427
        %v3436 = vsub.f32 %v3420, %v3430
        %v3437 = vsub.f32 %v3421, %v3433
        %v3438 = vmul.f32 %v3434, 1.442695
        %v3439 = vpow.pop %v3438
        %v3440 = vmul.f32 %v3435, 1.442695
        %v3441 = vpow.pop %v3440
        %v3442 = vmul.f32 %v3436, 1.442695
        %v3443 = vpow.pop %v3442
        %v3444 = vmul.f32 %v3437, 1.442695
        %v3445 = vpow.pop %v3444
        %v3446 = vmul.f32 %v3439, %v1668
        %v3447 = vmul.f32 %v3441, %v1669
        %v3448 = vmul.f32 %v3443, %v1670
        %v3449 = vmul.f32 %v3445, %v1671
        %v3450 = vsel %vm1956, %v3446, 0.0
        %3451 = vadd.xlane.f32.xlu0 %v3450
        %v3452 = vpop.xlane.xlu0 %3451
        %v3453 = vsel %vm1956, %v3447, 0.0
        %3454 = vadd.xlane.f32.xlu0 %v3453
        %v3455 = vpop.xlane.xlu0 %3454
        %v3456 = vsel %vm1956, %v3448, 0.0
        %3457 = vadd.xlane.f32.xlu0 %v3456
        %v3458 = vpop.xlane.xlu0 %3457
        %v3459 = vsel %vm1966, %v3449, 0.0
        %3460 = vadd.xlane.f32.xlu0 %v3459
        %v3461 = vpop.xlane.xlu0 %3460
        %v3462 = vrcp.pop %v3452
        %v3463 = vmul.f32 %v3446, %v3462
        %v3464 = vrcp.pop %v3455
        %v3465 = vmul.f32 %v3447, %v3464
        %v3466 = vrcp.pop %v3458
        %v3467 = vmul.f32 %v3448, %v3466
        %v3468 = vrcp.pop %v3461
        %v3469 = vmul.f32 %v3449, %v3468
        %v3470 = vpack.c.bf16 %v3465, %v3463
        %v3471 = vpack.c.bf16 %v3469, %v3467
        %v3472 = vpack.c.bf16 %v3333, %v3329
        %v3473 = vpack.c.bf16 %v3343, %v3339
        %v3475 = vsel %vm1956, %v3470, 0
        %v3478 = vsel %vm1956, %v3471, 0
        %v3481 = vand.u32 %v3473, %v2019
        %3483 = vmatprep.subr.bf16.mxu0 0
        %3484 = vmatpush1.bf16.msra.mxu0 %v3472
        %3485 = vmatprep.subr.bf16.mxu0 0
        %3486 = vmatpush1.bf16.msra.mxu0 %v3481
        %3487 = vmatprep.subr.bf16.mxu0 0
        %3488 = vmatpush1.bf16.msra.mxu0 0
        %3489 = vmatprep.subr.bf16.mxu0 0
        %3490 = vmatpush1.bf16.msra.mxu0 0
        %3491 = vmatprep.subr.bf16.mxu0 0
        %3492 = vmatpush1.bf16.msra.mxu0 0
        %3493 = vmatprep.subr.bf16.mxu0 0
        %3494 = vmatpush1.bf16.msra.mxu0 0
        %3495 = vmatprep.subr.bf16.mxu0 0
        %3496 = vmatpush1.bf16.msra.mxu0 0
        %3497 = vmatprep.subr.bf16.mxu0 0
        %3498 = vmatpush1.bf16.msra.mxu0 0
        %3499 = vmatprep.subr.bf16.mxu0 0
        %3500 = vmatpush1.bf16.msra.mxu0 0
        %3501 = vmatprep.subr.bf16.mxu0 0
        %3502 = vmatpush1.bf16.msra.mxu0 0
        %3503 = vmatprep.subr.bf16.mxu0 0
        %3504 = vmatpush1.bf16.msra.mxu0 0
        %3505 = vmatprep.subr.bf16.mxu0 0
        %3506 = vmatpush1.bf16.msra.mxu0 0
        %3507 = vmatprep.subr.bf16.mxu0 0
        %3508 = vmatpush1.bf16.msra.mxu0 0
        %3509 = vmatprep.subr.bf16.mxu0 0
        %3510 = vmatpush1.bf16.msra.mxu0 0
        %3511 = vmatprep.subr.bf16.mxu0 0
        %3512 = vmatpush1.bf16.msra.mxu0 0
        %3513 = vmatprep.subr.bf16.mxu0 0
        %3514 = vmatpush1.bf16.msra.mxu0 0
        %3515 = vmatprep.mubr.bf16.mxu0 0
        %3516 = vmatmul.mubr.bf16.gmra.mrb[0].mxu0 %v3475
        %v3517 = vpop.f32.mrb[0].mxu0
        %v3518 = vadd.f32 0.0, %v3517
        %v3519 = vpop.f32.mrb[0].mxu0
        %v3520 = vpop.f32.mrb[0].mxu0
        %v3521 = vadd.f32 0.0, %v3520
        %v3522 = vpop.f32.mrb[0].mxu0
        %3523 = vmatprep.mubr.bf16.mxu0 0
        %3524 = vmatmul.mubr.bf16.gmra.mrb[0].mxu0 %v3478
        %v3525 = vpop.f32.mrb[0].mxu0
        %v3526 = vadd.f32 0.0, %v3525
        %v3527 = vpop.f32.mrb[0].mxu0
        %v3528 = vpop.f32.mrb[0].mxu0
        %v3529 = vadd.f32 0.0, %v3528
        %v3530 = vpop.f32.mrb[0].mxu0
        %3531 = vdwg.mxu0
        %3532 = vrot.lane.b32.xlu0 %v3345, 112
        %v3533 = vpop.permute.xlu0 %3532
        %3534 = vrot.lane.b32.xlu0 %v3346, 112
        %v3535 = vpop.permute.xlu0 %3534
        %3536 = vrot.lane.b32.xlu0 %v3345, 48
        %v3537 = vpop.permute.xlu0 %3536
        %3538 = vrot.lane.b32.xlu0 %v3346, 48
        %v3539 = vpop.permute.xlu0 %3538
        %v3541 = vsel %vm1878, %v3533, 0
        %v3544 = vsel %vm1878, %v3535, 0
        %v3547 = vsel %vm1878, %v3537, 0
        %v3550 = vsel %vm1878, %v3539, 0
        %3552 = vmatprep.subr.bf16.mxu0 0
        %3553 = vmatpush1.bf16.xpose.msra.mxu0 %v3547
        %3554 = vmatprep.subr.bf16.mxu0 0
        %3555 = vmatpush1.bf16.xpose.msra.mxu0 %v3550
        %3556 = vmatprep.subr.bf16.mxu0 0
        %3557 = vmatpush1.bf16.xpose.msra.mxu0 0
        %3558 = vmatprep.subr.bf16.mxu0 0
        %3559 = vmatpush1.bf16.xpose.msra.mxu0 0
        %3560 = vmatprep.subr.bf16.mxu0 0
        %3561 = vmatpush1.bf16.xpose.msra.mxu0 0
        %3562 = vmatprep.subr.bf16.mxu0 0
        %3563 = vmatpush1.bf16.xpose.msra.mxu0 0
        %3564 = vmatprep.subr.bf16.mxu0 0
        %3565 = vmatpush1.bf16.xpose.msra.mxu0 0
        %3566 = vmatprep.subr.bf16.mxu0 0
        %3567 = vmatpush1.bf16.xpose.msra.mxu0 0
        %3568 = vmatprep.subr.bf16.mxu0 0
        %3569 = vmatpush1.bf16.xpose.msra.mxu0 0
        %3570 = vmatprep.subr.bf16.mxu0 0
        %3571 = vmatpush1.bf16.xpose.msra.mxu0 0
        %3572 = vmatprep.subr.bf16.mxu0 0
        %3573 = vmatpush1.bf16.xpose.msra.mxu0 0
        %3574 = vmatprep.subr.bf16.mxu0 0
        %3575 = vmatpush1.bf16.xpose.msra.mxu0 0
        %3576 = vmatprep.subr.bf16.mxu0 0
        %3577 = vmatpush1.bf16.xpose.msra.mxu0 0
        %3578 = vmatprep.subr.bf16.mxu0 0
        %3579 = vmatpush1.bf16.xpose.msra.mxu0 0
        %3580 = vmatprep.subr.bf16.mxu0 0
        %3581 = vmatpush1.bf16.xpose.msra.mxu0 0
        %3582 = vmatprep.subr.bf16.mxu0 0
        %3583 = vmatpush1.bf16.xpose.msra.mxu0 0
        %3584 = vmatprep.mubr.bf16.mxu0 0
        %3585 = vmatmul.mubr.bf16.gmra.mrb[0].mxu0 %v3541
        %v3586 = vpop.f32.mrb[0].mxu0
        %v3587 = vadd.f32 0.0, %v3586
        %v3588 = vpop.f32.mrb[0].mxu0
        %v3589 = vpop.f32.mrb[0].mxu0
        %v3590 = vadd.f32 0.0, %v3589
        %v3591 = vpop.f32.mrb[0].mxu0
        %3592 = vmatprep.mubr.bf16.mxu0 0
        %3593 = vmatmul.mubr.bf16.gmra.mrb[0].mxu0 %v3544
        %v3594 = vpop.f32.mrb[0].mxu0
        %v3595 = vadd.f32 0.0, %v3594
        %v3596 = vpop.f32.mrb[0].mxu0
        %v3597 = vpop.f32.mrb[0].mxu0
        %v3598 = vadd.f32 0.0, %v3597
        %v3599 = vpop.f32.mrb[0].mxu0
        %3600 = vdwg.mxu0
        %v3601 = vmul.f32 %v3587, 0.25
        %v3602 = vmul.f32 %v3590, 0.25
        %v3603 = vmul.f32 %v3595, 0.25
        %v3604 = vmul.f32 %v3598, 0.25
        %v3605 = vsub.f32 %v3601, %v1948
        %v3606 = vsub.f32 %v3602, %v1949
        %v3607 = vsub.f32 %v3603, %v1950
        %v3608 = vsub.f32 %v3604, %v1951
        %v3609 = vsel %vm1956, %v3605, -inf
        %3610 = vmax.xlane.f32.xlu0 %v3609
        %v3611 = vpop.xlane.xlu0 %3610
        %v3612 = vsel %vm1956, %v3606, -inf
        %3613 = vmax.xlane.f32.xlu0 %v3612
        %v3614 = vpop.xlane.xlu0 %3613
        %v3615 = vsel %vm1956, %v3607, -inf
        %3616 = vmax.xlane.f32.xlu0 %v3615
        %v3617 = vpop.xlane.xlu0 %3616
        %v3618 = vsel %vm1966, %v3608, -inf
        %3619 = vmax.xlane.f32.xlu0 %v3618
        %v3620 = vpop.xlane.xlu0 %3619
        %v3621 = vsub.f32 %v3605, %v3611
        %v3622 = vsub.f32 %v3606, %v3614
        %v3623 = vsub.f32 %v3607, %v3617
        %v3624 = vsub.f32 %v3608, %v3620
        %v3625 = vmul.f32 %v3621, 1.442695
        %v3626 = vpow.pop %v3625
        %v3627 = vmul.f32 %v3622, 1.442695
        %v3628 = vpow.pop %v3627
        %v3629 = vmul.f32 %v3623, 1.442695
        %v3630 = vpow.pop %v3629
        %v3631 = vmul.f32 %v3624, 1.442695
        %v3632 = vpow.pop %v3631
        %v3633 = vmul.f32 %v3626, %v1668
        %v3634 = vmul.f32 %v3628, %v1669
        %v3635 = vmul.f32 %v3630, %v1670
        %v3636 = vmul.f32 %v3632, %v1671
        %v3637 = vsel %vm1956, %v3633, 0.0
        %3638 = vadd.xlane.f32.xlu0 %v3637
        %v3639 = vpop.xlane.xlu0 %3638
        %v3640 = vsel %vm1956, %v3634, 0.0
        %3641 = vadd.xlane.f32.xlu0 %v3640
        %v3642 = vpop.xlane.xlu0 %3641
        %v3643 = vsel %vm1956, %v3635, 0.0
        %3644 = vadd.xlane.f32.xlu0 %v3643
        %v3645 = vpop.xlane.xlu0 %3644
        %v3646 = vsel %vm1966, %v3636, 0.0
        %3647 = vadd.xlane.f32.xlu0 %v3646
        %v3648 = vpop.xlane.xlu0 %3647
        %v3649 = vrcp.pop %v3639
        %v3650 = vmul.f32 %v3633, %v3649
        %v3651 = vrcp.pop %v3642
        %v3652 = vmul.f32 %v3634, %v3651
        %v3653 = vrcp.pop %v3645
        %v3654 = vmul.f32 %v3635, %v3653
        %v3655 = vrcp.pop %v3648
        %v3656 = vmul.f32 %v3636, %v3655
        %v3657 = vpack.c.bf16 %v3652, %v3650
        %v3658 = vpack.c.bf16 %v3656, %v3654
        %3661 = vrot.lane.b32.xlu0 %v3472, 112
        %v3662 = vpop.permute.xlu0 %3661
        %3663 = vrot.lane.b32.xlu0 %v3473, 112
        %v3664 = vpop.permute.xlu0 %3663
        %v3667 = vsel %vm1956, %v3657, 0
        %v3670 = vsel %vm1956, %v3658, 0
        %v3673 = vand.u32 %v3664, %v2019
        %3675 = vmatprep.subr.bf16.mxu0 0
        %3676 = vmatpush1.bf16.msra.mxu0 %v3662
        %3677 = vmatprep.subr.bf16.mxu0 0
        %3678 = vmatpush1.bf16.msra.mxu0 %v3673
        %3679 = vmatprep.subr.bf16.mxu0 0
        %3680 = vmatpush1.bf16.msra.mxu0 0
        %3681 = vmatprep.subr.bf16.mxu0 0
        %3682 = vmatpush1.bf16.msra.mxu0 0
        %3683 = vmatprep.subr.bf16.mxu0 0
        %3684 = vmatpush1.bf16.msra.mxu0 0
        %3685 = vmatprep.subr.bf16.mxu0 0
        %3686 = vmatpush1.bf16.msra.mxu0 0
        %3687 = vmatprep.subr.bf16.mxu0 0
        %3688 = vmatpush1.bf16.msra.mxu0 0
        %3689 = vmatprep.subr.bf16.mxu0 0
        %3690 = vmatpush1.bf16.msra.mxu0 0
        %3691 = vmatprep.subr.bf16.mxu0 0
        %3692 = vmatpush1.bf16.msra.mxu0 0
        %3693 = vmatprep.subr.bf16.mxu0 0
        %3694 = vmatpush1.bf16.msra.mxu0 0
        %3695 = vmatprep.subr.bf16.mxu0 0
        %3696 = vmatpush1.bf16.msra.mxu0 0
        %3697 = vmatprep.subr.bf16.mxu0 0
        %3698 = vmatpush1.bf16.msra.mxu0 0
        %3699 = vmatprep.subr.bf16.mxu0 0
        %3700 = vmatpush1.bf16.msra.mxu0 0
        %3701 = vmatprep.subr.bf16.mxu0 0
        %3702 = vmatpush1.bf16.msra.mxu0 0
        %3703 = vmatprep.subr.bf16.mxu0 0
        %3704 = vmatpush1.bf16.msra.mxu0 0
        %3705 = vmatprep.subr.bf16.mxu0 0
        %3706 = vmatpush1.bf16.msra.mxu0 0
        %3707 = vmatprep.mubr.bf16.mxu0 0
        %3708 = vmatmul.mubr.bf16.gmra.mrb[0].mxu0 %v3667
        %v3709 = vpop.f32.mrb[0].mxu0
        %v3710 = vadd.f32 0.0, %v3709
        %v3711 = vpop.f32.mrb[0].mxu0
        %v3712 = vpop.f32.mrb[0].mxu0
        %v3713 = vadd.f32 0.0, %v3712
        %v3714 = vpop.f32.mrb[0].mxu0
        %3715 = vmatprep.mubr.bf16.mxu0 0
        %3716 = vmatmul.mubr.bf16.gmra.mrb[0].mxu0 %v3670
        %v3717 = vpop.f32.mrb[0].mxu0
        %v3718 = vadd.f32 0.0, %v3717
        %v3719 = vpop.f32.mrb[0].mxu0
        %v3720 = vpop.f32.mrb[0].mxu0
        %v3721 = vadd.f32 0.0, %v3720
        %v3722 = vpop.f32.mrb[0].mxu0
        %3723 = vdwg.mxu0
        %3724 = vrot.lane.b32.xlu0 %v3345, 96
        %v3725 = vpop.permute.xlu0 %3724
        %3726 = vrot.lane.b32.xlu0 %v3346, 96
        %v3727 = vpop.permute.xlu0 %3726
        %3728 = vrot.lane.b32.xlu0 %v3345, 32
        %v3729 = vpop.permute.xlu0 %3728
        %3730 = vrot.lane.b32.xlu0 %v3346, 32
        %v3731 = vpop.permute.xlu0 %3730
        %v3733 = vsel %vm1878, %v3725, 0
        %v3736 = vsel %vm1878, %v3727, 0
        %v3739 = vsel %vm1878, %v3729, 0
        %v3742 = vsel %vm1878, %v3731, 0
        %3744 = vmatprep.subr.bf16.mxu0 0
        %3745 = vmatpush1.bf16.xpose.msra.mxu0 %v3739
        %3746 = vmatprep.subr.bf16.mxu0 0
        %3747 = vmatpush1.bf16.xpose.msra.mxu0 %v3742
        %3748 = vmatprep.subr.bf16.mxu0 0
        %3749 = vmatpush1.bf16.xpose.msra.mxu0 0
        %3750 = vmatprep.subr.bf16.mxu0 0
        %3751 = vmatpush1.bf16.xpose.msra.mxu0 0
        %3752 = vmatprep.subr.bf16.mxu0 0
        %3753 = vmatpush1.bf16.xpose.msra.mxu0 0
        %3754 = vmatprep.subr.bf16.mxu0 0
        %3755 = vmatpush1.bf16.xpose.msra.mxu0 0
        %3756 = vmatprep.subr.bf16.mxu0 0
        %3757 = vmatpush1.bf16.xpose.msra.mxu0 0
        %3758 = vmatprep.subr.bf16.mxu0 0
        %3759 = vmatpush1.bf16.xpose.msra.mxu0 0
        %3760 = vmatprep.subr.bf16.mxu0 0
        %3761 = vmatpush1.bf16.xpose.msra.mxu0 0
        %3762 = vmatprep.subr.bf16.mxu0 0
        %3763 = vmatpush1.bf16.xpose.msra.mxu0 0
        %3764 = vmatprep.subr.bf16.mxu0 0
        %3765 = vmatpush1.bf16.xpose.msra.mxu0 0
        %3766 = vmatprep.subr.bf16.mxu0 0
        %3767 = vmatpush1.bf16.xpose.msra.mxu0 0
        %3768 = vmatprep.subr.bf16.mxu0 0
        %3769 = vmatpush1.bf16.xpose.msra.mxu0 0
        %3770 = vmatprep.subr.bf16.mxu0 0
        %3771 = vmatpush1.bf16.xpose.msra.mxu0 0
        %3772 = vmatprep.subr.bf16.mxu0 0
        %3773 = vmatpush1.bf16.xpose.msra.mxu0 0
        %3774 = vmatprep.subr.bf16.mxu0 0
        %3775 = vmatpush1.bf16.xpose.msra.mxu0 0
        %3776 = vmatprep.mubr.bf16.mxu0 0
        %3777 = vmatmul.mubr.bf16.gmra.mrb[0].mxu0 %v3733
        %v3778 = vpop.f32.mrb[0].mxu0
        %v3779 = vadd.f32 0.0, %v3778
        %v3780 = vpop.f32.mrb[0].mxu0
        %v3781 = vpop.f32.mrb[0].mxu0
        %v3782 = vadd.f32 0.0, %v3781
        %v3783 = vpop.f32.mrb[0].mxu0
        %3784 = vmatprep.mubr.bf16.mxu0 0
        %3785 = vmatmul.mubr.bf16.gmra.mrb[0].mxu0 %v3736
        %v3786 = vpop.f32.mrb[0].mxu0
        %v3787 = vadd.f32 0.0, %v3786
        %v3788 = vpop.f32.mrb[0].mxu0
        %v3789 = vpop.f32.mrb[0].mxu0
        %v3790 = vadd.f32 0.0, %v3789
        %v3791 = vpop.f32.mrb[0].mxu0
        %3792 = vdwg.mxu0
        %v3793 = vmul.f32 %v3779, 0.25
        %v3794 = vmul.f32 %v3782, 0.25
        %v3795 = vmul.f32 %v3787, 0.25
        %v3796 = vmul.f32 %v3790, 0.25
        %v3797 = vsub.f32 %v3793, %v1948
        %v3798 = vsub.f32 %v3794, %v1949
        %v3799 = vsub.f32 %v3795, %v1950
        %v3800 = vsub.f32 %v3796, %v1951
        %v3801 = vsel %vm1956, %v3797, -inf
        %3802 = vmax.xlane.f32.xlu0 %v3801
        %v3803 = vpop.xlane.xlu0 %3802
        %v3804 = vsel %vm1956, %v3798, -inf
        %3805 = vmax.xlane.f32.xlu0 %v3804
        %v3806 = vpop.xlane.xlu0 %3805
        %v3807 = vsel %vm1956, %v3799, -inf
        %3808 = vmax.xlane.f32.xlu0 %v3807
        %v3809 = vpop.xlane.xlu0 %3808
        %v3810 = vsel %vm1966, %v3800, -inf
        %3811 = vmax.xlane.f32.xlu0 %v3810
        %v3812 = vpop.xlane.xlu0 %3811
        %v3813 = vsub.f32 %v3797, %v3803
        %v3814 = vsub.f32 %v3798, %v3806
        %v3815 = vsub.f32 %v3799, %v3809
        %v3816 = vsub.f32 %v3800, %v3812
        %v3817 = vmul.f32 %v3813, 1.442695
        %v3818 = vpow.pop %v3817
        %v3819 = vmul.f32 %v3814, 1.442695
        %v3820 = vpow.pop %v3819
        %v3821 = vmul.f32 %v3815, 1.442695
        %v3822 = vpow.pop %v3821
        %v3823 = vmul.f32 %v3816, 1.442695
        %v3824 = vpow.pop %v3823
        %v3825 = vmul.f32 %v3818, %v1668
        %v3826 = vmul.f32 %v3820, %v1669
        %v3827 = vmul.f32 %v3822, %v1670
        %v3828 = vmul.f32 %v3824, %v1671
        %v3829 = vsel %vm1956, %v3825, 0.0
        %3830 = vadd.xlane.f32.xlu0 %v3829
        %v3831 = vpop.xlane.xlu0 %3830
        %v3832 = vsel %vm1956, %v3826, 0.0
        %3833 = vadd.xlane.f32.xlu0 %v3832
        %v3834 = vpop.xlane.xlu0 %3833
        %v3835 = vsel %vm1956, %v3827, 0.0
        %3836 = vadd.xlane.f32.xlu0 %v3835
        %v3837 = vpop.xlane.xlu0 %3836
        %v3838 = vsel %vm1966, %v3828, 0.0
        %3839 = vadd.xlane.f32.xlu0 %v3838
        %v3840 = vpop.xlane.xlu0 %3839
        %v3841 = vrcp.pop %v3831
        %v3842 = vmul.f32 %v3825, %v3841
        %v3843 = vrcp.pop %v3834
        %v3844 = vmul.f32 %v3826, %v3843
        %v3845 = vrcp.pop %v3837
        %v3846 = vmul.f32 %v3827, %v3845
        %v3847 = vrcp.pop %v3840
        %v3848 = vmul.f32 %v3828, %v3847
        %v3849 = vpack.c.bf16 %v3844, %v3842
        %v3850 = vpack.c.bf16 %v3848, %v3846
        %3851 = vrot.lane.b32.xlu0 %v3472, 96
        %v3852 = vpop.permute.xlu0 %3851
        %3853 = vrot.lane.b32.xlu0 %v3473, 96
        %v3854 = vpop.permute.xlu0 %3853
        %v3857 = vsel %vm1956, %v3849, 0
        %v3860 = vsel %vm1956, %v3850, 0
        %v3863 = vand.u32 %v3854, %v2019
        %3865 = vmatprep.subr.bf16.mxu0 0
        %3866 = vmatpush1.bf16.msra.mxu0 %v3852
        %3867 = vmatprep.subr.bf16.mxu0 0
        %3868 = vmatpush1.bf16.msra.mxu0 %v3863
        %3869 = vmatprep.subr.bf16.mxu0 0
        %3870 = vmatpush1.bf16.msra.mxu0 0
        %3871 = vmatprep.subr.bf16.mxu0 0
        %3872 = vmatpush1.bf16.msra.mxu0 0
        %3873 = vmatprep.subr.bf16.mxu0 0
        %3874 = vmatpush1.bf16.msra.mxu0 0
        %3875 = vmatprep.subr.bf16.mxu0 0
        %3876 = vmatpush1.bf16.msra.mxu0 0
        %3877 = vmatprep.subr.bf16.mxu0 0
        %3878 = vmatpush1.bf16.msra.mxu0 0
        %3879 = vmatprep.subr.bf16.mxu0 0
        %3880 = vmatpush1.bf16.msra.mxu0 0
        %3881 = vmatprep.subr.bf16.mxu0 0
        %3882 = vmatpush1.bf16.msra.mxu0 0
        %3883 = vmatprep.subr.bf16.mxu0 0
        %3884 = vmatpush1.bf16.msra.mxu0 0
        %3885 = vmatprep.subr.bf16.mxu0 0
        %3886 = vmatpush1.bf16.msra.mxu0 0
        %3887 = vmatprep.subr.bf16.mxu0 0
        %3888 = vmatpush1.bf16.msra.mxu0 0
        %3889 = vmatprep.subr.bf16.mxu0 0
        %3890 = vmatpush1.bf16.msra.mxu0 0
        %3891 = vmatprep.subr.bf16.mxu0 0
        %3892 = vmatpush1.bf16.msra.mxu0 0
        %3893 = vmatprep.subr.bf16.mxu0 0
        %3894 = vmatpush1.bf16.msra.mxu0 0
        %3895 = vmatprep.subr.bf16.mxu0 0
        %3896 = vmatpush1.bf16.msra.mxu0 0
        %3897 = vmatprep.mubr.bf16.mxu0 0
        %3898 = vmatmul.mubr.bf16.gmra.mrb[0].mxu0 %v3857
        %v3899 = vpop.f32.mrb[0].mxu0
        %v3900 = vadd.f32 0.0, %v3899
        %v3901 = vpop.f32.mrb[0].mxu0
        %v3902 = vpop.f32.mrb[0].mxu0
        %v3903 = vadd.f32 0.0, %v3902
        %v3904 = vpop.f32.mrb[0].mxu0
        %3905 = vmatprep.mubr.bf16.mxu0 0
        %3906 = vmatmul.mubr.bf16.gmra.mrb[0].mxu0 %v3860
        %v3907 = vpop.f32.mrb[0].mxu0
        %v3908 = vadd.f32 0.0, %v3907
        %v3909 = vpop.f32.mrb[0].mxu0
        %v3910 = vpop.f32.mrb[0].mxu0
        %v3911 = vadd.f32 0.0, %v3910
        %v3912 = vpop.f32.mrb[0].mxu0
        %3913 = vdwg.mxu0
        %3914 = vrot.lane.b32.xlu0 %v3345, 80
        %v3915 = vpop.permute.xlu0 %3914
        %3916 = vrot.lane.b32.xlu0 %v3346, 80
        %v3917 = vpop.permute.xlu0 %3916
        %3918 = vrot.lane.b32.xlu0 %v3345, 16
        %v3919 = vpop.permute.xlu0 %3918
        %3920 = vrot.lane.b32.xlu0 %v3346, 16
        %v3921 = vpop.permute.xlu0 %3920
        %v3923 = vsel %vm1878, %v3915, 0
        %v3926 = vsel %vm1878, %v3917, 0
        %v3929 = vsel %vm1878, %v3919, 0
        %v3932 = vsel %vm1878, %v3921, 0
        %3934 = vmatprep.subr.bf16.mxu0 0
        %3935 = vmatpush1.bf16.xpose.msra.mxu0 %v3929
        %3936 = vmatprep.subr.bf16.mxu0 0
        %3937 = vmatpush1.bf16.xpose.msra.mxu0 %v3932
        %3938 = vmatprep.subr.bf16.mxu0 0
        %3939 = vmatpush1.bf16.xpose.msra.mxu0 0
        %3940 = vmatprep.subr.bf16.mxu0 0
        %3941 = vmatpush1.bf16.xpose.msra.mxu0 0
        %3942 = vmatprep.subr.bf16.mxu0 0
        %3943 = vmatpush1.bf16.xpose.msra.mxu0 0
        %3944 = vmatprep.subr.bf16.mxu0 0
        %3945 = vmatpush1.bf16.xpose.msra.mxu0 0
        %3946 = vmatprep.subr.bf16.mxu0 0
        %3947 = vmatpush1.bf16.xpose.msra.mxu0 0
        %3948 = vmatprep.subr.bf16.mxu0 0
        %3949 = vmatpush1.bf16.xpose.msra.mxu0 0
        %3950 = vmatprep.subr.bf16.mxu0 0
        %3951 = vmatpush1.bf16.xpose.msra.mxu0 0
        %3952 = vmatprep.subr.bf16.mxu0 0
        %3953 = vmatpush1.bf16.xpose.msra.mxu0 0
        %3954 = vmatprep.subr.bf16.mxu0 0
        %3955 = vmatpush1.bf16.xpose.msra.mxu0 0
        %3956 = vmatprep.subr.bf16.mxu0 0
        %3957 = vmatpush1.bf16.xpose.msra.mxu0 0
        %3958 = vmatprep.subr.bf16.mxu0 0
        %3959 = vmatpush1.bf16.xpose.msra.mxu0 0
        %3960 = vmatprep.subr.bf16.mxu0 0
        %3961 = vmatpush1.bf16.xpose.msra.mxu0 0
        %3962 = vmatprep.subr.bf16.mxu0 0
        %3963 = vmatpush1.bf16.xpose.msra.mxu0 0
        %3964 = vmatprep.subr.bf16.mxu0 0
        %3965 = vmatpush1.bf16.xpose.msra.mxu0 0
        %3966 = vmatprep.mubr.bf16.mxu0 0
        %3967 = vmatmul.mubr.bf16.gmra.mrb[0].mxu0 %v3923
        %v3968 = vpop.f32.mrb[0].mxu0
        %v3969 = vadd.f32 0.0, %v3968
        %v3970 = vpop.f32.mrb[0].mxu0
        %v3971 = vpop.f32.mrb[0].mxu0
        %v3972 = vadd.f32 0.0, %v3971
        %v3973 = vpop.f32.mrb[0].mxu0
        %3974 = vmatprep.mubr.bf16.mxu0 0
        %3975 = vmatmul.mubr.bf16.gmra.mrb[0].mxu0 %v3926
        %v3976 = vpop.f32.mrb[0].mxu0
        %v3977 = vadd.f32 0.0, %v3976
        %v3978 = vpop.f32.mrb[0].mxu0
        %v3979 = vpop.f32.mrb[0].mxu0
        %v3980 = vadd.f32 0.0, %v3979
        %v3981 = vpop.f32.mrb[0].mxu0
        %3982 = vdwg.mxu0
        %v3983 = vmul.f32 %v3969, 0.25
        %v3984 = vmul.f32 %v3972, 0.25
        %v3985 = vmul.f32 %v3977, 0.25
        %v3986 = vmul.f32 %v3980, 0.25
        %v3987 = vsub.f32 %v3983, %v1948
        %v3988 = vsub.f32 %v3984, %v1949
        %v3989 = vsub.f32 %v3985, %v1950
        %v3990 = vsub.f32 %v3986, %v1951
        %v3991 = vsel %vm1956, %v3987, -inf
        %3992 = vmax.xlane.f32.xlu0 %v3991
        %v3993 = vpop.xlane.xlu0 %3992
        %v3994 = vsel %vm1956, %v3988, -inf
        %3995 = vmax.xlane.f32.xlu0 %v3994
        %v3996 = vpop.xlane.xlu0 %3995
        %v3997 = vsel %vm1956, %v3989, -inf
        %3998 = vmax.xlane.f32.xlu0 %v3997
        %v3999 = vpop.xlane.xlu0 %3998
        %v4000 = vsel %vm1966, %v3990, -inf
        %4001 = vmax.xlane.f32.xlu0 %v4000
        %v4002 = vpop.xlane.xlu0 %4001
        %v4003 = vsub.f32 %v3987, %v3993
        %v4004 = vsub.f32 %v3988, %v3996
        %v4005 = vsub.f32 %v3989, %v3999
        %v4006 = vsub.f32 %v3990, %v4002
        %v4007 = vmul.f32 %v4003, 1.442695
        %v4008 = vpow.pop %v4007
        %v4009 = vmul.f32 %v4004, 1.442695
        %v4010 = vpow.pop %v4009
        %v4011 = vmul.f32 %v4005, 1.442695
        %v4012 = vpow.pop %v4011
        %v4013 = vmul.f32 %v4006, 1.442695
        %v4014 = vpow.pop %v4013
        %v4015 = vmul.f32 %v4008, %v1668
        %v4016 = vmul.f32 %v4010, %v1669
        %v4017 = vmul.f32 %v4012, %v1670
        %v4018 = vmul.f32 %v4014, %v1671
        %v4019 = vsel %vm1956, %v4015, 0.0
        %4020 = vadd.xlane.f32.xlu0 %v4019
        %v4021 = vpop.xlane.xlu0 %4020
        %v4022 = vsel %vm1956, %v4016, 0.0
        %4023 = vadd.xlane.f32.xlu0 %v4022
        %v4024 = vpop.xlane.xlu0 %4023
        %v4025 = vsel %vm1956, %v4017, 0.0
        %4026 = vadd.xlane.f32.xlu0 %v4025
        %v4027 = vpop.xlane.xlu0 %4026
        %v4028 = vsel %vm1966, %v4018, 0.0
        %4029 = vadd.xlane.f32.xlu0 %v4028
        %v4030 = vpop.xlane.xlu0 %4029
        %v4031 = vrcp.pop %v4021
        %v4032 = vmul.f32 %v4015, %v4031
        %v4033 = vrcp.pop %v4024
        %v4034 = vmul.f32 %v4016, %v4033
        %v4035 = vrcp.pop %v4027
        %v4036 = vmul.f32 %v4017, %v4035
        %v4037 = vrcp.pop %v4030
        %v4038 = vmul.f32 %v4018, %v4037
        %v4039 = vpack.c.bf16 %v4034, %v4032
        %v4040 = vpack.c.bf16 %v4038, %v4036
        %4041 = vrot.lane.b32.xlu0 %v3472, 80
        %v4042 = vpop.permute.xlu0 %4041
        %4043 = vrot.lane.b32.xlu0 %v3473, 80
        %v4044 = vpop.permute.xlu0 %4043
        %v4047 = vsel %vm1956, %v4039, 0
        %v4050 = vsel %vm1956, %v4040, 0
        %v4053 = vand.u32 %v4044, %v2019
        %4055 = vmatprep.subr.bf16.mxu0 0
        %4056 = vmatpush1.bf16.msra.mxu0 %v4042
        %4057 = vmatprep.subr.bf16.mxu0 0
        %4058 = vmatpush1.bf16.msra.mxu0 %v4053
        %4059 = vmatprep.subr.bf16.mxu0 0
        %4060 = vmatpush1.bf16.msra.mxu0 0
        %4061 = vmatprep.subr.bf16.mxu0 0
        %4062 = vmatpush1.bf16.msra.mxu0 0
        %4063 = vmatprep.subr.bf16.mxu0 0
        %4064 = vmatpush1.bf16.msra.mxu0 0
        %4065 = vmatprep.subr.bf16.mxu0 0
        %4066 = vmatpush1.bf16.msra.mxu0 0
        %4067 = vmatprep.subr.bf16.mxu0 0
        %4068 = vmatpush1.bf16.msra.mxu0 0
        %4069 = vmatprep.subr.bf16.mxu0 0
        %4070 = vmatpush1.bf16.msra.mxu0 0
        %4071 = vmatprep.subr.bf16.mxu0 0
        %4072 = vmatpush1.bf16.msra.mxu0 0
        %4073 = vmatprep.subr.bf16.mxu0 0
        %4074 = vmatpush1.bf16.msra.mxu0 0
        %4075 = vmatprep.subr.bf16.mxu0 0
        %4076 = vmatpush1.bf16.msra.mxu0 0
        %4077 = vmatprep.subr.bf16.mxu0 0
        %4078 = vmatpush1.bf16.msra.mxu0 0
        %4079 = vmatprep.subr.bf16.mxu0 0
        %4080 = vmatpush1.bf16.msra.mxu0 0
        %4081 = vmatprep.subr.bf16.mxu0 0
        %4082 = vmatpush1.bf16.msra.mxu0 0
        %4083 = vmatprep.subr.bf16.mxu0 0
        %4084 = vmatpush1.bf16.msra.mxu0 0
        %4085 = vmatprep.subr.bf16.mxu0 0
        %4086 = vmatpush1.bf16.msra.mxu0 0
        %4087 = vmatprep.mubr.bf16.mxu0 0
        %4088 = vmatmul.mubr.bf16.gmra.mrb[0].mxu0 %v4047
        %v4089 = vpop.f32.mrb[0].mxu0
        %v4090 = vadd.f32 0.0, %v4089
        %v4091 = vpop.f32.mrb[0].mxu0
        %v4092 = vpop.f32.mrb[0].mxu0
        %v4093 = vadd.f32 0.0, %v4092
        %v4094 = vpop.f32.mrb[0].mxu0
        %4095 = vmatprep.mubr.bf16.mxu0 0
        %4096 = vmatmul.mubr.bf16.gmra.mrb[0].mxu0 %v4050
        %v4097 = vpop.f32.mrb[0].mxu0
        %v4098 = vadd.f32 0.0, %v4097
        %v4099 = vpop.f32.mrb[0].mxu0
        %v4100 = vpop.f32.mrb[0].mxu0
        %v4101 = vadd.f32 0.0, %v4100
        %v4102 = vpop.f32.mrb[0].mxu0
        %4103 = vdwg.mxu0
        %4108 = vrot.lane.b32.xlu0 %v3710, 16
        %v4109 = vpop.permute.xlu0 %4108
        %4110 = vrot.lane.b32.xlu0 %v3713, 16
        %v4111 = vpop.permute.xlu0 %4110
        %4112 = vrot.lane.b32.xlu0 %v3718, 16
        %v4113 = vpop.permute.xlu0 %4112
        %4114 = vrot.lane.b32.xlu0 %v3721, 16
        %v4115 = vpop.permute.xlu0 %4114
        %4124 = vrot.lane.b32.xlu0 %v3900, 32
        %v4125 = vpop.permute.xlu0 %4124
        %4126 = vrot.lane.b32.xlu0 %v3903, 32
        %v4127 = vpop.permute.xlu0 %4126
        %4128 = vrot.lane.b32.xlu0 %v3908, 32
        %v4129 = vpop.permute.xlu0 %4128
        %4130 = vrot.lane.b32.xlu0 %v3911, 32
        %v4131 = vpop.permute.xlu0 %4130
        %4140 = vrot.lane.b32.xlu0 %v4090, 48
        %v4141 = vpop.permute.xlu0 %4140
        %4142 = vrot.lane.b32.xlu0 %v4093, 48
        %v4143 = vpop.permute.xlu0 %4142
        %4144 = vrot.lane.b32.xlu0 %v4098, 48
        %v4145 = vpop.permute.xlu0 %4144
        %4146 = vrot.lane.b32.xlu0 %v4101, 48
        %v4147 = vpop.permute.xlu0 %4146
        %v4152 = vsel %vm1878, %v3518, %v4109
        %v4153 = vsel %vm1878, %v3521, %v4111
        %v4154 = vsel %vm1878, %v3526, %v4113
        %v4155 = vsel %vm1878, %v3529, %v4115
        %v4156 = vsel %vm2696, %v4152, %v4125
        %v4157 = vsel %vm2696, %v4153, %v4127
        %v4158 = vsel %vm2696, %v4154, %v4129
        %v4159 = vsel %vm2696, %v4155, %v4131
        %v4160 = vsel %vm2701, %v4156, %v4141
        %v4161 = vsel %vm2701, %v4157, %v4143
        %v4162 = vsel %vm2701, %v4158, %v4145
        %v4163 = vsel %vm2701, %v4159, %v4147
        %s4164 = scalar_lea.vmem %s19, 32
        %v4165 = vld [vmem:[%s4164] sm:$0xf]
        %v4166 = vld [vmem:[%s4164 + $0x4] sm:$0xf]
        %v4167 = vld [vmem:[%s4164 + $0x8] sm:$0xf]
        %v4168 = vld [vmem:[%s4164 + $0xc] sm:$0xf]
        %v4169 = vld [vmem:[%s4164 + $0x10] sm:$0xf]
        %v4170 = vld [vmem:[%s4164 + $0x14] sm:$0xf]
        %v4171 = vld [vmem:[%s4164 + $0x18] sm:$0xf]
        %v4172 = vld [vmem:[%s4164 + $0x1c] sm:$0xf]
        %v4173 = vpack.c.bf16 %v4161, %v4160
        %v4174 = vpack.c.bf16 %v4163, %v4162
        %v4183 = vunpack.c.l.b16 %v4165
        %v4184 = vunpack.c.l.b16 %v4166
        %v4185 = vunpack.c.l.b16 %v4167
        %v4186 = vunpack.c.l.b16 %v4168
        %v4187 = vunpack.c.l.b16 %v4169
        %v4188 = vunpack.c.l.b16 %v4170
        %v4189 = vunpack.c.l.b16 %v4171
        %v4190 = vunpack.c.l.b16 %v4172
        %v4191 = vpack.c.b16 %v4184, %v4183
        %v4192 = vpack.c.b16 %v4186, %v4185
        %v4193 = vpack.c.b16 %v4188, %v4187
        %v4194 = vpack.c.b16 %v4190, %v4189
        %v4200 = vsel %vm1674, %v4173, 0
        %v4203 = vsel %vm1674, %v4174, 0
        %4205 = vmatprep.subr.bf16.mxu0 0
        %4206 = vmatpush1.bf16.msra.mxu0 %v4191
        %4207 = vmatprep.subr.bf16.mxu0 0
        %4208 = vmatpush1.bf16.msra.mxu0 %v4192
        %4209 = vmatprep.subr.bf16.mxu0 0
        %4210 = vmatpush1.bf16.msra.mxu0 %v4193
        %4211 = vmatprep.subr.bf16.mxu0 0
        %4212 = vmatpush1.bf16.msra.mxu0 %v4194
        %4213 = vmatprep.subr.bf16.mxu0 0
        %4214 = vmatpush1.bf16.msra.mxu0 0
        %4215 = vmatprep.subr.bf16.mxu0 0
        %4216 = vmatpush1.bf16.msra.mxu0 0
        %4217 = vmatprep.subr.bf16.mxu0 0
        %4218 = vmatpush1.bf16.msra.mxu0 0
        %4219 = vmatprep.subr.bf16.mxu0 0
        %4220 = vmatpush1.bf16.msra.mxu0 0
        %4221 = vmatprep.subr.bf16.mxu0 0
        %4222 = vmatpush1.bf16.msra.mxu0 0
        %4223 = vmatprep.subr.bf16.mxu0 0
        %4224 = vmatpush1.bf16.msra.mxu0 0
        %4225 = vmatprep.subr.bf16.mxu0 0
        %4226 = vmatpush1.bf16.msra.mxu0 0
        %4227 = vmatprep.subr.bf16.mxu0 0
        %4228 = vmatpush1.bf16.msra.mxu0 0
        %4229 = vmatprep.subr.bf16.mxu0 0
        %4230 = vmatpush1.bf16.msra.mxu0 0
        %4231 = vmatprep.subr.bf16.mxu0 0
        %4232 = vmatpush1.bf16.msra.mxu0 0
        %4233 = vmatprep.subr.bf16.mxu0 0
        %4234 = vmatpush1.bf16.msra.mxu0 0
        %4235 = vmatprep.subr.bf16.mxu0 0
        %4236 = vmatpush1.bf16.msra.mxu0 0
        %4237 = vmatprep.mubr.bf16.mxu0 0
        %4238 = vmatmul.mubr.bf16.gmra.mrb[0].mxu0 %v4200
        %v4239 = vpop.f32.mrb[0].mxu0
        %v4240 = vadd.f32 0.0, %v4239
        %v4241 = vpop.f32.mrb[0].mxu0
        %v4242 = vpop.f32.mrb[0].mxu0
        %v4243 = vadd.f32 0.0, %v4242
        %v4244 = vpop.f32.mrb[0].mxu0
        %4245 = vmatprep.mubr.bf16.mxu0 0
        %4246 = vmatmul.mubr.bf16.gmra.mrb[0].mxu0 %v4203
        %v4247 = vpop.f32.mrb[0].mxu0
        %v4248 = vadd.f32 0.0, %v4247
        %v4249 = vpop.f32.mrb[0].mxu0
        %v4250 = vpop.f32.mrb[0].mxu0
        %v4251 = vadd.f32 0.0, %v4250
        %v4252 = vpop.f32.mrb[0].mxu0
        %4253 = vdwg.mxu0
        %v4254 = vadd.f32 %v3142, %v4240
        %v4255 = vadd.f32 %v3143, %v4243
        %v4256 = vadd.f32 %v3144, %v4248
        %v4257 = vadd.f32 %v3145, %v4251
        %s4258 = scalar_lea.vmem %s21, 1
        %v4259 = vld [vmem:[%s4258] sm:$0x1]
        %v4261 = vlaneseq
        %v4262 = vshrl.u32 %v4261, 7
        %v4263 = vsub.s32 0, %v4262
        %v4264 = vrot.slane %v4259, %v4263
        %v4266 = vadd.f32 %v4254, %v4264
        %v4267 = vadd.f32 %v4255, %v4264
        %v4268 = vadd.f32 %v4256, %v4264
        %v4269 = vadd.f32 %v4257, %v4264
        %s4270 = scalar_lea.vmem %s23, 1
        %v4271 = vld [vmem:[%s4270] sm:$0x1]
        %s4272 = scalar_lea.vmem %s25, 1
        %v4273 = vld [vmem:[%s4272] sm:$0x1]
        %v4274 = vsel %vm1674, %v4266, 0.0
        %4275 = vadd.xlane.f32.xlu0 %v4274
        %v4276 = vpop.xlane.xlu0 %4275
        %v4277 = vsel %vm1674, %v4267, 0.0
        %4278 = vadd.xlane.f32.xlu0 %v4277
        %v4279 = vpop.xlane.xlu0 %4278
        %v4280 = vsel %vm1674, %v4268, 0.0
        %4281 = vadd.xlane.f32.xlu0 %v4280
        %v4282 = vpop.xlane.xlu0 %4281
        %v4283 = vsel %vm1684, %v4269, 0.0
        %4284 = vadd.xlane.f32.xlu0 %v4283
        %v4285 = vpop.xlane.xlu0 %4284
        %v4286 = vmul.f32 %v4276, %v1688
        %v4287 = vmul.f32 %v4279, %v1688
        %v4288 = vmul.f32 %v4282, %v1688
        %v4289 = vmul.f32 %v4285, %v1688
        %v4290 = vsub.f32 %v4266, %v4286
        %v4291 = vsub.f32 %v4267, %v4287
        %v4292 = vsub.f32 %v4268, %v4288
        %v4293 = vsub.f32 %v4269, %v4289
        %v4294 = vmul.f32 %v4290, %v4290
        %v4295 = vmul.f32 %v4291, %v4291
        %v4296 = vmul.f32 %v4292, %v4292
        %v4297 = vmul.f32 %v4293, %v4293
        %v4298 = vsel %vm1674, %v4294, 0.0
        %4299 = vadd.xlane.f32.xlu0 %v4298
        %v4300 = vpop.xlane.xlu0 %4299
        %v4301 = vsel %vm1674, %v4295, 0.0
        %4302 = vadd.xlane.f32.xlu0 %v4301
        %v4303 = vpop.xlane.xlu0 %4302
        %v4304 = vsel %vm1674, %v4296, 0.0
        %4305 = vadd.xlane.f32.xlu0 %v4304
        %v4306 = vpop.xlane.xlu0 %4305
        %v4307 = vsel %vm1684, %v4297, 0.0
        %4308 = vadd.xlane.f32.xlu0 %v4307
        %v4309 = vpop.xlane.xlu0 %4308
        %v4310 = vmul.f32 %v4300, %v1688
        %v4311 = vmul.f32 %v4303, %v1688
        %v4312 = vmul.f32 %v4306, %v1688
        %v4313 = vmul.f32 %v4309, %v1688
        %v4314 = vadd.f32 %v4310, 1e-06
        %v4315 = vadd.f32 %v4311, 1e-06
        %v4316 = vadd.f32 %v4312, 1e-06
        %v4317 = vadd.f32 %v4313, 1e-06
        %v4318 = vrsqrt.pop %v4314
        %v4319 = vrsqrt.pop %v4315
        %v4320 = vrsqrt.pop %v4316
        %v4321 = vrsqrt.pop %v4317
        %v4322 = vmul.f32 %v4290, %v4318
        %v4323 = vmul.f32 %v4291, %v4319
        %v4324 = vmul.f32 %v4292, %v4320
        %v4325 = vmul.f32 %v4293, %v4321
        %v4327 = vlaneseq
        %v4328 = vshrl.u32 %v4327, 7
        %v4329 = vsub.s32 0, %v4328
        %v4330 = vrot.slane %v4271, %v4329
        %v4332 = vmul.f32 %v4322, %v4330
        %v4333 = vmul.f32 %v4323, %v4330
        %v4334 = vmul.f32 %v4324, %v4330
        %v4335 = vmul.f32 %v4325, %v4330
        %v4337 = vlaneseq
        %v4338 = vshrl.u32 %v4337, 7
        %v4339 = vsub.s32 0, %v4338
        %v4340 = vrot.slane %v4273, %v4339
        %v4342 = vadd.f32 %v4332, %v4340
        %v4343 = vadd.f32 %v4333, %v4340
        %v4344 = vadd.f32 %v4334, %v4340
        %v4345 = vadd.f32 %v4335, %v4340
        %s4346 = scalar_lea.vmem %s27, 32
        %v4347 = vld [vmem:[%s4346] sm:$0xf]
        %v4348 = vld [vmem:[%s4346 + $0x4] sm:$0xf]
        %v4349 = vld [vmem:[%s4346 + $0x8] sm:$0xf]
        %v4350 = vld [vmem:[%s4346 + $0xc] sm:$0xf]
        %v4351 = vld [vmem:[%s4346 + $0x10] sm:$0xf]
        %v4352 = vld [vmem:[%s4346 + $0x14] sm:$0xf]
        %v4353 = vld [vmem:[%s4346 + $0x18] sm:$0xf]
        %v4354 = vld [vmem:[%s4346 + $0x1c] sm:$0xf]
        %v4355 = vpack.c.bf16 %v4343, %v4342
        %v4356 = vpack.c.bf16 %v4345, %v4344
        %s4357 = scalar_lea.vmem %s29, 1
        %v4358 = vld [vmem:[%s4357] sm:$0x1]
        %v4360 = vlaneseq
        %v4361 = vshrl.u32 %v4360, 7
        %v4362 = vsub.s32 0, %v4361
        %v4363 = vrot.slane %v4358, %v4362
        %v4373 = vunpack.c.l.b16 %v4347
        %v4374 = vunpack.c.l.b16 %v4348
        %v4375 = vunpack.c.l.b16 %v4349
        %v4376 = vunpack.c.l.b16 %v4350
        %v4377 = vunpack.c.l.b16 %v4351
        %v4378 = vunpack.c.l.b16 %v4352
        %v4379 = vunpack.c.l.b16 %v4353
        %v4380 = vunpack.c.l.b16 %v4354
        %v4381 = vpack.c.b16 %v4374, %v4373
        %v4382 = vpack.c.b16 %v4376, %v4375
        %v4383 = vpack.c.b16 %v4378, %v4377
        %v4384 = vpack.c.b16 %v4380, %v4379
        %v4390 = vsel %vm1674, %v4355, 0
        %v4393 = vsel %vm1674, %v4356, 0
        %4395 = vmatprep.subr.bf16.mxu0 0
        %4396 = vmatpush1.bf16.msra.mxu0 %v4381
        %4397 = vmatprep.subr.bf16.mxu0 0
        %4398 = vmatpush1.bf16.msra.mxu0 %v4382
        %4399 = vmatprep.subr.bf16.mxu0 0
        %4400 = vmatpush1.bf16.msra.mxu0 %v4383
        %4401 = vmatprep.subr.bf16.mxu0 0
        %4402 = vmatpush1.bf16.msra.mxu0 %v4384
        %4403 = vmatprep.subr.bf16.mxu0 0
        %4404 = vmatpush1.bf16.msra.mxu0 0
        %4405 = vmatprep.subr.bf16.mxu0 0
        %4406 = vmatpush1.bf16.msra.mxu0 0
        %4407 = vmatprep.subr.bf16.mxu0 0
        %4408 = vmatpush1.bf16.msra.mxu0 0
        %4409 = vmatprep.subr.bf16.mxu0 0
        %4410 = vmatpush1.bf16.msra.mxu0 0
        %4411 = vmatprep.subr.bf16.mxu0 0
        %4412 = vmatpush1.bf16.msra.mxu0 0
        %4413 = vmatprep.subr.bf16.mxu0 0
        %4414 = vmatpush1.bf16.msra.mxu0 0
        %4415 = vmatprep.subr.bf16.mxu0 0
        %4416 = vmatpush1.bf16.msra.mxu0 0
        %4417 = vmatprep.subr.bf16.mxu0 0
        %4418 = vmatpush1.bf16.msra.mxu0 0
        %4419 = vmatprep.subr.bf16.mxu0 0
        %4420 = vmatpush1.bf16.msra.mxu0 0
        %4421 = vmatprep.subr.bf16.mxu0 0
        %4422 = vmatpush1.bf16.msra.mxu0 0
        %4423 = vmatprep.subr.bf16.mxu0 0
        %4424 = vmatpush1.bf16.msra.mxu0 0
        %4425 = vmatprep.subr.bf16.mxu0 0
        %4426 = vmatpush1.bf16.msra.mxu0 0
        %4427 = vmatprep.mubr.bf16.mxu0 0
        %4428 = vmatmul.mubr.bf16.gmra.mrb[0].mxu0 %v4390
        %v4429 = vpop.f32.mrb[0].mxu0
        %v4430 = vadd.f32 %v4363, %v4429
        %v4431 = vpop.f32.mrb[0].mxu0
        %v4432 = vpop.f32.mrb[0].mxu0
        %v4433 = vadd.f32 %v4363, %v4432
        %v4434 = vpop.f32.mrb[0].mxu0
        %4435 = vmatprep.mubr.bf16.mxu0 0
        %4436 = vmatmul.mubr.bf16.gmra.mrb[0].mxu0 %v4393
        %v4437 = vpop.f32.mrb[0].mxu0
        %v4438 = vadd.f32 %v4363, %v4437
        %v4439 = vpop.f32.mrb[0].mxu0
        %v4440 = vpop.f32.mrb[0].mxu0
        %v4441 = vadd.f32 %v4363, %v4440
        %v4442 = vpop.f32.mrb[0].mxu0
        %4443 = vdwg.mxu0
        %v4444 = vmul.f32 %v4430, %v4430
        %v4445 = vmul.f32 %v4433, %v4433
        %v4446 = vmul.f32 %v4438, %v4438
        %v4447 = vmul.f32 %v4441, %v4441
        %v4448 = vmul.f32 %v4430, %v4444
        %v4449 = vmul.f32 %v4433, %v4445
        %v4450 = vmul.f32 %v4438, %v4446
        %v4451 = vmul.f32 %v4441, %v4447
        %v4452 = vmul.f32 %v4448, 0.044715
        %v4453 = vmul.f32 %v4449, 0.044715
        %v4454 = vmul.f32 %v4450, 0.044715
        %v4455 = vmul.f32 %v4451, 0.044715
        %v4456 = vadd.f32 %v4430, %v4452
        %v4457 = vadd.f32 %v4433, %v4453
        %v4458 = vadd.f32 %v4438, %v4454
        %v4459 = vadd.f32 %v4441, %v4455
        %v4460 = vmul.f32 %v4456, 0.7978846
        %v4461 = vmul.f32 %v4457, 0.7978846
        %v4462 = vmul.f32 %v4458, 0.7978846
        %v4463 = vmul.f32 %v4459, 0.7978846
        %v4464 = vtanh.pop %v4460
        %v4465 = vtanh.pop %v4461
        %v4466 = vtanh.pop %v4462
        %v4467 = vtanh.pop %v4463
        %v4468 = vadd.f32 %v4464, 1.0
        %v4469 = vadd.f32 %v4465, 1.0
        %v4470 = vadd.f32 %v4466, 1.0
        %v4471 = vadd.f32 %v4467, 1.0
        %v4472 = vmul.f32 %v4468, 0.5
        %v4473 = vmul.f32 %v4469, 0.5
        %v4474 = vmul.f32 %v4470, 0.5
        %v4475 = vmul.f32 %v4471, 0.5
        %v4476 = vmul.f32 %v4430, %v4472
        %v4477 = vmul.f32 %v4433, %v4473
        %v4478 = vmul.f32 %v4438, %v4474
        %v4479 = vmul.f32 %v4441, %v4475
        %s4480 = scalar_lea.vmem %s31, 64
        %v4481 = vld [vmem:[%s4480] sm:$0xf]
        %v4482 = vld [vmem:[%s4480 + $0x4] sm:$0xf]
        %v4483 = vld [vmem:[%s4480 + $0x8] sm:$0xf]
        %v4484 = vld [vmem:[%s4480 + $0xc] sm:$0xf]
        %v4485 = vld [vmem:[%s4480 + $0x10] sm:$0xf]
        %v4486 = vld [vmem:[%s4480 + $0x14] sm:$0xf]
        %v4487 = vld [vmem:[%s4480 + $0x18] sm:$0xf]
        %v4488 = vld [vmem:[%s4480 + $0x1c] sm:$0xf]
        %v4489 = vld [vmem:[%s4480 + $0x20] sm:$0xf]
        %v4490 = vld [vmem:[%s4480 + $0x24] sm:$0xf]
        %v4491 = vld [vmem:[%s4480 + $0x28] sm:$0xf]
        %v4492 = vld [vmem:[%s4480 + $0x2c] sm:$0xf]
        %v4493 = vld [vmem:[%s4480 + $0x30] sm:$0xf]
        %v4494 = vld [vmem:[%s4480 + $0x34] sm:$0xf]
        %v4495 = vld [vmem:[%s4480 + $0x38] sm:$0xf]
        %v4496 = vld [vmem:[%s4480 + $0x3c] sm:$0xf]
        %v4497 = vpack.c.bf16 %v4477, %v4476
        %v4498 = vpack.c.bf16 %v4479, %v4478
        %v4515 = vunpack.c.l.b16 %v4481
        %v4516 = vunpack.c.l.b16 %v4482
        %v4517 = vunpack.c.l.b16 %v4483
        %v4518 = vunpack.c.l.b16 %v4484
        %v4519 = vunpack.c.l.b16 %v4485
        %v4520 = vunpack.c.l.b16 %v4486
        %v4521 = vunpack.c.l.b16 %v4487
        %v4522 = vunpack.c.l.b16 %v4488
        %v4523 = vunpack.c.l.b16 %v4489
        %v4524 = vunpack.c.l.b16 %v4490
        %v4525 = vunpack.c.l.b16 %v4491
        %v4526 = vunpack.c.l.b16 %v4492
        %v4527 = vunpack.c.l.b16 %v4493
        %v4528 = vunpack.c.l.b16 %v4494
        %v4529 = vunpack.c.l.b16 %v4495
        %v4530 = vunpack.c.l.b16 %v4496
        %v4531 = vpack.c.b16 %v4516, %v4515
        %v4532 = vpack.c.b16 %v4518, %v4517
        %v4533 = vpack.c.b16 %v4520, %v4519
        %v4534 = vpack.c.b16 %v4522, %v4521
        %v4535 = vpack.c.b16 %v4524, %v4523
        %v4536 = vpack.c.b16 %v4526, %v4525
        %v4537 = vpack.c.b16 %v4528, %v4527
        %v4538 = vpack.c.b16 %v4530, %v4529
        %4547 = vmatprep.subr.bf16.mxu0 0
        %4548 = vmatpush1.bf16.msra.mxu0 %v4531
        %4549 = vmatprep.subr.bf16.mxu0 0
        %4550 = vmatpush1.bf16.msra.mxu0 %v4532
        %4551 = vmatprep.subr.bf16.mxu0 0
        %4552 = vmatpush1.bf16.msra.mxu0 %v4533
        %4553 = vmatprep.subr.bf16.mxu0 0
        %4554 = vmatpush1.bf16.msra.mxu0 %v4534
        %4555 = vmatprep.subr.bf16.mxu0 0
        %4556 = vmatpush1.bf16.msra.mxu0 %v4535
        %4557 = vmatprep.subr.bf16.mxu0 0
        %4558 = vmatpush1.bf16.msra.mxu0 %v4536
        %4559 = vmatprep.subr.bf16.mxu0 0
        %4560 = vmatpush1.bf16.msra.mxu0 %v4537
        %4561 = vmatprep.subr.bf16.mxu0 0
        %4562 = vmatpush1.bf16.msra.mxu0 %v4538
        %4563 = vmatprep.subr.bf16.mxu0 0
        %4564 = vmatpush1.bf16.msra.mxu0 0
        %4565 = vmatprep.subr.bf16.mxu0 0
        %4566 = vmatpush1.bf16.msra.mxu0 0
        %4567 = vmatprep.subr.bf16.mxu0 0
        %4568 = vmatpush1.bf16.msra.mxu0 0
        %4569 = vmatprep.subr.bf16.mxu0 0
        %4570 = vmatpush1.bf16.msra.mxu0 0
        %4571 = vmatprep.subr.bf16.mxu0 0
        %4572 = vmatpush1.bf16.msra.mxu0 0
        %4573 = vmatprep.subr.bf16.mxu0 0
        %4574 = vmatpush1.bf16.msra.mxu0 0
        %4575 = vmatprep.subr.bf16.mxu0 0
        %4576 = vmatpush1.bf16.msra.mxu0 0
        %4577 = vmatprep.subr.bf16.mxu0 0
        %4578 = vmatpush1.bf16.msra.mxu0 0
        %4579 = vmatprep.mubr.bf16.mxu0 0
        %4580 = vmatmul.mubr.bf16.gmra.mrb[0].mxu0 %v4497
        %v4581 = vpop.f32.mrb[0].mxu0
        %v4582 = vadd.f32 0.0, %v4581
        %v4583 = vpop.f32.mrb[0].mxu0
        %v4584 = vpop.f32.mrb[0].mxu0
        %v4585 = vadd.f32 0.0, %v4584
        %v4586 = vpop.f32.mrb[0].mxu0
        %4587 = vmatprep.mubr.bf16.mxu0 0
        %4588 = vmatmul.mubr.bf16.gmra.mrb[0].mxu0 %v4498
        %v4589 = vpop.f32.mrb[0].mxu0
        %v4590 = vadd.f32 0.0, %v4589
        %v4591 = vpop.f32.mrb[0].mxu0
        %v4592 = vpop.f32.mrb[0].mxu0
        %v4593 = vadd.f32 0.0, %v4592
        %v4594 = vpop.f32.mrb[0].mxu0
        %4595 = vdwg.mxu0
        %v4596 = vadd.f32 %v4266, %v4582
        %v4597 = vadd.f32 %v4267, %v4585
        %v4598 = vadd.f32 %v4268, %v4590
        %v4599 = vadd.f32 %v4269, %v4593
        %s4600 = scalar_lea.vmem %s33, 1
        %v4601 = vld [vmem:[%s4600] sm:$0x1]
        %v4603 = vlaneseq
        %v4604 = vshrl.u32 %v4603, 7
        %v4605 = vsub.s32 0, %v4604
        %v4606 = vrot.slane %v4601, %v4605
        %v4608 = vadd.f32 %v4596, %v4606
        %v4609 = vadd.f32 %v4597, %v4606
        %v4610 = vadd.f32 %v4598, %v4606
        %v4611 = vadd.f32 %v4599, %v4606
        %v4612 = vld [vmem:[%s35] sm:$0x1]
        %v4613 = vld [vmem:[%s37] sm:$0x1]
        %v4614 = vsel %vm1674, %v4608, 0.0
        %4615 = vadd.xlane.f32.xlu0 %v4614
        %v4616 = vpop.xlane.xlu0 %4615
        %v4617 = vsel %vm1674, %v4609, 0.0
        %4618 = vadd.xlane.f32.xlu0 %v4617
        %v4619 = vpop.xlane.xlu0 %4618
        %v4620 = vsel %vm1674, %v4610, 0.0
        %4621 = vadd.xlane.f32.xlu0 %v4620
        %v4622 = vpop.xlane.xlu0 %4621
        %v4623 = vsel %vm1684, %v4611, 0.0
        %4624 = vadd.xlane.f32.xlu0 %v4623
        %v4625 = vpop.xlane.xlu0 %4624
        %v4626 = vmul.f32 %v4616, %v1688
        %v4627 = vmul.f32 %v4619, %v1688
        %v4628 = vmul.f32 %v4622, %v1688
        %v4629 = vmul.f32 %v4625, %v1688
        %v4630 = vsub.f32 %v4608, %v4626
        %v4631 = vsub.f32 %v4609, %v4627
        %v4632 = vsub.f32 %v4610, %v4628
        %v4633 = vsub.f32 %v4611, %v4629
        %v4634 = vmul.f32 %v4630, %v4630
        %v4635 = vmul.f32 %v4631, %v4631
        %v4636 = vmul.f32 %v4632, %v4632
        %v4637 = vmul.f32 %v4633, %v4633
        %v4638 = vsel %vm1674, %v4634, 0.0
        %4639 = vadd.xlane.f32.xlu0 %v4638
        %v4640 = vpop.xlane.xlu0 %4639
        %v4641 = vsel %vm1674, %v4635, 0.0
        %4642 = vadd.xlane.f32.xlu0 %v4641
        %v4643 = vpop.xlane.xlu0 %4642
        %v4644 = vsel %vm1674, %v4636, 0.0
        %4645 = vadd.xlane.f32.xlu0 %v4644
        %v4646 = vpop.xlane.xlu0 %4645
        %v4647 = vsel %vm1684, %v4637, 0.0
        %4648 = vadd.xlane.f32.xlu0 %v4647
        %v4649 = vpop.xlane.xlu0 %4648
        %v4650 = vmul.f32 %v4640, %v1688
        %v4651 = vmul.f32 %v4643, %v1688
        %v4652 = vmul.f32 %v4646, %v1688
        %v4653 = vmul.f32 %v4649, %v1688
        %v4654 = vadd.f32 %v4650, 1e-06
        %v4655 = vadd.f32 %v4651, 1e-06
        %v4656 = vadd.f32 %v4652, 1e-06
        %v4657 = vadd.f32 %v4653, 1e-06
        %v4658 = vrsqrt.pop %v4654
        %v4659 = vrsqrt.pop %v4655
        %v4660 = vrsqrt.pop %v4656
        %v4661 = vrsqrt.pop %v4657
        %v4662 = vmul.f32 %v4630, %v4658
        %v4663 = vmul.f32 %v4631, %v4659
        %v4664 = vmul.f32 %v4632, %v4660
        %v4665 = vmul.f32 %v4633, %v4661
        %v4667 = vlaneseq
        %v4668 = vshrl.u32 %v4667, 7
        %v4669 = vsub.s32 0, %v4668
        %v4670 = vrot.slane %v4612, %v4669
        %v4672 = vmul.f32 %v4662, %v4670
        %v4673 = vmul.f32 %v4663, %v4670
        %v4674 = vmul.f32 %v4664, %v4670
        %v4675 = vmul.f32 %v4665, %v4670
        %v4677 = vlaneseq
        %v4678 = vshrl.u32 %v4677, 7
        %v4679 = vsub.s32 0, %v4678
        %v4680 = vrot.slane %v4613, %v4679
        %v4682 = vadd.f32 %v4672, %v4680
        %v4683 = vadd.f32 %v4673, %v4680
        %v4684 = vadd.f32 %v4674, %v4680
        %v4685 = vadd.f32 %v4675, %v4680
        %v4686 = vld [vmem:[%s7] sm:$0x1f]
        %v4687 = vld [vmem:[%s39] sm:$0x1f]
        %v4689 = vsel %vm1956, %v4686, 0
        %vm4691 = vcmask 1040384
        %v4693 = vsel %vm4691, %v4685, 0
        %4695 = vmatprep.subr.mxu0 0.0
        %4696 = vmatpush1.msra.mxu0 %v4682
        %4697 = vmatprep.subr.mxu0 0.0
        %4698 = vmatpush1.msra.mxu0 %v4683
        %4699 = vmatprep.subr.mxu0 0.0
        %4700 = vmatpush1.msra.mxu0 %v4684
        %4701 = vmatprep.subr.mxu0 0.0
        %4702 = vmatpush1.msra.mxu0 %v4693
        %4703 = vmatprep.subr.mxu0 0.0
        %4704 = vmatpush1.msra.mxu0 0.0
        %4705 = vmatprep.subr.mxu0 0.0
        %4706 = vmatpush1.msra.mxu0 0.0
        %4707 = vmatprep.subr.mxu0 0.0
        %4708 = vmatpush1.msra.mxu0 0.0
        %4709 = vmatprep.subr.mxu0 0.0
        %4710 = vmatpush1.msra.mxu0 0.0
        %4711 = vmatprep.subr.mxu0 0.0
        %4712 = vmatpush1.msra.mxu0 0.0
        %4713 = vmatprep.subr.mxu0 0.0
        %4714 = vmatpush1.msra.mxu0 0.0
        %4715 = vmatprep.subr.mxu0 0.0
        %4716 = vmatpush1.msra.mxu0 0.0
        %4717 = vmatprep.subr.mxu0 0.0
        %4718 = vmatpush1.msra.mxu0 0.0
        %4719 = vmatprep.subr.mxu0 0.0
        %4720 = vmatpush1.msra.mxu0 0.0
        %4721 = vmatprep.subr.mxu0 0.0
        %4722 = vmatpush1.msra.mxu0 0.0
        %4723 = vmatprep.subr.mxu0 0.0
        %4724 = vmatpush1.msra.mxu0 0.0
        %4725 = vmatprep.subr.mxu0 0.0
        %4726 = vmatpush1.msra.mxu0 0.0
        %4727 = vmatprep.subr.mxu0 0.0
        %4728 = vmatpush1.msra.mxu0 0.0
        %4729 = vmatprep.subr.mxu0 0.0
        %4730 = vmatpush1.msra.mxu0 0.0
        %4731 = vmatprep.subr.mxu0 0.0
        %4732 = vmatpush1.msra.mxu0 0.0
        %4733 = vmatprep.subr.mxu0 0.0
        %4734 = vmatpush1.msra.mxu0 0.0
        %4735 = vmatprep.subr.mxu0 0.0
        %4736 = vmatpush1.msra.mxu0 0.0
        %4737 = vmatprep.subr.mxu0 0.0
        %4738 = vmatpush1.msra.mxu0 0.0
        %4739 = vmatprep.subr.mxu0 0.0
        %4740 = vmatpush1.msra.mxu0 0.0
        %4741 = vmatprep.subr.mxu0 0.0
        %4742 = vmatpush1.msra.mxu0 0.0
        %4743 = vmatprep.subr.mxu0 0.0
        %4744 = vmatpush1.msra.mxu0 0.0
        %4745 = vmatprep.subr.mxu0 0.0
        %4746 = vmatpush1.msra.mxu0 0.0
        %4747 = vmatprep.subr.mxu0 0.0
        %4748 = vmatpush1.msra.mxu0 0.0
        %4749 = vmatprep.subr.mxu0 0.0
        %4750 = vmatpush1.msra.mxu0 0.0
        %4751 = vmatprep.subr.mxu0 0.0
        %4752 = vmatpush1.msra.mxu0 0.0
        %4753 = vmatprep.subr.mxu0 0.0
        %4754 = vmatpush1.msra.mxu0 0.0
        %4755 = vmatprep.subr.mxu0 0.0
        %4756 = vmatpush1.msra.mxu0 0.0
        %4757 = vmatprep.subr.mxu0 0.0
        %4758 = vmatpush1.msra.mxu0 0.0
        %4759 = vmatprep.mubr.f32.mxu0 0.0
        %4760 = vmatmul.mubr.f32.gmra.mrb[0].mxu0 %v4689
        %v4761 = vpop.f32.mrb[0].mxu0
        %v4762 = vadd.f32 %v4687, %v4761
        %v4763 = vpop.f32.mrb[0].mxu0
        %4764 = vdwg.mxu0
        %v4765 = vld [vmem:[%s41] sm:$0x1]
        %v4766 = vld [vmem:[%s43] sm:$0x1]
        %vm4767 = vcmask 520192
        %v4768 = vsel %vm4767, %v4762, 0.0
        %4769 = vadd.xlane.f32.xlu0 %v4768
        %v4770 = vpop.xlane.xlu0 %4769
        %v4771 = vmul.f32 %v4770, %v1688
        %v4772 = vsub.f32 %v4762, %v4771
        %v4773 = vmul.f32 %v4772, %v4772
        %v4774 = vsel %vm4767, %v4773, 0.0
        %4775 = vadd.xlane.f32.xlu0 %v4774
        %v4776 = vpop.xlane.xlu0 %4775
        %v4777 = vmul.f32 %v4776, %v1688
        %v4778 = vadd.f32 %v4777, 1e-06
        %v4779 = vrsqrt.pop %v4778
        %v4780 = vmul.f32 %v4772, %v4779
        %v4782 = vlaneseq
        %v4783 = vshrl.u32 %v4782, 7
        %v4784 = vsub.s32 0, %v4783
        %v4785 = vrot.slane %v4765, %v4784
        %v4787 = vmul.f32 %v4780, %v4785
        %v4789 = vlaneseq
        %v4790 = vshrl.u32 %v4789, 7
        %v4791 = vsub.s32 0, %v4790
        %v4792 = vrot.slane %v4766, %v4791
        %v4794 = vadd.f32 %v4787, %v4792
        %v4795 = vld [vmem:[%s45] sm:$0xff]
        %v4796 = vld [vmem:[%s45 + $0x8] sm:$0xff]
        %v4797 = vld [vmem:[%s45 + $0x10] sm:$0xff]
        %v4798 = vld [vmem:[%s45 + $0x18] sm:$0xff]
        %v4799 = vld [vmem:[%s45 + $0x20] sm:$0xff]
        %v4800 = vld [vmem:[%s45 + $0x28] sm:$0xff]
        %v4801 = vld [vmem:[%s45 + $0x30] sm:$0xff]
        %v4802 = vld [vmem:[%s45 + $0x38] sm:$0xff]
        %v4803 = vpack.c.bf16 %v4794, %v4794
        %v4804 = vld [vmem:[%s47] sm:$0x3]
        %v4806 = vlaneseq
        %v4807 = vshrl.u32 %v4806, 7
        %v4808 = vsub.s32 0, %v4807
        %v4809 = vrot.slane %v4804, %v4808
        %v4810 = vlaneseq
        %v4811 = vshrl.u32 %v4810, 7
        %v4812 = vsub.s32 1, %v4811
        %v4813 = vrot.slane %v4804, %v4812
        %v4824 = vunpack.c.l.b16 %v4795
        %v4825 = vunpack.c.h.b16 %v4795
        %v4826 = vunpack.c.l.b16 %v4796
        %v4827 = vunpack.c.h.b16 %v4796
        %v4828 = vunpack.c.l.b16 %v4797
        %v4829 = vunpack.c.h.b16 %v4797
        %v4830 = vunpack.c.l.b16 %v4798
        %v4831 = vunpack.c.h.b16 %v4798
        %v4832 = vunpack.c.l.b16 %v4799
        %v4833 = vunpack.c.h.b16 %v4799
        %v4834 = vunpack.c.l.b16 %v4800
        %v4835 = vunpack.c.h.b16 %v4800
        %v4836 = vunpack.c.l.b16 %v4801
        %v4837 = vunpack.c.h.b16 %v4801
        %v4838 = vunpack.c.l.b16 %v4802
        %v4839 = vunpack.c.h.b16 %v4802
        %v4840 = vpack.c.b16 %v4826, %v4824
        %v4841 = vpack.c.b16 %v4827, %v4825
        %v4842 = vpack.c.b16 %v4830, %v4828
        %v4843 = vpack.c.b16 %v4831, %v4829
        %v4844 = vpack.c.b16 %v4834, %v4832
        %v4845 = vpack.c.b16 %v4835, %v4833
        %v4846 = vpack.c.b16 %v4838, %v4836
        %v4847 = vpack.c.b16 %v4839, %v4837
        %v4857 = vsel %vm1674, %v4803, 0
        %4859 = vmatprep.subr.bf16.mxu0 %v4841
        %4860 = vmatpush1.bf16.msra.mxu0 %v4840
        %4861 = vmatprep.subr.bf16.mxu0 %v4843
        %4862 = vmatpush1.bf16.msra.mxu0 %v4842
        %4863 = vmatprep.subr.bf16.mxu0 %v4845
        %4864 = vmatpush1.bf16.msra.mxu0 %v4844
        %4865 = vmatprep.subr.bf16.mxu0 %v4847
        %4866 = vmatpush1.bf16.msra.mxu0 %v4846
        %4867 = vmatprep.subr.bf16.mxu0 0
        %4868 = vmatpush1.bf16.msra.mxu0 0
        %4869 = vmatprep.subr.bf16.mxu0 0
        %4870 = vmatpush1.bf16.msra.mxu0 0
        %4871 = vmatprep.subr.bf16.mxu0 0
        %4872 = vmatpush1.bf16.msra.mxu0 0
        %4873 = vmatprep.subr.bf16.mxu0 0
        %4874 = vmatpush1.bf16.msra.mxu0 0
        %4875 = vmatprep.subr.bf16.mxu0 0
        %4876 = vmatpush1.bf16.msra.mxu0 0
        %4877 = vmatprep.subr.bf16.mxu0 0
        %4878 = vmatpush1.bf16.msra.mxu0 0
        %4879 = vmatprep.subr.bf16.mxu0 0
        %4880 = vmatpush1.bf16.msra.mxu0 0
        %4881 = vmatprep.subr.bf16.mxu0 0
        %4882 = vmatpush1.bf16.msra.mxu0 0
        %4883 = vmatprep.subr.bf16.mxu0 0
        %4884 = vmatpush1.bf16.msra.mxu0 0
        %4885 = vmatprep.subr.bf16.mxu0 0
        %4886 = vmatpush1.bf16.msra.mxu0 0
        %4887 = vmatprep.subr.bf16.mxu0 0
        %4888 = vmatpush1.bf16.msra.mxu0 0
        %4889 = vmatprep.subr.bf16.mxu0 0
        %4890 = vmatpush1.bf16.msra.mxu0 0
        %4891 = vmatprep.mubr.bf16.mxu0 0
        %4892 = vmatmul.mubr.bf16.gmra.mrb[0].mxu0 %v4857
        %v4893 = vpop.f32.mrb[0].mxu0
        %v4894 = vadd.f32 %v4809, %v4893
        %v4895 = vpop.f32.mrb[0].mxu0
        %v4896 = vadd.f32 %v4813, %v4895
        %v4897 = vpop.f32.mrb[0].mxu0
        %v4898 = vpop.f32.mrb[0].mxu0
        %4899 = vdwg.mxu0
        %v4900 = vpack.c.bf16 %v4894, %v4894
        %4902 = vrot.lane.b32.xlu0 %v4900, 64
        %v4903 = vpop.permute.xlu0 %4902
        %v4905 = vsel %vm1878, %v4900, 0
        %v4908 = vsel %vm1878, %v4903, 0
        %4910 = vmatprep.subr.bf16.mxu0 0
        %4911 = vmatpush1.bf16.xpose.msra.mxu0 %v4908
        %4912 = vmatprep.subr.bf16.mxu0 0
        %4913 = vmatpush1.bf16.xpose.msra.mxu0 0
        %4914 = vmatprep.subr.bf16.mxu0 0
        %4915 = vmatpush1.bf16.xpose.msra.mxu0 0
        %4916 = vmatprep.subr.bf16.mxu0 0
        %4917 = vmatpush1.bf16.xpose.msra.mxu0 0
        %4918 = vmatprep.subr.bf16.mxu0 0
        %4919 = vmatpush1.bf16.xpose.msra.mxu0 0
        %4920 = vmatprep.subr.bf16.mxu0 0
        %4921 = vmatpush1.bf16.xpose.msra.mxu0 0
        %4922 = vmatprep.subr.bf16.mxu0 0
        %4923 = vmatpush1.bf16.xpose.msra.mxu0 0
        %4924 = vmatprep.subr.bf16.mxu0 0
        %4925 = vmatpush1.bf16.xpose.msra.mxu0 0
        %4926 = vmatprep.subr.bf16.mxu0 0
        %4927 = vmatpush1.bf16.xpose.msra.mxu0 0
        %4928 = vmatprep.subr.bf16.mxu0 0
        %4929 = vmatpush1.bf16.xpose.msra.mxu0 0
        %4930 = vmatprep.subr.bf16.mxu0 0
        %4931 = vmatpush1.bf16.xpose.msra.mxu0 0
        %4932 = vmatprep.subr.bf16.mxu0 0
        %4933 = vmatpush1.bf16.xpose.msra.mxu0 0
        %4934 = vmatprep.subr.bf16.mxu0 0
        %4935 = vmatpush1.bf16.xpose.msra.mxu0 0
        %4936 = vmatprep.subr.bf16.mxu0 0
        %4937 = vmatpush1.bf16.xpose.msra.mxu0 0
        %4938 = vmatprep.subr.bf16.mxu0 0
        %4939 = vmatpush1.bf16.xpose.msra.mxu0 0
        %4940 = vmatprep.subr.bf16.mxu0 0
        %4941 = vmatpush1.bf16.xpose.msra.mxu0 0
        %4942 = vmatprep.mubr.bf16.mxu0 0
        %4943 = vmatmul.mubr.bf16.gmra.mrb[0].mxu0 %v4905
        %v4944 = vpop.f32.mrb[0].mxu0
        %v4945 = vadd.f32 0.0, %v4944
        %v4946 = vpop.f32.mrb[0].mxu0
        %v4947 = vpop.f32.mrb[0].mxu0
        %v4948 = vpop.f32.mrb[0].mxu0
        %4949 = vdwg.mxu0
        %v4950 = vmul.f32 %v4945, 0.25
        %vm4951 = vcmask 36864
        %v4952 = vsel %vm4951, %v4950, -inf
        %4953 = vmax.xlane.f32.xlu0 %v4952
        %v4954 = vpop.xlane.xlu0 %4953
        %v4955 = vsub.f32 %v4950, %v4954
        %v4956 = vmul.f32 %v4955, 1.442695
        %v4957 = vpow.pop %v4956
        %v4958 = vsel %vm4951, %v4957, 0.0
        %4959 = vadd.xlane.f32.xlu0 %v4958
        %v4960 = vpop.xlane.xlu0 %4959
        %v4961 = vrcp.pop %v4960
        %v4962 = vmul.f32 %v4957, %v4961
        %v4963 = vpack.c.bf16 %v4962, %v4962
        %v4964 = vpack.c.bf16 %v4896, %v4896
        %vm4965 = vcmask 39936
        %v4967 = vsel %vm4965, %v4963, 0
        %vm4969 = vcmask 1041408
        %vm4970 = vcmask 1042432
        %v4971 = vsel %vm4969, 4294967295, 65535
        %v4972 = vsel %vm4970, %v4971, 0
        %v4974 = vand.u32 %v4964, %v4972
        %4976 = vmatprep.subr.bf16.mxu0 0
        %4977 = vmatpush1.bf16.msra.mxu0 %v4974
        %4978 = vmatprep.subr.bf16.mxu0 0
        %4979 = vmatpush1.bf16.msra.mxu0 0
        %4980 = vmatprep.subr.bf16.mxu0 0
        %4981 = vmatpush1.bf16.msra.mxu0 0
        %4982 = vmatprep.subr.bf16.mxu0 0
        %4983 = vmatpush1.bf16.msra.mxu0 0
        %4984 = vmatprep.subr.bf16.mxu0 0
        %4985 = vmatpush1.bf16.msra.mxu0 0
        %4986 = vmatprep.subr.bf16.mxu0 0
        %4987 = vmatpush1.bf16.msra.mxu0 0
        %4988 = vmatprep.subr.bf16.mxu0 0
        %4989 = vmatpush1.bf16.msra.mxu0 0
        %4990 = vmatprep.subr.bf16.mxu0 0
        %4991 = vmatpush1.bf16.msra.mxu0 0
        %4992 = vmatprep.subr.bf16.mxu0 0
        %4993 = vmatpush1.bf16.msra.mxu0 0
        %4994 = vmatprep.subr.bf16.mxu0 0
        %4995 = vmatpush1.bf16.msra.mxu0 0
        %4996 = vmatprep.subr.bf16.mxu0 0
        %4997 = vmatpush1.bf16.msra.mxu0 0
        %4998 = vmatprep.subr.bf16.mxu0 0
        %4999 = vmatpush1.bf16.msra.mxu0 0
        %5000 = vmatprep.subr.bf16.mxu0 0
        %5001 = vmatpush1.bf16.msra.mxu0 0
        %5002 = vmatprep.subr.bf16.mxu0 0
        %5003 = vmatpush1.bf16.msra.mxu0 0
        %5004 = vmatprep.subr.bf16.mxu0 0
        %5005 = vmatpush1.bf16.msra.mxu0 0
        %5006 = vmatprep.subr.bf16.mxu0 0
        %5007 = vmatpush1.bf16.msra.mxu0 0
        %5008 = vmatprep.mubr.bf16.mxu0 0
        %5009 = vmatmul.mubr.bf16.gmra.mrb[0].mxu0 %v4967
        %v5010 = vpop.f32.mrb[0].mxu0
        %v5011 = vadd.f32 0.0, %v5010
        %v5012 = vpop.f32.mrb[0].mxu0
        %v5013 = vpop.f32.mrb[0].mxu0
        %v5014 = vpop.f32.mrb[0].mxu0
        %5015 = vdwg.mxu0
        %5016 = vrot.lane.b32.xlu0 %v4900, 112
        %v5017 = vpop.permute.xlu0 %5016
        %5018 = vrot.lane.b32.xlu0 %v4900, 48
        %v5019 = vpop.permute.xlu0 %5018
        %v5021 = vsel %vm1878, %v5017, 0
        %v5024 = vsel %vm1878, %v5019, 0
        %5026 = vmatprep.subr.bf16.mxu0 0
        %5027 = vmatpush1.bf16.xpose.msra.mxu0 %v5024
        %5028 = vmatprep.subr.bf16.mxu0 0
        %5029 = vmatpush1.bf16.xpose.msra.mxu0 0
        %5030 = vmatprep.subr.bf16.mxu0 0
        %5031 = vmatpush1.bf16.xpose.msra.mxu0 0
        %5032 = vmatprep.subr.bf16.mxu0 0
        %5033 = vmatpush1.bf16.xpose.msra.mxu0 0
        %5034 = vmatprep.subr.bf16.mxu0 0
        %5035 = vmatpush1.bf16.xpose.msra.mxu0 0
        %5036 = vmatprep.subr.bf16.mxu0 0
        %5037 = vmatpush1.bf16.xpose.msra.mxu0 0
        %5038 = vmatprep.subr.bf16.mxu0 0
        %5039 = vmatpush1.bf16.xpose.msra.mxu0 0
        %5040 = vmatprep.subr.bf16.mxu0 0
        %5041 = vmatpush1.bf16.xpose.msra.mxu0 0
        %5042 = vmatprep.subr.bf16.mxu0 0
        %5043 = vmatpush1.bf16.xpose.msra.mxu0 0
        %5044 = vmatprep.subr.bf16.mxu0 0
        %5045 = vmatpush1.bf16.xpose.msra.mxu0 0
        %5046 = vmatprep.subr.bf16.mxu0 0
        %5047 = vmatpush1.bf16.xpose.msra.mxu0 0
        %5048 = vmatprep.subr.bf16.mxu0 0
        %5049 = vmatpush1.bf16.xpose.msra.mxu0 0
        %5050 = vmatprep.subr.bf16.mxu0 0
        %5051 = vmatpush1.bf16.xpose.msra.mxu0 0
        %5052 = vmatprep.subr.bf16.mxu0 0
        %5053 = vmatpush1.bf16.xpose.msra.mxu0 0
        %5054 = vmatprep.subr.bf16.mxu0 0
        %5055 = vmatpush1.bf16.xpose.msra.mxu0 0
        %5056 = vmatprep.subr.bf16.mxu0 0
        %5057 = vmatpush1.bf16.xpose.msra.mxu0 0
        %5058 = vmatprep.mubr.bf16.mxu0 0
        %5059 = vmatmul.mubr.bf16.gmra.mrb[0].mxu0 %v5021
        %v5060 = vpop.f32.mrb[0].mxu0
        %v5061 = vadd.f32 0.0, %v5060
        %v5062 = vpop.f32.mrb[0].mxu0
        %v5063 = vpop.f32.mrb[0].mxu0
        %v5064 = vpop.f32.mrb[0].mxu0
        %5065 = vdwg.mxu0
        %v5066 = vmul.f32 %v5061, 0.25
        %v5067 = vsel %vm4951, %v5066, -inf
        %5068 = vmax.xlane.f32.xlu0 %v5067
        %v5069 = vpop.xlane.xlu0 %5068
        %v5070 = vsub.f32 %v5066, %v5069
        %v5071 = vmul.f32 %v5070, 1.442695
        %v5072 = vpow.pop %v5071
        %v5073 = vsel %vm4951, %v5072, 0.0
        %5074 = vadd.xlane.f32.xlu0 %v5073
        %v5075 = vpop.xlane.xlu0 %5074
        %v5076 = vrcp.pop %v5075
        %v5077 = vmul.f32 %v5072, %v5076
        %v5078 = vpack.c.bf16 %v5077, %v5077
        %5080 = vrot.lane.b32.xlu0 %v4964, 112
        %v5081 = vpop.permute.xlu0 %5080
        %v5083 = vsel %vm4965, %v5078, 0
        %v5086 = vand.u32 %v5081, %v4972
        %5088 = vmatprep.subr.bf16.mxu0 0
        %5089 = vmatpush1.bf16.msra.mxu0 %v5086
        %5090 = vmatprep.subr.bf16.mxu0 0
        %5091 = vmatpush1.bf16.msra.mxu0 0
        %5092 = vmatprep.subr.bf16.mxu0 0
        %5093 = vmatpush1.bf16.msra.mxu0 0
        %5094 = vmatprep.subr.bf16.mxu0 0
        %5095 = vmatpush1.bf16.msra.mxu0 0
        %5096 = vmatprep.subr.bf16.mxu0 0
        %5097 = vmatpush1.bf16.msra.mxu0 0
        %5098 = vmatprep.subr.bf16.mxu0 0
        %5099 = vmatpush1.bf16.msra.mxu0 0
        %5100 = vmatprep.subr.bf16.mxu0 0
        %5101 = vmatpush1.bf16.msra.mxu0 0
        %5102 = vmatprep.subr.bf16.mxu0 0
        %5103 = vmatpush1.bf16.msra.mxu0 0
        %5104 = vmatprep.subr.bf16.mxu0 0
        %5105 = vmatpush1.bf16.msra.mxu0 0
        %5106 = vmatprep.subr.bf16.mxu0 0
        %5107 = vmatpush1.bf16.msra.mxu0 0
        %5108 = vmatprep.subr.bf16.mxu0 0
        %5109 = vmatpush1.bf16.msra.mxu0 0
        %5110 = vmatprep.subr.bf16.mxu0 0
        %5111 = vmatpush1.bf16.msra.mxu0 0
        %5112 = vmatprep.subr.bf16.mxu0 0
        %5113 = vmatpush1.bf16.msra.mxu0 0
        %5114 = vmatprep.subr.bf16.mxu0 0
        %5115 = vmatpush1.bf16.msra.mxu0 0
        %5116 = vmatprep.subr.bf16.mxu0 0
        %5117 = vmatpush1.bf16.msra.mxu0 0
        %5118 = vmatprep.subr.bf16.mxu0 0
        %5119 = vmatpush1.bf16.msra.mxu0 0
        %5120 = vmatprep.mubr.bf16.mxu0 0
        %5121 = vmatmul.mubr.bf16.gmra.mrb[0].mxu0 %v5083
        %v5122 = vpop.f32.mrb[0].mxu0
        %v5123 = vadd.f32 0.0, %v5122
        %v5124 = vpop.f32.mrb[0].mxu0
        %v5125 = vpop.f32.mrb[0].mxu0
        %v5126 = vpop.f32.mrb[0].mxu0
        %5127 = vdwg.mxu0
        %5128 = vrot.lane.b32.xlu0 %v4900, 96
        %v5129 = vpop.permute.xlu0 %5128
        %5130 = vrot.lane.b32.xlu0 %v4900, 32
        %v5131 = vpop.permute.xlu0 %5130
        %v5133 = vsel %vm1878, %v5129, 0
        %v5136 = vsel %vm1878, %v5131, 0
        %5138 = vmatprep.subr.bf16.mxu0 0
        %5139 = vmatpush1.bf16.xpose.msra.mxu0 %v5136
        %5140 = vmatprep.subr.bf16.mxu0 0
        %5141 = vmatpush1.bf16.xpose.msra.mxu0 0
        %5142 = vmatprep.subr.bf16.mxu0 0
        %5143 = vmatpush1.bf16.xpose.msra.mxu0 0
        %5144 = vmatprep.subr.bf16.mxu0 0
        %5145 = vmatpush1.bf16.xpose.msra.mxu0 0
        %5146 = vmatprep.subr.bf16.mxu0 0
        %5147 = vmatpush1.bf16.xpose.msra.mxu0 0
        %5148 = vmatprep.subr.bf16.mxu0 0
        %5149 = vmatpush1.bf16.xpose.msra.mxu0 0
        %5150 = vmatprep.subr.bf16.mxu0 0
        %5151 = vmatpush1.bf16.xpose.msra.mxu0 0
        %5152 = vmatprep.subr.bf16.mxu0 0
        %5153 = vmatpush1.bf16.xpose.msra.mxu0 0
        %5154 = vmatprep.subr.bf16.mxu0 0
        %5155 = vmatpush1.bf16.xpose.msra.mxu0 0
        %5156 = vmatprep.subr.bf16.mxu0 0
        %5157 = vmatpush1.bf16.xpose.msra.mxu0 0
        %5158 = vmatprep.subr.bf16.mxu0 0
        %5159 = vmatpush1.bf16.xpose.msra.mxu0 0
        %5160 = vmatprep.subr.bf16.mxu0 0
        %5161 = vmatpush1.bf16.xpose.msra.mxu0 0
        %5162 = vmatprep.subr.bf16.mxu0 0
        %5163 = vmatpush1.bf16.xpose.msra.mxu0 0
        %5164 = vmatprep.subr.bf16.mxu0 0
        %5165 = vmatpush1.bf16.xpose.msra.mxu0 0
        %5166 = vmatprep.subr.bf16.mxu0 0
        %5167 = vmatpush1.bf16.xpose.msra.mxu0 0
        %5168 = vmatprep.subr.bf16.mxu0 0
        %5169 = vmatpush1.bf16.xpose.msra.mxu0 0
        %5170 = vmatprep.mubr.bf16.mxu0 0
        %5171 = vmatmul.mubr.bf16.gmra.mrb[0].mxu0 %v5133
        %v5172 = vpop.f32.mrb[0].mxu0
        %v5173 = vadd.f32 0.0, %v5172
        %v5174 = vpop.f32.mrb[0].mxu0
        %v5175 = vpop.f32.mrb[0].mxu0
        %v5176 = vpop.f32.mrb[0].mxu0
        %5177 = vdwg.mxu0
        %v5178 = vmul.f32 %v5173, 0.25
        %v5179 = vsel %vm4951, %v5178, -inf
        %5180 = vmax.xlane.f32.xlu0 %v5179
        %v5181 = vpop.xlane.xlu0 %5180
        %v5182 = vsub.f32 %v5178, %v5181
        %v5183 = vmul.f32 %v5182, 1.442695
        %v5184 = vpow.pop %v5183
        %v5185 = vsel %vm4951, %v5184, 0.0
        %5186 = vadd.xlane.f32.xlu0 %v5185
        %v5187 = vpop.xlane.xlu0 %5186
        %v5188 = vrcp.pop %v5187
        %v5189 = vmul.f32 %v5184, %v5188
        %v5190 = vpack.c.bf16 %v5189, %v5189
        %5191 = vrot.lane.b32.xlu0 %v4964, 96
        %v5192 = vpop.permute.xlu0 %5191
        %v5194 = vsel %vm4965, %v5190, 0
        %v5197 = vand.u32 %v5192, %v4972
        %5199 = vmatprep.subr.bf16.mxu0 0
        %5200 = vmatpush1.bf16.msra.mxu0 %v5197
        %5201 = vmatprep.subr.bf16.mxu0 0
        %5202 = vmatpush1.bf16.msra.mxu0 0
        %5203 = vmatprep.subr.bf16.mxu0 0
        %5204 = vmatpush1.bf16.msra.mxu0 0
        %5205 = vmatprep.subr.bf16.mxu0 0
        %5206 = vmatpush1.bf16.msra.mxu0 0
        %5207 = vmatprep.subr.bf16.mxu0 0
        %5208 = vmatpush1.bf16.msra.mxu0 0
        %5209 = vmatprep.subr.bf16.mxu0 0
        %5210 = vmatpush1.bf16.msra.mxu0 0
        %5211 = vmatprep.subr.bf16.mxu0 0
        %5212 = vmatpush1.bf16.msra.mxu0 0
        %5213 = vmatprep.subr.bf16.mxu0 0
        %5214 = vmatpush1.bf16.msra.mxu0 0
        %5215 = vmatprep.subr.bf16.mxu0 0
        %5216 = vmatpush1.bf16.msra.mxu0 0
        %5217 = vmatprep.subr.bf16.mxu0 0
        %5218 = vmatpush1.bf16.msra.mxu0 0
        %5219 = vmatprep.subr.bf16.mxu0 0
        %5220 = vmatpush1.bf16.msra.mxu0 0
        %5221 = vmatprep.subr.bf16.mxu0 0
        %5222 = vmatpush1.bf16.msra.mxu0 0
        %5223 = vmatprep.subr.bf16.mxu0 0
        %5224 = vmatpush1.bf16.msra.mxu0 0
        %5225 = vmatprep.subr.bf16.mxu0 0
        %5226 = vmatpush1.bf16.msra.mxu0 0
        %5227 = vmatprep.subr.bf16.mxu0 0
        %5228 = vmatpush1.bf16.msra.mxu0 0
        %5229 = vmatprep.subr.bf16.mxu0 0
        %5230 = vmatpush1.bf16.msra.mxu0 0
        %5231 = vmatprep.mubr.bf16.mxu0 0
        %5232 = vmatmul.mubr.bf16.gmra.mrb[0].mxu0 %v5194
        %v5233 = vpop.f32.mrb[0].mxu0
        %v5234 = vadd.f32 0.0, %v5233
        %v5235 = vpop.f32.mrb[0].mxu0
        %v5236 = vpop.f32.mrb[0].mxu0
        %v5237 = vpop.f32.mrb[0].mxu0
        %5238 = vdwg.mxu0
        %5239 = vrot.lane.b32.xlu0 %v4900, 80
        %v5240 = vpop.permute.xlu0 %5239
        %5241 = vrot.lane.b32.xlu0 %v4900, 16
        %v5242 = vpop.permute.xlu0 %5241
        %v5244 = vsel %vm1878, %v5240, 0
        %v5247 = vsel %vm1878, %v5242, 0
        %5249 = vmatprep.subr.bf16.mxu0 0
        %5250 = vmatpush1.bf16.xpose.msra.mxu0 %v5247
        %5251 = vmatprep.subr.bf16.mxu0 0
        %5252 = vmatpush1.bf16.xpose.msra.mxu0 0
        %5253 = vmatprep.subr.bf16.mxu0 0
        %5254 = vmatpush1.bf16.xpose.msra.mxu0 0
        %5255 = vmatprep.subr.bf16.mxu0 0
        %5256 = vmatpush1.bf16.xpose.msra.mxu0 0
        %5257 = vmatprep.subr.bf16.mxu0 0
        %5258 = vmatpush1.bf16.xpose.msra.mxu0 0
        %5259 = vmatprep.subr.bf16.mxu0 0
        %5260 = vmatpush1.bf16.xpose.msra.mxu0 0
        %5261 = vmatprep.subr.bf16.mxu0 0
        %5262 = vmatpush1.bf16.xpose.msra.mxu0 0
        %5263 = vmatprep.subr.bf16.mxu0 0
        %5264 = vmatpush1.bf16.xpose.msra.mxu0 0
        %5265 = vmatprep.subr.bf16.mxu0 0
        %5266 = vmatpush1.bf16.xpose.msra.mxu0 0
        %5267 = vmatprep.subr.bf16.mxu0 0
        %5268 = vmatpush1.bf16.xpose.msra.mxu0 0
        %5269 = vmatprep.subr.bf16.mxu0 0
        %5270 = vmatpush1.bf16.xpose.msra.mxu0 0
        %5271 = vmatprep.subr.bf16.mxu0 0
        %5272 = vmatpush1.bf16.xpose.msra.mxu0 0
        %5273 = vmatprep.subr.bf16.mxu0 0
        %5274 = vmatpush1.bf16.xpose.msra.mxu0 0
        %5275 = vmatprep.subr.bf16.mxu0 0
        %5276 = vmatpush1.bf16.xpose.msra.mxu0 0
        %5277 = vmatprep.subr.bf16.mxu0 0
        %5278 = vmatpush1.bf16.xpose.msra.mxu0 0
        %5279 = vmatprep.subr.bf16.mxu0 0
        %5280 = vmatpush1.bf16.xpose.msra.mxu0 0
        %5281 = vmatprep.mubr.bf16.mxu0 0
        %5282 = vmatmul.mubr.bf16.gmra.mrb[0].mxu0 %v5244
        %v5283 = vpop.f32.mrb[0].mxu0
        %v5284 = vadd.f32 0.0, %v5283
        %v5285 = vpop.f32.mrb[0].mxu0
        %v5286 = vpop.f32.mrb[0].mxu0
        %v5287 = vpop.f32.mrb[0].mxu0
        %5288 = vdwg.mxu0
        %v5289 = vmul.f32 %v5284, 0.25
        %v5290 = vsel %vm4951, %v5289, -inf
        %5291 = vmax.xlane.f32.xlu0 %v5290
        %v5292 = vpop.xlane.xlu0 %5291
        %v5293 = vsub.f32 %v5289, %v5292
        %v5294 = vmul.f32 %v5293, 1.442695
        %v5295 = vpow.pop %v5294
        %v5296 = vsel %vm4951, %v5295, 0.0
        %5297 = vadd.xlane.f32.xlu0 %v5296
        %v5298 = vpop.xlane.xlu0 %5297
        %v5299 = vrcp.pop %v5298
        %v5300 = vmul.f32 %v5295, %v5299
        %v5301 = vpack.c.bf16 %v5300, %v5300
        %5302 = vrot.lane.b32.xlu0 %v4964, 80
        %v5303 = vpop.permute.xlu0 %5302
        %v5305 = vsel %vm4965, %v5301, 0
        %v5308 = vand.u32 %v5303, %v4972
        %5310 = vmatprep.subr.bf16.mxu0 0
        %5311 = vmatpush1.bf16.msra.mxu0 %v5308
        %5312 = vmatprep.subr.bf16.mxu0 0
        %5313 = vmatpush1.bf16.msra.mxu0 0
        %5314 = vmatprep.subr.bf16.mxu0 0
        %5315 = vmatpush1.bf16.msra.mxu0 0
        %5316 = vmatprep.subr.bf16.mxu0 0
        %5317 = vmatpush1.bf16.msra.mxu0 0
        %5318 = vmatprep.subr.bf16.mxu0 0
        %5319 = vmatpush1.bf16.msra.mxu0 0
        %5320 = vmatprep.subr.bf16.mxu0 0
        %5321 = vmatpush1.bf16.msra.mxu0 0
        %5322 = vmatprep.subr.bf16.mxu0 0
        %5323 = vmatpush1.bf16.msra.mxu0 0
        %5324 = vmatprep.subr.bf16.mxu0 0
        %5325 = vmatpush1.bf16.msra.mxu0 0
        %5326 = vmatprep.subr.bf16.mxu0 0
        %5327 = vmatpush1.bf16.msra.mxu0 0
        %5328 = vmatprep.subr.bf16.mxu0 0
        %5329 = vmatpush1.bf16.msra.mxu0 0
        %5330 = vmatprep.subr.bf16.mxu0 0
        %5331 = vmatpush1.bf16.msra.mxu0 0
        %5332 = vmatprep.subr.bf16.mxu0 0
        %5333 = vmatpush1.bf16.msra.mxu0 0
        %5334 = vmatprep.subr.bf16.mxu0 0
        %5335 = vmatpush1.bf16.msra.mxu0 0
        %5336 = vmatprep.subr.bf16.mxu0 0
        %5337 = vmatpush1.bf16.msra.mxu0 0
        %5338 = vmatprep.subr.bf16.mxu0 0
        %5339 = vmatpush1.bf16.msra.mxu0 0
        %5340 = vmatprep.subr.bf16.mxu0 0
        %5341 = vmatpush1.bf16.msra.mxu0 0
        %5342 = vmatprep.mubr.bf16.mxu0 0
        %5343 = vmatmul.mubr.bf16.gmra.mrb[0].mxu0 %v5305
        %v5344 = vpop.f32.mrb[0].mxu0
        %v5345 = vadd.f32 0.0, %v5344
        %v5346 = vpop.f32.mrb[0].mxu0
        %v5347 = vpop.f32.mrb[0].mxu0
        %v5348 = vpop.f32.mrb[0].mxu0
        %5349 = vdwg.mxu0
        %5351 = vrot.lane.b32.xlu0 %v5123, 16
        %v5352 = vpop.permute.xlu0 %5351
        %5355 = vrot.lane.b32.xlu0 %v5234, 32
        %v5356 = vpop.permute.xlu0 %5355
        %5359 = vrot.lane.b32.xlu0 %v5345, 48
        %v5360 = vpop.permute.xlu0 %5359
        %v5362 = vsel %vm1878, %v5011, %v5352
        %v5363 = vsel %vm2696, %v5362, %v5356
        %v5364 = vsel %vm2701, %v5363, %v5360
        %v5365 = vld [vmem:[%s49] sm:$0xf]
        %v5366 = vld [vmem:[%s49 + $0x4] sm:$0xf]
        %v5367 = vld [vmem:[%s49 + $0x8] sm:$0xf]
        %v5368 = vld [vmem:[%s49 + $0xc] sm:$0xf]
        %v5369 = vld [vmem:[%s49 + $0x10] sm:$0xf]
        %v5370 = vld [vmem:[%s49 + $0x14] sm:$0xf]
        %v5371 = vld [vmem:[%s49 + $0x18] sm:$0xf]
        %v5372 = vld [vmem:[%s49 + $0x1c] sm:$0xf]
        %v5373 = vpack.c.bf16 %v5364, %v5364
        %v5382 = vunpack.c.l.b16 %v5365
        %v5383 = vunpack.c.l.b16 %v5366
        %v5384 = vunpack.c.l.b16 %v5367
        %v5385 = vunpack.c.l.b16 %v5368
        %v5386 = vunpack.c.l.b16 %v5369
        %v5387 = vunpack.c.l.b16 %v5370
        %v5388 = vunpack.c.l.b16 %v5371
        %v5389 = vunpack.c.l.b16 %v5372
        %v5390 = vpack.c.b16 %v5383, %v5382
        %v5391 = vpack.c.b16 %v5385, %v5384
        %v5392 = vpack.c.b16 %v5387, %v5386
        %v5393 = vpack.c.b16 %v5389, %v5388
        %v5399 = vsel %vm1674, %v5373, 0
        %5401 = vmatprep.subr.bf16.mxu0 0
        %5402 = vmatpush1.bf16.msra.mxu0 %v5390
        %5403 = vmatprep.subr.bf16.mxu0 0
        %5404 = vmatpush1.bf16.msra.mxu0 %v5391
        %5405 = vmatprep.subr.bf16.mxu0 0
        %5406 = vmatpush1.bf16.msra.mxu0 %v5392
        %5407 = vmatprep.subr.bf16.mxu0 0
        %5408 = vmatpush1.bf16.msra.mxu0 %v5393
        %5409 = vmatprep.subr.bf16.mxu0 0
        %5410 = vmatpush1.bf16.msra.mxu0 0
        %5411 = vmatprep.subr.bf16.mxu0 0
        %5412 = vmatpush1.bf16.msra.mxu0 0
        %5413 = vmatprep.subr.bf16.mxu0 0
        %5414 = vmatpush1.bf16.msra.mxu0 0
        %5415 = vmatprep.subr.bf16.mxu0 0
        %5416 = vmatpush1.bf16.msra.mxu0 0
        %5417 = vmatprep.subr.bf16.mxu0 0
        %5418 = vmatpush1.bf16.msra.mxu0 0
        %5419 = vmatprep.subr.bf16.mxu0 0
        %5420 = vmatpush1.bf16.msra.mxu0 0
        %5421 = vmatprep.subr.bf16.mxu0 0
        %5422 = vmatpush1.bf16.msra.mxu0 0
        %5423 = vmatprep.subr.bf16.mxu0 0
        %5424 = vmatpush1.bf16.msra.mxu0 0
        %5425 = vmatprep.subr.bf16.mxu0 0
        %5426 = vmatpush1.bf16.msra.mxu0 0
        %5427 = vmatprep.subr.bf16.mxu0 0
        %5428 = vmatpush1.bf16.msra.mxu0 0
        %5429 = vmatprep.subr.bf16.mxu0 0
        %5430 = vmatpush1.bf16.msra.mxu0 0
        %5431 = vmatprep.subr.bf16.mxu0 0
        %5432 = vmatpush1.bf16.msra.mxu0 0
        %5433 = vmatprep.mubr.bf16.mxu0 0
        %5434 = vmatmul.mubr.bf16.gmra.mrb[0].mxu0 %v5399
        %v5435 = vpop.f32.mrb[0].mxu0
        %v5436 = vadd.f32 0.0, %v5435
        %v5437 = vpop.f32.mrb[0].mxu0
        %v5438 = vpop.f32.mrb[0].mxu0
        %v5439 = vpop.f32.mrb[0].mxu0
        %5440 = vdwg.mxu0
        %v5441 = vadd.f32 %v4762, %v5436
        %v5442 = vld [vmem:[%s51] sm:$0x1]
        %v5444 = vlaneseq
        %v5445 = vshrl.u32 %v5444, 7
        %v5446 = vsub.s32 0, %v5445
        %v5447 = vrot.slane %v5442, %v5446
        %v5449 = vadd.f32 %v5441, %v5447
        %v5450 = vld [vmem:[%s53] sm:$0x1]
        %v5451 = vld [vmem:[%s55] sm:$0x1]
        %v5452 = vsel %vm4767, %v5449, 0.0
        %5453 = vadd.xlane.f32.xlu0 %v5452
        %v5454 = vpop.xlane.xlu0 %5453
        %v5455 = vmul.f32 %v5454, %v1688
        %v5456 = vsub.f32 %v5449, %v5455
        %v5457 = vmul.f32 %v5456, %v5456
        %v5458 = vsel %vm4767, %v5457, 0.0
        %5459 = vadd.xlane.f32.xlu0 %v5458
        %v5460 = vpop.xlane.xlu0 %5459
        %v5461 = vmul.f32 %v5460, %v1688
        %v5462 = vadd.f32 %v5461, 1e-06
        %v5463 = vrsqrt.pop %v5462
        %v5464 = vmul.f32 %v5456, %v5463
        %v5466 = vlaneseq
        %v5467 = vshrl.u32 %v5466, 7
        %v5468 = vsub.s32 0, %v5467
        %v5469 = vrot.slane %v5450, %v5468
        %v5471 = vmul.f32 %v5464, %v5469
        %v5473 = vlaneseq
        %v5474 = vshrl.u32 %v5473, 7
        %v5475 = vsub.s32 0, %v5474
        %v5476 = vrot.slane %v5451, %v5475
        %v5478 = vadd.f32 %v5471, %v5476
        %v5479 = vld [vmem:[%s57] sm:$0xf]
        %v5480 = vld [vmem:[%s57 + $0x4] sm:$0xf]
        %v5481 = vld [vmem:[%s57 + $0x8] sm:$0xf]
        %v5482 = vld [vmem:[%s57 + $0xc] sm:$0xf]
        %v5483 = vld [vmem:[%s57 + $0x10] sm:$0xf]
        %v5484 = vld [vmem:[%s57 + $0x14] sm:$0xf]
        %v5485 = vld [vmem:[%s57 + $0x18] sm:$0xf]
        %v5486 = vld [vmem:[%s57 + $0x1c] sm:$0xf]
        %v5487 = vpack.c.bf16 %v5478, %v5478
        %v5488 = vld [vmem:[%s59] sm:$0x1]
        %v5490 = vlaneseq
        %v5491 = vshrl.u32 %v5490, 7
        %v5492 = vsub.s32 0, %v5491
        %v5493 = vrot.slane %v5488, %v5492
        %v5503 = vunpack.c.l.b16 %v5479
        %v5504 = vunpack.c.l.b16 %v5480
        %v5505 = vunpack.c.l.b16 %v5481
        %v5506 = vunpack.c.l.b16 %v5482
        %v5507 = vunpack.c.l.b16 %v5483
        %v5508 = vunpack.c.l.b16 %v5484
        %v5509 = vunpack.c.l.b16 %v5485
        %v5510 = vunpack.c.l.b16 %v5486
        %v5511 = vpack.c.b16 %v5504, %v5503
        %v5512 = vpack.c.b16 %v5506, %v5505
        %v5513 = vpack.c.b16 %v5508, %v5507
        %v5514 = vpack.c.b16 %v5510, %v5509
        %v5520 = vsel %vm1674, %v5487, 0
        %5522 = vmatprep.subr.bf16.mxu0 0
        %5523 = vmatpush1.bf16.msra.mxu0 %v5511
        %5524 = vmatprep.subr.bf16.mxu0 0
        %5525 = vmatpush1.bf16.msra.mxu0 %v5512
        %5526 = vmatprep.subr.bf16.mxu0 0
        %5527 = vmatpush1.bf16.msra.mxu0 %v5513
        %5528 = vmatprep.subr.bf16.mxu0 0
        %5529 = vmatpush1.bf16.msra.mxu0 %v5514
        %5530 = vmatprep.subr.bf16.mxu0 0
        %5531 = vmatpush1.bf16.msra.mxu0 0
        %5532 = vmatprep.subr.bf16.mxu0 0
        %5533 = vmatpush1.bf16.msra.mxu0 0
        %5534 = vmatprep.subr.bf16.mxu0 0
        %5535 = vmatpush1.bf16.msra.mxu0 0
        %5536 = vmatprep.subr.bf16.mxu0 0
        %5537 = vmatpush1.bf16.msra.mxu0 0
        %5538 = vmatprep.subr.bf16.mxu0 0
        %5539 = vmatpush1.bf16.msra.mxu0 0
        %5540 = vmatprep.subr.bf16.mxu0 0
        %5541 = vmatpush1.bf16.msra.mxu0 0
        %5542 = vmatprep.subr.bf16.mxu0 0
        %5543 = vmatpush1.bf16.msra.mxu0 0
        %5544 = vmatprep.subr.bf16.mxu0 0
        %5545 = vmatpush1.bf16.msra.mxu0 0
        %5546 = vmatprep.subr.bf16.mxu0 0
        %5547 = vmatpush1.bf16.msra.mxu0 0
        %5548 = vmatprep.subr.bf16.mxu0 0
        %5549 = vmatpush1.bf16.msra.mxu0 0
        %5550 = vmatprep.subr.bf16.mxu0 0
        %5551 = vmatpush1.bf16.msra.mxu0 0
        %5552 = vmatprep.subr.bf16.mxu0 0
        %5553 = vmatpush1.bf16.msra.mxu0 0
        %5554 = vmatprep.mubr.bf16.mxu0 0
        %5555 = vmatmul.mubr.bf16.gmra.mrb[0].mxu0 %v5520
        %v5556 = vpop.f32.mrb[0].mxu0
        %v5557 = vadd.f32 %v5493, %v5556
        %v5558 = vpop.f32.mrb[0].mxu0
        %v5559 = vpop.f32.mrb[0].mxu0
        %v5560 = vpop.f32.mrb[0].mxu0
        %5561 = vdwg.mxu0
        %v5562 = vmul.f32 %v5557, %v5557
        %v5563 = vmul.f32 %v5557, %v5562
        %v5564 = vmul.f32 %v5563, 0.044715
        %v5565 = vadd.f32 %v5557, %v5564
        %v5566 = vmul.f32 %v5565, 0.7978846
        %v5567 = vtanh.pop %v5566
        %v5568 = vadd.f32 %v5567, 1.0
        %v5569 = vmul.f32 %v5568, 0.5
        %v5570 = vmul.f32 %v5557, %v5569
        %v5571 = vld [vmem:[%s61] sm:$0xf]
        %v5572 = vld [vmem:[%s61 + $0x4] sm:$0xf]
        %v5573 = vld [vmem:[%s61 + $0x8] sm:$0xf]
        %v5574 = vld [vmem:[%s61 + $0xc] sm:$0xf]
        %v5575 = vld [vmem:[%s61 + $0x10] sm:$0xf]
        %v5576 = vld [vmem:[%s61 + $0x14] sm:$0xf]
        %v5577 = vld [vmem:[%s61 + $0x18] sm:$0xf]
        %v5578 = vld [vmem:[%s61 + $0x1c] sm:$0xf]
        %v5579 = vpack.c.bf16 %v5570, %v5570
        %v5588 = vunpack.c.l.b16 %v5571
        %v5589 = vunpack.c.l.b16 %v5572
        %v5590 = vunpack.c.l.b16 %v5573
        %v5591 = vunpack.c.l.b16 %v5574
        %v5592 = vunpack.c.l.b16 %v5575
        %v5593 = vunpack.c.l.b16 %v5576
        %v5594 = vunpack.c.l.b16 %v5577
        %v5595 = vunpack.c.l.b16 %v5578
        %v5596 = vpack.c.b16 %v5589, %v5588
        %v5597 = vpack.c.b16 %v5591, %v5590
        %v5598 = vpack.c.b16 %v5593, %v5592
        %v5599 = vpack.c.b16 %v5595, %v5594
        %v5605 = vsel %vm1674, %v5579, 0
        %5607 = vmatprep.subr.bf16.mxu0 0
        %5608 = vmatpush1.bf16.msra.mxu0 %v5596
        %5609 = vmatprep.subr.bf16.mxu0 0
        %5610 = vmatpush1.bf16.msra.mxu0 %v5597
        %5611 = vmatprep.subr.bf16.mxu0 0
        %5612 = vmatpush1.bf16.msra.mxu0 %v5598
        %5613 = vmatprep.subr.bf16.mxu0 0
        %5614 = vmatpush1.bf16.msra.mxu0 %v5599
        %5615 = vmatprep.subr.bf16.mxu0 0
        %5616 = vmatpush1.bf16.msra.mxu0 0
        %5617 = vmatprep.subr.bf16.mxu0 0
        %5618 = vmatpush1.bf16.msra.mxu0 0
        %5619 = vmatprep.subr.bf16.mxu0 0
        %5620 = vmatpush1.bf16.msra.mxu0 0
        %5621 = vmatprep.subr.bf16.mxu0 0
        %5622 = vmatpush1.bf16.msra.mxu0 0
        %5623 = vmatprep.subr.bf16.mxu0 0
        %5624 = vmatpush1.bf16.msra.mxu0 0
        %5625 = vmatprep.subr.bf16.mxu0 0
        %5626 = vmatpush1.bf16.msra.mxu0 0
        %5627 = vmatprep.subr.bf16.mxu0 0
        %5628 = vmatpush1.bf16.msra.mxu0 0
        %5629 = vmatprep.subr.bf16.mxu0 0
        %5630 = vmatpush1.bf16.msra.mxu0 0
        %5631 = vmatprep.subr.bf16.mxu0 0
        %5632 = vmatpush1.bf16.msra.mxu0 0
        %5633 = vmatprep.subr.bf16.mxu0 0
        %5634 = vmatpush1.bf16.msra.mxu0 0
        %5635 = vmatprep.subr.bf16.mxu0 0
        %5636 = vmatpush1.bf16.msra.mxu0 0
        %5637 = vmatprep.subr.bf16.mxu0 0
        %5638 = vmatpush1.bf16.msra.mxu0 0
        %5639 = vmatprep.mubr.bf16.mxu0 0
        %5640 = vmatmul.mubr.bf16.gmra.mrb[0].mxu0 %v5605
        %v5641 = vpop.f32.mrb[0].mxu0
        %v5642 = vadd.f32 0.0, %v5641
        %v5643 = vpop.f32.mrb[0].mxu0
        %v5644 = vpop.f32.mrb[0].mxu0
        %v5645 = vpop.f32.mrb[0].mxu0
        %5646 = vdwg.mxu0
        %v5647 = vadd.f32 %v5449, %v5642
        %v5648 = vld [vmem:[%s63] sm:$0x1]
        %v5650 = vlaneseq
        %v5651 = vshrl.u32 %v5650, 7
        %v5652 = vsub.s32 0, %v5651
        %v5653 = vrot.slane %v5648, %v5652
        %v5655 = vadd.f32 %v5647, %v5653
        %s5656 = scalar_lea.vmem %s41, 1
        %v5657 = vld [vmem:[%s5656] sm:$0x1]
        %s5658 = scalar_lea.vmem %s43, 1
        %v5659 = vld [vmem:[%s5658] sm:$0x1]
        %v5660 = vsel %vm4767, %v5655, 0.0
        %5661 = vadd.xlane.f32.xlu0 %v5660
        %v5662 = vpop.xlane.xlu0 %5661
        %v5663 = vmul.f32 %v5662, %v1688
        %v5664 = vsub.f32 %v5655, %v5663
        %v5665 = vmul.f32 %v5664, %v5664
        %v5666 = vsel %vm4767, %v5665, 0.0
        %5667 = vadd.xlane.f32.xlu0 %v5666
        %v5668 = vpop.xlane.xlu0 %5667
        %v5669 = vmul.f32 %v5668, %v1688
        %v5670 = vadd.f32 %v5669, 1e-06
        %v5671 = vrsqrt.pop %v5670
        %v5672 = vmul.f32 %v5664, %v5671
        %v5674 = vlaneseq
        %v5675 = vshrl.u32 %v5674, 7
        %v5676 = vsub.s32 0, %v5675
        %v5677 = vrot.slane %v5657, %v5676
        %v5679 = vmul.f32 %v5672, %v5677
        %v5681 = vlaneseq
        %v5682 = vshrl.u32 %v5681, 7
        %v5683 = vsub.s32 0, %v5682
        %v5684 = vrot.slane %v5659, %v5683
        %v5686 = vadd.f32 %v5679, %v5684
        %s5687 = scalar_lea.vmem %s45, 64
        %v5688 = vld [vmem:[%s5687] sm:$0xff]
        %v5689 = vld [vmem:[%s5687 + $0x8] sm:$0xff]
        %v5690 = vld [vmem:[%s5687 + $0x10] sm:$0xff]
        %v5691 = vld [vmem:[%s5687 + $0x18] sm:$0xff]
        %v5692 = vld [vmem:[%s5687 + $0x20] sm:$0xff]
        %v5693 = vld [vmem:[%s5687 + $0x28] sm:$0xff]
        %v5694 = vld [vmem:[%s5687 + $0x30] sm:$0xff]
        %v5695 = vld [vmem:[%s5687 + $0x38] sm:$0xff]
        %v5696 = vpack.c.bf16 %v5686, %v5686
        %s5697 = scalar_lea.vmem %s47, 2
        %v5698 = vld [vmem:[%s5697] sm:$0x3]
        %v5700 = vlaneseq
        %v5701 = vshrl.u32 %v5700, 7
        %v5702 = vsub.s32 0, %v5701
        %v5703 = vrot.slane %v5698, %v5702
        %v5704 = vlaneseq
        %v5705 = vshrl.u32 %v5704, 7
        %v5706 = vsub.s32 1, %v5705
        %v5707 = vrot.slane %v5698, %v5706
        %v5718 = vunpack.c.l.b16 %v5688
        %v5719 = vunpack.c.h.b16 %v5688
        %v5720 = vunpack.c.l.b16 %v5689
        %v5721 = vunpack.c.h.b16 %v5689
        %v5722 = vunpack.c.l.b16 %v5690
        %v5723 = vunpack.c.h.b16 %v5690
        %v5724 = vunpack.c.l.b16 %v5691
        %v5725 = vunpack.c.h.b16 %v5691
        %v5726 = vunpack.c.l.b16 %v5692
        %v5727 = vunpack.c.h.b16 %v5692
        %v5728 = vunpack.c.l.b16 %v5693
        %v5729 = vunpack.c.h.b16 %v5693
        %v5730 = vunpack.c.l.b16 %v5694
        %v5731 = vunpack.c.h.b16 %v5694
        %v5732 = vunpack.c.l.b16 %v5695
        %v5733 = vunpack.c.h.b16 %v5695
        %v5734 = vpack.c.b16 %v5720, %v5718
        %v5735 = vpack.c.b16 %v5721, %v5719
        %v5736 = vpack.c.b16 %v5724, %v5722
        %v5737 = vpack.c.b16 %v5725, %v5723
        %v5738 = vpack.c.b16 %v5728, %v5726
        %v5739 = vpack.c.b16 %v5729, %v5727
        %v5740 = vpack.c.b16 %v5732, %v5730
        %v5741 = vpack.c.b16 %v5733, %v5731
        %v5751 = vsel %vm1674, %v5696, 0
        %5753 = vmatprep.subr.bf16.mxu0 %v5735
        %5754 = vmatpush1.bf16.msra.mxu0 %v5734
        %5755 = vmatprep.subr.bf16.mxu0 %v5737
        %5756 = vmatpush1.bf16.msra.mxu0 %v5736
        %5757 = vmatprep.subr.bf16.mxu0 %v5739
        %5758 = vmatpush1.bf16.msra.mxu0 %v5738
        %5759 = vmatprep.subr.bf16.mxu0 %v5741
        %5760 = vmatpush1.bf16.msra.mxu0 %v5740
        %5761 = vmatprep.subr.bf16.mxu0 0
        %5762 = vmatpush1.bf16.msra.mxu0 0
        %5763 = vmatprep.subr.bf16.mxu0 0
        %5764 = vmatpush1.bf16.msra.mxu0 0
        %5765 = vmatprep.subr.bf16.mxu0 0
        %5766 = vmatpush1.bf16.msra.mxu0 0
        %5767 = vmatprep.subr.bf16.mxu0 0
        %5768 = vmatpush1.bf16.msra.mxu0 0
        %5769 = vmatprep.subr.bf16.mxu0 0
        %5770 = vmatpush1.bf16.msra.mxu0 0
        %5771 = vmatprep.subr.bf16.mxu0 0
        %5772 = vmatpush1.bf16.msra.mxu0 0
        %5773 = vmatprep.subr.bf16.mxu0 0
        %5774 = vmatpush1.bf16.msra.mxu0 0
        %5775 = vmatprep.subr.bf16.mxu0 0
        %5776 = vmatpush1.bf16.msra.mxu0 0
        %5777 = vmatprep.subr.bf16.mxu0 0
        %5778 = vmatpush1.bf16.msra.mxu0 0
        %5779 = vmatprep.subr.bf16.mxu0 0
        %5780 = vmatpush1.bf16.msra.mxu0 0
        %5781 = vmatprep.subr.bf16.mxu0 0
        %5782 = vmatpush1.bf16.msra.mxu0 0
        %5783 = vmatprep.subr.bf16.mxu0 0
        %5784 = vmatpush1.bf16.msra.mxu0 0
        %5785 = vmatprep.mubr.bf16.mxu0 0
        %5786 = vmatmul.mubr.bf16.gmra.mrb[0].mxu0 %v5751
        %v5787 = vpop.f32.mrb[0].mxu0
        %v5788 = vadd.f32 %v5703, %v5787
        %v5789 = vpop.f32.mrb[0].mxu0
        %v5790 = vadd.f32 %v5707, %v5789
        %v5791 = vpop.f32.mrb[0].mxu0
        %v5792 = vpop.f32.mrb[0].mxu0
        %5793 = vdwg.mxu0
        %v5794 = vpack.c.bf16 %v5788, %v5788
        %5796 = vrot.lane.b32.xlu0 %v5794, 64
        %v5797 = vpop.permute.xlu0 %5796
        %v5799 = vsel %vm1878, %v5794, 0
        %v5802 = vsel %vm1878, %v5797, 0
        %5804 = vmatprep.subr.bf16.mxu0 0
        %5805 = vmatpush1.bf16.xpose.msra.mxu0 %v5802
        %5806 = vmatprep.subr.bf16.mxu0 0
        %5807 = vmatpush1.bf16.xpose.msra.mxu0 0
        %5808 = vmatprep.subr.bf16.mxu0 0
        %5809 = vmatpush1.bf16.xpose.msra.mxu0 0
        %5810 = vmatprep.subr.bf16.mxu0 0
        %5811 = vmatpush1.bf16.xpose.msra.mxu0 0
        %5812 = vmatprep.subr.bf16.mxu0 0
        %5813 = vmatpush1.bf16.xpose.msra.mxu0 0
        %5814 = vmatprep.subr.bf16.mxu0 0
        %5815 = vmatpush1.bf16.xpose.msra.mxu0 0
        %5816 = vmatprep.subr.bf16.mxu0 0
        %5817 = vmatpush1.bf16.xpose.msra.mxu0 0
        %5818 = vmatprep.subr.bf16.mxu0 0
        %5819 = vmatpush1.bf16.xpose.msra.mxu0 0
        %5820 = vmatprep.subr.bf16.mxu0 0
        %5821 = vmatpush1.bf16.xpose.msra.mxu0 0
        %5822 = vmatprep.subr.bf16.mxu0 0
        %5823 = vmatpush1.bf16.xpose.msra.mxu0 0
        %5824 = vmatprep.subr.bf16.mxu0 0
        %5825 = vmatpush1.bf16.xpose.msra.mxu0 0
        %5826 = vmatprep.subr.bf16.mxu0 0
        %5827 = vmatpush1.bf16.xpose.msra.mxu0 0
        %5828 = vmatprep.subr.bf16.mxu0 0
        %5829 = vmatpush1.bf16.xpose.msra.mxu0 0
        %5830 = vmatprep.subr.bf16.mxu0 0
        %5831 = vmatpush1.bf16.xpose.msra.mxu0 0
        %5832 = vmatprep.subr.bf16.mxu0 0
        %5833 = vmatpush1.bf16.xpose.msra.mxu0 0
        %5834 = vmatprep.subr.bf16.mxu0 0
        %5835 = vmatpush1.bf16.xpose.msra.mxu0 0
        %5836 = vmatprep.mubr.bf16.mxu0 0
        %5837 = vmatmul.mubr.bf16.gmra.mrb[0].mxu0 %v5799
        %v5838 = vpop.f32.mrb[0].mxu0
        %v5839 = vadd.f32 0.0, %v5838
        %v5840 = vpop.f32.mrb[0].mxu0
        %v5841 = vpop.f32.mrb[0].mxu0
        %v5842 = vpop.f32.mrb[0].mxu0
        %5843 = vdwg.mxu0
        %v5844 = vmul.f32 %v5839, 0.25
        %v5845 = vsel %vm4951, %v5844, -inf
        %5846 = vmax.xlane.f32.xlu0 %v5845
        %v5847 = vpop.xlane.xlu0 %5846
        %v5848 = vsub.f32 %v5844, %v5847
        %v5849 = vmul.f32 %v5848, 1.442695
        %v5850 = vpow.pop %v5849
        %v5851 = vsel %vm4951, %v5850, 0.0
        %5852 = vadd.xlane.f32.xlu0 %v5851
        %v5853 = vpop.xlane.xlu0 %5852
        %v5854 = vrcp.pop %v5853
        %v5855 = vmul.f32 %v5850, %v5854
        %v5856 = vpack.c.bf16 %v5855, %v5855
        %v5857 = vpack.c.bf16 %v5790, %v5790
        %v5859 = vsel %vm4965, %v5856, 0
        %v5862 = vand.u32 %v5857, %v4972
        %5864 = vmatprep.subr.bf16.mxu0 0
        %5865 = vmatpush1.bf16.msra.mxu0 %v5862
        %5866 = vmatprep.subr.bf16.mxu0 0
        %5867 = vmatpush1.bf16.msra.mxu0 0
        %5868 = vmatprep.subr.bf16.mxu0 0
        %5869 = vmatpush1.bf16.msra.mxu0 0
        %5870 = vmatprep.subr.bf16.mxu0 0
        %5871 = vmatpush1.bf16.msra.mxu0 0
        %5872 = vmatprep.subr.bf16.mxu0 0
        %5873 = vmatpush1.bf16.msra.mxu0 0
        %5874 = vmatprep.subr.bf16.mxu0 0
        %5875 = vmatpush1.bf16.msra.mxu0 0
        %5876 = vmatprep.subr.bf16.mxu0 0
        %5877 = vmatpush1.bf16.msra.mxu0 0
        %5878 = vmatprep.subr.bf16.mxu0 0
        %5879 = vmatpush1.bf16.msra.mxu0 0
        %5880 = vmatprep.subr.bf16.mxu0 0
        %5881 = vmatpush1.bf16.msra.mxu0 0
        %5882 = vmatprep.subr.bf16.mxu0 0
        %5883 = vmatpush1.bf16.msra.mxu0 0
        %5884 = vmatprep.subr.bf16.mxu0 0
        %5885 = vmatpush1.bf16.msra.mxu0 0
        %5886 = vmatprep.subr.bf16.mxu0 0
        %5887 = vmatpush1.bf16.msra.mxu0 0
        %5888 = vmatprep.subr.bf16.mxu0 0
        %5889 = vmatpush1.bf16.msra.mxu0 0
        %5890 = vmatprep.subr.bf16.mxu0 0
        %5891 = vmatpush1.bf16.msra.mxu0 0
        %5892 = vmatprep.subr.bf16.mxu0 0
        %5893 = vmatpush1.bf16.msra.mxu0 0
        %5894 = vmatprep.subr.bf16.mxu0 0
        %5895 = vmatpush1.bf16.msra.mxu0 0
        %5896 = vmatprep.mubr.bf16.mxu0 0
        %5897 = vmatmul.mubr.bf16.gmra.mrb[0].mxu0 %v5859
        %v5898 = vpop.f32.mrb[0].mxu0
        %v5899 = vadd.f32 0.0, %v5898
        %v5900 = vpop.f32.mrb[0].mxu0
        %v5901 = vpop.f32.mrb[0].mxu0
        %v5902 = vpop.f32.mrb[0].mxu0
        %5903 = vdwg.mxu0
        %5904 = vrot.lane.b32.xlu0 %v5794, 112
        %v5905 = vpop.permute.xlu0 %5904
        %5906 = vrot.lane.b32.xlu0 %v5794, 48
        %v5907 = vpop.permute.xlu0 %5906
        %v5909 = vsel %vm1878, %v5905, 0
        %v5912 = vsel %vm1878, %v5907, 0
        %5914 = vmatprep.subr.bf16.mxu0 0
        %5915 = vmatpush1.bf16.xpose.msra.mxu0 %v5912
        %5916 = vmatprep.subr.bf16.mxu0 0
        %5917 = vmatpush1.bf16.xpose.msra.mxu0 0
        %5918 = vmatprep.subr.bf16.mxu0 0
        %5919 = vmatpush1.bf16.xpose.msra.mxu0 0
        %5920 = vmatprep.subr.bf16.mxu0 0
        %5921 = vmatpush1.bf16.xpose.msra.mxu0 0
        %5922 = vmatprep.subr.bf16.mxu0 0
        %5923 = vmatpush1.bf16.xpose.msra.mxu0 0
        %5924 = vmatprep.subr.bf16.mxu0 0
        %5925 = vmatpush1.bf16.xpose.msra.mxu0 0
        %5926 = vmatprep.subr.bf16.mxu0 0
        %5927 = vmatpush1.bf16.xpose.msra.mxu0 0
        %5928 = vmatprep.subr.bf16.mxu0 0
        %5929 = vmatpush1.bf16.xpose.msra.mxu0 0
        %5930 = vmatprep.subr.bf16.mxu0 0
        %5931 = vmatpush1.bf16.xpose.msra.mxu0 0
        %5932 = vmatprep.subr.bf16.mxu0 0
        %5933 = vmatpush1.bf16.xpose.msra.mxu0 0
        %5934 = vmatprep.subr.bf16.mxu0 0
        %5935 = vmatpush1.bf16.xpose.msra.mxu0 0
        %5936 = vmatprep.subr.bf16.mxu0 0
        %5937 = vmatpush1.bf16.xpose.msra.mxu0 0
        %5938 = vmatprep.subr.bf16.mxu0 0
        %5939 = vmatpush1.bf16.xpose.msra.mxu0 0
        %5940 = vmatprep.subr.bf16.mxu0 0
        %5941 = vmatpush1.bf16.xpose.msra.mxu0 0
        %5942 = vmatprep.subr.bf16.mxu0 0
        %5943 = vmatpush1.bf16.xpose.msra.mxu0 0
        %5944 = vmatprep.subr.bf16.mxu0 0
        %5945 = vmatpush1.bf16.xpose.msra.mxu0 0
        %5946 = vmatprep.mubr.bf16.mxu0 0
        %5947 = vmatmul.mubr.bf16.gmra.mrb[0].mxu0 %v5909
        %v5948 = vpop.f32.mrb[0].mxu0
        %v5949 = vadd.f32 0.0, %v5948
        %v5950 = vpop.f32.mrb[0].mxu0
        %v5951 = vpop.f32.mrb[0].mxu0
        %v5952 = vpop.f32.mrb[0].mxu0
        %5953 = vdwg.mxu0
        %v5954 = vmul.f32 %v5949, 0.25
        %v5955 = vsel %vm4951, %v5954, -inf
        %5956 = vmax.xlane.f32.xlu0 %v5955
        %v5957 = vpop.xlane.xlu0 %5956
        %v5958 = vsub.f32 %v5954, %v5957
        %v5959 = vmul.f32 %v5958, 1.442695
        %v5960 = vpow.pop %v5959
        %v5961 = vsel %vm4951, %v5960, 0.0
        %5962 = vadd.xlane.f32.xlu0 %v5961
        %v5963 = vpop.xlane.xlu0 %5962
        %v5964 = vrcp.pop %v5963
        %v5965 = vmul.f32 %v5960, %v5964
        %v5966 = vpack.c.bf16 %v5965, %v5965
        %5968 = vrot.lane.b32.xlu0 %v5857, 112
        %v5969 = vpop.permute.xlu0 %5968
        %v5971 = vsel %vm4965, %v5966, 0
        %v5974 = vand.u32 %v5969, %v4972
        %5976 = vmatprep.subr.bf16.mxu0 0
        %5977 = vmatpush1.bf16.msra.mxu0 %v5974
        %5978 = vmatprep.subr.bf16.mxu0 0
        %5979 = vmatpush1.bf16.msra.mxu0 0
        %5980 = vmatprep.subr.bf16.mxu0 0
        %5981 = vmatpush1.bf16.msra.mxu0 0
        %5982 = vmatprep.subr.bf16.mxu0 0
        %5983 = vmatpush1.bf16.msra.mxu0 0
        %5984 = vmatprep.subr.bf16.mxu0 0
        %5985 = vmatpush1.bf16.msra.mxu0 0
        %5986 = vmatprep.subr.bf16.mxu0 0
        %5987 = vmatpush1.bf16.msra.mxu0 0
        %5988 = vmatprep.subr.bf16.mxu0 0
        %5989 = vmatpush1.bf16.msra.mxu0 0
        %5990 = vmatprep.subr.bf16.mxu0 0
        %5991 = vmatpush1.bf16.msra.mxu0 0
        %5992 = vmatprep.subr.bf16.mxu0 0
        %5993 = vmatpush1.bf16.msra.mxu0 0
        %5994 = vmatprep.subr.bf16.mxu0 0
        %5995 = vmatpush1.bf16.msra.mxu0 0
        %5996 = vmatprep.subr.bf16.mxu0 0
        %5997 = vmatpush1.bf16.msra.mxu0 0
        %5998 = vmatprep.subr.bf16.mxu0 0
        %5999 = vmatpush1.bf16.msra.mxu0 0
        %6000 = vmatprep.subr.bf16.mxu0 0
        %6001 = vmatpush1.bf16.msra.mxu0 0
        %6002 = vmatprep.subr.bf16.mxu0 0
        %6003 = vmatpush1.bf16.msra.mxu0 0
        %6004 = vmatprep.subr.bf16.mxu0 0
        %6005 = vmatpush1.bf16.msra.mxu0 0
        %6006 = vmatprep.subr.bf16.mxu0 0
        %6007 = vmatpush1.bf16.msra.mxu0 0
        %6008 = vmatprep.mubr.bf16.mxu0 0
        %6009 = vmatmul.mubr.bf16.gmra.mrb[0].mxu0 %v5971
        %v6010 = vpop.f32.mrb[0].mxu0
        %v6011 = vadd.f32 0.0, %v6010
        %v6012 = vpop.f32.mrb[0].mxu0
        %v6013 = vpop.f32.mrb[0].mxu0
        %v6014 = vpop.f32.mrb[0].mxu0
        %6015 = vdwg.mxu0
        %6016 = vrot.lane.b32.xlu0 %v5794, 96
        %v6017 = vpop.permute.xlu0 %6016
        %6018 = vrot.lane.b32.xlu0 %v5794, 32
        %v6019 = vpop.permute.xlu0 %6018
        %v6021 = vsel %vm1878, %v6017, 0
        %v6024 = vsel %vm1878, %v6019, 0
        %6026 = vmatprep.subr.bf16.mxu0 0
        %6027 = vmatpush1.bf16.xpose.msra.mxu0 %v6024
        %6028 = vmatprep.subr.bf16.mxu0 0
        %6029 = vmatpush1.bf16.xpose.msra.mxu0 0
        %6030 = vmatprep.subr.bf16.mxu0 0
        %6031 = vmatpush1.bf16.xpose.msra.mxu0 0
        %6032 = vmatprep.subr.bf16.mxu0 0
        %6033 = vmatpush1.bf16.xpose.msra.mxu0 0
        %6034 = vmatprep.subr.bf16.mxu0 0
        %6035 = vmatpush1.bf16.xpose.msra.mxu0 0
        %6036 = vmatprep.subr.bf16.mxu0 0
        %6037 = vmatpush1.bf16.xpose.msra.mxu0 0
        %6038 = vmatprep.subr.bf16.mxu0 0
        %6039 = vmatpush1.bf16.xpose.msra.mxu0 0
        %6040 = vmatprep.subr.bf16.mxu0 0
        %6041 = vmatpush1.bf16.xpose.msra.mxu0 0
        %6042 = vmatprep.subr.bf16.mxu0 0
        %6043 = vmatpush1.bf16.xpose.msra.mxu0 0
        %6044 = vmatprep.subr.bf16.mxu0 0
        %6045 = vmatpush1.bf16.xpose.msra.mxu0 0
        %6046 = vmatprep.subr.bf16.mxu0 0
        %6047 = vmatpush1.bf16.xpose.msra.mxu0 0
        %6048 = vmatprep.subr.bf16.mxu0 0
        %6049 = vmatpush1.bf16.xpose.msra.mxu0 0
        %6050 = vmatprep.subr.bf16.mxu0 0
        %6051 = vmatpush1.bf16.xpose.msra.mxu0 0
        %6052 = vmatprep.subr.bf16.mxu0 0
        %6053 = vmatpush1.bf16.xpose.msra.mxu0 0
        %6054 = vmatprep.subr.bf16.mxu0 0
        %6055 = vmatpush1.bf16.xpose.msra.mxu0 0
        %6056 = vmatprep.subr.bf16.mxu0 0
        %6057 = vmatpush1.bf16.xpose.msra.mxu0 0
        %6058 = vmatprep.mubr.bf16.mxu0 0
        %6059 = vmatmul.mubr.bf16.gmra.mrb[0].mxu0 %v6021
        %v6060 = vpop.f32.mrb[0].mxu0
        %v6061 = vadd.f32 0.0, %v6060
        %v6062 = vpop.f32.mrb[0].mxu0
        %v6063 = vpop.f32.mrb[0].mxu0
        %v6064 = vpop.f32.mrb[0].mxu0
        %6065 = vdwg.mxu0
        %v6066 = vmul.f32 %v6061, 0.25
        %v6067 = vsel %vm4951, %v6066, -inf
        %6068 = vmax.xlane.f32.xlu0 %v6067
        %v6069 = vpop.xlane.xlu0 %6068
        %v6070 = vsub.f32 %v6066, %v6069
        %v6071 = vmul.f32 %v6070, 1.442695
        %v6072 = vpow.pop %v6071
        %v6073 = vsel %vm4951, %v6072, 0.0
        %6074 = vadd.xlane.f32.xlu0 %v6073
        %v6075 = vpop.xlane.xlu0 %6074
        %v6076 = vrcp.pop %v6075
        %v6077 = vmul.f32 %v6072, %v6076
        %v6078 = vpack.c.bf16 %v6077, %v6077
        %6079 = vrot.lane.b32.xlu0 %v5857, 96
        %v6080 = vpop.permute.xlu0 %6079
        %v6082 = vsel %vm4965, %v6078, 0
        %v6085 = vand.u32 %v6080, %v4972
        %6087 = vmatprep.subr.bf16.mxu0 0
        %6088 = vmatpush1.bf16.msra.mxu0 %v6085
        %6089 = vmatprep.subr.bf16.mxu0 0
        %6090 = vmatpush1.bf16.msra.mxu0 0
        %6091 = vmatprep.subr.bf16.mxu0 0
        %6092 = vmatpush1.bf16.msra.mxu0 0
        %6093 = vmatprep.subr.bf16.mxu0 0
        %6094 = vmatpush1.bf16.msra.mxu0 0
        %6095 = vmatprep.subr.bf16.mxu0 0
        %6096 = vmatpush1.bf16.msra.mxu0 0
        %6097 = vmatprep.subr.bf16.mxu0 0
        %6098 = vmatpush1.bf16.msra.mxu0 0
        %6099 = vmatprep.subr.bf16.mxu0 0
        %6100 = vmatpush1.bf16.msra.mxu0 0
        %6101 = vmatprep.subr.bf16.mxu0 0
        %6102 = vmatpush1.bf16.msra.mxu0 0
        %6103 = vmatprep.subr.bf16.mxu0 0
        %6104 = vmatpush1.bf16.msra.mxu0 0
        %6105 = vmatprep.subr.bf16.mxu0 0
        %6106 = vmatpush1.bf16.msra.mxu0 0
        %6107 = vmatprep.subr.bf16.mxu0 0
        %6108 = vmatpush1.bf16.msra.mxu0 0
        %6109 = vmatprep.subr.bf16.mxu0 0
        %6110 = vmatpush1.bf16.msra.mxu0 0
        %6111 = vmatprep.subr.bf16.mxu0 0
        %6112 = vmatpush1.bf16.msra.mxu0 0
        %6113 = vmatprep.subr.bf16.mxu0 0
        %6114 = vmatpush1.bf16.msra.mxu0 0
        %6115 = vmatprep.subr.bf16.mxu0 0
        %6116 = vmatpush1.bf16.msra.mxu0 0
        %6117 = vmatprep.subr.bf16.mxu0 0
        %6118 = vmatpush1.bf16.msra.mxu0 0
        %6119 = vmatprep.mubr.bf16.mxu0 0
        %6120 = vmatmul.mubr.bf16.gmra.mrb[0].mxu0 %v6082
        %v6121 = vpop.f32.mrb[0].mxu0
        %v6122 = vadd.f32 0.0, %v6121
        %v6123 = vpop.f32.mrb[0].mxu0
        %v6124 = vpop.f32.mrb[0].mxu0
        %v6125 = vpop.f32.mrb[0].mxu0
        %6126 = vdwg.mxu0
        %6127 = vrot.lane.b32.xlu0 %v5794, 80
        %v6128 = vpop.permute.xlu0 %6127
        %6129 = vrot.lane.b32.xlu0 %v5794, 16
        %v6130 = vpop.permute.xlu0 %6129
        %v6132 = vsel %vm1878, %v6128, 0
        %v6135 = vsel %vm1878, %v6130, 0
        %6137 = vmatprep.subr.bf16.mxu0 0
        %6138 = vmatpush1.bf16.xpose.msra.mxu0 %v6135
        %6139 = vmatprep.subr.bf16.mxu0 0
        %6140 = vmatpush1.bf16.xpose.msra.mxu0 0
        %6141 = vmatprep.subr.bf16.mxu0 0
        %6142 = vmatpush1.bf16.xpose.msra.mxu0 0
        %6143 = vmatprep.subr.bf16.mxu0 0
        %6144 = vmatpush1.bf16.xpose.msra.mxu0 0
        %6145 = vmatprep.subr.bf16.mxu0 0
        %6146 = vmatpush1.bf16.xpose.msra.mxu0 0
        %6147 = vmatprep.subr.bf16.mxu0 0
        %6148 = vmatpush1.bf16.xpose.msra.mxu0 0
        %6149 = vmatprep.subr.bf16.mxu0 0
        %6150 = vmatpush1.bf16.xpose.msra.mxu0 0
        %6151 = vmatprep.subr.bf16.mxu0 0
        %6152 = vmatpush1.bf16.xpose.msra.mxu0 0
        %6153 = vmatprep.subr.bf16.mxu0 0
        %6154 = vmatpush1.bf16.xpose.msra.mxu0 0
        %6155 = vmatprep.subr.bf16.mxu0 0
        %6156 = vmatpush1.bf16.xpose.msra.mxu0 0
        %6157 = vmatprep.subr.bf16.mxu0 0
        %6158 = vmatpush1.bf16.xpose.msra.mxu0 0
        %6159 = vmatprep.subr.bf16.mxu0 0
        %6160 = vmatpush1.bf16.xpose.msra.mxu0 0
        %6161 = vmatprep.subr.bf16.mxu0 0
        %6162 = vmatpush1.bf16.xpose.msra.mxu0 0
        %6163 = vmatprep.subr.bf16.mxu0 0
        %6164 = vmatpush1.bf16.xpose.msra.mxu0 0
        %6165 = vmatprep.subr.bf16.mxu0 0
        %6166 = vmatpush1.bf16.xpose.msra.mxu0 0
        %6167 = vmatprep.subr.bf16.mxu0 0
        %6168 = vmatpush1.bf16.xpose.msra.mxu0 0
        %6169 = vmatprep.mubr.bf16.mxu0 0
        %6170 = vmatmul.mubr.bf16.gmra.mrb[0].mxu0 %v6132
        %v6171 = vpop.f32.mrb[0].mxu0
        %v6172 = vadd.f32 0.0, %v6171
        %v6173 = vpop.f32.mrb[0].mxu0
        %v6174 = vpop.f32.mrb[0].mxu0
        %v6175 = vpop.f32.mrb[0].mxu0
        %6176 = vdwg.mxu0
        %v6177 = vmul.f32 %v6172, 0.25
        %v6178 = vsel %vm4951, %v6177, -inf
        %6179 = vmax.xlane.f32.xlu0 %v6178
        %v6180 = vpop.xlane.xlu0 %6179
        %v6181 = vsub.f32 %v6177, %v6180
        %v6182 = vmul.f32 %v6181, 1.442695
        %v6183 = vpow.pop %v6182
        %v6184 = vsel %vm4951, %v6183, 0.0
        %6185 = vadd.xlane.f32.xlu0 %v6184
        %v6186 = vpop.xlane.xlu0 %6185
        %v6187 = vrcp.pop %v6186
        %v6188 = vmul.f32 %v6183, %v6187
        %v6189 = vpack.c.bf16 %v6188, %v6188
        %6190 = vrot.lane.b32.xlu0 %v5857, 80
        %v6191 = vpop.permute.xlu0 %6190
        %v6193 = vsel %vm4965, %v6189, 0
        %v6196 = vand.u32 %v6191, %v4972
        %6198 = vmatprep.subr.bf16.mxu0 0
        %6199 = vmatpush1.bf16.msra.mxu0 %v6196
        %6200 = vmatprep.subr.bf16.mxu0 0
        %6201 = vmatpush1.bf16.msra.mxu0 0
        %6202 = vmatprep.subr.bf16.mxu0 0
        %6203 = vmatpush1.bf16.msra.mxu0 0
        %6204 = vmatprep.subr.bf16.mxu0 0
        %6205 = vmatpush1.bf16.msra.mxu0 0
        %6206 = vmatprep.subr.bf16.mxu0 0
        %6207 = vmatpush1.bf16.msra.mxu0 0
        %6208 = vmatprep.subr.bf16.mxu0 0
        %6209 = vmatpush1.bf16.msra.mxu0 0
        %6210 = vmatprep.subr.bf16.mxu0 0
        %6211 = vmatpush1.bf16.msra.mxu0 0
        %6212 = vmatprep.subr.bf16.mxu0 0
        %6213 = vmatpush1.bf16.msra.mxu0 0
        %6214 = vmatprep.subr.bf16.mxu0 0
        %6215 = vmatpush1.bf16.msra.mxu0 0
        %6216 = vmatprep.subr.bf16.mxu0 0
        %6217 = vmatpush1.bf16.msra.mxu0 0
        %6218 = vmatprep.subr.bf16.mxu0 0
        %6219 = vmatpush1.bf16.msra.mxu0 0
        %6220 = vmatprep.subr.bf16.mxu0 0
        %6221 = vmatpush1.bf16.msra.mxu0 0
        %6222 = vmatprep.subr.bf16.mxu0 0
        %6223 = vmatpush1.bf16.msra.mxu0 0
        %6224 = vmatprep.subr.bf16.mxu0 0
        %6225 = vmatpush1.bf16.msra.mxu0 0
        %6226 = vmatprep.subr.bf16.mxu0 0
        %6227 = vmatpush1.bf16.msra.mxu0 0
        %6228 = vmatprep.subr.bf16.mxu0 0
        %6229 = vmatpush1.bf16.msra.mxu0 0
        %6230 = vmatprep.mubr.bf16.mxu0 0
        %6231 = vmatmul.mubr.bf16.gmra.mrb[0].mxu0 %v6193
        %v6232 = vpop.f32.mrb[0].mxu0
        %v6233 = vadd.f32 0.0, %v6232
        %v6234 = vpop.f32.mrb[0].mxu0
        %v6235 = vpop.f32.mrb[0].mxu0
        %v6236 = vpop.f32.mrb[0].mxu0
        %6237 = vdwg.mxu0
        %6239 = vrot.lane.b32.xlu0 %v6011, 16
        %v6240 = vpop.permute.xlu0 %6239
        %6243 = vrot.lane.b32.xlu0 %v6122, 32
        %v6244 = vpop.permute.xlu0 %6243
        %6247 = vrot.lane.b32.xlu0 %v6233, 48
        %v6248 = vpop.permute.xlu0 %6247
        %v6250 = vsel %vm1878, %v5899, %v6240
        %v6251 = vsel %vm2696, %v6250, %v6244
        %v6252 = vsel %vm2701, %v6251, %v6248
        %s6253 = scalar_lea.vmem %s49, 32
        %v6254 = vld [vmem:[%s6253] sm:$0xf]
        %v6255 = vld [vmem:[%s6253 + $0x4] sm:$0xf]
        %v6256 = vld [vmem:[%s6253 + $0x8] sm:$0xf]
        %v6257 = vld [vmem:[%s6253 + $0xc] sm:$0xf]
        %v6258 = vld [vmem:[%s6253 + $0x10] sm:$0xf]
        %v6259 = vld [vmem:[%s6253 + $0x14] sm:$0xf]
        %v6260 = vld [vmem:[%s6253 + $0x18] sm:$0xf]
        %v6261 = vld [vmem:[%s6253 + $0x1c] sm:$0xf]
        %v6262 = vpack.c.bf16 %v6252, %v6252
        %v6271 = vunpack.c.l.b16 %v6254
        %v6272 = vunpack.c.l.b16 %v6255
        %v6273 = vunpack.c.l.b16 %v6256
        %v6274 = vunpack.c.l.b16 %v6257
        %v6275 = vunpack.c.l.b16 %v6258
        %v6276 = vunpack.c.l.b16 %v6259
        %v6277 = vunpack.c.l.b16 %v6260
        %v6278 = vunpack.c.l.b16 %v6261
        %v6279 = vpack.c.b16 %v6272, %v6271
        %v6280 = vpack.c.b16 %v6274, %v6273
        %v6281 = vpack.c.b16 %v6276, %v6275
        %v6282 = vpack.c.b16 %v6278, %v6277
        %v6288 = vsel %vm1674, %v6262, 0
        %6290 = vmatprep.subr.bf16.mxu0 0
        %6291 = vmatpush1.bf16.msra.mxu0 %v6279
        %6292 = vmatprep.subr.bf16.mxu0 0
        %6293 = vmatpush1.bf16.msra.mxu0 %v6280
        %6294 = vmatprep.subr.bf16.mxu0 0
        %6295 = vmatpush1.bf16.msra.mxu0 %v6281
        %6296 = vmatprep.subr.bf16.mxu0 0
        %6297 = vmatpush1.bf16.msra.mxu0 %v6282
        %6298 = vmatprep.subr.bf16.mxu0 0
        %6299 = vmatpush1.bf16.msra.mxu0 0
        %6300 = vmatprep.subr.bf16.mxu0 0
        %6301 = vmatpush1.bf16.msra.mxu0 0
        %6302 = vmatprep.subr.bf16.mxu0 0
        %6303 = vmatpush1.bf16.msra.mxu0 0
        %6304 = vmatprep.subr.bf16.mxu0 0
        %6305 = vmatpush1.bf16.msra.mxu0 0
        %6306 = vmatprep.subr.bf16.mxu0 0
        %6307 = vmatpush1.bf16.msra.mxu0 0
        %6308 = vmatprep.subr.bf16.mxu0 0
        %6309 = vmatpush1.bf16.msra.mxu0 0
        %6310 = vmatprep.subr.bf16.mxu0 0
        %6311 = vmatpush1.bf16.msra.mxu0 0
        %6312 = vmatprep.subr.bf16.mxu0 0
        %6313 = vmatpush1.bf16.msra.mxu0 0
        %6314 = vmatprep.subr.bf16.mxu0 0
        %6315 = vmatpush1.bf16.msra.mxu0 0
        %6316 = vmatprep.subr.bf16.mxu0 0
        %6317 = vmatpush1.bf16.msra.mxu0 0
        %6318 = vmatprep.subr.bf16.mxu0 0
        %6319 = vmatpush1.bf16.msra.mxu0 0
        %6320 = vmatprep.subr.bf16.mxu0 0
        %6321 = vmatpush1.bf16.msra.mxu0 0
        %6322 = vmatprep.mubr.bf16.mxu0 0
        %6323 = vmatmul.mubr.bf16.gmra.mrb[0].mxu0 %v6288
        %v6324 = vpop.f32.mrb[0].mxu0
        %v6325 = vadd.f32 0.0, %v6324
        %v6326 = vpop.f32.mrb[0].mxu0
        %v6327 = vpop.f32.mrb[0].mxu0
        %v6328 = vpop.f32.mrb[0].mxu0
        %6329 = vdwg.mxu0
        %v6330 = vadd.f32 %v5655, %v6325
        %s6331 = scalar_lea.vmem %s51, 1
        %v6332 = vld [vmem:[%s6331] sm:$0x1]
        %v6334 = vlaneseq
        %v6335 = vshrl.u32 %v6334, 7
        %v6336 = vsub.s32 0, %v6335
        %v6337 = vrot.slane %v6332, %v6336
        %v6339 = vadd.f32 %v6330, %v6337
        %s6340 = scalar_lea.vmem %s53, 1
        %v6341 = vld [vmem:[%s6340] sm:$0x1]
        %s6342 = scalar_lea.vmem %s55, 1
        %v6343 = vld [vmem:[%s6342] sm:$0x1]
        %v6344 = vsel %vm4767, %v6339, 0.0
        %6345 = vadd.xlane.f32.xlu0 %v6344
        %v6346 = vpop.xlane.xlu0 %6345
        %v6347 = vmul.f32 %v6346, %v1688
        %v6348 = vsub.f32 %v6339, %v6347
        %v6349 = vmul.f32 %v6348, %v6348
        %v6350 = vsel %vm4767, %v6349, 0.0
        %6351 = vadd.xlane.f32.xlu0 %v6350
        %v6352 = vpop.xlane.xlu0 %6351
        %v6353 = vmul.f32 %v6352, %v1688
        %v6354 = vadd.f32 %v6353, 1e-06
        %v6355 = vrsqrt.pop %v6354
        %v6356 = vmul.f32 %v6348, %v6355
        %v6358 = vlaneseq
        %v6359 = vshrl.u32 %v6358, 7
        %v6360 = vsub.s32 0, %v6359
        %v6361 = vrot.slane %v6341, %v6360
        %v6363 = vmul.f32 %v6356, %v6361
        %v6365 = vlaneseq
        %v6366 = vshrl.u32 %v6365, 7
        %v6367 = vsub.s32 0, %v6366
        %v6368 = vrot.slane %v6343, %v6367
        %v6370 = vadd.f32 %v6363, %v6368
        %s6371 = scalar_lea.vmem %s57, 32
        %v6372 = vld [vmem:[%s6371] sm:$0xf]
        %v6373 = vld [vmem:[%s6371 + $0x4] sm:$0xf]
        %v6374 = vld [vmem:[%s6371 + $0x8] sm:$0xf]
        %v6375 = vld [vmem:[%s6371 + $0xc] sm:$0xf]
        %v6376 = vld [vmem:[%s6371 + $0x10] sm:$0xf]
        %v6377 = vld [vmem:[%s6371 + $0x14] sm:$0xf]
        %v6378 = vld [vmem:[%s6371 + $0x18] sm:$0xf]
        %v6379 = vld [vmem:[%s6371 + $0x1c] sm:$0xf]
        %v6380 = vpack.c.bf16 %v6370, %v6370
        %s6381 = scalar_lea.vmem %s59, 1
        %v6382 = vld [vmem:[%s6381] sm:$0x1]
        %v6384 = vlaneseq
        %v6385 = vshrl.u32 %v6384, 7
        %v6386 = vsub.s32 0, %v6385
        %v6387 = vrot.slane %v6382, %v6386
        %v6397 = vunpack.c.l.b16 %v6372
        %v6398 = vunpack.c.l.b16 %v6373
        %v6399 = vunpack.c.l.b16 %v6374
        %v6400 = vunpack.c.l.b16 %v6375
        %v6401 = vunpack.c.l.b16 %v6376
        %v6402 = vunpack.c.l.b16 %v6377
        %v6403 = vunpack.c.l.b16 %v6378
        %v6404 = vunpack.c.l.b16 %v6379
        %v6405 = vpack.c.b16 %v6398, %v6397
        %v6406 = vpack.c.b16 %v6400, %v6399
        %v6407 = vpack.c.b16 %v6402, %v6401
        %v6408 = vpack.c.b16 %v6404, %v6403
        %v6414 = vsel %vm1674, %v6380, 0
        %6416 = vmatprep.subr.bf16.mxu0 0
        %6417 = vmatpush1.bf16.msra.mxu0 %v6405
        %6418 = vmatprep.subr.bf16.mxu0 0
        %6419 = vmatpush1.bf16.msra.mxu0 %v6406
        %6420 = vmatprep.subr.bf16.mxu0 0
        %6421 = vmatpush1.bf16.msra.mxu0 %v6407
        %6422 = vmatprep.subr.bf16.mxu0 0
        %6423 = vmatpush1.bf16.msra.mxu0 %v6408
        %6424 = vmatprep.subr.bf16.mxu0 0
        %6425 = vmatpush1.bf16.msra.mxu0 0
        %6426 = vmatprep.subr.bf16.mxu0 0
        %6427 = vmatpush1.bf16.msra.mxu0 0
        %6428 = vmatprep.subr.bf16.mxu0 0
        %6429 = vmatpush1.bf16.msra.mxu0 0
        %6430 = vmatprep.subr.bf16.mxu0 0
        %6431 = vmatpush1.bf16.msra.mxu0 0
        %6432 = vmatprep.subr.bf16.mxu0 0
        %6433 = vmatpush1.bf16.msra.mxu0 0
        %6434 = vmatprep.subr.bf16.mxu0 0
        %6435 = vmatpush1.bf16.msra.mxu0 0
        %6436 = vmatprep.subr.bf16.mxu0 0
        %6437 = vmatpush1.bf16.msra.mxu0 0
        %6438 = vmatprep.subr.bf16.mxu0 0
        %6439 = vmatpush1.bf16.msra.mxu0 0
        %6440 = vmatprep.subr.bf16.mxu0 0
        %6441 = vmatpush1.bf16.msra.mxu0 0
        %6442 = vmatprep.subr.bf16.mxu0 0
        %6443 = vmatpush1.bf16.msra.mxu0 0
        %6444 = vmatprep.subr.bf16.mxu0 0
        %6445 = vmatpush1.bf16.msra.mxu0 0
        %6446 = vmatprep.subr.bf16.mxu0 0
        %6447 = vmatpush1.bf16.msra.mxu0 0
        %6448 = vmatprep.mubr.bf16.mxu0 0
        %6449 = vmatmul.mubr.bf16.gmra.mrb[0].mxu0 %v6414
        %v6450 = vpop.f32.mrb[0].mxu0
        %v6451 = vadd.f32 %v6387, %v6450
        %v6452 = vpop.f32.mrb[0].mxu0
        %v6453 = vpop.f32.mrb[0].mxu0
        %v6454 = vpop.f32.mrb[0].mxu0
        %6455 = vdwg.mxu0
        %v6456 = vmul.f32 %v6451, %v6451
        %v6457 = vmul.f32 %v6451, %v6456
        %v6458 = vmul.f32 %v6457, 0.044715
        %v6459 = vadd.f32 %v6451, %v6458
        %v6460 = vmul.f32 %v6459, 0.7978846
        %v6461 = vtanh.pop %v6460
        %v6462 = vadd.f32 %v6461, 1.0
        %v6463 = vmul.f32 %v6462, 0.5
        %v6464 = vmul.f32 %v6451, %v6463
        %s6465 = scalar_lea.vmem %s61, 32
        %v6466 = vld [vmem:[%s6465] sm:$0xf]
        %v6467 = vld [vmem:[%s6465 + $0x4] sm:$0xf]
        %v6468 = vld [vmem:[%s6465 + $0x8] sm:$0xf]
        %v6469 = vld [vmem:[%s6465 + $0xc] sm:$0xf]
        %v6470 = vld [vmem:[%s6465 + $0x10] sm:$0xf]
        %v6471 = vld [vmem:[%s6465 + $0x14] sm:$0xf]
        %v6472 = vld [vmem:[%s6465 + $0x18] sm:$0xf]
        %v6473 = vld [vmem:[%s6465 + $0x1c] sm:$0xf]
        %v6474 = vpack.c.bf16 %v6464, %v6464
        %v6483 = vunpack.c.l.b16 %v6466
        %v6484 = vunpack.c.l.b16 %v6467
        %v6485 = vunpack.c.l.b16 %v6468
        %v6486 = vunpack.c.l.b16 %v6469
        %v6487 = vunpack.c.l.b16 %v6470
        %v6488 = vunpack.c.l.b16 %v6471
        %v6489 = vunpack.c.l.b16 %v6472
        %v6490 = vunpack.c.l.b16 %v6473
        %v6491 = vpack.c.b16 %v6484, %v6483
        %v6492 = vpack.c.b16 %v6486, %v6485
        %v6493 = vpack.c.b16 %v6488, %v6487
        %v6494 = vpack.c.b16 %v6490, %v6489
        %v6500 = vsel %vm1674, %v6474, 0
        %6502 = vmatprep.subr.bf16.mxu0 0
        %6503 = vmatpush1.bf16.msra.mxu0 %v6491
        %6504 = vmatprep.subr.bf16.mxu0 0
        %6505 = vmatpush1.bf16.msra.mxu0 %v6492
        %6506 = vmatprep.subr.bf16.mxu0 0
        %6507 = vmatpush1.bf16.msra.mxu0 %v6493
        %6508 = vmatprep.subr.bf16.mxu0 0
        %6509 = vmatpush1.bf16.msra.mxu0 %v6494
        %6510 = vmatprep.subr.bf16.mxu0 0
        %6511 = vmatpush1.bf16.msra.mxu0 0
        %6512 = vmatprep.subr.bf16.mxu0 0
        %6513 = vmatpush1.bf16.msra.mxu0 0
        %6514 = vmatprep.subr.bf16.mxu0 0
        %6515 = vmatpush1.bf16.msra.mxu0 0
        %6516 = vmatprep.subr.bf16.mxu0 0
        %6517 = vmatpush1.bf16.msra.mxu0 0
        %6518 = vmatprep.subr.bf16.mxu0 0
        %6519 = vmatpush1.bf16.msra.mxu0 0
        %6520 = vmatprep.subr.bf16.mxu0 0
        %6521 = vmatpush1.bf16.msra.mxu0 0
        %6522 = vmatprep.subr.bf16.mxu0 0
        %6523 = vmatpush1.bf16.msra.mxu0 0
        %6524 = vmatprep.subr.bf16.mxu0 0
        %6525 = vmatpush1.bf16.msra.mxu0 0
        %6526 = vmatprep.subr.bf16.mxu0 0
        %6527 = vmatpush1.bf16.msra.mxu0 0
        %6528 = vmatprep.subr.bf16.mxu0 0
        %6529 = vmatpush1.bf16.msra.mxu0 0
        %6530 = vmatprep.subr.bf16.mxu0 0
        %6531 = vmatpush1.bf16.msra.mxu0 0
        %6532 = vmatprep.subr.bf16.mxu0 0
        %6533 = vmatpush1.bf16.msra.mxu0 0
        %6534 = vmatprep.mubr.bf16.mxu0 0
        %6535 = vmatmul.mubr.bf16.gmra.mrb[0].mxu0 %v6500
        %v6536 = vpop.f32.mrb[0].mxu0
        %v6537 = vadd.f32 0.0, %v6536
        %v6538 = vpop.f32.mrb[0].mxu0
        %v6539 = vpop.f32.mrb[0].mxu0
        %v6540 = vpop.f32.mrb[0].mxu0
        %6541 = vdwg.mxu0
        %v6542 = vadd.f32 %v6339, %v6537
        %s6543 = scalar_lea.vmem %s63, 1
        %v6544 = vld [vmem:[%s6543] sm:$0x1]
        %v6546 = vlaneseq
        %v6547 = vshrl.u32 %v6546, 7
        %v6548 = vsub.s32 0, %v6547
        %v6549 = vrot.slane %v6544, %v6548
        %v6551 = vadd.f32 %v6542, %v6549
        %v6552 = vld [vmem:[%s65] sm:$0x1]
        %v6553 = vld [vmem:[%s67] sm:$0x1]
        %v6554 = vsel %vm4767, %v6551, 0.0
        %6555 = vadd.xlane.f32.xlu0 %v6554
        %v6556 = vpop.xlane.xlu0 %6555
        %v6557 = vmul.f32 %v6556, %v1688
        %v6558 = vsub.f32 %v6551, %v6557
        %v6559 = vmul.f32 %v6558, %v6558
        %v6560 = vsel %vm4767, %v6559, 0.0
        %6561 = vadd.xlane.f32.xlu0 %v6560
        %v6562 = vpop.xlane.xlu0 %6561
        %v6563 = vmul.f32 %v6562, %v1688
        %v6564 = vadd.f32 %v6563, 1e-06
        %v6565 = vrsqrt.pop %v6564
        %v6566 = vmul.f32 %v6558, %v6565
        %v6568 = vlaneseq
        %v6569 = vshrl.u32 %v6568, 7
        %v6570 = vsub.s32 0, %v6569
        %v6571 = vrot.slane %v6552, %v6570
        %v6573 = vmul.f32 %v6566, %v6571
        %v6575 = vlaneseq
        %v6576 = vshrl.u32 %v6575, 7
        %v6577 = vsub.s32 0, %v6576
        %v6578 = vrot.slane %v6553, %v6577
        %v6580 = vadd.f32 %v6573, %v6578
        %v6581 = vsel %vm4767, %v6580, 0.0
        %v6582 = vrot.slane %v6581, 4
        %v6583 = vadd.f32 %v6581, %v6582
        %v6584 = vrot.slane %v6583, 2
        %v6585 = vadd.f32 %v6583, %v6584
        %v6586 = vrot.slane %v6585, 1
        %v6587 = vadd.f32 %v6585, %v6586
        %v6588 = vmul.f32 %v6587, 0.2
        %v6589 = vld [vmem:[%s69] sm:$0xf]
        %v6590 = vld [vmem:[%s69 + $0x4] sm:$0xf]
        %v6591 = vld [vmem:[%s69 + $0x8] sm:$0xf]
        %v6592 = vld [vmem:[%s69 + $0xc] sm:$0xf]
        %v6593 = vld [vmem:[%s69 + $0x10] sm:$0xf]
        %v6594 = vld [vmem:[%s69 + $0x14] sm:$0xf]
        %v6595 = vld [vmem:[%s69 + $0x18] sm:$0xf]
        %v6596 = vld [vmem:[%s69 + $0x1c] sm:$0xf]
        %v6597 = vpack.c.bf16 %v6588, %v6588
        %v6598 = vld [vmem:[%s71] sm:$0x1]
        %v6607 = vunpack.c.l.b16 %v6589
        %v6608 = vunpack.c.l.b16 %v6590
        %v6609 = vunpack.c.l.b16 %v6591
        %v6610 = vunpack.c.l.b16 %v6592
        %v6611 = vunpack.c.l.b16 %v6593
        %v6612 = vunpack.c.l.b16 %v6594
        %v6613 = vunpack.c.l.b16 %v6595
        %v6614 = vunpack.c.l.b16 %v6596
        %v6615 = vpack.c.b16 %v6608, %v6607
        %v6616 = vpack.c.b16 %v6610, %v6609
        %v6617 = vpack.c.b16 %v6612, %v6611
        %v6618 = vpack.c.b16 %v6614, %v6613
        %v6624 = vsel %vm1674, %v6597, 0
        %6626 = vmatprep.subr.bf16.mxu0 0
        %6627 = vmatpush1.bf16.msra.mxu0 %v6615
        %6628 = vmatprep.subr.bf16.mxu0 0
        %6629 = vmatpush1.bf16.msra.mxu0 %v6616
        %6630 = vmatprep.subr.bf16.mxu0 0
        %6631 = vmatpush1.bf16.msra.mxu0 %v6617
        %6632 = vmatprep.subr.bf16.mxu0 0
        %6633 = vmatpush1.bf16.msra.mxu0 %v6618
        %6634 = vmatprep.subr.bf16.mxu0 0
        %6635 = vmatpush1.bf16.msra.mxu0 0
        %6636 = vmatprep.subr.bf16.mxu0 0
        %6637 = vmatpush1.bf16.msra.mxu0 0
        %6638 = vmatprep.subr.bf16.mxu0 0
        %6639 = vmatpush1.bf16.msra.mxu0 0
        %6640 = vmatprep.subr.bf16.mxu0 0
        %6641 = vmatpush1.bf16.msra.mxu0 0
        %6642 = vmatprep.subr.bf16.mxu0 0
        %6643 = vmatpush1.bf16.msra.mxu0 0
        %6644 = vmatprep.subr.bf16.mxu0 0
        %6645 = vmatpush1.bf16.msra.mxu0 0
        %6646 = vmatprep.subr.bf16.mxu0 0
        %6647 = vmatpush1.bf16.msra.mxu0 0
        %6648 = vmatprep.subr.bf16.mxu0 0
        %6649 = vmatpush1.bf16.msra.mxu0 0
        %6650 = vmatprep.subr.bf16.mxu0 0
        %6651 = vmatpush1.bf16.msra.mxu0 0
        %6652 = vmatprep.subr.bf16.mxu0 0
        %6653 = vmatpush1.bf16.msra.mxu0 0
        %6654 = vmatprep.subr.bf16.mxu0 0
        %6655 = vmatpush1.bf16.msra.mxu0 0
        %6656 = vmatprep.subr.bf16.mxu0 0
        %6657 = vmatpush1.bf16.msra.mxu0 0
        %6658 = vmatprep.mubr.bf16.mxu0 0
        %6659 = vmatmul.mubr.bf16.gmra.mrb[0].mxu0 %v6624
        %v6660 = vpop.f32.mrb[0].mxu0
        %v6661 = vadd.f32 %v6598, %v6660
        %v6662 = vpop.f32.mrb[0].mxu0
        %v6663 = vpop.f32.mrb[0].mxu0
        %v6664 = vpop.f32.mrb[0].mxu0
        %6665 = vdwg.mxu0
        %vm6666 = vcmask 32768
        %6667 = vst.msk [vmem:[%s1090] sm:$0x1] %vm6666, %v6661
        %s6668 = sand.u32 %s856, 1
        %s6669 = scalar_lea.sflag [#allocation3], %s6668
        %s6670 = sand.u32 %s856, 1
        %s6671 = scalar_lea.vmem [#allocation2], %s6670
        // Predicated region
        $region165: #{multiscale_forward.1} parent=163 // pred_check
          %p6672 = pneg %p866
        $region166: #{multiscale_forward.1} parent=163 // pred_check_branch
          %6674 = sbr.rel (%p6672) target = $region168
        $region167: #{multiscale_forward.1} parent=163 // pred_region
          %s6676 = ssub.s32 16, 16
          %6677 = vsyncadd %s6669, %s6676
          %s6678 = smul.addr %s87, 16
          %s6679 = scalar_lea.hbm %s73, %s6678
          %s6681 = sshll.u32 %s6671, 4
          %s6682 = int_to_ptr.vmem [resolvable:$true] %s6681
          %6684 = dma.vmem_to_hbm [thread:$0]  %s6682, 16, %s6679, %s6669
        $region168: #{multiscale_forward.1} parent=163 // pred_fallthru
          _
      $region164: #{multiscale_forward.1} parent=5 // pred_fallthru
        _
      %p6685 = scmp.le.s32.totalorder 2, %s82
      // Predicated region
      $region169: #{multiscale_forward.1} parent=5 // pred_check
        %p6686 = pneg %p6685
      $region170: #{multiscale_forward.1} parent=5 // pred_check_branch
        %6688 = sbr.rel (%p6686) target = $region172
      $region171: #{multiscale_forward.1} parent=5 // pred_region
        %s6689 = ssub.s32 %s82, 2
        // Predicated region
        $region173: #{multiscale_forward.1} parent=171 // pred_check
          %p6690 = pneg %p872
        $region174: #{multiscale_forward.1} parent=171 // pred_check_branch
          %6692 = sbr.rel (%p6690) target = $region176
        $region175: #{multiscale_forward.1} parent=171 // pred_region
          %s6693 = sand.u32 %s857, 1
          %s6694 = scalar_lea.sflag [#allocation3], %s6693
          %s6695 = sand.u32 %s857, 1
          %s6696 = scalar_lea.vmem [#allocation2], %s6695
          %6697 = dma.done %s6694, 16
        $region176: #{multiscale_forward.1} parent=171 // pred_fallthru
          _
      $region172: #{multiscale_forward.1} parent=5 // pred_fallthru
        _
    $region6: #{multiscale_forward.1} parent=1 // loop_footer
      %s86 = sadd.s32 1, %s82
    $region7: #{multiscale_forward.1} parent=1 // loop_footer_branch
      %81 = sbr.rel target = $region3
    $region8: #{multiscale_forward.1} parent=1 // loop_exit
      _
    %6698 = vsyncpa [#allocation3], 1
    %s6699 = scalar_lea.sflag [#allocation3], 1
    %6700 = vsyncpa %s6699, 1

</llo_original>
